<compile_context>
chip_gen: v7x
topology: tpu7x:2x2x1
jax: 0.10.0
libtpu: 0.0.40
codegen_flags: <defaults>
</compile_context>

<pallas_src>
import functools
import math

import jax
import jax.numpy as jnp
from jax.experimental import pallas as pl
from jax.experimental.pallas import tpu as pltpu


# ---------------------------------------------------------------------------
# Shared math helpers (used both inside kernels and in the pure-JAX reference)
# ---------------------------------------------------------------------------
def _layer_norm(x, gamma, beta, eps=1e-5):
    mu = jnp.mean(x, axis=-1, keepdims=True)
    xc = x - mu
    var = jnp.mean(xc * xc, axis=-1, keepdims=True)
    return xc * jax.lax.rsqrt(var + eps) * gamma + beta


def _gelu(x):
    # TODO(synk): PyTorch nn.GELU() defaults to the exact erf formulation; the tanh
    # approximation is used (erf has no guaranteed Mosaic lowering; max dev ~1e-3).
    c = math.sqrt(2.0 / math.pi)
    return 0.5 * x * (1.0 + jnp.tanh(c * (x + 0.044715 * (x * x * x))))


def _unfold_patches(x, patch):
    """nn.Unfold(kernel=patch, stride=patch) + transpose(1, 2):
    (B, C, H, W) -> (B, L, C*patch*patch) with feature order (c, kh, kw)."""
    B, C, H, W = x.shape
    hb, wb = H // patch, W // patch
    x = x.reshape(B, C, hb, patch, wb, patch)
    x = x.transpose(0, 2, 4, 1, 3, 5)
    return x.reshape(B, hb * wb, C * patch * patch)


def _pick_batch_tile(batch, bytes_per_batch_elem, budget_bytes=4 << 20):
    """Largest divisor of `batch` whose activation tile stays under the budget.
    The budget keeps double-buffered in+out tiles well inside the 32 MiB scoped
    VMEM default and v7x's 64 MiB physical VMEM."""
    bt = 1
    for cand in range(1, batch + 1):
        if batch % cand == 0 and cand * bytes_per_batch_elem <= budget_bytes:
            bt = cand
    return bt


def _const_spec(shape):
    # Constant operand: same (only) block at every grid step -> stays VMEM-resident.
    n = len(shape)
    return pl.BlockSpec(shape, lambda b, n=n: (0,) * n)


# ---------------------------------------------------------------------------
# Kernel 1: fused patch-embedding matmul + cls-token prepend + pos-embed add
# ---------------------------------------------------------------------------
def _embed_kernel(xp_ref, w_ref, rowadd_ref, o_ref):
    # xp_ref:     (Bt, S, P)  patches; row 0 is zeros (placeholder for the cls row)
    # w_ref:      (P, E)      patch-embedding weight (transposed Linear weight)
    # rowadd_ref: (S, E)      row 0: cls_token + pos[0]; rows i>0: linear bias + pos[i]
    # o_ref:      (Bt, S, E)
    bt = xp_ref.shape[0]
    for b in range(bt):  # static unroll over the batch tile
        emb = jnp.dot(xp_ref[b], w_ref[...], preferred_element_type=jnp.float32)
        o_ref[b] = (emb + rowadd_ref[...]).astype(o_ref.dtype)


def _fused_patch_embed(patches0, w_t, rowadd, batch_tile):
    B, S, P = patches0.shape
    E = w_t.shape[1]
    return pl.pallas_call(
        _embed_kernel,
        out_shape=jax.ShapeDtypeStruct((B, S, E), patches0.dtype),
        grid_spec=pltpu.PrefetchScalarGridSpec(
            num_scalar_prefetch=0,
            grid=(B // batch_tile,),
            in_specs=[
                pl.BlockSpec((batch_tile, S, P), lambda b: (b, 0, 0)),
                _const_spec(w_t.shape),
                _const_spec(rowadd.shape),
            ],
            out_specs=pl.BlockSpec((batch_tile, S, E), lambda b: (b, 0, 0)),
        ),
        compiler_params=pltpu.CompilerParams(dimension_semantics=("parallel",)),
    )(patches0, w_t, rowadd)


# ---------------------------------------------------------------------------
# Kernel 2: one full TransformerEncoder block
# ---------------------------------------------------------------------------
def _encoder_kernel(x_ref, wq_ref, wk_ref, wv_ref, bq_ref, bk_ref, bv_ref,
                    woh_ref, bo_ref, ln1g_ref, ln1b_ref, ln2g_ref, ln2b_ref,
                    w1_ref, b1_ref, w2_ref, b2_ref, o_ref):
    bt, s, e = x_ref.shape
    H, _, dh = wq_ref.shape
    scale = 1.0 / math.sqrt(dh)

    for b in range(bt):                       # static unroll over the batch tile
        x2 = x_ref[b]                         # (S, E)

        # --- multi-head self-attention (dropout = identity at inference) ---
        xn = _layer_norm(x2, ln1g_ref[...], ln1b_ref[...])
        attn = jnp.zeros((s, e), jnp.float32)
        for h in range(H):                    # static unroll over heads
            q = jnp.dot(xn, wq_ref[h]) + bq_ref[h]          # (S, dh)
            k = jnp.dot(xn, wk_ref[h]) + bk_ref[h]
            v = jnp.dot(xn, wv_ref[h]) + bv_ref[h]
            sc = jnp.dot(q, k.T, preferred_element_type=jnp.float32) * scale
            sc = sc - jnp.max(sc, axis=-1, keepdims=True)
            pr = jnp.exp(sc)
            pr = pr / jnp.sum(pr, axis=-1, keepdims=True)
            oh = jnp.dot(pr, v)                              # (S, dh)
            attn = attn + jnp.dot(oh, woh_ref[h])            # (S, E)
        x2 = x2 + attn + bo_ref[...]

        # --- MLP ---
        xn2 = _layer_norm(x2, ln2g_ref[...], ln2b_ref[...])
        hdn = _gelu(jnp.dot(xn2, w1_ref[...]) + b1_ref[...])
        x2 = x2 + jnp.dot(hdn, w2_ref[...]) + b2_ref[...]

        o_ref[b] = x2.astype(o_ref.dtype)


def _encoder_layer(x, consts, batch_tile):
    B, S, E = x.shape
    return pl.pallas_call(
        _encoder_kernel,
        out_shape=jax.ShapeDtypeStruct((B, S, E), x.dtype),
        grid_spec=pltpu.PrefetchScalarGridSpec(
            num_scalar_prefetch=0,
            grid=(B // batch_tile,),
            in_specs=[pl.BlockSpec((batch_tile, S, E), lambda b: (b, 0, 0))]
            + [_const_spec(c.shape) for c in consts],
            out_specs=pl.BlockSpec((batch_tile, S, E), lambda b: (b, 0, 0)),
        ),
        compiler_params=pltpu.CompilerParams(dimension_semantics=("parallel",)),
        input_output_aliases={0: 0},          # in-place residual update
    )(x, *consts)


# ---------------------------------------------------------------------------
# Kernel 3: final LayerNorm on the cls row + classifier
# ---------------------------------------------------------------------------
def _head_kernel(x_ref, lng_ref, lnb_ref, wc_ref, bc_ref, o_ref):
    xn = _layer_norm(x_ref[...], lng_ref[...], lnb_ref[...])
    o_ref[...] = (jnp.dot(xn, wc_ref[...]) + bc_ref[...]).astype(o_ref.dtype)


def _head(x_cls, ln_g, ln_b, wc_t, bc, batch_tile):
    B, E = x_cls.shape
    C = wc_t.shape[1]
    return pl.pallas_call(
        _head_kernel,
        out_shape=jax.ShapeDtypeStruct((B, C), x_cls.dtype),
        grid_spec=pltpu.PrefetchScalarGridSpec(
            num_scalar_prefetch=0,
            grid=(B // batch_tile,),
            in_specs=[pl.BlockSpec((batch_tile, E), lambda b: (b, 0)),
                      _const_spec(ln_g.shape), _const_spec(ln_b.shape),
                      _const_spec(wc_t.shape), _const_spec(bc.shape)],
            out_specs=pl.BlockSpec((batch_tile, C), lambda b: (b, 0)),
        ),
        compiler_params=pltpu.CompilerParams(dimension_semantics=("parallel",)),
    )(x_cls, ln_g, ln_b, wc_t, bc)


# ---------------------------------------------------------------------------
# Full forward (Pallas) and pure-JAX reference
# ---------------------------------------------------------------------------
def vit_forward_pallas(x_img, params, *, patch_size, num_heads):
    dt = x_img.dtype
    B = x_img.shape[0]
    E, P = params["embed_w"].shape
    H = num_heads
    dh = E // H

    patches = _unfold_patches(x_img, patch_size)            # (B, L, P)
    L = patches.shape[1]
    S = L + 1

    # Row 0 is a zero placeholder; the per-row additive term turns it into
    # cls_token + pos[0]  (fuses cls concat + pos-embed add into the matmul epilogue).
    patches0 = jnp.concatenate([jnp.zeros((B, 1, P), dt), patches], axis=1)
    rowadd = jnp.concatenate(
        [params["cls_token"][0] + params["pos_embed"][0, :1],
         params["pos_embed"][0, 1:] + params["embed_b"][None, :]], axis=0)  # (S, E)

    batch_tile = _pick_batch_tile(B, S * E * jnp.dtype(dt).itemsize)

    x = _fused_patch_embed(patches0, params["embed_w"].T, rowadd, batch_tile)

    for lyr in params["layers"]:
        wq, wk, wv = jnp.split(lyr["in_proj_w"], 3, axis=0)
        bq, bk, bv = jnp.split(lyr["in_proj_b"], 3, axis=0)

        def _per_head_w(wt):  # (E_out, E_in) torch layout -> (H, E_in, dh)
            return jnp.moveaxis(wt.T.reshape(E, H, dh), 1, 0)

        def _per_head_b(bb):  # (E,) -> (H, 1, dh)
            return bb.reshape(H, 1, dh)

        consts = (
            _per_head_w(wq), _per_head_w(wk), _per_head_w(wv),
            _per_head_b(bq), _per_head_b(bk), _per_head_b(bv),
            lyr["out_proj_w"].T.reshape(H, dh, E),
            lyr["out_proj_b"][None, :],
            lyr["ln1_g"][None, :], lyr["ln1_b"][None, :],
            lyr["ln2_g"][None, :], lyr["ln2_b"][None, :],
            lyr["mlp_w1"].T, lyr["mlp_b1"][None, :],
            lyr["mlp_w2"].T, lyr["mlp_b2"][None, :],
        )
        x = _encoder_layer(x, consts, batch_tile)

    x_cls = x[:, 0, :]                                       # (B, E)
    return _head(x_cls, params["ln_g"][None, :], params["ln_b"][None, :],
                 params["cls_w"].T, params["cls_b"][None, :], batch_tile)


def vit_forward_reference(x_img, params, *, patch_size, num_heads):
    B = x_img.shape[0]
    E = params["embed_w"].shape[0]
    H = num_heads
    dh = E // H

    patches = _unfold_patches(x_img, patch_size)
    x = patches @ params["embed_w"].T + params["embed_b"]
    cls = jnp.broadcast_to(params["cls_token"], (B, 1, E))
    x = jnp.concatenate([cls, x], axis=1)
    x = x + params["pos_embed"]
    S = x.shape[1]

    for lyr in params["layers"]:
        xn = _layer_norm(x, lyr["ln1_g"], lyr["ln1_b"])
        qkv = xn @ lyr["in_proj_w"].T + lyr["in_proj_b"]
        q, k, v = jnp.split(qkv, 3, axis=-1)

        def _heads(t):
            return t.reshape(B, S, H, dh).transpose(0, 2, 1, 3)

        q, k, v = _heads(q), _heads(k), _heads(v)
        sc = jnp.einsum("bhqd,bhkd->bhqk", q, k) / math.sqrt(dh)
        pr = jax.nn.softmax(sc, axis=-1)
        oo = jnp.einsum("bhqk,bhkd->bhqd", pr, v)
        oo = oo.transpose(0, 2, 1, 3).reshape(B, S, E)
        x = (oo @ lyr["out_proj_w"].T + lyr["out_proj_b"]) + x

        xn = _layer_norm(x, lyr["ln2_g"], lyr["ln2_b"])
        h1 = _gelu(xn @ lyr["mlp_w1"].T + lyr["mlp_b1"])
        x = (h1 @ lyr["mlp_w2"].T + lyr["mlp_b2"]) + x

    x0 = _layer_norm(x[:, 0, :], params["ln_g"], params["ln_b"])
    return x0 @ params["cls_w"].T + params["cls_b"]


def init_vit_params(key, *, img_size, in_channels, patch_size, embed_dim,
                    num_encoders, num_heads, hidden_dim, num_classes):
    P = in_channels * patch_size * patch_size
    S = (img_size // patch_size) ** 2 + 1
    E = embed_dim
    keys = jax.random.split(key, 8 + num_encoders)

    def nrm(k, shape, scale):
        return (scale * jax.random.normal(k, shape)).astype(jnp.float32)

    params = {
        "embed_w": nrm(keys[0], (E, P), 0.08),
        "embed_b": nrm(keys[1], (E,), 0.05),
        # PyTorch inits cls_token / pos_embed to zeros; random values are used here
        # so the fused adds are actually exercised by the correctness check.
        "cls_token": nrm(keys[2], (1, 1, E), 0.1),
        "pos_embed": nrm(keys[3], (1, S, E), 0.1),
        "ln_g": 1.0 + nrm(keys[4], (E,), 0.05),
        "ln_b": nrm(keys[5], (E,), 0.05),
        "cls_w": nrm(keys[6], (num_classes, E), 0.08),
        "cls_b": nrm(keys[7], (num_classes,), 0.05),
        "layers": [],
    }
    for i in range(num_encoders):
        lk = jax.random.split(keys[8 + i], 12)
        params["layers"].append({
            "ln1_g": 1.0 + nrm(lk[0], (E,), 0.05),
            "ln1_b": nrm(lk[1], (E,), 0.05),
            "in_proj_w": nrm(lk[2], (3 * E, E), 1.0 / math.sqrt(E)),
            "in_proj_b": nrm(lk[3], (3 * E,), 0.02),
            "out_proj_w": nrm(lk[4], (E, E), 1.0 / math.sqrt(E)),
            "out_proj_b": nrm(lk[5], (E,), 0.02),
            "ln2_g": 1.0 + nrm(lk[6], (E,), 0.05),
            "ln2_b": nrm(lk[7], (E,), 0.05),
            "mlp_w1": nrm(lk[8], (hidden_dim, E), 1.0 / math.sqrt(E)),
            "mlp_b1": nrm(lk[9], (hidden_dim,), 0.02),
            "mlp_w2": nrm(lk[10], (E, hidden_dim), 1.0 / math.sqrt(hidden_dim)),
            "mlp_b2": nrm(lk[11], (E,), 0.02),
        })
    return params


if __name__ == "__main__":
    # Small config; embed_dim is a multiple of 128 so every block is lane-dense.
    img_size = 16
    in_channels = 4
    patch_size = 4
    embed_dim = 128
    num_encoders = 2
    num_heads = 4
    hidden_dim = 256
    dropout = 0.0        # inference: all Dropout layers are identity
    num_classes = 10
    batch = 2

    key = jax.random.PRNGKey(0)
    kp, kx = jax.random.split(key)
    params = init_vit_params(
        kp, img_size=img_size, in_channels=in_channels, patch_size=patch_size,
        embed_dim=embed_dim, num_encoders=num_encoders, num_heads=num_heads,
        hidden_dim=hidden_dim, num_classes=num_classes)
    x_img = jax.random.normal(
        kx, (batch, in_channels, img_size, img_size), dtype=jnp.float32)

    fwd = jax.jit(functools.partial(
        vit_forward_pallas, patch_size=patch_size, num_heads=num_heads))
    out = jax.block_until_ready(fwd(x_img, params))

    ref = jax.block_until_ready(
        vit_forward_reference(x_img, params, patch_size=patch_size,
                              num_heads=num_heads))

    assert out.shape == (batch, num_classes)
    assert out.dtype == jnp.float32
    # Both paths use TPU-default (bf16-pass) matmul precision; tolerance sized for that.
    assert jnp.allclose(out, ref, atol=5e-2, rtol=5e-2), (
        float(jnp.max(jnp.abs(out - ref))))
    print("KERNEL_OK")
</pallas_src>

<mosaic_0001>
module attributes {stable_mosaic.version = 11 : i64} {
  func.func @_embed_kernel(%arg0: i32, %arg1: memref<2x17x64xf32, #tpu.memory_space<vmem>>, %arg2: memref<64x128xf32, #tpu.memory_space<vmem>>, %arg3: memref<17x128xf32, #tpu.memory_space<vmem>>, %arg4: memref<2x17x128xf32, #tpu.memory_space<vmem>>) attributes {dimension_semantics = [#tpu.dimension_semantics<parallel>], iteration_bounds = array<i64: 1>, scalar_prefetch = 0 : i64, scratch_operands = 0 : i64, tpu.core_type = #tpu.core_type<tc>, window_params = [{transform_indices = @transform_0, window_bounds = array<i64: 2, 17, 64>}, {pipeline_mode = #tpu.pipeline_mode<synchronous>, transform_indices = @transform_1, window_bounds = array<i64: 64, 128>}, {pipeline_mode = #tpu.pipeline_mode<synchronous>, transform_indices = @transform_2, window_bounds = array<i64: 17, 128>}, {transform_indices = @transform_3, window_bounds = array<i64: 2, 17, 128>}]} {
    %c0 = arith.constant 0 : index
    %c0_0 = arith.constant 0 : index
    %c0_1 = arith.constant 0 : index
    %0 = vector.load %arg1[%c0, %c0_0, %c0_1] : memref<2x17x64xf32, #tpu.memory_space<vmem>>, vector<1x17x64xf32>
    %1 = vector.shape_cast %0 : vector<1x17x64xf32> to vector<17x64xf32>
    %c0_2 = arith.constant 0 : index
    %c0_3 = arith.constant 0 : index
    %2 = vector.load %arg2[%c0_2, %c0_3] : memref<64x128xf32, #tpu.memory_space<vmem>>, vector<64x128xf32>
    %cst = arith.constant dense<0.000000e+00> : vector<17x128xf32>
    %3 = tpu.matmul %1, %2, %cst {dimension_numbers = #tpu.dot_dimension_numbers<[1], [0], [0], [1], [0, 0, 1, 1], [], []>} : vector<17x64xf32>, vector<64x128xf32>, vector<17x128xf32> -> vector<17x128xf32>
    %c0_4 = arith.constant 0 : index
    %c0_5 = arith.constant 0 : index
    %4 = vector.load %arg3[%c0_4, %c0_5] : memref<17x128xf32, #tpu.memory_space<vmem>>, vector<17x128xf32>
    %5 = arith.addf %3, %4 : vector<17x128xf32>
    %c0_6 = arith.constant 0 : index
    %c0_7 = arith.constant 0 : index
    %c0_8 = arith.constant 0 : index
    %6 = vector.load %arg4[%c0_6, %c0_7, %c0_8] : memref<2x17x128xf32, #tpu.memory_space<vmem>>, vector<1x17x128xf32>
    %7 = vector.shape_cast %6 : vector<1x17x128xf32> to vector<17x128xf32>
    %8 = vector.shape_cast %5 : vector<17x128xf32> to vector<1x17x128xf32>
    tpu.vector_store %arg4[%c0_6, %c0_7, %c0_8], %8 {strides = array<i32>} : memref<2x17x128xf32, #tpu.memory_space<vmem>>, vector<1x17x128xf32>,
    %c1 = arith.constant 1 : index
    %c0_9 = arith.constant 0 : index
    %c0_10 = arith.constant 0 : index
    %9 = vector.load %arg1[%c1, %c0_9, %c0_10] : memref<2x17x64xf32, #tpu.memory_space<vmem>>, vector<1x17x64xf32>
    %10 = vector.shape_cast %9 : vector<1x17x64xf32> to vector<17x64xf32>
    %c0_11 = arith.constant 0 : index
    %c0_12 = arith.constant 0 : index
    %11 = vector.load %arg2[%c0_11, %c0_12] : memref<64x128xf32, #tpu.memory_space<vmem>>, vector<64x128xf32>
    %cst_13 = arith.constant dense<0.000000e+00> : vector<17x128xf32>
    %12 = tpu.matmul %10, %11, %cst_13 {dimension_numbers = #tpu.dot_dimension_numbers<[1], [0], [0], [1], [0, 0, 1, 1], [], []>} : vector<17x64xf32>, vector<64x128xf32>, vector<17x128xf32> -> vector<17x128xf32>
    %c0_14 = arith.constant 0 : index
    %c0_15 = arith.constant 0 : index
    %13 = vector.load %arg3[%c0_14, %c0_15] : memref<17x128xf32, #tpu.memory_space<vmem>>, vector<17x128xf32>
    %14 = arith.addf %12, %13 : vector<17x128xf32>
    %c1_16 = arith.constant 1 : index
    %c0_17 = arith.constant 0 : index
    %c0_18 = arith.constant 0 : index
    %15 = vector.load %arg4[%c1_16, %c0_17, %c0_18] : memref<2x17x128xf32, #tpu.memory_space<vmem>>, vector<1x17x128xf32>
    %16 = vector.shape_cast %15 : vector<1x17x128xf32> to vector<17x128xf32>
    %17 = vector.shape_cast %14 : vector<17x128xf32> to vector<1x17x128xf32>
    tpu.vector_store %arg4[%c1_16, %c0_17, %c0_18], %17 {strides = array<i32>} : memref<2x17x128xf32, #tpu.memory_space<vmem>>, vector<1x17x128xf32>,
    return
  }
  func.func @transform_0(%arg0: i32) -> (i32, i32, i32) {
    %c0_i32 = arith.constant 0 : i32
    %c0_i32_0 = arith.constant 0 : i32
    %c0_i32_1 = arith.constant 0 : i32
    return %arg0, %c0_i32, %c0_i32_0 : i32, i32, i32
  }
  func.func @transform_1(%arg0: i32) -> (i32, i32) {
    %c0_i32 = arith.constant 0 : i32
    %c0_i32_0 = arith.constant 0 : i32
    %c0_i32_1 = arith.constant 0 : i32
    return %c0_i32, %c0_i32_0 : i32, i32
  }
  func.func @transform_2(%arg0: i32) -> (i32, i32) {
    %c0_i32 = arith.constant 0 : i32
    %c0_i32_0 = arith.constant 0 : i32
    %c0_i32_1 = arith.constant 0 : i32
    return %c0_i32, %c0_i32_0 : i32, i32
  }
  func.func @transform_3(%arg0: i32) -> (i32, i32, i32) {
    %c0_i32 = arith.constant 0 : i32
    %c0_i32_0 = arith.constant 0 : i32
    %c0_i32_1 = arith.constant 0 : i32
    return %arg0, %c0_i32, %c0_i32_0 : i32, i32, i32
  }
}

module attributes {stable_mosaic.version = 11 : i64} {
  func.func @_head_kernel(%arg0: i32, %arg1: memref<2x128xf32, #tpu.memory_space<vmem>>, %arg2: memref<1x128xf32, #tpu.memory_space<vmem>>, %arg3: memref<1x128xf32, #tpu.memory_space<vmem>>, %arg4: memref<128x10xf32, #tpu.memory_space<vmem>>, %arg5: memref<1x10xf32, #tpu.memory_space<vmem>>, %arg6: memref<2x10xf32, #tpu.memory_space<vmem>>) attributes {dimension_semantics = [#tpu.dimension_semantics<parallel>], iteration_bounds = array<i64: 1>, scalar_prefetch = 0 : i64, scratch_operands = 0 : i64, tpu.core_type = #tpu.core_type<tc>, window_params = [{transform_indices = @transform_0, window_bounds = array<i64: 2, 128>}, {pipeline_mode = #tpu.pipeline_mode<synchronous>, transform_indices = @transform_1, window_bounds = array<i64: 1, 128>}, {pipeline_mode = #tpu.pipeline_mode<synchronous>, transform_indices = @transform_2, window_bounds = array<i64: 1, 128>}, {pipeline_mode = #tpu.pipeline_mode<synchronous>, transform_indices = @transform_3, window_bounds = array<i64: 128, 10>}, {pipeline_mode = #tpu.pipeline_mode<synchronous>, transform_indices = @transform_4, window_bounds = array<i64: 1, 10>}, {transform_indices = @transform_5, window_bounds = array<i64: 2, 10>}]} {
    %c0 = arith.constant 0 : index
    %c0_0 = arith.constant 0 : index
    %0 = vector.load %arg1[%c0, %c0_0] : memref<2x128xf32, #tpu.memory_space<vmem>>, vector<2x128xf32>
    %c0_1 = arith.constant 0 : index
    %c0_2 = arith.constant 0 : index
    %1 = vector.load %arg2[%c0_1, %c0_2] : memref<1x128xf32, #tpu.memory_space<vmem>>, vector<1x128xf32>
    %c0_3 = arith.constant 0 : index
    %c0_4 = arith.constant 0 : index
    %2 = vector.load %arg3[%c0_3, %c0_4] : memref<1x128xf32, #tpu.memory_space<vmem>>, vector<1x128xf32>
    %cst = arith.constant dense<0.000000e+00> : vector<2xf32>
    %3 = vector.multi_reduction <add>, %0, %cst [1] : vector<2x128xf32> to vector<2xf32>
    %4 = vector.shape_cast %3 : vector<2xf32> to vector<2x1xf32>
    %cst_5 = arith.constant 1.280000e+02 : f32
    %5 = vector.broadcast %cst_5 : f32 to vector<2x1xf32>
    %6 = arith.divf %4, %5 : vector<2x1xf32>
    %7 = vector.broadcast %6 : vector<2x1xf32> to vector<2x128xf32>
    %8 = arith.subf %0, %7 : vector<2x128xf32>
    %9 = arith.mulf %8, %8 : vector<2x128xf32>
    %cst_6 = arith.constant dense<0.000000e+00> : vector<2xf32>
    %10 = vector.multi_reduction <add>, %9, %cst_6 [1] : vector<2x128xf32> to vector<2xf32>
    %11 = vector.shape_cast %10 : vector<2xf32> to vector<2x1xf32>
    %cst_7 = arith.constant 1.280000e+02 : f32
    %12 = vector.broadcast %cst_7 : f32 to vector<2x1xf32>
    %13 = arith.divf %11, %12 : vector<2x1xf32>
    %cst_8 = arith.constant 9.99999974E-6 : f32
    %14 = vector.broadcast %cst_8 : f32 to vector<2x1xf32>
    %15 = arith.addf %13, %14 : vector<2x1xf32>
    %16 = math.rsqrt %15 : vector<2x1xf32>
    %17 = vector.broadcast %16 : vector<2x1xf32> to vector<2x128xf32>
    %18 = arith.mulf %8, %17 : vector<2x128xf32>
    %19 = vector.broadcast %1 : vector<1x128xf32> to vector<2x128xf32>
    %20 = arith.mulf %18, %19 : vector<2x128xf32>
    %21 = vector.broadcast %2 : vector<1x128xf32> to vector<2x128xf32>
    %22 = arith.addf %20, %21 : vector<2x128xf32>
    %c0_9 = arith.constant 0 : index
    %c0_10 = arith.constant 0 : index
    %23 = vector.load %arg4[%c0_9, %c0_10] : memref<128x10xf32, #tpu.memory_space<vmem>>, vector<128x10xf32>
    %cst_11 = arith.constant dense<0.000000e+00> : vector<2x10xf32>
    %24 = tpu.matmul %22, %23, %cst_11 {dimension_numbers = #tpu.dot_dimension_numbers<[1], [0], [0], [1], [0, 0, 1, 1], [], []>} : vector<2x128xf32>, vector<128x10xf32>, vector<2x10xf32> -> vector<2x10xf32>
    %c0_12 = arith.constant 0 : index
    %c0_13 = arith.constant 0 : index
    %25 = vector.load %arg5[%c0_12, %c0_13] : memref<1x10xf32, #tpu.memory_space<vmem>>, vector<1x10xf32>
    %26 = vector.broadcast %25 : vector<1x10xf32> to vector<2x10xf32>
    %27 = arith.addf %24, %26 : vector<2x10xf32>
    %c0_14 = arith.constant 0 : index
    %c0_15 = arith.constant 0 : index
    %28 = vector.load %arg6[%c0_14, %c0_15] : memref<2x10xf32, #tpu.memory_space<vmem>>, vector<2x10xf32>
    tpu.vector_store %arg6[%c0_14, %c0_15], %27 {strides = array<i32>} : memref<2x10xf32, #tpu.memory_space<vmem>>, vector<2x10xf32>,
    return
  }
  func.func @transform_0(%arg0: i32) -> (i32, i32) {
    %c0_i32 = arith.constant 0 : i32
    %c0_i32_0 = arith.constant 0 : i32
    return %arg0, %c0_i32 : i32, i32
  }
  func.func @transform_1(%arg0: i32) -> (i32, i32) {
    %c0_i32 = arith.constant 0 : i32
    %c0_i32_0 = arith.constant 0 : i32
    %c0_i32_1 = arith.constant 0 : i32
    return %c0_i32, %c0_i32_0 : i32, i32
  }
  func.func @transform_2(%arg0: i32) -> (i32, i32) {
    %c0_i32 = arith.constant 0 : i32
    %c0_i32_0 = arith.constant 0 : i32
    %c0_i32_1 = arith.constant 0 : i32
    return %c0_i32, %c0_i32_0 : i32, i32
  }
  func.func @transform_3(%arg0: i32) -> (i32, i32) {
    %c0_i32 = arith.constant 0 : i32
    %c0_i32_0 = arith.constant 0 : i32
    %c0_i32_1 = arith.constant 0 : i32
    return %c0_i32, %c0_i32_0 : i32, i32
  }
  func.func @transform_4(%arg0: i32) -> (i32, i32) {
    %c0_i32 = arith.constant 0 : i32
    %c0_i32_0 = arith.constant 0 : i32
    %c0_i32_1 = arith.constant 0 : i32
    return %c0_i32, %c0_i32_0 : i32, i32
  }
  func.func @transform_5(%arg0: i32) -> (i32, i32) {
    %c0_i32 = arith.constant 0 : i32
    %c0_i32_0 = arith.constant 0 : i32
    return %arg0, %c0_i32 : i32, i32
  }
}

module attributes {stable_mosaic.version = 11 : i64} {
  func.func @_encoder_kernel(%arg0: i32, %arg1: memref<2x17x128xf32, #tpu.memory_space<vmem>>, %arg2: memref<4x128x32xf32, #tpu.memory_space<vmem>>, %arg3: memref<4x128x32xf32, #tpu.memory_space<vmem>>, %arg4: memref<4x128x32xf32, #tpu.memory_space<vmem>>, %arg5: memref<4x1x32xf32, #tpu.memory_space<vmem>>, %arg6: memref<4x1x32xf32, #tpu.memory_space<vmem>>, %arg7: memref<4x1x32xf32, #tpu.memory_space<vmem>>, %arg8: memref<4x32x128xf32, #tpu.memory_space<vmem>>, %arg9: memref<1x128xf32, #tpu.memory_space<vmem>>, %arg10: memref<1x128xf32, #tpu.memory_space<vmem>>, %arg11: memref<1x128xf32, #tpu.memory_space<vmem>>, %arg12: memref<1x128xf32, #tpu.memory_space<vmem>>, %arg13: memref<1x128xf32, #tpu.memory_space<vmem>>, %arg14: memref<128x256xf32, #tpu.memory_space<vmem>>, %arg15: memref<1x256xf32, #tpu.memory_space<vmem>>, %arg16: memref<256x128xf32, #tpu.memory_space<vmem>>, %arg17: memref<1x128xf32, #tpu.memory_space<vmem>>, %arg18: memref<2x17x128xf32, #tpu.memory_space<vmem>>) attributes {dimension_semantics = [#tpu.dimension_semantics<parallel>], iteration_bounds = array<i64: 1>, scalar_prefetch = 0 : i64, scratch_operands = 0 : i64, tpu.core_type = #tpu.core_type<tc>, window_params = [{transform_indices = @transform_0, window_bounds = array<i64: 2, 17, 128>}, {pipeline_mode = #tpu.pipeline_mode<synchronous>, transform_indices = @transform_1, window_bounds = array<i64: 4, 128, 32>}, {pipeline_mode = #tpu.pipeline_mode<synchronous>, transform_indices = @transform_2, window_bounds = array<i64: 4, 128, 32>}, {pipeline_mode = #tpu.pipeline_mode<synchronous>, transform_indices = @transform_3, window_bounds = array<i64: 4, 128, 32>}, {pipeline_mode = #tpu.pipeline_mode<synchronous>, transform_indices = @transform_4, window_bounds = array<i64: 4, 1, 32>}, {pipeline_mode = #tpu.pipeline_mode<synchronous>, transform_indices = @transform_5, window_bounds = array<i64: 4, 1, 32>}, {pipeline_mode = #tpu.pipeline_mode<synchronous>, transform_indices = @transform_6, window_bounds = array<i64: 4, 1, 32>}, {pipeline_mode = #tpu.pipeline_mode<synchronous>, transform_indices = @transform_7, window_bounds = array<i64: 4, 32, 128>}, {pipeline_mode = #tpu.pipeline_mode<synchronous>, transform_indices = @transform_8, window_bounds = array<i64: 1, 128>}, {pipeline_mode = #tpu.pipeline_mode<synchronous>, transform_indices = @transform_9, window_bounds = array<i64: 1, 128>}, {pipeline_mode = #tpu.pipeline_mode<synchronous>, transform_indices = @transform_10, window_bounds = array<i64: 1, 128>}, {pipeline_mode = #tpu.pipeline_mode<synchronous>, transform_indices = @transform_11, window_bounds = array<i64: 1, 128>}, {pipeline_mode = #tpu.pipeline_mode<synchronous>, transform_indices = @transform_12, window_bounds = array<i64: 1, 128>}, {pipeline_mode = #tpu.pipeline_mode<synchronous>, transform_indices = @transform_13, window_bounds = array<i64: 128, 256>}, {pipeline_mode = #tpu.pipeline_mode<synchronous>, transform_indices = @transform_14, window_bounds = array<i64: 1, 256>}, {pipeline_mode = #tpu.pipeline_mode<synchronous>, transform_indices = @transform_15, window_bounds = array<i64: 256, 128>}, {pipeline_mode = #tpu.pipeline_mode<synchronous>, transform_indices = @transform_16, window_bounds = array<i64: 1, 128>}, {transform_indices = @transform_17, window_bounds = array<i64: 2, 17, 128>}]} {
    %c0 = arith.constant 0 : index
    %c0_0 = arith.constant 0 : index
    %c0_1 = arith.constant 0 : index
    %0 = vector.load %arg1[%c0, %c0_0, %c0_1] : memref<2x17x128xf32, #tpu.memory_space<vmem>>, vector<1x17x128xf32>
    %1 = vector.shape_cast %0 : vector<1x17x128xf32> to vector<17x128xf32>
    %c0_2 = arith.constant 0 : index
    %c0_3 = arith.constant 0 : index
    %2 = vector.load %arg10[%c0_2, %c0_3] : memref<1x128xf32, #tpu.memory_space<vmem>>, vector<1x128xf32>
    %c0_4 = arith.constant 0 : index
    %c0_5 = arith.constant 0 : index
    %3 = vector.load %arg11[%c0_4, %c0_5] : memref<1x128xf32, #tpu.memory_space<vmem>>, vector<1x128xf32>
    %cst = arith.constant dense<0.000000e+00> : vector<17xf32>
    %4 = vector.multi_reduction <add>, %1, %cst [1] : vector<17x128xf32> to vector<17xf32>
    %5 = vector.shape_cast %4 : vector<17xf32> to vector<17x1xf32>
    %cst_6 = arith.constant 1.280000e+02 : f32
    %6 = vector.broadcast %cst_6 : f32 to vector<17x1xf32>
    %7 = arith.divf %5, %6 : vector<17x1xf32>
    %8 = vector.broadcast %7 : vector<17x1xf32> to vector<17x128xf32>
    %9 = arith.subf %1, %8 : vector<17x128xf32>
    %10 = arith.mulf %9, %9 : vector<17x128xf32>
    %cst_7 = arith.constant dense<0.000000e+00> : vector<17xf32>
    %11 = vector.multi_reduction <add>, %10, %cst_7 [1] : vector<17x128xf32> to vector<17xf32>
    %12 = vector.shape_cast %11 : vector<17xf32> to vector<17x1xf32>
    %cst_8 = arith.constant 1.280000e+02 : f32
    %13 = vector.broadcast %cst_8 : f32 to vector<17x1xf32>
    %14 = arith.divf %12, %13 : vector<17x1xf32>
    %cst_9 = arith.constant 9.99999974E-6 : f32
    %15 = vector.broadcast %cst_9 : f32 to vector<17x1xf32>
    %16 = arith.addf %14, %15 : vector<17x1xf32>
    %17 = math.rsqrt %16 : vector<17x1xf32>
    %18 = vector.broadcast %17 : vector<17x1xf32> to vector<17x128xf32>
    %19 = arith.mulf %9, %18 : vector<17x128xf32>
    %20 = vector.broadcast %2 : vector<1x128xf32> to vector<17x128xf32>
    %21 = arith.mulf %19, %20 : vector<17x128xf32>
    %22 = vector.broadcast %3 : vector<1x128xf32> to vector<17x128xf32>
    %23 = arith.addf %21, %22 : vector<17x128xf32>
    %cst_10 = arith.constant 0.000000e+00 : f32
    %24 = vector.broadcast %cst_10 : f32 to vector<17x128xf32>
    %c0_11 = arith.constant 0 : index
    %c0_12 = arith.constant 0 : index
    %c0_13 = arith.constant 0 : index
    %25 = vector.load %arg2[%c0_11, %c0_12, %c0_13] : memref<4x128x32xf32, #tpu.memory_space<vmem>>, vector<1x128x32xf32>
    %26 = vector.shape_cast %25 : vector<1x128x32xf32> to vector<128x32xf32>
    %cst_14 = arith.constant dense<0.000000e+00> : vector<17x32xf32>
    %27 = tpu.matmul %23, %26, %cst_14 {dimension_numbers = #tpu.dot_dimension_numbers<[1], [0], [0], [1], [0, 0, 1, 1], [], []>} : vector<17x128xf32>, vector<128x32xf32>, vector<17x32xf32> -> vector<17x32xf32>
    %c0_15 = arith.constant 0 : index
    %c0_16 = arith.constant 0 : index
    %c0_17 = arith.constant 0 : index
    %28 = vector.load %arg5[%c0_15, %c0_16, %c0_17] : memref<4x1x32xf32, #tpu.memory_space<vmem>>, vector<1x1x32xf32>
    %29 = vector.shape_cast %28 : vector<1x1x32xf32> to vector<1x32xf32>
    %30 = vector.broadcast %29 : vector<1x32xf32> to vector<17x32xf32>
    %31 = arith.addf %27, %30 : vector<17x32xf32>
    %c0_18 = arith.constant 0 : index
    %c0_19 = arith.constant 0 : index
    %c0_20 = arith.constant 0 : index
    %32 = vector.load %arg3[%c0_18, %c0_19, %c0_20] : memref<4x128x32xf32, #tpu.memory_space<vmem>>, vector<1x128x32xf32>
    %33 = vector.shape_cast %32 : vector<1x128x32xf32> to vector<128x32xf32>
    %cst_21 = arith.constant dense<0.000000e+00> : vector<17x32xf32>
    %34 = tpu.matmul %23, %33, %cst_21 {dimension_numbers = #tpu.dot_dimension_numbers<[1], [0], [0], [1], [0, 0, 1, 1], [], []>} : vector<17x128xf32>, vector<128x32xf32>, vector<17x32xf32> -> vector<17x32xf32>
    %c0_22 = arith.constant 0 : index
    %c0_23 = arith.constant 0 : index
    %c0_24 = arith.constant 0 : index
    %35 = vector.load %arg6[%c0_22, %c0_23, %c0_24] : memref<4x1x32xf32, #tpu.memory_space<vmem>>, vector<1x1x32xf32>
    %36 = vector.shape_cast %35 : vector<1x1x32xf32> to vector<1x32xf32>
    %37 = vector.broadcast %36 : vector<1x32xf32> to vector<17x32xf32>
    %38 = arith.addf %34, %37 : vector<17x32xf32>
    %c0_25 = arith.constant 0 : index
    %c0_26 = arith.constant 0 : index
    %c0_27 = arith.constant 0 : index
    %39 = vector.load %arg4[%c0_25, %c0_26, %c0_27] : memref<4x128x32xf32, #tpu.memory_space<vmem>>, vector<1x128x32xf32>
    %40 = vector.shape_cast %39 : vector<1x128x32xf32> to vector<128x32xf32>
    %cst_28 = arith.constant dense<0.000000e+00> : vector<17x32xf32>
    %41 = tpu.matmul %23, %40, %cst_28 {dimension_numbers = #tpu.dot_dimension_numbers<[1], [0], [0], [1], [0, 0, 1, 1], [], []>} : vector<17x128xf32>, vector<128x32xf32>, vector<17x32xf32> -> vector<17x32xf32>
    %c0_29 = arith.constant 0 : index
    %c0_30 = arith.constant 0 : index
    %c0_31 = arith.constant 0 : index
    %42 = vector.load %arg7[%c0_29, %c0_30, %c0_31] : memref<4x1x32xf32, #tpu.memory_space<vmem>>, vector<1x1x32xf32>
    %43 = vector.shape_cast %42 : vector<1x1x32xf32> to vector<1x32xf32>
    %44 = vector.broadcast %43 : vector<1x32xf32> to vector<17x32xf32>
    %45 = arith.addf %41, %44 : vector<17x32xf32>
    %46 = tpu.transpose %38, [1, 0] : vector<17x32xf32> -> vector<32x17xf32>
    %cst_32 = arith.constant dense<0.000000e+00> : vector<17x17xf32>
    %47 = tpu.matmul %31, %46, %cst_32 {dimension_numbers = #tpu.dot_dimension_numbers<[1], [0], [0], [1], [0, 0, 1, 1], [], []>} : vector<17x32xf32>, vector<32x17xf32>, vector<17x17xf32> -> vector<17x17xf32>
    %cst_33 = arith.constant 0.176776692 : f32
    %48 = vector.broadcast %cst_33 : f32 to vector<17x17xf32>
    %49 = arith.mulf %47, %48 : vector<17x17xf32>
    %cst_34 = arith.constant dense<0xFF800000> : vector<17xf32>
    %50 = vector.multi_reduction <maximumf>, %49, %cst_34 [1] : vector<17x17xf32> to vector<17xf32>
    %51 = vector.shape_cast %50 : vector<17xf32> to vector<17x1xf32>
    %52 = vector.broadcast %51 : vector<17x1xf32> to vector<17x17xf32>
    %53 = arith.subf %49, %52 : vector<17x17xf32>
    %54 = math.exp %53 : vector<17x17xf32>
    %cst_35 = arith.constant dense<0.000000e+00> : vector<17xf32>
    %55 = vector.multi_reduction <add>, %54, %cst_35 [1] : vector<17x17xf32> to vector<17xf32>
    %56 = vector.shape_cast %55 : vector<17xf32> to vector<17x1xf32>
    %57 = vector.broadcast %56 : vector<17x1xf32> to vector<17x17xf32>
    %58 = arith.divf %54, %57 : vector<17x17xf32>
    %cst_36 = arith.constant dense<0.000000e+00> : vector<17x32xf32>
    %59 = tpu.matmul %58, %45, %cst_36 {dimension_numbers = #tpu.dot_dimension_numbers<[1], [0], [0], [1], [0, 0, 1, 1], [], []>} : vector<17x17xf32>, vector<17x32xf32>, vector<17x32xf32> -> vector<17x32xf32>
    %c0_37 = arith.constant 0 : index
    %c0_38 = arith.constant 0 : index
    %c0_39 = arith.constant 0 : index
    %60 = vector.load %arg8[%c0_37, %c0_38, %c0_39] : memref<4x32x128xf32, #tpu.memory_space<vmem>>, vector<1x32x128xf32>
    %61 = vector.shape_cast %60 : vector<1x32x128xf32> to vector<32x128xf32>
    %cst_40 = arith.constant dense<0.000000e+00> : vector<17x128xf32>
    %62 = tpu.matmul %59, %61, %cst_40 {dimension_numbers = #tpu.dot_dimension_numbers<[1], [0], [0], [1], [0, 0, 1, 1], [], []>} : vector<17x32xf32>, vector<32x128xf32>, vector<17x128xf32> -> vector<17x128xf32>
    %63 = arith.addf %24, %62 : vector<17x128xf32>
    %c1 = arith.constant 1 : index
    %c0_41 = arith.constant 0 : index
    %c0_42 = arith.constant 0 : index
    %64 = vector.load %arg2[%c1, %c0_41, %c0_42] : memref<4x128x32xf32, #tpu.memory_space<vmem>>, vector<1x128x32xf32>
    %65 = vector.shape_cast %64 : vector<1x128x32xf32> to vector<128x32xf32>
    %cst_43 = arith.constant dense<0.000000e+00> : vector<17x32xf32>
    %66 = tpu.matmul %23, %65, %cst_43 {dimension_numbers = #tpu.dot_dimension_numbers<[1], [0], [0], [1], [0, 0, 1, 1], [], []>} : vector<17x128xf32>, vector<128x32xf32>, vector<17x32xf32> -> vector<17x32xf32>
    %c1_44 = arith.constant 1 : index
    %c0_45 = arith.constant 0 : index
    %c0_46 = arith.constant 0 : index
    %67 = vector.load %arg5[%c1_44, %c0_45, %c0_46] : memref<4x1x32xf32, #tpu.memory_space<vmem>>, vector<1x1x32xf32>
    %68 = vector.shape_cast %67 : vector<1x1x32xf32> to vector<1x32xf32>
    %69 = vector.broadcast %68 : vector<1x32xf32> to vector<17x32xf32>
    %70 = arith.addf %66, %69 : vector<17x32xf32>
    %c1_47 = arith.constant 1 : index
    %c0_48 = arith.constant 0 : index
    %c0_49 = arith.constant 0 : index
    %71 = vector.load %arg3[%c1_47, %c0_48, %c0_49] : memref<4x128x32xf32, #tpu.memory_space<vmem>>, vector<1x128x32xf32>
    %72 = vector.shape_cast %71 : vector<1x128x32xf32> to vector<128x32xf32>
    %cst_50 = arith.constant dense<0.000000e+00> : vector<17x32xf32>
    %73 = tpu.matmul %23, %72, %cst_50 {dimension_numbers = #tpu.dot_dimension_numbers<[1], [0], [0], [1], [0, 0, 1, 1], [], []>} : vector<17x128xf32>, vector<128x32xf32>, vector<17x32xf32> -> vector<17x32xf32>
    %c1_51 = arith.constant 1 : index
    %c0_52 = arith.constant 0 : index
    %c0_53 = arith.constant 0 : index
    %74 = vector.load %arg6[%c1_51, %c0_52, %c0_53] : memref<4x1x32xf32, #tpu.memory_space<vmem>>, vector<1x1x32xf32>
    %75 = vector.shape_cast %74 : vector<1x1x32xf32> to vector<1x32xf32>
    %76 = vector.broadcast %75 : vector<1x32xf32> to vector<17x32xf32>
    %77 = arith.addf %73, %76 : vector<17x32xf32>
    %c1_54 = arith.constant 1 : index
    %c0_55 = arith.constant 0 : index
    %c0_56 = arith.constant 0 : index
    %78 = vector.load %arg4[%c1_54, %c0_55, %c0_56] : memref<4x128x32xf32, #tpu.memory_space<vmem>>, vector<1x128x32xf32>
    %79 = vector.shape_cast %78 : vector<1x128x32xf32> to vector<128x32xf32>
    %cst_57 = arith.constant dense<0.000000e+00> : vector<17x32xf32>
    %80 = tpu.matmul %23, %79, %cst_57 {dimension_numbers = #tpu.dot_dimension_numbers<[1], [0], [0], [1], [0, 0, 1, 1], [], []>} : vector<17x128xf32>, vector<128x32xf32>, vector<17x32xf32> -> vector<17x32xf32>
    %c1_58 = arith.constant 1 : index
    %c0_59 = arith.constant 0 : index
    %c0_60 = arith.constant 0 : index
    %81 = vector.load %arg7[%c1_58, %c0_59, %c0_60] : memref<4x1x32xf32, #tpu.memory_space<vmem>>, vector<1x1x32xf32>
    %82 = vector.shape_cast %81 : vector<1x1x32xf32> to vector<1x32xf32>
    %83 = vector.broadcast %82 : vector<1x32xf32> to vector<17x32xf32>
    %84 = arith.addf %80, %83 : vector<17x32xf32>
    %85 = tpu.transpose %77, [1, 0] : vector<17x32xf32> -> vector<32x17xf32>
    %cst_61 = arith.constant dense<0.000000e+00> : vector<17x17xf32>
    %86 = tpu.matmul %70, %85, %cst_61 {dimension_numbers = #tpu.dot_dimension_numbers<[1], [0], [0], [1], [0, 0, 1, 1], [], []>} : vector<17x32xf32>, vector<32x17xf32>, vector<17x17xf32> -> vector<17x17xf32>
    %cst_62 = arith.constant 0.176776692 : f32
    %87 = vector.broadcast %cst_62 : f32 to vector<17x17xf32>
    %88 = arith.mulf %86, %87 : vector<17x17xf32>
    %cst_63 = arith.constant dense<0xFF800000> : vector<17xf32>
    %89 = vector.multi_reduction <maximumf>, %88, %cst_63 [1] : vector<17x17xf32> to vector<17xf32>
    %90 = vector.shape_cast %89 : vector<17xf32> to vector<17x1xf32>
    %91 = vector.broadcast %90 : vector<17x1xf32> to vector<17x17xf32>
    %92 = arith.subf %88, %91 : vector<17x17xf32>
    %93 = math.exp %92 : vector<17x17xf32>
    %cst_64 = arith.constant dense<0.000000e+00> : vector<17xf32>
    %94 = vector.multi_reduction <add>, %93, %cst_64 [1] : vector<17x17xf32> to vector<17xf32>
    %95 = vector.shape_cast %94 : vector<17xf32> to vector<17x1xf32>
    %96 = vector.broadcast %95 : vector<17x1xf32> to vector<17x17xf32>
    %97 = arith.divf %93, %96 : vector<17x17xf32>
    %cst_65 = arith.constant dense<0.000000e+00> : vector<17x32xf32>
    %98 = tpu.matmul %97, %84, %cst_65 {dimension_numbers = #tpu.dot_dimension_numbers<[1], [0], [0], [1], [0, 0, 1, 1], [], []>} : vector<17x17xf32>, vector<17x32xf32>, vector<17x32xf32> -> vector<17x32xf32>
    %c1_66 = arith.constant 1 : index
    %c0_67 = arith.constant 0 : index
    %c0_68 = arith.constant 0 : index
    %99 = vector.load %arg8[%c1_66, %c0_67, %c0_68] : memref<4x32x128xf32, #tpu.memory_space<vmem>>, vector<1x32x128xf32>
    %100 = vector.shape_cast %99 : vector<1x32x128xf32> to vector<32x128xf32>
    %cst_69 = arith.constant dense<0.000000e+00> : vector<17x128xf32>
    %101 = tpu.matmul %98, %100, %cst_69 {dimension_numbers = #tpu.dot_dimension_numbers<[1], [0], [0], [1], [0, 0, 1, 1], [], []>} : vector<17x32xf32>, vector<32x128xf32>, vector<17x128xf32> -> vector<17x128xf32>
    %102 = arith.addf %63, %101 : vector<17x128xf32>
    %c2 = arith.constant 2 : index
    %c0_70 = arith.constant 0 : index
    %c0_71 = arith.constant 0 : index
    %103 = vector.load %arg2[%c2, %c0_70, %c0_71] : memref<4x128x32xf32, #tpu.memory_space<vmem>>, vector<1x128x32xf32>
    %104 = vector.shape_cast %103 : vector<1x128x32xf32> to vector<128x32xf32>
    %cst_72 = arith.constant dense<0.000000e+00> : vector<17x32xf32>
    %105 = tpu.matmul %23, %104, %cst_72 {dimension_numbers = #tpu.dot_dimension_numbers<[1], [0], [0], [1], [0, 0, 1, 1], [], []>} : vector<17x128xf32>, vector<128x32xf32>, vector<17x32xf32> -> vector<17x32xf32>
    %c2_73 = arith.constant 2 : index
    %c0_74 = arith.constant 0 : index
    %c0_75 = arith.constant 0 : index
    %106 = vector.load %arg5[%c2_73, %c0_74, %c0_75] : memref<4x1x32xf32, #tpu.memory_space<vmem>>, vector<1x1x32xf32>
    %107 = vector.shape_cast %106 : vector<1x1x32xf32> to vector<1x32xf32>
    %108 = vector.broadcast %107 : vector<1x32xf32> to vector<17x32xf32>
    %109 = arith.addf %105, %108 : vector<17x32xf32>
    %c2_76 = arith.constant 2 : index
    %c0_77 = arith.constant 0 : index
    %c0_78 = arith.constant 0 : index
    %110 = vector.load %arg3[%c2_76, %c0_77, %c0_78] : memref<4x128x32xf32, #tpu.memory_space<vmem>>, vector<1x128x32xf32>
    %111 = vector.shape_cast %110 : vector<1x128x32xf32> to vector<128x32xf32>
    %cst_79 = arith.constant dense<0.000000e+00> : vector<17x32xf32>
    %112 = tpu.matmul %23, %111, %cst_79 {dimension_numbers = #tpu.dot_dimension_numbers<[1], [0], [0], [1], [0, 0, 1, 1], [], []>} : vector<17x128xf32>, vector<128x32xf32>, vector<17x32xf32> -> vector<17x32xf32>
    %c2_80 = arith.constant 2 : index
    %c0_81 = arith.constant 0 : index
    %c0_82 = arith.constant 0 : index
    %113 = vector.load %arg6[%c2_80, %c0_81, %c0_82] : memref<4x1x32xf32, #tpu.memory_space<vmem>>, vector<1x1x32xf32>
    %114 = vector.shape_cast %113 : vector<1x1x32xf32> to vector<1x32xf32>
    %115 = vector.broadcast %114 : vector<1x32xf32> to vector<17x32xf32>
    %116 = arith.addf %112, %115 : vector<17x32xf32>
    %c2_83 = arith.constant 2 : index
    %c0_84 = arith.constant 0 : index
    %c0_85 = arith.constant 0 : index
    %117 = vector.load %arg4[%c2_83, %c0_84, %c0_85] : memref<4x128x32xf32, #tpu.memory_space<vmem>>, vector<1x128x32xf32>
    %118 = vector.shape_cast %117 : vector<1x128x32xf32> to vector<128x32xf32>
    %cst_86 = arith.constant dense<0.000000e+00> : vector<17x32xf32>
    %119 = tpu.matmul %23, %118, %cst_86 {dimension_numbers = #tpu.dot_dimension_numbers<[1], [0], [0], [1], [0, 0, 1, 1], [], []>} : vector<17x128xf32>, vector<128x32xf32>, vector<17x32xf32> -> vector<17x32xf32>
    %c2_87 = arith.constant 2 : index
    %c0_88 = arith.constant 0 : index
    %c0_89 = arith.constant 0 : index
    %120 = vector.load %arg7[%c2_87, %c0_88, %c0_89] : memref<4x1x32xf32, #tpu.memory_space<vmem>>, vector<1x1x32xf32>
    %121 = vector.shape_cast %120 : vector<1x1x32xf32> to vector<1x32xf32>
    %122 = vector.broadcast %121 : vector<1x32xf32> to vector<17x32xf32>
    %123 = arith.addf %119, %122 : vector<17x32xf32>
    %124 = tpu.transpose %116, [1, 0] : vector<17x32xf32> -> vector<32x17xf32>
    %cst_90 = arith.constant dense<0.000000e+00> : vector<17x17xf32>
    %125 = tpu.matmul %109, %124, %cst_90 {dimension_numbers = #tpu.dot_dimension_numbers<[1], [0], [0], [1], [0, 0, 1, 1], [], []>} : vector<17x32xf32>, vector<32x17xf32>, vector<17x17xf32> -> vector<17x17xf32>
    %cst_91 = arith.constant 0.176776692 : f32
    %126 = vector.broadcast %cst_91 : f32 to vector<17x17xf32>
    %127 = arith.mulf %125, %126 : vector<17x17xf32>
    %cst_92 = arith.constant dense<0xFF800000> : vector<17xf32>
    %128 = vector.multi_reduction <maximumf>, %127, %cst_92 [1] : vector<17x17xf32> to vector<17xf32>
    %129 = vector.shape_cast %128 : vector<17xf32> to vector<17x1xf32>
    %130 = vector.broadcast %129 : vector<17x1xf32> to vector<17x17xf32>
    %131 = arith.subf %127, %130 : vector<17x17xf32>
    %132 = math.exp %131 : vector<17x17xf32>
    %cst_93 = arith.constant dense<0.000000e+00> : vector<17xf32>
    %133 = vector.multi_reduction <add>, %132, %cst_93 [1] : vector<17x17xf32> to vector<17xf32>
    %134 = vector.shape_cast %133 : vector<17xf32> to vector<17x1xf32>
    %135 = vector.broadcast %134 : vector<17x1xf32> to vector<17x17xf32>
    %136 = arith.divf %132, %135 : vector<17x17xf32>
    %cst_94 = arith.constant dense<0.000000e+00> : vector<17x32xf32>
    %137 = tpu.matmul %136, %123, %cst_94 {dimension_numbers = #tpu.dot_dimension_numbers<[1], [0], [0], [1], [0, 0, 1, 1], [], []>} : vector<17x17xf32>, vector<17x32xf32>, vector<17x32xf32> -> vector<17x32xf32>
    %c2_95 = arith.constant 2 : index
    %c0_96 = arith.constant 0 : index
    %c0_97 = arith.constant 0 : index
    %138 = vector.load %arg8[%c2_95, %c0_96, %c0_97] : memref<4x32x128xf32, #tpu.memory_space<vmem>>, vector<1x32x128xf32>
    %139 = vector.shape_cast %138 : vector<1x32x128xf32> to vector<32x128xf32>
    %cst_98 = arith.constant dense<0.000000e+00> : vector<17x128xf32>
    %140 = tpu.matmul %137, %139, %cst_98 {dimension_numbers = #tpu.dot_dimension_numbers<[1], [0], [0], [1], [0, 0, 1, 1], [], []>} : vector<17x32xf32>, vector<32x128xf32>, vector<17x128xf32> -> vector<17x128xf32>
    %141 = arith.addf %102, %140 : vector<17x128xf32>
    %c3 = arith.constant 3 : index
    %c0_99 = arith.constant 0 : index
    %c0_100 = arith.constant 0 : index
    %142 = vector.load %arg2[%c3, %c0_99, %c0_100] : memref<4x128x32xf32, #tpu.memory_space<vmem>>, vector<1x128x32xf32>
    %143 = vector.shape_cast %142 : vector<1x128x32xf32> to vector<128x32xf32>
    %cst_101 = arith.constant dense<0.000000e+00> : vector<17x32xf32>
    %144 = tpu.matmul %23, %143, %cst_101 {dimension_numbers = #tpu.dot_dimension_numbers<[1], [0], [0], [1], [0, 0, 1, 1], [], []>} : vector<17x128xf32>, vector<128x32xf32>, vector<17x32xf32> -> vector<17x32xf32>
    %c3_102 = arith.constant 3 : index
    %c0_103 = arith.constant 0 : index
    %c0_104 = arith.constant 0 : index
    %145 = vector.load %arg5[%c3_102, %c0_103, %c0_104] : memref<4x1x32xf32, #tpu.memory_space<vmem>>, vector<1x1x32xf32>
    %146 = vector.shape_cast %145 : vector<1x1x32xf32> to vector<1x32xf32>
    %147 = vector.broadcast %146 : vector<1x32xf32> to vector<17x32xf32>
    %148 = arith.addf %144, %147 : vector<17x32xf32>
    %c3_105 = arith.constant 3 : index
    %c0_106 = arith.constant 0 : index
    %c0_107 = arith.constant 0 : index
    %149 = vector.load %arg3[%c3_105, %c0_106, %c0_107] : memref<4x128x32xf32, #tpu.memory_space<vmem>>, vector<1x128x32xf32>
    %150 = vector.shape_cast %149 : vector<1x128x32xf32> to vector<128x32xf32>
    %cst_108 = arith.constant dense<0.000000e+00> : vector<17x32xf32>
    %151 = tpu.matmul %23, %150, %cst_108 {dimension_numbers = #tpu.dot_dimension_numbers<[1], [0], [0], [1], [0, 0, 1, 1], [], []>} : vector<17x128xf32>, vector<128x32xf32>, vector<17x32xf32> -> vector<17x32xf32>
    %c3_109 = arith.constant 3 : index
    %c0_110 = arith.constant 0 : index
    %c0_111 = arith.constant 0 : index
    %152 = vector.load %arg6[%c3_109, %c0_110, %c0_111] : memref<4x1x32xf32, #tpu.memory_space<vmem>>, vector<1x1x32xf32>
    %153 = vector.shape_cast %152 : vector<1x1x32xf32> to vector<1x32xf32>
    %154 = vector.broadcast %153 : vector<1x32xf32> to vector<17x32xf32>
    %155 = arith.addf %151, %154 : vector<17x32xf32>
    %c3_112 = arith.constant 3 : index
    %c0_113 = arith.constant 0 : index
    %c0_114 = arith.constant 0 : index
    %156 = vector.load %arg4[%c3_112, %c0_113, %c0_114] : memref<4x128x32xf32, #tpu.memory_space<vmem>>, vector<1x128x32xf32>
    %157 = vector.shape_cast %156 : vector<1x128x32xf32> to vector<128x32xf32>
    %cst_115 = arith.constant dense<0.000000e+00> : vector<17x32xf32>
    %158 = tpu.matmul %23, %157, %cst_115 {dimension_numbers = #tpu.dot_dimension_numbers<[1], [0], [0], [1], [0, 0, 1, 1], [], []>} : vector<17x128xf32>, vector<128x32xf32>, vector<17x32xf32> -> vector<17x32xf32>
    %c3_116 = arith.constant 3 : index
    %c0_117 = arith.constant 0 : index
    %c0_118 = arith.constant 0 : index
    %159 = vector.load %arg7[%c3_116, %c0_117, %c0_118] : memref<4x1x32xf32, #tpu.memory_space<vmem>>, vector<1x1x32xf32>
    %160 = vector.shape_cast %159 : vector<1x1x32xf32> to vector<1x32xf32>
    %161 = vector.broadcast %160 : vector<1x32xf32> to vector<17x32xf32>
    %162 = arith.addf %158, %161 : vector<17x32xf32>
    %163 = tpu.transpose %155, [1, 0] : vector<17x32xf32> -> vector<32x17xf32>
    %cst_119 = arith.constant dense<0.000000e+00> : vector<17x17xf32>
    %164 = tpu.matmul %148, %163, %cst_119 {dimension_numbers = #tpu.dot_dimension_numbers<[1], [0], [0], [1], [0, 0, 1, 1], [], []>} : vector<17x32xf32>, vector<32x17xf32>, vector<17x17xf32> -> vector<17x17xf32>
    %cst_120 = arith.constant 0.176776692 : f32
    %165 = vector.broadcast %cst_120 : f32 to vector<17x17xf32>
    %166 = arith.mulf %164, %165 : vector<17x17xf32>
    %cst_121 = arith.constant dense<0xFF800000> : vector<17xf32>
    %167 = vector.multi_reduction <maximumf>, %166, %cst_121 [1] : vector<17x17xf32> to vector<17xf32>
    %168 = vector.shape_cast %167 : vector<17xf32> to vector<17x1xf32>
    %169 = vector.broadcast %168 : vector<17x1xf32> to vector<17x17xf32>
    %170 = arith.subf %166, %169 : vector<17x17xf32>
    %171 = math.exp %170 : vector<17x17xf32>
    %cst_122 = arith.constant dense<0.000000e+00> : vector<17xf32>
    %172 = vector.multi_reduction <add>, %171, %cst_122 [1] : vector<17x17xf32> to vector<17xf32>
    %173 = vector.shape_cast %172 : vector<17xf32> to vector<17x1xf32>
    %174 = vector.broadcast %173 : vector<17x1xf32> to vector<17x17xf32>
    %175 = arith.divf %171, %174 : vector<17x17xf32>
    %cst_123 = arith.constant dense<0.000000e+00> : vector<17x32xf32>
    %176 = tpu.matmul %175, %162, %cst_123 {dimension_numbers = #tpu.dot_dimension_numbers<[1], [0], [0], [1], [0, 0, 1, 1], [], []>} : vector<17x17xf32>, vector<17x32xf32>, vector<17x32xf32> -> vector<17x32xf32>
    %c3_124 = arith.constant 3 : index
    %c0_125 = arith.constant 0 : index
    %c0_126 = arith.constant 0 : index
    %177 = vector.load %arg8[%c3_124, %c0_125, %c0_126] : memref<4x32x128xf32, #tpu.memory_space<vmem>>, vector<1x32x128xf32>
    %178 = vector.shape_cast %177 : vector<1x32x128xf32> to vector<32x128xf32>
    %cst_127 = arith.constant dense<0.000000e+00> : vector<17x128xf32>
    %179 = tpu.matmul %176, %178, %cst_127 {dimension_numbers = #tpu.dot_dimension_numbers<[1], [0], [0], [1], [0, 0, 1, 1], [], []>} : vector<17x32xf32>, vector<32x128xf32>, vector<17x128xf32> -> vector<17x128xf32>
    %180 = arith.addf %141, %179 : vector<17x128xf32>
    %181 = arith.addf %1, %180 : vector<17x128xf32>
    %c0_128 = arith.constant 0 : index
    %c0_129 = arith.constant 0 : index
    %182 = vector.load %arg9[%c0_128, %c0_129] : memref<1x128xf32, #tpu.memory_space<vmem>>, vector<1x128xf32>
    %183 = vector.broadcast %182 : vector<1x128xf32> to vector<17x128xf32>
    %184 = arith.addf %181, %183 : vector<17x128xf32>
    %c0_130 = arith.constant 0 : index
    %c0_131 = arith.constant 0 : index
    %185 = vector.load %arg12[%c0_130, %c0_131] : memref<1x128xf32, #tpu.memory_space<vmem>>, vector<1x128xf32>
    %c0_132 = arith.constant 0 : index
    %c0_133 = arith.constant 0 : index
    %186 = vector.load %arg13[%c0_132, %c0_133] : memref<1x128xf32, #tpu.memory_space<vmem>>, vector<1x128xf32>
    %cst_134 = arith.constant dense<0.000000e+00> : vector<17xf32>
    %187 = vector.multi_reduction <add>, %184, %cst_134 [1] : vector<17x128xf32> to vector<17xf32>
    %188 = vector.shape_cast %187 : vector<17xf32> to vector<17x1xf32>
    %cst_135 = arith.constant 1.280000e+02 : f32
    %189 = vector.broadcast %cst_135 : f32 to vector<17x1xf32>
    %190 = arith.divf %188, %189 : vector<17x1xf32>
    %191 = vector.broadcast %190 : vector<17x1xf32> to vector<17x128xf32>
    %192 = arith.subf %184, %191 : vector<17x128xf32>
    %193 = arith.mulf %192, %192 : vector<17x128xf32>
    %cst_136 = arith.constant dense<0.000000e+00> : vector<17xf32>
    %194 = vector.multi_reduction <add>, %193, %cst_136 [1] : vector<17x128xf32> to vector<17xf32>
    %195 = vector.shape_cast %194 : vector<17xf32> to vector<17x1xf32>
    %cst_137 = arith.constant 1.280000e+02 : f32
    %196 = vector.broadcast %cst_137 : f32 to vector<17x1xf32>
    %197 = arith.divf %195, %196 : vector<17x1xf32>
    %cst_138 = arith.constant 9.99999974E-6 : f32
    %198 = vector.broadcast %cst_138 : f32 to vector<17x1xf32>
    %199 = arith.addf %197, %198 : vector<17x1xf32>
    %200 = math.rsqrt %199 : vector<17x1xf32>
    %201 = vector.broadcast %200 : vector<17x1xf32> to vector<17x128xf32>
    %202 = arith.mulf %192, %201 : vector<17x128xf32>
    %203 = vector.broadcast %185 : vector<1x128xf32> to vector<17x128xf32>
    %204 = arith.mulf %202, %203 : vector<17x128xf32>
    %205 = vector.broadcast %186 : vector<1x128xf32> to vector<17x128xf32>
    %206 = arith.addf %204, %205 : vector<17x128xf32>
    %c0_139 = arith.constant 0 : index
    %c0_140 = arith.constant 0 : index
    %207 = vector.load %arg14[%c0_139, %c0_140] : memref<128x256xf32, #tpu.memory_space<vmem>>, vector<128x256xf32>
    %cst_141 = arith.constant dense<0.000000e+00> : vector<17x256xf32>
    %208 = tpu.matmul %206, %207, %cst_141 {dimension_numbers = #tpu.dot_dimension_numbers<[1], [0], [0], [1], [0, 0, 1, 1], [], []>} : vector<17x128xf32>, vector<128x256xf32>, vector<17x256xf32> -> vector<17x256xf32>
    %c0_142 = arith.constant 0 : index
    %c0_143 = arith.constant 0 : index
    %209 = vector.load %arg15[%c0_142, %c0_143] : memref<1x256xf32, #tpu.memory_space<vmem>>, vector<1x256xf32>
    %210 = vector.broadcast %209 : vector<1x256xf32> to vector<17x256xf32>
    %211 = arith.addf %208, %210 : vector<17x256xf32>
    %cst_144 = arith.constant 5.000000e-01 : f32
    %212 = vector.broadcast %cst_144 : f32 to vector<17x256xf32>
    %213 = arith.mulf %212, %211 : vector<17x256xf32>
    %214 = arith.mulf %211, %211 : vector<17x256xf32>
    %215 = arith.mulf %214, %211 : vector<17x256xf32>
    %cst_145 = arith.constant 4.471500e-02 : f32
    %216 = vector.broadcast %cst_145 : f32 to vector<17x256xf32>
    %217 = arith.mulf %216, %215 : vector<17x256xf32>
    %218 = arith.addf %211, %217 : vector<17x256xf32>
    %cst_146 = arith.constant 0.797884583 : f32
    %219 = vector.broadcast %cst_146 : f32 to vector<17x256xf32>
    %220 = arith.mulf %219, %218 : vector<17x256xf32>
    %221 = math.tanh %220 : vector<17x256xf32>
    %cst_147 = arith.constant 1.000000e+00 : f32
    %222 = vector.broadcast %cst_147 : f32 to vector<17x256xf32>
    %223 = arith.addf %222, %221 : vector<17x256xf32>
    %224 = arith.mulf %213, %223 : vector<17x256xf32>
    %c0_148 = arith.constant 0 : index
    %c0_149 = arith.constant 0 : index
    %225 = vector.load %arg16[%c0_148, %c0_149] : memref<256x128xf32, #tpu.memory_space<vmem>>, vector<256x128xf32>
    %cst_150 = arith.constant dense<0.000000e+00> : vector<17x128xf32>
    %226 = tpu.matmul %224, %225, %cst_150 {dimension_numbers = #tpu.dot_dimension_numbers<[1], [0], [0], [1], [0, 0, 1, 1], [], []>} : vector<17x256xf32>, vector<256x128xf32>, vector<17x128xf32> -> vector<17x128xf32>
    %227 = arith.addf %184, %226 : vector<17x128xf32>
    %c0_151 = arith.constant 0 : index
    %c0_152 = arith.constant 0 : index
    %228 = vector.load %arg17[%c0_151, %c0_152] : memref<1x128xf32, #tpu.memory_space<vmem>>, vector<1x128xf32>
    %229 = vector.broadcast %228 : vector<1x128xf32> to vector<17x128xf32>
    %230 = arith.addf %227, %229 : vector<17x128xf32>
    %c0_153 = arith.constant 0 : index
    %c0_154 = arith.constant 0 : index
    %c0_155 = arith.constant 0 : index
    %231 = vector.load %arg18[%c0_153, %c0_154, %c0_155] : memref<2x17x128xf32, #tpu.memory_space<vmem>>, vector<1x17x128xf32>
    %232 = vector.shape_cast %231 : vector<1x17x128xf32> to vector<17x128xf32>
    %233 = vector.shape_cast %230 : vector<17x128xf32> to vector<1x17x128xf32>
    tpu.vector_store %arg18[%c0_153, %c0_154, %c0_155], %233 {strides = array<i32>} : memref<2x17x128xf32, #tpu.memory_space<vmem>>, vector<1x17x128xf32>,
    %c1_156 = arith.constant 1 : index
    %c0_157 = arith.constant 0 : index
    %c0_158 = arith.constant 0 : index
    %234 = vector.load %arg1[%c1_156, %c0_157, %c0_158] : memref<2x17x128xf32, #tpu.memory_space<vmem>>, vector<1x17x128xf32>
    %235 = vector.shape_cast %234 : vector<1x17x128xf32> to vector<17x128xf32>
    %c0_159 = arith.constant 0 : index
    %c0_160 = arith.constant 0 : index
    %236 = vector.load %arg10[%c0_159, %c0_160] : memref<1x128xf32, #tpu.memory_space<vmem>>, vector<1x128xf32>
    %c0_161 = arith.constant 0 : index
    %c0_162 = arith.constant 0 : index
    %237 = vector.load %arg11[%c0_161, %c0_162] : memref<1x128xf32, #tpu.memory_space<vmem>>, vector<1x128xf32>
    %cst_163 = arith.constant dense<0.000000e+00> : vector<17xf32>
    %238 = vector.multi_reduction <add>, %235, %cst_163 [1] : vector<17x128xf32> to vector<17xf32>
    %239 = vector.shape_cast %238 : vector<17xf32> to vector<17x1xf32>
    %cst_164 = arith.constant 1.280000e+02 : f32
    %240 = vector.broadcast %cst_164 : f32 to vector<17x1xf32>
    %241 = arith.divf %239, %240 : vector<17x1xf32>
    %242 = vector.broadcast %241 : vector<17x1xf32> to vector<17x128xf32>
    %243 = arith.subf %235, %242 : vector<17x128xf32>
    %244 = arith.mulf %243, %243 : vector<17x128xf32>
    %cst_165 = arith.constant dense<0.000000e+00> : vector<17xf32>
    %245 = vector.multi_reduction <add>, %244, %cst_165 [1] : vector<17x128xf32> to vector<17xf32>
    %246 = vector.shape_cast %245 : vector<17xf32> to vector<17x1xf32>
    %cst_166 = arith.constant 1.280000e+02 : f32
    %247 = vector.broadcast %cst_166 : f32 to vector<17x1xf32>
    %248 = arith.divf %246, %247 : vector<17x1xf32>
    %cst_167 = arith.constant 9.99999974E-6 : f32
    %249 = vector.broadcast %cst_167 : f32 to vector<17x1xf32>
    %250 = arith.addf %248, %249 : vector<17x1xf32>
    %251 = math.rsqrt %250 : vector<17x1xf32>
    %252 = vector.broadcast %251 : vector<17x1xf32> to vector<17x128xf32>
    %253 = arith.mulf %243, %252 : vector<17x128xf32>
    %254 = vector.broadcast %236 : vector<1x128xf32> to vector<17x128xf32>
    %255 = arith.mulf %253, %254 : vector<17x128xf32>
    %256 = vector.broadcast %237 : vector<1x128xf32> to vector<17x128xf32>
    %257 = arith.addf %255, %256 : vector<17x128xf32>
    %cst_168 = arith.constant 0.000000e+00 : f32
    %258 = vector.broadcast %cst_168 : f32 to vector<17x128xf32>
    %c0_169 = arith.constant 0 : index
    %c0_170 = arith.constant 0 : index
    %c0_171 = arith.constant 0 : index
    %259 = vector.load %arg2[%c0_169, %c0_170, %c0_171] : memref<4x128x32xf32, #tpu.memory_space<vmem>>, vector<1x128x32xf32>
    %260 = vector.shape_cast %259 : vector<1x128x32xf32> to vector<128x32xf32>
    %cst_172 = arith.constant dense<0.000000e+00> : vector<17x32xf32>
    %261 = tpu.matmul %257, %260, %cst_172 {dimension_numbers = #tpu.dot_dimension_numbers<[1], [0], [0], [1], [0, 0, 1, 1], [], []>} : vector<17x128xf32>, vector<128x32xf32>, vector<17x32xf32> -> vector<17x32xf32>
    %c0_173 = arith.constant 0 : index
    %c0_174 = arith.constant 0 : index
    %c0_175 = arith.constant 0 : index
    %262 = vector.load %arg5[%c0_173, %c0_174, %c0_175] : memref<4x1x32xf32, #tpu.memory_space<vmem>>, vector<1x1x32xf32>
    %263 = vector.shape_cast %262 : vector<1x1x32xf32> to vector<1x32xf32>
    %264 = vector.broadcast %263 : vector<1x32xf32> to vector<17x32xf32>
    %265 = arith.addf %261, %264 : vector<17x32xf32>
    %c0_176 = arith.constant 0 : index
    %c0_177 = arith.constant 0 : index
    %c0_178 = arith.constant 0 : index
    %266 = vector.load %arg3[%c0_176, %c0_177, %c0_178] : memref<4x128x32xf32, #tpu.memory_space<vmem>>, vector<1x128x32xf32>
    %267 = vector.shape_cast %266 : vector<1x128x32xf32> to vector<128x32xf32>
    %cst_179 = arith.constant dense<0.000000e+00> : vector<17x32xf32>
    %268 = tpu.matmul %257, %267, %cst_179 {dimension_numbers = #tpu.dot_dimension_numbers<[1], [0], [0], [1], [0, 0, 1, 1], [], []>} : vector<17x128xf32>, vector<128x32xf32>, vector<17x32xf32> -> vector<17x32xf32>
    %c0_180 = arith.constant 0 : index
    %c0_181 = arith.constant 0 : index
    %c0_182 = arith.constant 0 : index
    %269 = vector.load %arg6[%c0_180, %c0_181, %c0_182] : memref<4x1x32xf32, #tpu.memory_space<vmem>>, vector<1x1x32xf32>
    %270 = vector.shape_cast %269 : vector<1x1x32xf32> to vector<1x32xf32>
    %271 = vector.broadcast %270 : vector<1x32xf32> to vector<17x32xf32>
    %272 = arith.addf %268, %271 : vector<17x32xf32>
    %c0_183 = arith.constant 0 : index
    %c0_184 = arith.constant 0 : index
    %c0_185 = arith.constant 0 : index
    %273 = vector.load %arg4[%c0_183, %c0_184, %c0_185] : memref<4x128x32xf32, #tpu.memory_space<vmem>>, vector<1x128x32xf32>
    %274 = vector.shape_cast %273 : vector<1x128x32xf32> to vector<128x32xf32>
    %cst_186 = arith.constant dense<0.000000e+00> : vector<17x32xf32>
    %275 = tpu.matmul %257, %274, %cst_186 {dimension_numbers = #tpu.dot_dimension_numbers<[1], [0], [0], [1], [0, 0, 1, 1], [], []>} : vector<17x128xf32>, vector<128x32xf32>, vector<17x32xf32> -> vector<17x32xf32>
    %c0_187 = arith.constant 0 : index
    %c0_188 = arith.constant 0 : index
    %c0_189 = arith.constant 0 : index
    %276 = vector.load %arg7[%c0_187, %c0_188, %c0_189] : memref<4x1x32xf32, #tpu.memory_space<vmem>>, vector<1x1x32xf32>
    %277 = vector.shape_cast %276 : vector<1x1x32xf32> to vector<1x32xf32>
    %278 = vector.broadcast %277 : vector<1x32xf32> to vector<17x32xf32>
    %279 = arith.addf %275, %278 : vector<17x32xf32>
    %280 = tpu.transpose %272, [1, 0] : vector<17x32xf32> -> vector<32x17xf32>
    %cst_190 = arith.constant dense<0.000000e+00> : vector<17x17xf32>
    %281 = tpu.matmul %265, %280, %cst_190 {dimension_numbers = #tpu.dot_dimension_numbers<[1], [0], [0], [1], [0, 0, 1, 1], [], []>} : vector<17x32xf32>, vector<32x17xf32>, vector<17x17xf32> -> vector<17x17xf32>
    %cst_191 = arith.constant 0.176776692 : f32
    %282 = vector.broadcast %cst_191 : f32 to vector<17x17xf32>
    %283 = arith.mulf %281, %282 : vector<17x17xf32>
    %cst_192 = arith.constant dense<0xFF800000> : vector<17xf32>
    %284 = vector.multi_reduction <maximumf>, %283, %cst_192 [1] : vector<17x17xf32> to vector<17xf32>
    %285 = vector.shape_cast %284 : vector<17xf32> to vector<17x1xf32>
    %286 = vector.broadcast %285 : vector<17x1xf32> to vector<17x17xf32>
    %287 = arith.subf %283, %286 : vector<17x17xf32>
    %288 = math.exp %287 : vector<17x17xf32>
    %cst_193 = arith.constant dense<0.000000e+00> : vector<17xf32>
    %289 = vector.multi_reduction <add>, %288, %cst_193 [1] : vector<17x17xf32> to vector<17xf32>
    %290 = vector.shape_cast %289 : vector<17xf32> to vector<17x1xf32>
    %291 = vector.broadcast %290 : vector<17x1xf32> to vector<17x17xf32>
    %292 = arith.divf %288, %291 : vector<17x17xf32>
    %cst_194 = arith.constant dense<0.000000e+00> : vector<17x32xf32>
    %293 = tpu.matmul %292, %279, %cst_194 {dimension_numbers = #tpu.dot_dimension_numbers<[1], [0], [0], [1], [0, 0, 1, 1], [], []>} : vector<17x17xf32>, vector<17x32xf32>, vector<17x32xf32> -> vector<17x32xf32>
    %c0_195 = arith.constant 0 : index
    %c0_196 = arith.constant 0 : index
    %c0_197 = arith.constant 0 : index
    %294 = vector.load %arg8[%c0_195, %c0_196, %c0_197] : memref<4x32x128xf32, #tpu.memory_space<vmem>>, vector<1x32x128xf32>
    %295 = vector.shape_cast %294 : vector<1x32x128xf32> to vector<32x128xf32>
    %cst_198 = arith.constant dense<0.000000e+00> : vector<17x128xf32>
    %296 = tpu.matmul %293, %295, %cst_198 {dimension_numbers = #tpu.dot_dimension_numbers<[1], [0], [0], [1], [0, 0, 1, 1], [], []>} : vector<17x32xf32>, vector<32x128xf32>, vector<17x128xf32> -> vector<17x128xf32>
    %297 = arith.addf %258, %296 : vector<17x128xf32>
    %c1_199 = arith.constant 1 : index
    %c0_200 = arith.constant 0 : index
    %c0_201 = arith.constant 0 : index
    %298 = vector.load %arg2[%c1_199, %c0_200, %c0_201] : memref<4x128x32xf32, #tpu.memory_space<vmem>>, vector<1x128x32xf32>
    %299 = vector.shape_cast %298 : vector<1x128x32xf32> to vector<128x32xf32>
    %cst_202 = arith.constant dense<0.000000e+00> : vector<17x32xf32>
    %300 = tpu.matmul %257, %299, %cst_202 {dimension_numbers = #tpu.dot_dimension_numbers<[1], [0], [0], [1], [0, 0, 1, 1], [], []>} : vector<17x128xf32>, vector<128x32xf32>, vector<17x32xf32> -> vector<17x32xf32>
    %c1_203 = arith.constant 1 : index
    %c0_204 = arith.constant 0 : index
    %c0_205 = arith.constant 0 : index
    %301 = vector.load %arg5[%c1_203, %c0_204, %c0_205] : memref<4x1x32xf32, #tpu.memory_space<vmem>>, vector<1x1x32xf32>
    %302 = vector.shape_cast %301 : vector<1x1x32xf32> to vector<1x32xf32>
    %303 = vector.broadcast %302 : vector<1x32xf32> to vector<17x32xf32>
    %304 = arith.addf %300, %303 : vector<17x32xf32>
    %c1_206 = arith.constant 1 : index
    %c0_207 = arith.constant 0 : index
    %c0_208 = arith.constant 0 : index
    %305 = vector.load %arg3[%c1_206, %c0_207, %c0_208] : memref<4x128x32xf32, #tpu.memory_space<vmem>>, vector<1x128x32xf32>
    %306 = vector.shape_cast %305 : vector<1x128x32xf32> to vector<128x32xf32>
    %cst_209 = arith.constant dense<0.000000e+00> : vector<17x32xf32>
    %307 = tpu.matmul %257, %306, %cst_209 {dimension_numbers = #tpu.dot_dimension_numbers<[1], [0], [0], [1], [0, 0, 1, 1], [], []>} : vector<17x128xf32>, vector<128x32xf32>, vector<17x32xf32> -> vector<17x32xf32>
    %c1_210 = arith.constant 1 : index
    %c0_211 = arith.constant 0 : index
    %c0_212 = arith.constant 0 : index
    %308 = vector.load %arg6[%c1_210, %c0_211, %c0_212] : memref<4x1x32xf32, #tpu.memory_space<vmem>>, vector<1x1x32xf32>
    %309 = vector.shape_cast %308 : vector<1x1x32xf32> to vector<1x32xf32>
    %310 = vector.broadcast %309 : vector<1x32xf32> to vector<17x32xf32>
    %311 = arith.addf %307, %310 : vector<17x32xf32>
    %c1_213 = arith.constant 1 : index
    %c0_214 = arith.constant 0 : index
    %c0_215 = arith.constant 0 : index
    %312 = vector.load %arg4[%c1_213, %c0_214, %c0_215] : memref<4x128x32xf32, #tpu.memory_space<vmem>>, vector<1x128x32xf32>
    %313 = vector.shape_cast %312 : vector<1x128x32xf32> to vector<128x32xf32>
    %cst_216 = arith.constant dense<0.000000e+00> : vector<17x32xf32>
    %314 = tpu.matmul %257, %313, %cst_216 {dimension_numbers = #tpu.dot_dimension_numbers<[1], [0], [0], [1], [0, 0, 1, 1], [], []>} : vector<17x128xf32>, vector<128x32xf32>, vector<17x32xf32> -> vector<17x32xf32>
    %c1_217 = arith.constant 1 : index
    %c0_218 = arith.constant 0 : index
    %c0_219 = arith.constant 0 : index
    %315 = vector.load %arg7[%c1_217, %c0_218, %c0_219] : memref<4x1x32xf32, #tpu.memory_space<vmem>>, vector<1x1x32xf32>
    %316 = vector.shape_cast %315 : vector<1x1x32xf32> to vector<1x32xf32>
    %317 = vector.broadcast %316 : vector<1x32xf32> to vector<17x32xf32>
    %318 = arith.addf %314, %317 : vector<17x32xf32>
    %319 = tpu.transpose %311, [1, 0] : vector<17x32xf32> -> vector<32x17xf32>
    %cst_220 = arith.constant dense<0.000000e+00> : vector<17x17xf32>
    %320 = tpu.matmul %304, %319, %cst_220 {dimension_numbers = #tpu.dot_dimension_numbers<[1], [0], [0], [1], [0, 0, 1, 1], [], []>} : vector<17x32xf32>, vector<32x17xf32>, vector<17x17xf32> -> vector<17x17xf32>
    %cst_221 = arith.constant 0.176776692 : f32
    %321 = vector.broadcast %cst_221 : f32 to vector<17x17xf32>
    %322 = arith.mulf %320, %321 : vector<17x17xf32>
    %cst_222 = arith.constant dense<0xFF800000> : vector<17xf32>
    %323 = vector.multi_reduction <maximumf>, %322, %cst_222 [1] : vector<17x17xf32> to vector<17xf32>
    %324 = vector.shape_cast %323 : vector<17xf32> to vector<17x1xf32>
    %325 = vector.broadcast %324 : vector<17x1xf32> to vector<17x17xf32>
    %326 = arith.subf %322, %325 : vector<17x17xf32>
    %327 = math.exp %326 : vector<17x17xf32>
    %cst_223 = arith.constant dense<0.000000e+00> : vector<17xf32>
    %328 = vector.multi_reduction <add>, %327, %cst_223 [1] : vector<17x17xf32> to vector<17xf32>
    %329 = vector.shape_cast %328 : vector<17xf32> to vector<17x1xf32>
    %330 = vector.broadcast %329 : vector<17x1xf32> to vector<17x17xf32>
    %331 = arith.divf %327, %330 : vector<17x17xf32>
    %cst_224 = arith.constant dense<0.000000e+00> : vector<17x32xf32>
    %332 = tpu.matmul %331, %318, %cst_224 {dimension_numbers = #tpu.dot_dimension_numbers<[1], [0], [0], [1], [0, 0, 1, 1], [], []>} : vector<17x17xf32>, vector<17x32xf32>, vector<17x32xf32> -> vector<17x32xf32>
    %c1_225 = arith.constant 1 : index
    %c0_226 = arith.constant 0 : index
    %c0_227 = arith.constant 0 : index
    %333 = vector.load %arg8[%c1_225, %c0_226, %c0_227] : memref<4x32x128xf32, #tpu.memory_space<vmem>>, vector<1x32x128xf32>
    %334 = vector.shape_cast %333 : vector<1x32x128xf32> to vector<32x128xf32>
    %cst_228 = arith.constant dense<0.000000e+00> : vector<17x128xf32>
    %335 = tpu.matmul %332, %334, %cst_228 {dimension_numbers = #tpu.dot_dimension_numbers<[1], [0], [0], [1], [0, 0, 1, 1], [], []>} : vector<17x32xf32>, vector<32x128xf32>, vector<17x128xf32> -> vector<17x128xf32>
    %336 = arith.addf %297, %335 : vector<17x128xf32>
    %c2_229 = arith.constant 2 : index
    %c0_230 = arith.constant 0 : index
    %c0_231 = arith.constant 0 : index
    %337 = vector.load %arg2[%c2_229, %c0_230, %c0_231] : memref<4x128x32xf32, #tpu.memory_space<vmem>>, vector<1x128x32xf32>
    %338 = vector.shape_cast %337 : vector<1x128x32xf32> to vector<128x32xf32>
    %cst_232 = arith.constant dense<0.000000e+00> : vector<17x32xf32>
    %339 = tpu.matmul %257, %338, %cst_232 {dimension_numbers = #tpu.dot_dimension_numbers<[1], [0], [0], [1], [0, 0, 1, 1], [], []>} : vector<17x128xf32>, vector<128x32xf32>, vector<17x32xf32> -> vector<17x32xf32>
    %c2_233 = arith.constant 2 : index
    %c0_234 = arith.constant 0 : index
    %c0_235 = arith.constant 0 : index
    %340 = vector.load %arg5[%c2_233, %c0_234, %c0_235] : memref<4x1x32xf32, #tpu.memory_space<vmem>>, vector<1x1x32xf32>
    %341 = vector.shape_cast %340 : vector<1x1x32xf32> to vector<1x32xf32>
    %342 = vector.broadcast %341 : vector<1x32xf32> to vector<17x32xf32>
    %343 = arith.addf %339, %342 : vector<17x32xf32>
    %c2_236 = arith.constant 2 : index
    %c0_237 = arith.constant 0 : index
    %c0_238 = arith.constant 0 : index
    %344 = vector.load %arg3[%c2_236, %c0_237, %c0_238] : memref<4x128x32xf32, #tpu.memory_space<vmem>>, vector<1x128x32xf32>
    %345 = vector.shape_cast %344 : vector<1x128x32xf32> to vector<128x32xf32>
    %cst_239 = arith.constant dense<0.000000e+00> : vector<17x32xf32>
    %346 = tpu.matmul %257, %345, %cst_239 {dimension_numbers = #tpu.dot_dimension_numbers<[1], [0], [0], [1], [0, 0, 1, 1], [], []>} : vector<17x128xf32>, vector<128x32xf32>, vector<17x32xf32> -> vector<17x32xf32>
    %c2_240 = arith.constant 2 : index
    %c0_241 = arith.constant 0 : index
    %c0_242 = arith.constant 0 : index
    %347 = vector.load %arg6[%c2_240, %c0_241, %c0_242] : memref<4x1x32xf32, #tpu.memory_space<vmem>>, vector<1x1x32xf32>
    %348 = vector.shape_cast %347 : vector<1x1x32xf32> to vector<1x32xf32>
    %349 = vector.broadcast %348 : vector<1x32xf32> to vector<17x32xf32>
    %350 = arith.addf %346, %349 : vector<17x32xf32>
    %c2_243 = arith.constant 2 : index
    %c0_244 = arith.constant 0 : index
    %c0_245 = arith.constant 0 : index
    %351 = vector.load %arg4[%c2_243, %c0_244, %c0_245] : memref<4x128x32xf32, #tpu.memory_space<vmem>>, vector<1x128x32xf32>
    %352 = vector.shape_cast %351 : vector<1x128x32xf32> to vector<128x32xf32>
    %cst_246 = arith.constant dense<0.000000e+00> : vector<17x32xf32>
    %353 = tpu.matmul %257, %352, %cst_246 {dimension_numbers = #tpu.dot_dimension_numbers<[1], [0], [0], [1], [0, 0, 1, 1], [], []>} : vector<17x128xf32>, vector<128x32xf32>, vector<17x32xf32> -> vector<17x32xf32>
    %c2_247 = arith.constant 2 : index
    %c0_248 = arith.constant 0 : index
    %c0_249 = arith.constant 0 : index
    %354 = vector.load %arg7[%c2_247, %c0_248, %c0_249] : memref<4x1x32xf32, #tpu.memory_space<vmem>>, vector<1x1x32xf32>
    %355 = vector.shape_cast %354 : vector<1x1x32xf32> to vector<1x32xf32>
    %356 = vector.broadcast %355 : vector<1x32xf32> to vector<17x32xf32>
    %357 = arith.addf %353, %356 : vector<17x32xf32>
    %358 = tpu.transpose %350, [1, 0] : vector<17x32xf32> -> vector<32x17xf32>
    %cst_250 = arith.constant dense<0.000000e+00> : vector<17x17xf32>
    %359 = tpu.matmul %343, %358, %cst_250 {dimension_numbers = #tpu.dot_dimension_numbers<[1], [0], [0], [1], [0, 0, 1, 1], [], []>} : vector<17x32xf32>, vector<32x17xf32>, vector<17x17xf32> -> vector<17x17xf32>
    %cst_251 = arith.constant 0.176776692 : f32
    %360 = vector.broadcast %cst_251 : f32 to vector<17x17xf32>
    %361 = arith.mulf %359, %360 : vector<17x17xf32>
    %cst_252 = arith.constant dense<0xFF800000> : vector<17xf32>
    %362 = vector.multi_reduction <maximumf>, %361, %cst_252 [1] : vector<17x17xf32> to vector<17xf32>
    %363 = vector.shape_cast %362 : vector<17xf32> to vector<17x1xf32>
    %364 = vector.broadcast %363 : vector<17x1xf32> to vector<17x17xf32>
    %365 = arith.subf %361, %364 : vector<17x17xf32>
    %366 = math.exp %365 : vector<17x17xf32>
    %cst_253 = arith.constant dense<0.000000e+00> : vector<17xf32>
    %367 = vector.multi_reduction <add>, %366, %cst_253 [1] : vector<17x17xf32> to vector<17xf32>
    %368 = vector.shape_cast %367 : vector<17xf32> to vector<17x1xf32>
    %369 = vector.broadcast %368 : vector<17x1xf32> to vector<17x17xf32>
    %370 = arith.divf %366, %369 : vector<17x17xf32>
    %cst_254 = arith.constant dense<0.000000e+00> : vector<17x32xf32>
    %371 = tpu.matmul %370, %357, %cst_254 {dimension_numbers = #tpu.dot_dimension_numbers<[1], [0], [0], [1], [0, 0, 1, 1], [], []>} : vector<17x17xf32>, vector<17x32xf32>, vector<17x32xf32> -> vector<17x32xf32>
    %c2_255 = arith.constant 2 : index
    %c0_256 = arith.constant 0 : index
    %c0_257 = arith.constant 0 : index
    %372 = vector.load %arg8[%c2_255, %c0_256, %c0_257] : memref<4x32x128xf32, #tpu.memory_space<vmem>>, vector<1x32x128xf32>
    %373 = vector.shape_cast %372 : vector<1x32x128xf32> to vector<32x128xf32>
    %cst_258 = arith.constant dense<0.000000e+00> : vector<17x128xf32>
    %374 = tpu.matmul %371, %373, %cst_258 {dimension_numbers = #tpu.dot_dimension_numbers<[1], [0], [0], [1], [0, 0, 1, 1], [], []>} : vector<17x32xf32>, vector<32x128xf32>, vector<17x128xf32> -> vector<17x128xf32>
    %375 = arith.addf %336, %374 : vector<17x128xf32>
    %c3_259 = arith.constant 3 : index
    %c0_260 = arith.constant 0 : index
    %c0_261 = arith.constant 0 : index
    %376 = vector.load %arg2[%c3_259, %c0_260, %c0_261] : memref<4x128x32xf32, #tpu.memory_space<vmem>>, vector<1x128x32xf32>
    %377 = vector.shape_cast %376 : vector<1x128x32xf32> to vector<128x32xf32>
    %cst_262 = arith.constant dense<0.000000e+00> : vector<17x32xf32>
    %378 = tpu.matmul %257, %377, %cst_262 {dimension_numbers = #tpu.dot_dimension_numbers<[1], [0], [0], [1], [0, 0, 1, 1], [], []>} : vector<17x128xf32>, vector<128x32xf32>, vector<17x32xf32> -> vector<17x32xf32>
    %c3_263 = arith.constant 3 : index
    %c0_264 = arith.constant 0 : index
    %c0_265 = arith.constant 0 : index
    %379 = vector.load %arg5[%c3_263, %c0_264, %c0_265] : memref<4x1x32xf32, #tpu.memory_space<vmem>>, vector<1x1x32xf32>
    %380 = vector.shape_cast %379 : vector<1x1x32xf32> to vector<1x32xf32>
    %381 = vector.broadcast %380 : vector<1x32xf32> to vector<17x32xf32>
    %382 = arith.addf %378, %381 : vector<17x32xf32>
    %c3_266 = arith.constant 3 : index
    %c0_267 = arith.constant 0 : index
    %c0_268 = arith.constant 0 : index
    %383 = vector.load %arg3[%c3_266, %c0_267, %c0_268] : memref<4x128x32xf32, #tpu.memory_space<vmem>>, vector<1x128x32xf32>
    %384 = vector.shape_cast %383 : vector<1x128x32xf32> to vector<128x32xf32>
    %cst_269 = arith.constant dense<0.000000e+00> : vector<17x32xf32>
    %385 = tpu.matmul %257, %384, %cst_269 {dimension_numbers = #tpu.dot_dimension_numbers<[1], [0], [0], [1], [0, 0, 1, 1], [], []>} : vector<17x128xf32>, vector<128x32xf32>, vector<17x32xf32> -> vector<17x32xf32>
    %c3_270 = arith.constant 3 : index
    %c0_271 = arith.constant 0 : index
    %c0_272 = arith.constant 0 : index
    %386 = vector.load %arg6[%c3_270, %c0_271, %c0_272] : memref<4x1x32xf32, #tpu.memory_space<vmem>>, vector<1x1x32xf32>
    %387 = vector.shape_cast %386 : vector<1x1x32xf32> to vector<1x32xf32>
    %388 = vector.broadcast %387 : vector<1x32xf32> to vector<17x32xf32>
    %389 = arith.addf %385, %388 : vector<17x32xf32>
    %c3_273 = arith.constant 3 : index
    %c0_274 = arith.constant 0 : index
    %c0_275 = arith.constant 0 : index
    %390 = vector.load %arg4[%c3_273, %c0_274, %c0_275] : memref<4x128x32xf32, #tpu.memory_space<vmem>>, vector<1x128x32xf32>
    %391 = vector.shape_cast %390 : vector<1x128x32xf32> to vector<128x32xf32>
    %cst_276 = arith.constant dense<0.000000e+00> : vector<17x32xf32>
    %392 = tpu.matmul %257, %391, %cst_276 {dimension_numbers = #tpu.dot_dimension_numbers<[1], [0], [0], [1], [0, 0, 1, 1], [], []>} : vector<17x128xf32>, vector<128x32xf32>, vector<17x32xf32> -> vector<17x32xf32>
    %c3_277 = arith.constant 3 : index
    %c0_278 = arith.constant 0 : index
    %c0_279 = arith.constant 0 : index
    %393 = vector.load %arg7[%c3_277, %c0_278, %c0_279] : memref<4x1x32xf32, #tpu.memory_space<vmem>>, vector<1x1x32xf32>
    %394 = vector.shape_cast %393 : vector<1x1x32xf32> to vector<1x32xf32>
    %395 = vector.broadcast %394 : vector<1x32xf32> to vector<17x32xf32>
    %396 = arith.addf %392, %395 : vector<17x32xf32>
    %397 = tpu.transpose %389, [1, 0] : vector<17x32xf32> -> vector<32x17xf32>
    %cst_280 = arith.constant dense<0.000000e+00> : vector<17x17xf32>
    %398 = tpu.matmul %382, %397, %cst_280 {dimension_numbers = #tpu.dot_dimension_numbers<[1], [0], [0], [1], [0, 0, 1, 1], [], []>} : vector<17x32xf32>, vector<32x17xf32>, vector<17x17xf32> -> vector<17x17xf32>
    %cst_281 = arith.constant 0.176776692 : f32
    %399 = vector.broadcast %cst_281 : f32 to vector<17x17xf32>
    %400 = arith.mulf %398, %399 : vector<17x17xf32>
    %cst_282 = arith.constant dense<0xFF800000> : vector<17xf32>
    %401 = vector.multi_reduction <maximumf>, %400, %cst_282 [1] : vector<17x17xf32> to vector<17xf32>
    %402 = vector.shape_cast %401 : vector<17xf32> to vector<17x1xf32>
    %403 = vector.broadcast %402 : vector<17x1xf32> to vector<17x17xf32>
    %404 = arith.subf %400, %403 : vector<17x17xf32>
    %405 = math.exp %404 : vector<17x17xf32>
    %cst_283 = arith.constant dense<0.000000e+00> : vector<17xf32>
    %406 = vector.multi_reduction <add>, %405, %cst_283 [1] : vector<17x17xf32> to vector<17xf32>
    %407 = vector.shape_cast %406 : vector<17xf32> to vector<17x1xf32>
    %408 = vector.broadcast %407 : vector<17x1xf32> to vector<17x17xf32>
    %409 = arith.divf %405, %408 : vector<17x17xf32>
    %cst_284 = arith.constant dense<0.000000e+00> : vector<17x32xf32>
    %410 = tpu.matmul %409, %396, %cst_284 {dimension_numbers = #tpu.dot_dimension_numbers<[1], [0], [0], [1], [0, 0, 1, 1], [], []>} : vector<17x17xf32>, vector<17x32xf32>, vector<17x32xf32> -> vector<17x32xf32>
    %c3_285 = arith.constant 3 : index
    %c0_286 = arith.constant 0 : index
    %c0_287 = arith.constant 0 : index
    %411 = vector.load %arg8[%c3_285, %c0_286, %c0_287] : memref<4x32x128xf32, #tpu.memory_space<vmem>>, vector<1x32x128xf32>
    %412 = vector.shape_cast %411 : vector<1x32x128xf32> to vector<32x128xf32>
    %cst_288 = arith.constant dense<0.000000e+00> : vector<17x128xf32>
    %413 = tpu.matmul %410, %412, %cst_288 {dimension_numbers = #tpu.dot_dimension_numbers<[1], [0], [0], [1], [0, 0, 1, 1], [], []>} : vector<17x32xf32>, vector<32x128xf32>, vector<17x128xf32> -> vector<17x128xf32>
    %414 = arith.addf %375, %413 : vector<17x128xf32>
    %415 = arith.addf %235, %414 : vector<17x128xf32>
    %c0_289 = arith.constant 0 : index
    %c0_290 = arith.constant 0 : index
    %416 = vector.load %arg9[%c0_289, %c0_290] : memref<1x128xf32, #tpu.memory_space<vmem>>, vector<1x128xf32>
    %417 = vector.broadcast %416 : vector<1x128xf32> to vector<17x128xf32>
    %418 = arith.addf %415, %417 : vector<17x128xf32>
    %c0_291 = arith.constant 0 : index
    %c0_292 = arith.constant 0 : index
    %419 = vector.load %arg12[%c0_291, %c0_292] : memref<1x128xf32, #tpu.memory_space<vmem>>, vector<1x128xf32>
    %c0_293 = arith.constant 0 : index
    %c0_294 = arith.constant 0 : index
    %420 = vector.load %arg13[%c0_293, %c0_294] : memref<1x128xf32, #tpu.memory_space<vmem>>, vector<1x128xf32>
    %cst_295 = arith.constant dense<0.000000e+00> : vector<17xf32>
    %421 = vector.multi_reduction <add>, %418, %cst_295 [1] : vector<17x128xf32> to vector<17xf32>
    %422 = vector.shape_cast %421 : vector<17xf32> to vector<17x1xf32>
    %cst_296 = arith.constant 1.280000e+02 : f32
    %423 = vector.broadcast %cst_296 : f32 to vector<17x1xf32>
    %424 = arith.divf %422, %423 : vector<17x1xf32>
    %425 = vector.broadcast %424 : vector<17x1xf32> to vector<17x128xf32>
    %426 = arith.subf %418, %425 : vector<17x128xf32>
    %427 = arith.mulf %426, %426 : vector<17x128xf32>
    %cst_297 = arith.constant dense<0.000000e+00> : vector<17xf32>
    %428 = vector.multi_reduction <add>, %427, %cst_297 [1] : vector<17x128xf32> to vector<17xf32>
    %429 = vector.shape_cast %428 : vector<17xf32> to vector<17x1xf32>
    %cst_298 = arith.constant 1.280000e+02 : f32
    %430 = vector.broadcast %cst_298 : f32 to vector<17x1xf32>
    %431 = arith.divf %429, %430 : vector<17x1xf32>
    %cst_299 = arith.constant 9.99999974E-6 : f32
    %432 = vector.broadcast %cst_299 : f32 to vector<17x1xf32>
    %433 = arith.addf %431, %432 : vector<17x1xf32>
    %434 = math.rsqrt %433 : vector<17x1xf32>
    %435 = vector.broadcast %434 : vector<17x1xf32> to vector<17x128xf32>
    %436 = arith.mulf %426, %435 : vector<17x128xf32>
    %437 = vector.broadcast %419 : vector<1x128xf32> to vector<17x128xf32>
    %438 = arith.mulf %436, %437 : vector<17x128xf32>
    %439 = vector.broadcast %420 : vector<1x128xf32> to vector<17x128xf32>
    %440 = arith.addf %438, %439 : vector<17x128xf32>
    %c0_300 = arith.constant 0 : index
    %c0_301 = arith.constant 0 : index
    %441 = vector.load %arg14[%c0_300, %c0_301] : memref<128x256xf32, #tpu.memory_space<vmem>>, vector<128x256xf32>
    %cst_302 = arith.constant dense<0.000000e+00> : vector<17x256xf32>
    %442 = tpu.matmul %440, %441, %cst_302 {dimension_numbers = #tpu.dot_dimension_numbers<[1], [0], [0], [1], [0, 0, 1, 1], [], []>} : vector<17x128xf32>, vector<128x256xf32>, vector<17x256xf32> -> vector<17x256xf32>
    %c0_303 = arith.constant 0 : index
    %c0_304 = arith.constant 0 : index
    %443 = vector.load %arg15[%c0_303, %c0_304] : memref<1x256xf32, #tpu.memory_space<vmem>>, vector<1x256xf32>
    %444 = vector.broadcast %443 : vector<1x256xf32> to vector<17x256xf32>
    %445 = arith.addf %442, %444 : vector<17x256xf32>
    %cst_305 = arith.constant 5.000000e-01 : f32
    %446 = vector.broadcast %cst_305 : f32 to vector<17x256xf32>
    %447 = arith.mulf %446, %445 : vector<17x256xf32>
    %448 = arith.mulf %445, %445 : vector<17x256xf32>
    %449 = arith.mulf %448, %445 : vector<17x256xf32>
    %cst_306 = arith.constant 4.471500e-02 : f32
    %450 = vector.broadcast %cst_306 : f32 to vector<17x256xf32>
    %451 = arith.mulf %450, %449 : vector<17x256xf32>
    %452 = arith.addf %445, %451 : vector<17x256xf32>
    %cst_307 = arith.constant 0.797884583 : f32
    %453 = vector.broadcast %cst_307 : f32 to vector<17x256xf32>
    %454 = arith.mulf %453, %452 : vector<17x256xf32>
    %455 = math.tanh %454 : vector<17x256xf32>
    %cst_308 = arith.constant 1.000000e+00 : f32
    %456 = vector.broadcast %cst_308 : f32 to vector<17x256xf32>
    %457 = arith.addf %456, %455 : vector<17x256xf32>
    %458 = arith.mulf %447, %457 : vector<17x256xf32>
    %c0_309 = arith.constant 0 : index
    %c0_310 = arith.constant 0 : index
    %459 = vector.load %arg16[%c0_309, %c0_310] : memref<256x128xf32, #tpu.memory_space<vmem>>, vector<256x128xf32>
    %cst_311 = arith.constant dense<0.000000e+00> : vector<17x128xf32>
    %460 = tpu.matmul %458, %459, %cst_311 {dimension_numbers = #tpu.dot_dimension_numbers<[1], [0], [0], [1], [0, 0, 1, 1], [], []>} : vector<17x256xf32>, vector<256x128xf32>, vector<17x128xf32> -> vector<17x128xf32>
    %461 = arith.addf %418, %460 : vector<17x128xf32>
    %c0_312 = arith.constant 0 : index
    %c0_313 = arith.constant 0 : index
    %462 = vector.load %arg17[%c0_312, %c0_313] : memref<1x128xf32, #tpu.memory_space<vmem>>, vector<1x128xf32>
    %463 = vector.broadcast %462 : vector<1x128xf32> to vector<17x128xf32>
    %464 = arith.addf %461, %463 : vector<17x128xf32>
    %c1_314 = arith.constant 1 : index
    %c0_315 = arith.constant 0 : index
    %c0_316 = arith.constant 0 : index
    %465 = vector.load %arg18[%c1_314, %c0_315, %c0_316] : memref<2x17x128xf32, #tpu.memory_space<vmem>>, vector<1x17x128xf32>
    %466 = vector.shape_cast %465 : vector<1x17x128xf32> to vector<17x128xf32>
    %467 = vector.shape_cast %464 : vector<17x128xf32> to vector<1x17x128xf32>
    tpu.vector_store %arg18[%c1_314, %c0_315, %c0_316], %467 {strides = array<i32>} : memref<2x17x128xf32, #tpu.memory_space<vmem>>, vector<1x17x128xf32>,
    return
  }
  func.func @transform_0(%arg0: i32) -> (i32, i32, i32) {
    %c0_i32 = arith.constant 0 : i32
    %c0_i32_0 = arith.constant 0 : i32
    %c0_i32_1 = arith.constant 0 : i32
    return %arg0, %c0_i32, %c0_i32_0 : i32, i32, i32
  }
  func.func @transform_1(%arg0: i32) -> (i32, i32, i32) {
    %c0_i32 = arith.constant 0 : i32
    %c0_i32_0 = arith.constant 0 : i32
    %c0_i32_1 = arith.constant 0 : i32
    %c0_i32_2 = arith.constant 0 : i32
    return %c0_i32, %c0_i32_0, %c0_i32_1 : i32, i32, i32
  }
  func.func @transform_2(%arg0: i32) -> (i32, i32, i32) {
    %c0_i32 = arith.constant 0 : i32
    %c0_i32_0 = arith.constant 0 : i32
    %c0_i32_1 = arith.constant 0 : i32
    %c0_i32_2 = arith.constant 0 : i32
    return %c0_i32, %c0_i32_0, %c0_i32_1 : i32, i32, i32
  }
  func.func @transform_3(%arg0: i32) -> (i32, i32, i32) {
    %c0_i32 = arith.constant 0 : i32
    %c0_i32_0 = arith.constant 0 : i32
    %c0_i32_1 = arith.constant 0 : i32
    %c0_i32_2 = arith.constant 0 : i32
    return %c0_i32, %c0_i32_0, %c0_i32_1 : i32, i32, i32
  }
  func.func @transform_4(%arg0: i32) -> (i32, i32, i32) {
    %c0_i32 = arith.constant 0 : i32
    %c0_i32_0 = arith.constant 0 : i32
    %c0_i32_1 = arith.constant 0 : i32
    %c0_i32_2 = arith.constant 0 : i32
    return %c0_i32, %c0_i32_0, %c0_i32_1 : i32, i32, i32
  }
  func.func @transform_5(%arg0: i32) -> (i32, i32, i32) {
    %c0_i32 = arith.constant 0 : i32
    %c0_i32_0 = arith.constant 0 : i32
    %c0_i32_1 = arith.constant 0 : i32
    %c0_i32_2 = arith.constant 0 : i32
    return %c0_i32, %c0_i32_0, %c0_i32_1 : i32, i32, i32
  }
  func.func @transform_6(%arg0: i32) -> (i32, i32, i32) {
    %c0_i32 = arith.constant 0 : i32
    %c0_i32_0 = arith.constant 0 : i32
    %c0_i32_1 = arith.constant 0 : i32
    %c0_i32_2 = arith.constant 0 : i32
    return %c0_i32, %c0_i32_0, %c0_i32_1 : i32, i32, i32
  }
  func.func @transform_7(%arg0: i32) -> (i32, i32, i32) {
    %c0_i32 = arith.constant 0 : i32
    %c0_i32_0 = arith.constant 0 : i32
    %c0_i32_1 = arith.constant 0 : i32
    %c0_i32_2 = arith.constant 0 : i32
    return %c0_i32, %c0_i32_0, %c0_i32_1 : i32, i32, i32
  }
  func.func @transform_8(%arg0: i32) -> (i32, i32) {
    %c0_i32 = arith.constant 0 : i32
    %c0_i32_0 = arith.constant 0 : i32
    %c0_i32_1 = arith.constant 0 : i32
    return %c0_i32, %c0_i32_0 : i32, i32
  }
  func.func @transform_9(%arg0: i32) -> (i32, i32) {
    %c0_i32 = arith.constant 0 : i32
    %c0_i32_0 = arith.constant 0 : i32
    %c0_i32_1 = arith.constant 0 : i32
    return %c0_i32, %c0_i32_0 : i32, i32
  }
  func.func @transform_10(%arg0: i32) -> (i32, i32) {
    %c0_i32 = arith.constant 0 : i32
    %c0_i32_0 = arith.constant 0 : i32
    %c0_i32_1 = arith.constant 0 : i32
    return %c0_i32, %c0_i32_0 : i32, i32
  }
  func.func @transform_11(%arg0: i32) -> (i32, i32) {
    %c0_i32 = arith.constant 0 : i32
    %c0_i32_0 = arith.constant 0 : i32
    %c0_i32_1 = arith.constant 0 : i32
    return %c0_i32, %c0_i32_0 : i32, i32
  }
  func.func @transform_12(%arg0: i32) -> (i32, i32) {
    %c0_i32 = arith.constant 0 : i32
    %c0_i32_0 = arith.constant 0 : i32
    %c0_i32_1 = arith.constant 0 : i32
    return %c0_i32, %c0_i32_0 : i32, i32
  }
  func.func @transform_13(%arg0: i32) -> (i32, i32) {
    %c0_i32 = arith.constant 0 : i32
    %c0_i32_0 = arith.constant 0 : i32
    %c0_i32_1 = arith.constant 0 : i32
    return %c0_i32, %c0_i32_0 : i32, i32
  }
  func.func @transform_14(%arg0: i32) -> (i32, i32) {
    %c0_i32 = arith.constant 0 : i32
    %c0_i32_0 = arith.constant 0 : i32
    %c0_i32_1 = arith.constant 0 : i32
    return %c0_i32, %c0_i32_0 : i32, i32
  }
  func.func @transform_15(%arg0: i32) -> (i32, i32) {
    %c0_i32 = arith.constant 0 : i32
    %c0_i32_0 = arith.constant 0 : i32
    %c0_i32_1 = arith.constant 0 : i32
    return %c0_i32, %c0_i32_0 : i32, i32
  }
  func.func @transform_16(%arg0: i32) -> (i32, i32) {
    %c0_i32 = arith.constant 0 : i32
    %c0_i32_0 = arith.constant 0 : i32
    %c0_i32_1 = arith.constant 0 : i32
    return %c0_i32, %c0_i32_0 : i32, i32
  }
  func.func @transform_17(%arg0: i32) -> (i32, i32, i32) {
    %c0_i32 = arith.constant 0 : i32
    %c0_i32_0 = arith.constant 0 : i32
    %c0_i32_1 = arith.constant 0 : i32
    return %arg0, %c0_i32, %c0_i32_0 : i32, i32, i32
  }
}

</mosaic_0001>

<llo_original>
// kernel: vit_forward_pallas.4
$region0: #{vit_forward_pallas.4}
  #allocation0 [shape = 'u32[]', space=smem, size = 0x4, offset = 0x4, fixed_abs, tag = 'smem constant byte address 0x4 - core index']
  #allocation1 [shape = 'u32[144,128]{1,0:T(1,128)}', space=vmem, size = 0x12000, scoped, tag = 'internal scratch']
  %s0 = inlined_call_operand.vmem [shape: f32[2,17,64], index: 0, kind: input, shape index: {}]
  %s1 = inlined_call_operand.vmem [shape: f32[64,128], index: 1, kind: input, shape index: {}]
  %s2 = inlined_call_operand.vmem [shape: f32[17,128], index: 2, kind: input, shape index: {}]
  %s3 = inlined_call_operand.vmem [shape: f32[2,17,128], index: 3, kind: output, shape index: {}]
  %s4 = sld [smem:[#allocation0]]
  $region22: #{vit_forward_pallas.4} parent=0
    _
  %s6 = ssub.s32 1, %s4
  %s7 = scalar_select 0, %s6, %s4
  // Predicated region
  $region2: #{vit_forward_pallas.4} parent=0 // pred_check
    _
  $region3: #{vit_forward_pallas.4} parent=0 // pred_check_branch
    %9 = sbr.rel (0) target = $region5
  $region4: #{vit_forward_pallas.4} parent=0 // pred_region
    _
  $region5: #{vit_forward_pallas.4} parent=0 // pred_fallthru
    _
  // Predicated region
  $region6: #{vit_forward_pallas.4} parent=0 // pred_check
    _
  $region7: #{vit_forward_pallas.4} parent=0 // pred_check_branch
    %11 = sbr.rel (0) target = $region9
  $region8: #{vit_forward_pallas.4} parent=0 // pred_region
    _
  $region9: #{vit_forward_pallas.4} parent=0 // pred_fallthru
    _
  // Predicated region
  $region10: #{vit_forward_pallas.4} parent=0 // pred_check
    _
  $region11: #{vit_forward_pallas.4} parent=0 // pred_check_branch
    %13 = sbr.rel (0) target = $region13
  $region12: #{vit_forward_pallas.4} parent=0 // pred_region
    _
  $region13: #{vit_forward_pallas.4} parent=0 // pred_fallthru
    _
  %v14 = vld [vmem:[%s0] sm:$0xff]
  %v15 = vld [vmem:[%s0 + $0x8] sm:$0xff]
  %v16 = vld [vmem:[%s0 + $0x10] sm:$0x1]
  %v17 = vld [vmem:[%s1] sm:$0xff]
  %v18 = vld [vmem:[%s1 + $0x8] sm:$0xff]
  %v19 = vld [vmem:[%s1 + $0x10] sm:$0xff]
  %v20 = vld [vmem:[%s1 + $0x18] sm:$0xff]
  %v21 = vld [vmem:[%s1 + $0x20] sm:$0xff]
  %v22 = vld [vmem:[%s1 + $0x28] sm:$0xff]
  %v23 = vld [vmem:[%s1 + $0x30] sm:$0xff]
  %v24 = vld [vmem:[%s1 + $0x38] sm:$0xff]
  %v25 = vld [vmem:[%s2] sm:$0xff]
  %v26 = vld [vmem:[%s2 + $0x8] sm:$0xff]
  %v27 = vld [vmem:[%s2 + $0x10] sm:$0x1]
  %vm28 = vcmask 523264
  %v30 = vsel %vm28, %v14, 0
  %v33 = vsel %vm28, %v15, 0
  %v36 = vsel %vm28, %v16, 0
  %38 = vmatprep.subr.mxu0 0.0
  %39 = vmatpush1.msra.mxu0 %v17
  %40 = vmatprep.subr.mxu0 0.0
  %41 = vmatpush1.msra.mxu0 %v18
  %42 = vmatprep.subr.mxu0 0.0
  %43 = vmatpush1.msra.mxu0 %v19
  %44 = vmatprep.subr.mxu0 0.0
  %45 = vmatpush1.msra.mxu0 %v20
  %46 = vmatprep.subr.mxu0 0.0
  %47 = vmatpush1.msra.mxu0 %v21
  %48 = vmatprep.subr.mxu0 0.0
  %49 = vmatpush1.msra.mxu0 %v22
  %50 = vmatprep.subr.mxu0 0.0
  %51 = vmatpush1.msra.mxu0 %v23
  %52 = vmatprep.subr.mxu0 0.0
  %53 = vmatpush1.msra.mxu0 %v24
  %54 = vmatprep.subr.mxu0 0.0
  %55 = vmatpush1.msra.mxu0 0.0
  %56 = vmatprep.subr.mxu0 0.0
  %57 = vmatpush1.msra.mxu0 0.0
  %58 = vmatprep.subr.mxu0 0.0
  %59 = vmatpush1.msra.mxu0 0.0
  %60 = vmatprep.subr.mxu0 0.0
  %61 = vmatpush1.msra.mxu0 0.0
  %62 = vmatprep.subr.mxu0 0.0
  %63 = vmatpush1.msra.mxu0 0.0
  %64 = vmatprep.subr.mxu0 0.0
  %65 = vmatpush1.msra.mxu0 0.0
  %66 = vmatprep.subr.mxu0 0.0
  %67 = vmatpush1.msra.mxu0 0.0
  %68 = vmatprep.subr.mxu0 0.0
  %69 = vmatpush1.msra.mxu0 0.0
  %70 = vmatprep.subr.mxu0 0.0
  %71 = vmatpush1.msra.mxu0 0.0
  %72 = vmatprep.subr.mxu0 0.0
  %73 = vmatpush1.msra.mxu0 0.0
  %74 = vmatprep.subr.mxu0 0.0
  %75 = vmatpush1.msra.mxu0 0.0
  %76 = vmatprep.subr.mxu0 0.0
  %77 = vmatpush1.msra.mxu0 0.0
  %78 = vmatprep.subr.mxu0 0.0
  %79 = vmatpush1.msra.mxu0 0.0
  %80 = vmatprep.subr.mxu0 0.0
  %81 = vmatpush1.msra.mxu0 0.0
  %82 = vmatprep.subr.mxu0 0.0
  %83 = vmatpush1.msra.mxu0 0.0
  %84 = vmatprep.subr.mxu0 0.0
  %85 = vmatpush1.msra.mxu0 0.0
  %86 = vmatprep.subr.mxu0 0.0
  %87 = vmatpush1.msra.mxu0 0.0
  %88 = vmatprep.subr.mxu0 0.0
  %89 = vmatpush1.msra.mxu0 0.0
  %90 = vmatprep.subr.mxu0 0.0
  %91 = vmatpush1.msra.mxu0 0.0
  %92 = vmatprep.subr.mxu0 0.0
  %93 = vmatpush1.msra.mxu0 0.0
  %94 = vmatprep.subr.mxu0 0.0
  %95 = vmatpush1.msra.mxu0 0.0
  %96 = vmatprep.subr.mxu0 0.0
  %97 = vmatpush1.msra.mxu0 0.0
  %98 = vmatprep.subr.mxu0 0.0
  %99 = vmatpush1.msra.mxu0 0.0
  %100 = vmatprep.subr.mxu0 0.0
  %101 = vmatpush1.msra.mxu0 0.0
  %102 = vmatprep.mubr.f32.mxu0 0.0
  %103 = vmatmul.mubr.f32.gmra.mrb[0].mxu0 %v30
  %v104 = vpop.f32.mrb[0].mxu0
  %v105 = vadd.f32 %v25, %v104
  %v106 = vpop.f32.mrb[0].mxu0
  %107 = vmatprep.mubr.f32.mxu0 0.0
  %108 = vmatmul.mubr.f32.gmra.mrb[0].mxu0 %v33
  %v109 = vpop.f32.mrb[0].mxu0
  %v110 = vadd.f32 %v26, %v109
  %v111 = vpop.f32.mrb[0].mxu0
  %112 = vmatprep.mubr.f32.mxu0 0.0
  %113 = vmatmul.mubr.f32.gmra.mrb[0].mxu0 %v36
  %v114 = vpop.f32.mrb[0].mxu0
  %v115 = vadd.f32 %v27, %v114
  %v116 = vpop.f32.mrb[0].mxu0
  %117 = vdwg.mxu0
  %118 = vst [vmem:[%s3] sm:$0xff] %v105
  %119 = vst [vmem:[%s3 + $0x8] sm:$0xff] %v110
  %120 = vst [vmem:[%s3 + $0x10] sm:$0x1] %v115
  %s121 = scalar_lea.vmem %s0, 24
  %v122 = vld [vmem:[%s121] sm:$0xff]
  %v123 = vld [vmem:[%s121 + $0x8] sm:$0xff]
  %v124 = vld [vmem:[%s121 + $0x10] sm:$0x1]
  %v125 = vld [vmem:[%s1] sm:$0xff]
  %v126 = vld [vmem:[%s1 + $0x8] sm:$0xff]
  %v127 = vld [vmem:[%s1 + $0x10] sm:$0xff]
  %v128 = vld [vmem:[%s1 + $0x18] sm:$0xff]
  %v129 = vld [vmem:[%s1 + $0x20] sm:$0xff]
  %v130 = vld [vmem:[%s1 + $0x28] sm:$0xff]
  %v131 = vld [vmem:[%s1 + $0x30] sm:$0xff]
  %v132 = vld [vmem:[%s1 + $0x38] sm:$0xff]
  %v133 = vld [vmem:[%s2] sm:$0xff]
  %v134 = vld [vmem:[%s2 + $0x8] sm:$0xff]
  %v135 = vld [vmem:[%s2 + $0x10] sm:$0x1]
  %v137 = vsel %vm28, %v122, 0
  %v140 = vsel %vm28, %v123, 0
  %v143 = vsel %vm28, %v124, 0
  %145 = vmatprep.subr.mxu0 0.0
  %146 = vmatpush1.msra.mxu0 %v125
  %147 = vmatprep.subr.mxu0 0.0
  %148 = vmatpush1.msra.mxu0 %v126
  %149 = vmatprep.subr.mxu0 0.0
  %150 = vmatpush1.msra.mxu0 %v127
  %151 = vmatprep.subr.mxu0 0.0
  %152 = vmatpush1.msra.mxu0 %v128
  %153 = vmatprep.subr.mxu0 0.0
  %154 = vmatpush1.msra.mxu0 %v129
  %155 = vmatprep.subr.mxu0 0.0
  %156 = vmatpush1.msra.mxu0 %v130
  %157 = vmatprep.subr.mxu0 0.0
  %158 = vmatpush1.msra.mxu0 %v131
  %159 = vmatprep.subr.mxu0 0.0
  %160 = vmatpush1.msra.mxu0 %v132
  %161 = vmatprep.subr.mxu0 0.0
  %162 = vmatpush1.msra.mxu0 0.0
  %163 = vmatprep.subr.mxu0 0.0
  %164 = vmatpush1.msra.mxu0 0.0
  %165 = vmatprep.subr.mxu0 0.0
  %166 = vmatpush1.msra.mxu0 0.0
  %167 = vmatprep.subr.mxu0 0.0
  %168 = vmatpush1.msra.mxu0 0.0
  %169 = vmatprep.subr.mxu0 0.0
  %170 = vmatpush1.msra.mxu0 0.0
  %171 = vmatprep.subr.mxu0 0.0
  %172 = vmatpush1.msra.mxu0 0.0
  %173 = vmatprep.subr.mxu0 0.0
  %174 = vmatpush1.msra.mxu0 0.0
  %175 = vmatprep.subr.mxu0 0.0
  %176 = vmatpush1.msra.mxu0 0.0
  %177 = vmatprep.subr.mxu0 0.0
  %178 = vmatpush1.msra.mxu0 0.0
  %179 = vmatprep.subr.mxu0 0.0
  %180 = vmatpush1.msra.mxu0 0.0
  %181 = vmatprep.subr.mxu0 0.0
  %182 = vmatpush1.msra.mxu0 0.0
  %183 = vmatprep.subr.mxu0 0.0
  %184 = vmatpush1.msra.mxu0 0.0
  %185 = vmatprep.subr.mxu0 0.0
  %186 = vmatpush1.msra.mxu0 0.0
  %187 = vmatprep.subr.mxu0 0.0
  %188 = vmatpush1.msra.mxu0 0.0
  %189 = vmatprep.subr.mxu0 0.0
  %190 = vmatpush1.msra.mxu0 0.0
  %191 = vmatprep.subr.mxu0 0.0
  %192 = vmatpush1.msra.mxu0 0.0
  %193 = vmatprep.subr.mxu0 0.0
  %194 = vmatpush1.msra.mxu0 0.0
  %195 = vmatprep.subr.mxu0 0.0
  %196 = vmatpush1.msra.mxu0 0.0
  %197 = vmatprep.subr.mxu0 0.0
  %198 = vmatpush1.msra.mxu0 0.0
  %199 = vmatprep.subr.mxu0 0.0
  %200 = vmatpush1.msra.mxu0 0.0
  %201 = vmatprep.subr.mxu0 0.0
  %202 = vmatpush1.msra.mxu0 0.0
  %203 = vmatprep.subr.mxu0 0.0
  %204 = vmatpush1.msra.mxu0 0.0
  %205 = vmatprep.subr.mxu0 0.0
  %206 = vmatpush1.msra.mxu0 0.0
  %207 = vmatprep.subr.mxu0 0.0
  %208 = vmatpush1.msra.mxu0 0.0
  %209 = vmatprep.mubr.f32.mxu0 0.0
  %210 = vmatmul.mubr.f32.gmra.mrb[0].mxu0 %v137
  %v211 = vpop.f32.mrb[0].mxu0
  %v212 = vadd.f32 %v133, %v211
  %v213 = vpop.f32.mrb[0].mxu0
  %214 = vmatprep.mubr.f32.mxu0 0.0
  %215 = vmatmul.mubr.f32.gmra.mrb[0].mxu0 %v140
  %v216 = vpop.f32.mrb[0].mxu0
  %v217 = vadd.f32 %v134, %v216
  %v218 = vpop.f32.mrb[0].mxu0
  %219 = vmatprep.mubr.f32.mxu0 0.0
  %220 = vmatmul.mubr.f32.gmra.mrb[0].mxu0 %v143
  %v221 = vpop.f32.mrb[0].mxu0
  %v222 = vadd.f32 %v135, %v221
  %v223 = vpop.f32.mrb[0].mxu0
  %224 = vdwg.mxu0
  %s225 = scalar_lea.vmem %s3, 24
  %226 = vst [vmem:[%s225] sm:$0xff] %v212
  %227 = vst [vmem:[%s225 + $0x8] sm:$0xff] %v217
  %228 = vst [vmem:[%s225 + $0x10] sm:$0x1] %v222
  // Predicated region
  $region14: #{vit_forward_pallas.4} parent=0 // pred_check
    _
  $region15: #{vit_forward_pallas.4} parent=0 // pred_check_branch
    %230 = sbr.rel (0) target = $region17
  $region16: #{vit_forward_pallas.4} parent=0 // pred_region
    _
  $region17: #{vit_forward_pallas.4} parent=0 // pred_fallthru
    _
  // Predicated region
  $region18: #{vit_forward_pallas.4} parent=0 // pred_check
    _
  $region19: #{vit_forward_pallas.4} parent=0 // pred_check_branch
    %232 = sbr.rel (0) target = $region21
  $region20: #{vit_forward_pallas.4} parent=0 // pred_region
    _
  $region21: #{vit_forward_pallas.4} parent=0 // pred_fallthru
    _

// kernel: vit_forward_pallas.7
$region0: #{vit_forward_pallas.7}
  #allocation0 [shape = 'u32[]', space=smem, size = 0x4, offset = 0x4, fixed_abs, tag = 'smem constant byte address 0x4 - core index']
  #allocation1 [shape = 'u32[144,128]{1,0:T(1,128)}', space=vmem, size = 0x12000, scoped, tag = 'internal scratch']
  %s0 = inlined_call_operand.vmem [shape: f32[2,128], index: 0, kind: input, shape index: {}]
  %s1 = inlined_call_operand.vmem [shape: f32[1,128], index: 1, kind: input, shape index: {}]
  %s2 = inlined_call_operand.vmem [shape: f32[1,128], index: 2, kind: input, shape index: {}]
  %s3 = inlined_call_operand.vmem [shape: f32[128,10], index: 3, kind: input, shape index: {}]
  %s4 = inlined_call_operand.vmem [shape: f32[1,10], index: 4, kind: input, shape index: {}]
  %s5 = inlined_call_operand.hbm [shape: f32[2,10], index: 5, kind: output, shape index: {}]
  %s6 = sld [smem:[#allocation0]]
  $region30: #{vit_forward_pallas.7} parent=0
    _
  %s8 = ssub.s32 1, %s6
  %s9 = scalar_select 0, %s8, %s6
  $region1: #{vit_forward_pallas.7} parent=0
    #allocation2 [shape = 'u8[1024]{0}', space=vmem, size = 0x400, scoped, tag = 'output window, operand 0, single buffered']
    #allocation3 [shape = 's32[1]{0}', space=sflag, size = 0x4, scoped, tag = 'scoped memory for vit_forward_pallas.7']
    %10 = vsyncpa [#allocation3], 0
    // Predicated region
    $region2: #{vit_forward_pallas.7} parent=1 // pred_check
      _
    $region3: #{vit_forward_pallas.7} parent=1 // pred_check_branch
      %12 = sbr.rel (0) target = $region5
    $region4: #{vit_forward_pallas.7} parent=1 // pred_region
      _
    $region5: #{vit_forward_pallas.7} parent=1 // pred_fallthru
      _
    // Predicated region
    $region6: #{vit_forward_pallas.7} parent=1 // pred_check
      _
    $region7: #{vit_forward_pallas.7} parent=1 // pred_check_branch
      %14 = sbr.rel (0) target = $region9
    $region8: #{vit_forward_pallas.7} parent=1 // pred_region
      _
    $region9: #{vit_forward_pallas.7} parent=1 // pred_fallthru
      _
    // Predicated region
    $region10: #{vit_forward_pallas.7} parent=1 // pred_check
      _
    $region11: #{vit_forward_pallas.7} parent=1 // pred_check_branch
      %16 = sbr.rel (0) target = $region13
    $region12: #{vit_forward_pallas.7} parent=1 // pred_region
      _
    $region13: #{vit_forward_pallas.7} parent=1 // pred_fallthru
      _
    // Predicated region
    $region14: #{vit_forward_pallas.7} parent=1 // pred_check
      _
    $region15: #{vit_forward_pallas.7} parent=1 // pred_check_branch
      %18 = sbr.rel (0) target = $region17
    $region16: #{vit_forward_pallas.7} parent=1 // pred_region
      _
    $region17: #{vit_forward_pallas.7} parent=1 // pred_fallthru
      _
    // Predicated region
    $region18: #{vit_forward_pallas.7} parent=1 // pred_check
      _
    $region19: #{vit_forward_pallas.7} parent=1 // pred_check_branch
      %20 = sbr.rel (0) target = $region21
    $region20: #{vit_forward_pallas.7} parent=1 // pred_region
      _
    $region21: #{vit_forward_pallas.7} parent=1 // pred_fallthru
      _
    %v21 = vld [vmem:[%s0] sm:$0x3]
    %v22 = vld [vmem:[%s1] sm:$0x1]
    %v23 = vld [vmem:[%s2] sm:$0x1]
    %vm24 = vcmask 1041408
    %v25 = vsel %vm24, %v21, 0.0
    %26 = vadd.xlane.f32.xlu0 %v25
    %v27 = vpop.xlane.xlu0 %26
    %v28 = vrcp.pop 128.0
    %v29 = vmul.f32 %v27, %v28
    %v30 = vsub.f32 %v21, %v29
    %v31 = vmul.f32 %v30, %v30
    %v32 = vsel %vm24, %v31, 0.0
    %33 = vadd.xlane.f32.xlu0 %v32
    %v34 = vpop.xlane.xlu0 %33
    %v35 = vmul.f32 %v34, %v28
    %v36 = vadd.f32 %v35, 1e-05
    %v37 = vrsqrt.pop %v36
    %v38 = vmul.f32 %v30, %v37
    %v40 = vlaneseq
    %v41 = vshrl.u32 %v40, 7
    %v42 = vsub.s32 0, %v41
    %v43 = vrot.slane %v22, %v42
    %v45 = vmul.f32 %v38, %v43
    %v47 = vlaneseq
    %v48 = vshrl.u32 %v47, 7
    %v49 = vsub.s32 0, %v48
    %v50 = vrot.slane %v23, %v49
    %v52 = vadd.f32 %v45, %v50
    %v53 = vld [vmem:[%s3] sm:$0xff]
    %v54 = vld [vmem:[%s3 + $0x8] sm:$0xff]
    %v55 = vld [vmem:[%s3 + $0x10] sm:$0xff]
    %v56 = vld [vmem:[%s3 + $0x18] sm:$0xff]
    %v57 = vld [vmem:[%s3 + $0x20] sm:$0xff]
    %v58 = vld [vmem:[%s3 + $0x28] sm:$0xff]
    %v59 = vld [vmem:[%s3 + $0x30] sm:$0xff]
    %v60 = vld [vmem:[%s3 + $0x38] sm:$0xff]
    %v61 = vld [vmem:[%s3 + $0x40] sm:$0xff]
    %v62 = vld [vmem:[%s3 + $0x48] sm:$0xff]
    %v63 = vld [vmem:[%s3 + $0x50] sm:$0xff]
    %v64 = vld [vmem:[%s3 + $0x58] sm:$0xff]
    %v65 = vld [vmem:[%s3 + $0x60] sm:$0xff]
    %v66 = vld [vmem:[%s3 + $0x68] sm:$0xff]
    %v67 = vld [vmem:[%s3 + $0x70] sm:$0xff]
    %v68 = vld [vmem:[%s3 + $0x78] sm:$0xff]
    %v69 = vld [vmem:[%s4] sm:$0x1]
    %v71 = vlaneseq
    %v72 = vshrl.u32 %v71, 7
    %v73 = vsub.s32 0, %v72
    %v74 = vrot.slane %v69, %v73
    %76 = vmatprep.subr.mxu0 0.0
    %77 = vmatpush1.msra.mxu0 %v53
    %78 = vmatprep.subr.mxu0 0.0
    %79 = vmatpush1.msra.mxu0 %v54
    %80 = vmatprep.subr.mxu0 0.0
    %81 = vmatpush1.msra.mxu0 %v55
    %82 = vmatprep.subr.mxu0 0.0
    %83 = vmatpush1.msra.mxu0 %v56
    %84 = vmatprep.subr.mxu0 0.0
    %85 = vmatpush1.msra.mxu0 %v57
    %86 = vmatprep.subr.mxu0 0.0
    %87 = vmatpush1.msra.mxu0 %v58
    %88 = vmatprep.subr.mxu0 0.0
    %89 = vmatpush1.msra.mxu0 %v59
    %90 = vmatprep.subr.mxu0 0.0
    %91 = vmatpush1.msra.mxu0 %v60
    %92 = vmatprep.subr.mxu0 0.0
    %93 = vmatpush1.msra.mxu0 %v61
    %94 = vmatprep.subr.mxu0 0.0
    %95 = vmatpush1.msra.mxu0 %v62
    %96 = vmatprep.subr.mxu0 0.0
    %97 = vmatpush1.msra.mxu0 %v63
    %98 = vmatprep.subr.mxu0 0.0
    %99 = vmatpush1.msra.mxu0 %v64
    %100 = vmatprep.subr.mxu0 0.0
    %101 = vmatpush1.msra.mxu0 %v65
    %102 = vmatprep.subr.mxu0 0.0
    %103 = vmatpush1.msra.mxu0 %v66
    %104 = vmatprep.subr.mxu0 0.0
    %105 = vmatpush1.msra.mxu0 %v67
    %106 = vmatprep.subr.mxu0 0.0
    %107 = vmatpush1.msra.mxu0 %v68
    %108 = vmatprep.subr.mxu0 0.0
    %109 = vmatpush1.msra.mxu0 0.0
    %110 = vmatprep.subr.mxu0 0.0
    %111 = vmatpush1.msra.mxu0 0.0
    %112 = vmatprep.subr.mxu0 0.0
    %113 = vmatpush1.msra.mxu0 0.0
    %114 = vmatprep.subr.mxu0 0.0
    %115 = vmatpush1.msra.mxu0 0.0
    %116 = vmatprep.subr.mxu0 0.0
    %117 = vmatpush1.msra.mxu0 0.0
    %118 = vmatprep.subr.mxu0 0.0
    %119 = vmatpush1.msra.mxu0 0.0
    %120 = vmatprep.subr.mxu0 0.0
    %121 = vmatpush1.msra.mxu0 0.0
    %122 = vmatprep.subr.mxu0 0.0
    %123 = vmatpush1.msra.mxu0 0.0
    %124 = vmatprep.subr.mxu0 0.0
    %125 = vmatpush1.msra.mxu0 0.0
    %126 = vmatprep.subr.mxu0 0.0
    %127 = vmatpush1.msra.mxu0 0.0
    %128 = vmatprep.subr.mxu0 0.0
    %129 = vmatpush1.msra.mxu0 0.0
    %130 = vmatprep.subr.mxu0 0.0
    %131 = vmatpush1.msra.mxu0 0.0
    %132 = vmatprep.subr.mxu0 0.0
    %133 = vmatpush1.msra.mxu0 0.0
    %134 = vmatprep.subr.mxu0 0.0
    %135 = vmatpush1.msra.mxu0 0.0
    %136 = vmatprep.subr.mxu0 0.0
    %137 = vmatpush1.msra.mxu0 0.0
    %138 = vmatprep.subr.mxu0 0.0
    %139 = vmatpush1.msra.mxu0 0.0
    %140 = vmatprep.mubr.f32.mxu0 0.0
    %141 = vmatmul.mubr.f32.gmra.mrb[0].mxu0 %v52
    %v142 = vpop.f32.mrb[0].mxu0
    %v143 = vadd.f32 %v74, %v142
    %v144 = vpop.f32.mrb[0].mxu0
    %145 = vdwg.mxu0
    %vm146 = vcmask 74752
    %147 = vst.msk [vmem:[#allocation2] sm:$0x3] %vm146, %v143
    // Predicated region
    $region22: #{vit_forward_pallas.7} parent=1 // pred_check
      _
    $region23: #{vit_forward_pallas.7} parent=1 // pred_check_branch
      %149 = sbr.rel (0) target = $region25
    $region24: #{vit_forward_pallas.7} parent=1 // pred_region
      %s151 = ssub.s32 32, 32
      %152 = vsyncadd [#allocation3], %s151
      %s154 = sshll.u32 [#allocation2], 4
      %s155 = int_to_ptr.vmem [resolvable:$true] %s154
      %157 = dma.vmem_to_hbm [thread:$0]  %s155, 32, %s5, [#allocation3]
    $region25: #{vit_forward_pallas.7} parent=1 // pred_fallthru
      _
    // Predicated region
    $region26: #{vit_forward_pallas.7} parent=1 // pred_check
      _
    $region27: #{vit_forward_pallas.7} parent=1 // pred_check_branch
      %159 = sbr.rel (0) target = $region29
    $region28: #{vit_forward_pallas.7} parent=1 // pred_region
      %160 = dma.done [#allocation3], 32
    $region29: #{vit_forward_pallas.7} parent=1 // pred_fallthru
      _
    %161 = vsyncpa [#allocation3], 1

// kernel: vit_forward_pallas.5
$region0: #{vit_forward_pallas.5}
  #allocation0 [shape = 'u32[]', space=smem, size = 0x4, offset = 0x4, fixed_abs, tag = 'smem constant byte address 0x4 - core index']
  #allocation1 [shape = 'u32[144,128]{1,0:T(1,128)}', space=vmem, size = 0x12000, scoped, tag = 'internal scratch']
  %s0 = inlined_call_operand.vmem [shape: f32[2,17,128], index: 0, kind: input, shape index: {}, may-alias: {0,17}]
  %s1 = inlined_call_operand.vmem [shape: f32[4,128,32], index: 1, kind: input, shape index: {}]
  %s2 = inlined_call_operand.vmem [shape: f32[4,128,32], index: 2, kind: input, shape index: {}]
  %s3 = inlined_call_operand.vmem [shape: f32[4,128,32], index: 3, kind: input, shape index: {}]
  %s4 = inlined_call_operand.vmem [shape: f32[4,1,32], index: 4, kind: input, shape index: {}]
  %s5 = inlined_call_operand.vmem [shape: f32[4,1,32], index: 5, kind: input, shape index: {}]
  %s6 = inlined_call_operand.vmem [shape: f32[4,1,32], index: 6, kind: input, shape index: {}]
  %s7 = inlined_call_operand.vmem [shape: f32[4,32,128], index: 7, kind: input, shape index: {}]
  %s8 = inlined_call_operand.vmem [shape: f32[1,128], index: 8, kind: input, shape index: {}]
  %s9 = inlined_call_operand.vmem [shape: f32[1,128], index: 9, kind: input, shape index: {}]
  %s10 = inlined_call_operand.vmem [shape: f32[1,128], index: 10, kind: input, shape index: {}]
  %s11 = inlined_call_operand.vmem [shape: f32[1,128], index: 11, kind: input, shape index: {}]
  %s12 = inlined_call_operand.vmem [shape: f32[1,128], index: 12, kind: input, shape index: {}]
  %s13 = inlined_call_operand.vmem [shape: f32[128,256], index: 13, kind: input, shape index: {}]
  %s14 = inlined_call_operand.vmem [shape: f32[1,256], index: 14, kind: input, shape index: {}]
  %s15 = inlined_call_operand.vmem [shape: f32[256,128], index: 15, kind: input, shape index: {}]
  %s16 = inlined_call_operand.vmem [shape: f32[1,128], index: 16, kind: input, shape index: {}]
  %s17 = inlined_call_operand.vmem [shape: f32[2,17,128], index: 17, kind: output, shape index: {}, may-alias: {0,17}]
  %s18 = sld [smem:[#allocation0]]
  $region78: #{vit_forward_pallas.5} parent=0
    _
  %s20 = ssub.s32 1, %s18
  %s21 = scalar_select 0, %s20, %s18
  // Predicated region
  $region2: #{vit_forward_pallas.5} parent=0 // pred_check
    _
  $region3: #{vit_forward_pallas.5} parent=0 // pred_check_branch
    %23 = sbr.rel (0) target = $region5
  $region4: #{vit_forward_pallas.5} parent=0 // pred_region
    _
  $region5: #{vit_forward_pallas.5} parent=0 // pred_fallthru
    _
  // Predicated region
  $region6: #{vit_forward_pallas.5} parent=0 // pred_check
    _
  $region7: #{vit_forward_pallas.5} parent=0 // pred_check_branch
    %25 = sbr.rel (0) target = $region9
  $region8: #{vit_forward_pallas.5} parent=0 // pred_region
    _
  $region9: #{vit_forward_pallas.5} parent=0 // pred_fallthru
    _
  // Predicated region
  $region10: #{vit_forward_pallas.5} parent=0 // pred_check
    _
  $region11: #{vit_forward_pallas.5} parent=0 // pred_check_branch
    %27 = sbr.rel (0) target = $region13
  $region12: #{vit_forward_pallas.5} parent=0 // pred_region
    _
  $region13: #{vit_forward_pallas.5} parent=0 // pred_fallthru
    _
  // Predicated region
  $region14: #{vit_forward_pallas.5} parent=0 // pred_check
    _
  $region15: #{vit_forward_pallas.5} parent=0 // pred_check_branch
    %29 = sbr.rel (0) target = $region17
  $region16: #{vit_forward_pallas.5} parent=0 // pred_region
    _
  $region17: #{vit_forward_pallas.5} parent=0 // pred_fallthru
    _
  // Predicated region
  $region18: #{vit_forward_pallas.5} parent=0 // pred_check
    _
  $region19: #{vit_forward_pallas.5} parent=0 // pred_check_branch
    %31 = sbr.rel (0) target = $region21
  $region20: #{vit_forward_pallas.5} parent=0 // pred_region
    _
  $region21: #{vit_forward_pallas.5} parent=0 // pred_fallthru
    _
  // Predicated region
  $region22: #{vit_forward_pallas.5} parent=0 // pred_check
    _
  $region23: #{vit_forward_pallas.5} parent=0 // pred_check_branch
    %33 = sbr.rel (0) target = $region25
  $region24: #{vit_forward_pallas.5} parent=0 // pred_region
    _
  $region25: #{vit_forward_pallas.5} parent=0 // pred_fallthru
    _
  // Predicated region
  $region26: #{vit_forward_pallas.5} parent=0 // pred_check
    _
  $region27: #{vit_forward_pallas.5} parent=0 // pred_check_branch
    %35 = sbr.rel (0) target = $region29
  $region28: #{vit_forward_pallas.5} parent=0 // pred_region
    _
  $region29: #{vit_forward_pallas.5} parent=0 // pred_fallthru
    _
  // Predicated region
  $region30: #{vit_forward_pallas.5} parent=0 // pred_check
    _
  $region31: #{vit_forward_pallas.5} parent=0 // pred_check_branch
    %37 = sbr.rel (0) target = $region33
  $region32: #{vit_forward_pallas.5} parent=0 // pred_region
    _
  $region33: #{vit_forward_pallas.5} parent=0 // pred_fallthru
    _
  // Predicated region
  $region34: #{vit_forward_pallas.5} parent=0 // pred_check
    _
  $region35: #{vit_forward_pallas.5} parent=0 // pred_check_branch
    %39 = sbr.rel (0) target = $region37
  $region36: #{vit_forward_pallas.5} parent=0 // pred_region
    _
  $region37: #{vit_forward_pallas.5} parent=0 // pred_fallthru
    _
  // Predicated region
  $region38: #{vit_forward_pallas.5} parent=0 // pred_check
    _
  $region39: #{vit_forward_pallas.5} parent=0 // pred_check_branch
    %41 = sbr.rel (0) target = $region41
  $region40: #{vit_forward_pallas.5} parent=0 // pred_region
    _
  $region41: #{vit_forward_pallas.5} parent=0 // pred_fallthru
    _
  // Predicated region
  $region42: #{vit_forward_pallas.5} parent=0 // pred_check
    _
  $region43: #{vit_forward_pallas.5} parent=0 // pred_check_branch
    %43 = sbr.rel (0) target = $region45
  $region44: #{vit_forward_pallas.5} parent=0 // pred_region
    _
  $region45: #{vit_forward_pallas.5} parent=0 // pred_fallthru
    _
  // Predicated region
  $region46: #{vit_forward_pallas.5} parent=0 // pred_check
    _
  $region47: #{vit_forward_pallas.5} parent=0 // pred_check_branch
    %45 = sbr.rel (0) target = $region49
  $region48: #{vit_forward_pallas.5} parent=0 // pred_region
    _
  $region49: #{vit_forward_pallas.5} parent=0 // pred_fallthru
    _
  // Predicated region
  $region50: #{vit_forward_pallas.5} parent=0 // pred_check
    _
  $region51: #{vit_forward_pallas.5} parent=0 // pred_check_branch
    %47 = sbr.rel (0) target = $region53
  $region52: #{vit_forward_pallas.5} parent=0 // pred_region
    _
  $region53: #{vit_forward_pallas.5} parent=0 // pred_fallthru
    _
  // Predicated region
  $region54: #{vit_forward_pallas.5} parent=0 // pred_check
    _
  $region55: #{vit_forward_pallas.5} parent=0 // pred_check_branch
    %49 = sbr.rel (0) target = $region57
  $region56: #{vit_forward_pallas.5} parent=0 // pred_region
    _
  $region57: #{vit_forward_pallas.5} parent=0 // pred_fallthru
    _
  // Predicated region
  $region58: #{vit_forward_pallas.5} parent=0 // pred_check
    _
  $region59: #{vit_forward_pallas.5} parent=0 // pred_check_branch
    %51 = sbr.rel (0) target = $region61
  $region60: #{vit_forward_pallas.5} parent=0 // pred_region
    _
  $region61: #{vit_forward_pallas.5} parent=0 // pred_fallthru
    _
  // Predicated region
  $region62: #{vit_forward_pallas.5} parent=0 // pred_check
    _
  $region63: #{vit_forward_pallas.5} parent=0 // pred_check_branch
    %53 = sbr.rel (0) target = $region65
  $region64: #{vit_forward_pallas.5} parent=0 // pred_region
    _
  $region65: #{vit_forward_pallas.5} parent=0 // pred_fallthru
    _
  // Predicated region
  $region66: #{vit_forward_pallas.5} parent=0 // pred_check
    _
  $region67: #{vit_forward_pallas.5} parent=0 // pred_check_branch
    %55 = sbr.rel (0) target = $region69
  $region68: #{vit_forward_pallas.5} parent=0 // pred_region
    _
  $region69: #{vit_forward_pallas.5} parent=0 // pred_fallthru
    _
  %v56 = vld [vmem:[%s0] sm:$0xff]
  %v57 = vld [vmem:[%s0 + $0x8] sm:$0xff]
  %v58 = vld [vmem:[%s0 + $0x10] sm:$0x1]
  %v59 = vld [vmem:[%s9] sm:$0x1]
  %v60 = vld [vmem:[%s10] sm:$0x1]
  %61 = vadd.xlane.f32.xlu0 %v56
  %v62 = vpop.xlane.xlu0 %61
  %63 = vadd.xlane.f32.xlu0 %v57
  %v64 = vpop.xlane.xlu0 %63
  %vm65 = vcmask 1040384
  %v66 = vsel %vm65, %v58, 0.0
  %67 = vadd.xlane.f32.xlu0 %v66
  %v68 = vpop.xlane.xlu0 %67
  %v69 = vrcp.pop 128.0
  %v70 = vmul.f32 %v62, %v69
  %v71 = vmul.f32 %v64, %v69
  %v72 = vmul.f32 %v68, %v69
  %v73 = vsub.f32 %v56, %v70
  %v74 = vsub.f32 %v57, %v71
  %v75 = vsub.f32 %v58, %v72
  %v76 = vmul.f32 %v73, %v73
  %v77 = vmul.f32 %v74, %v74
  %v78 = vmul.f32 %v75, %v75
  %79 = vadd.xlane.f32.xlu0 %v76
  %v80 = vpop.xlane.xlu0 %79
  %81 = vadd.xlane.f32.xlu0 %v77
  %v82 = vpop.xlane.xlu0 %81
  %v83 = vsel %vm65, %v78, 0.0
  %84 = vadd.xlane.f32.xlu0 %v83
  %v85 = vpop.xlane.xlu0 %84
  %v86 = vmul.f32 %v80, %v69
  %v87 = vmul.f32 %v82, %v69
  %v88 = vmul.f32 %v85, %v69
  %v89 = vadd.f32 %v86, 1e-05
  %v90 = vadd.f32 %v87, 1e-05
  %v91 = vadd.f32 %v88, 1e-05
  %v92 = vrsqrt.pop %v89
  %v93 = vrsqrt.pop %v90
  %v94 = vrsqrt.pop %v91
  %v95 = vmul.f32 %v73, %v92
  %v96 = vmul.f32 %v74, %v93
  %v97 = vmul.f32 %v75, %v94
  %v99 = vlaneseq
  %v100 = vshrl.u32 %v99, 7
  %v101 = vsub.s32 0, %v100
  %v102 = vrot.slane %v59, %v101
  %v104 = vmul.f32 %v95, %v102
  %v105 = vmul.f32 %v96, %v102
  %v106 = vmul.f32 %v97, %v102
  %v108 = vlaneseq
  %v109 = vshrl.u32 %v108, 7
  %v110 = vsub.s32 0, %v109
  %v111 = vrot.slane %v60, %v110
  %v113 = vadd.f32 %v104, %v111
  %v114 = vadd.f32 %v105, %v111
  %v115 = vadd.f32 %v106, %v111
  %v116 = vld [vmem:[%s1] sm:$0xff]
  %v117 = vld [vmem:[%s1 + $0x8] sm:$0xff]
  %v118 = vld [vmem:[%s1 + $0x10] sm:$0xff]
  %v119 = vld [vmem:[%s1 + $0x18] sm:$0xff]
  %v120 = vld [vmem:[%s1 + $0x20] sm:$0xff]
  %v121 = vld [vmem:[%s1 + $0x28] sm:$0xff]
  %v122 = vld [vmem:[%s1 + $0x30] sm:$0xff]
  %v123 = vld [vmem:[%s1 + $0x38] sm:$0xff]
  %v124 = vld [vmem:[%s1 + $0x40] sm:$0xff]
  %v125 = vld [vmem:[%s1 + $0x48] sm:$0xff]
  %v126 = vld [vmem:[%s1 + $0x50] sm:$0xff]
  %v127 = vld [vmem:[%s1 + $0x58] sm:$0xff]
  %v128 = vld [vmem:[%s1 + $0x60] sm:$0xff]
  %v129 = vld [vmem:[%s1 + $0x68] sm:$0xff]
  %v130 = vld [vmem:[%s1 + $0x70] sm:$0xff]
  %v131 = vld [vmem:[%s1 + $0x78] sm:$0xff]
  %v132 = vld [vmem:[%s4] sm:$0x1]
  %v134 = vlaneseq
  %v135 = vshrl.u32 %v134, 7
  %v136 = vsub.s32 0, %v135
  %v137 = vrot.slane %v132, %v136
  %139 = vmatprep.subr.mxu0 0.0
  %140 = vmatpush1.msra.mxu0 %v116
  %141 = vmatprep.subr.mxu0 0.0
  %142 = vmatpush1.msra.mxu0 %v117
  %143 = vmatprep.subr.mxu0 0.0
  %144 = vmatpush1.msra.mxu0 %v118
  %145 = vmatprep.subr.mxu0 0.0
  %146 = vmatpush1.msra.mxu0 %v119
  %147 = vmatprep.subr.mxu0 0.0
  %148 = vmatpush1.msra.mxu0 %v120
  %149 = vmatprep.subr.mxu0 0.0
  %150 = vmatpush1.msra.mxu0 %v121
  %151 = vmatprep.subr.mxu0 0.0
  %152 = vmatpush1.msra.mxu0 %v122
  %153 = vmatprep.subr.mxu0 0.0
  %154 = vmatpush1.msra.mxu0 %v123
  %155 = vmatprep.subr.mxu0 0.0
  %156 = vmatpush1.msra.mxu0 %v124
  %157 = vmatprep.subr.mxu0 0.0
  %158 = vmatpush1.msra.mxu0 %v125
  %159 = vmatprep.subr.mxu0 0.0
  %160 = vmatpush1.msra.mxu0 %v126
  %161 = vmatprep.subr.mxu0 0.0
  %162 = vmatpush1.msra.mxu0 %v127
  %163 = vmatprep.subr.mxu0 0.0
  %164 = vmatpush1.msra.mxu0 %v128
  %165 = vmatprep.subr.mxu0 0.0
  %166 = vmatpush1.msra.mxu0 %v129
  %167 = vmatprep.subr.mxu0 0.0
  %168 = vmatpush1.msra.mxu0 %v130
  %169 = vmatprep.subr.mxu0 0.0
  %170 = vmatpush1.msra.mxu0 %v131
  %171 = vmatprep.subr.mxu0 0.0
  %172 = vmatpush1.msra.mxu0 0.0
  %173 = vmatprep.subr.mxu0 0.0
  %174 = vmatpush1.msra.mxu0 0.0
  %175 = vmatprep.subr.mxu0 0.0
  %176 = vmatpush1.msra.mxu0 0.0
  %177 = vmatprep.subr.mxu0 0.0
  %178 = vmatpush1.msra.mxu0 0.0
  %179 = vmatprep.subr.mxu0 0.0
  %180 = vmatpush1.msra.mxu0 0.0
  %181 = vmatprep.subr.mxu0 0.0
  %182 = vmatpush1.msra.mxu0 0.0
  %183 = vmatprep.subr.mxu0 0.0
  %184 = vmatpush1.msra.mxu0 0.0
  %185 = vmatprep.subr.mxu0 0.0
  %186 = vmatpush1.msra.mxu0 0.0
  %187 = vmatprep.subr.mxu0 0.0
  %188 = vmatpush1.msra.mxu0 0.0
  %189 = vmatprep.subr.mxu0 0.0
  %190 = vmatpush1.msra.mxu0 0.0
  %191 = vmatprep.subr.mxu0 0.0
  %192 = vmatpush1.msra.mxu0 0.0
  %193 = vmatprep.subr.mxu0 0.0
  %194 = vmatpush1.msra.mxu0 0.0
  %195 = vmatprep.subr.mxu0 0.0
  %196 = vmatpush1.msra.mxu0 0.0
  %197 = vmatprep.subr.mxu0 0.0
  %198 = vmatpush1.msra.mxu0 0.0
  %199 = vmatprep.subr.mxu0 0.0
  %200 = vmatpush1.msra.mxu0 0.0
  %201 = vmatprep.subr.mxu0 0.0
  %202 = vmatpush1.msra.mxu0 0.0
  %203 = vmatprep.mubr.f32.mxu0 0.0
  %204 = vmatmul.mubr.f32.gmra.mrb[0].mxu0 %v113
  %v205 = vpop.f32.mrb[0].mxu0
  %v206 = vadd.f32 %v137, %v205
  %v207 = vpop.f32.mrb[0].mxu0
  %208 = vmatprep.mubr.f32.mxu0 0.0
  %209 = vmatmul.mubr.f32.gmra.mrb[0].mxu0 %v114
  %v210 = vpop.f32.mrb[0].mxu0
  %v211 = vadd.f32 %v137, %v210
  %v212 = vpop.f32.mrb[0].mxu0
  %213 = vmatprep.mubr.f32.mxu0 0.0
  %214 = vmatmul.mubr.f32.gmra.mrb[0].mxu0 %v115
  %v215 = vpop.f32.mrb[0].mxu0
  %v216 = vadd.f32 %v137, %v215
  %v217 = vpop.f32.mrb[0].mxu0
  %218 = vdwg.mxu0
  %v219 = vld [vmem:[%s2] sm:$0xff]
  %v220 = vld [vmem:[%s2 + $0x8] sm:$0xff]
  %v221 = vld [vmem:[%s2 + $0x10] sm:$0xff]
  %v222 = vld [vmem:[%s2 + $0x18] sm:$0xff]
  %v223 = vld [vmem:[%s2 + $0x20] sm:$0xff]
  %v224 = vld [vmem:[%s2 + $0x28] sm:$0xff]
  %v225 = vld [vmem:[%s2 + $0x30] sm:$0xff]
  %v226 = vld [vmem:[%s2 + $0x38] sm:$0xff]
  %v227 = vld [vmem:[%s2 + $0x40] sm:$0xff]
  %v228 = vld [vmem:[%s2 + $0x48] sm:$0xff]
  %v229 = vld [vmem:[%s2 + $0x50] sm:$0xff]
  %v230 = vld [vmem:[%s2 + $0x58] sm:$0xff]
  %v231 = vld [vmem:[%s2 + $0x60] sm:$0xff]
  %v232 = vld [vmem:[%s2 + $0x68] sm:$0xff]
  %v233 = vld [vmem:[%s2 + $0x70] sm:$0xff]
  %v234 = vld [vmem:[%s2 + $0x78] sm:$0xff]
  %v235 = vld [vmem:[%s5] sm:$0x1]
  %v237 = vlaneseq
  %v238 = vshrl.u32 %v237, 7
  %v239 = vsub.s32 0, %v238
  %v240 = vrot.slane %v235, %v239
  %242 = vmatprep.subr.mxu0 0.0
  %243 = vmatpush1.msra.mxu0 %v219
  %244 = vmatprep.subr.mxu0 0.0
  %245 = vmatpush1.msra.mxu0 %v220
  %246 = vmatprep.subr.mxu0 0.0
  %247 = vmatpush1.msra.mxu0 %v221
  %248 = vmatprep.subr.mxu0 0.0
  %249 = vmatpush1.msra.mxu0 %v222
  %250 = vmatprep.subr.mxu0 0.0
  %251 = vmatpush1.msra.mxu0 %v223
  %252 = vmatprep.subr.mxu0 0.0
  %253 = vmatpush1.msra.mxu0 %v224
  %254 = vmatprep.subr.mxu0 0.0
  %255 = vmatpush1.msra.mxu0 %v225
  %256 = vmatprep.subr.mxu0 0.0
  %257 = vmatpush1.msra.mxu0 %v226
  %258 = vmatprep.subr.mxu0 0.0
  %259 = vmatpush1.msra.mxu0 %v227
  %260 = vmatprep.subr.mxu0 0.0
  %261 = vmatpush1.msra.mxu0 %v228
  %262 = vmatprep.subr.mxu0 0.0
  %263 = vmatpush1.msra.mxu0 %v229
  %264 = vmatprep.subr.mxu0 0.0
  %265 = vmatpush1.msra.mxu0 %v230
  %266 = vmatprep.subr.mxu0 0.0
  %267 = vmatpush1.msra.mxu0 %v231
  %268 = vmatprep.subr.mxu0 0.0
  %269 = vmatpush1.msra.mxu0 %v232
  %270 = vmatprep.subr.mxu0 0.0
  %271 = vmatpush1.msra.mxu0 %v233
  %272 = vmatprep.subr.mxu0 0.0
  %273 = vmatpush1.msra.mxu0 %v234
  %274 = vmatprep.subr.mxu0 0.0
  %275 = vmatpush1.msra.mxu0 0.0
  %276 = vmatprep.subr.mxu0 0.0
  %277 = vmatpush1.msra.mxu0 0.0
  %278 = vmatprep.subr.mxu0 0.0
  %279 = vmatpush1.msra.mxu0 0.0
  %280 = vmatprep.subr.mxu0 0.0
  %281 = vmatpush1.msra.mxu0 0.0
  %282 = vmatprep.subr.mxu0 0.0
  %283 = vmatpush1.msra.mxu0 0.0
  %284 = vmatprep.subr.mxu0 0.0
  %285 = vmatpush1.msra.mxu0 0.0
  %286 = vmatprep.subr.mxu0 0.0
  %287 = vmatpush1.msra.mxu0 0.0
  %288 = vmatprep.subr.mxu0 0.0
  %289 = vmatpush1.msra.mxu0 0.0
  %290 = vmatprep.subr.mxu0 0.0
  %291 = vmatpush1.msra.mxu0 0.0
  %292 = vmatprep.subr.mxu0 0.0
  %293 = vmatpush1.msra.mxu0 0.0
  %294 = vmatprep.subr.mxu0 0.0
  %295 = vmatpush1.msra.mxu0 0.0
  %296 = vmatprep.subr.mxu0 0.0
  %297 = vmatpush1.msra.mxu0 0.0
  %298 = vmatprep.subr.mxu0 0.0
  %299 = vmatpush1.msra.mxu0 0.0
  %300 = vmatprep.subr.mxu0 0.0
  %301 = vmatpush1.msra.mxu0 0.0
  %302 = vmatprep.subr.mxu0 0.0
  %303 = vmatpush1.msra.mxu0 0.0
  %304 = vmatprep.subr.mxu0 0.0
  %305 = vmatpush1.msra.mxu0 0.0
  %306 = vmatprep.mubr.f32.mxu0 0.0
  %307 = vmatmul.mubr.f32.gmra.mrb[0].mxu0 %v113
  %v308 = vpop.f32.mrb[0].mxu0
  %v309 = vadd.f32 %v240, %v308
  %v310 = vpop.f32.mrb[0].mxu0
  %311 = vmatprep.mubr.f32.mxu0 0.0
  %312 = vmatmul.mubr.f32.gmra.mrb[0].mxu0 %v114
  %v313 = vpop.f32.mrb[0].mxu0
  %v314 = vadd.f32 %v240, %v313
  %v315 = vpop.f32.mrb[0].mxu0
  %316 = vmatprep.mubr.f32.mxu0 0.0
  %317 = vmatmul.mubr.f32.gmra.mrb[0].mxu0 %v115
  %v318 = vpop.f32.mrb[0].mxu0
  %v319 = vadd.f32 %v240, %v318
  %v320 = vpop.f32.mrb[0].mxu0
  %321 = vdwg.mxu0
  %v322 = vld [vmem:[%s3] sm:$0xff]
  %v323 = vld [vmem:[%s3 + $0x8] sm:$0xff]
  %v324 = vld [vmem:[%s3 + $0x10] sm:$0xff]
  %v325 = vld [vmem:[%s3 + $0x18] sm:$0xff]
  %v326 = vld [vmem:[%s3 + $0x20] sm:$0xff]
  %v327 = vld [vmem:[%s3 + $0x28] sm:$0xff]
  %v328 = vld [vmem:[%s3 + $0x30] sm:$0xff]
  %v329 = vld [vmem:[%s3 + $0x38] sm:$0xff]
  %v330 = vld [vmem:[%s3 + $0x40] sm:$0xff]
  %v331 = vld [vmem:[%s3 + $0x48] sm:$0xff]
  %v332 = vld [vmem:[%s3 + $0x50] sm:$0xff]
  %v333 = vld [vmem:[%s3 + $0x58] sm:$0xff]
  %v334 = vld [vmem:[%s3 + $0x60] sm:$0xff]
  %v335 = vld [vmem:[%s3 + $0x68] sm:$0xff]
  %v336 = vld [vmem:[%s3 + $0x70] sm:$0xff]
  %v337 = vld [vmem:[%s3 + $0x78] sm:$0xff]
  %v338 = vld [vmem:[%s6] sm:$0x1]
  %v340 = vlaneseq
  %v341 = vshrl.u32 %v340, 7
  %v342 = vsub.s32 0, %v341
  %v343 = vrot.slane %v338, %v342
  %345 = vmatprep.subr.mxu0 0.0
  %346 = vmatpush1.msra.mxu0 %v322
  %347 = vmatprep.subr.mxu0 0.0
  %348 = vmatpush1.msra.mxu0 %v323
  %349 = vmatprep.subr.mxu0 0.0
  %350 = vmatpush1.msra.mxu0 %v324
  %351 = vmatprep.subr.mxu0 0.0
  %352 = vmatpush1.msra.mxu0 %v325
  %353 = vmatprep.subr.mxu0 0.0
  %354 = vmatpush1.msra.mxu0 %v326
  %355 = vmatprep.subr.mxu0 0.0
  %356 = vmatpush1.msra.mxu0 %v327
  %357 = vmatprep.subr.mxu0 0.0
  %358 = vmatpush1.msra.mxu0 %v328
  %359 = vmatprep.subr.mxu0 0.0
  %360 = vmatpush1.msra.mxu0 %v329
  %361 = vmatprep.subr.mxu0 0.0
  %362 = vmatpush1.msra.mxu0 %v330
  %363 = vmatprep.subr.mxu0 0.0
  %364 = vmatpush1.msra.mxu0 %v331
  %365 = vmatprep.subr.mxu0 0.0
  %366 = vmatpush1.msra.mxu0 %v332
  %367 = vmatprep.subr.mxu0 0.0
  %368 = vmatpush1.msra.mxu0 %v333
  %369 = vmatprep.subr.mxu0 0.0
  %370 = vmatpush1.msra.mxu0 %v334
  %371 = vmatprep.subr.mxu0 0.0
  %372 = vmatpush1.msra.mxu0 %v335
  %373 = vmatprep.subr.mxu0 0.0
  %374 = vmatpush1.msra.mxu0 %v336
  %375 = vmatprep.subr.mxu0 0.0
  %376 = vmatpush1.msra.mxu0 %v337
  %377 = vmatprep.subr.mxu0 0.0
  %378 = vmatpush1.msra.mxu0 0.0
  %379 = vmatprep.subr.mxu0 0.0
  %380 = vmatpush1.msra.mxu0 0.0
  %381 = vmatprep.subr.mxu0 0.0
  %382 = vmatpush1.msra.mxu0 0.0
  %383 = vmatprep.subr.mxu0 0.0
  %384 = vmatpush1.msra.mxu0 0.0
  %385 = vmatprep.subr.mxu0 0.0
  %386 = vmatpush1.msra.mxu0 0.0
  %387 = vmatprep.subr.mxu0 0.0
  %388 = vmatpush1.msra.mxu0 0.0
  %389 = vmatprep.subr.mxu0 0.0
  %390 = vmatpush1.msra.mxu0 0.0
  %391 = vmatprep.subr.mxu0 0.0
  %392 = vmatpush1.msra.mxu0 0.0
  %393 = vmatprep.subr.mxu0 0.0
  %394 = vmatpush1.msra.mxu0 0.0
  %395 = vmatprep.subr.mxu0 0.0
  %396 = vmatpush1.msra.mxu0 0.0
  %397 = vmatprep.subr.mxu0 0.0
  %398 = vmatpush1.msra.mxu0 0.0
  %399 = vmatprep.subr.mxu0 0.0
  %400 = vmatpush1.msra.mxu0 0.0
  %401 = vmatprep.subr.mxu0 0.0
  %402 = vmatpush1.msra.mxu0 0.0
  %403 = vmatprep.subr.mxu0 0.0
  %404 = vmatpush1.msra.mxu0 0.0
  %405 = vmatprep.subr.mxu0 0.0
  %406 = vmatpush1.msra.mxu0 0.0
  %407 = vmatprep.subr.mxu0 0.0
  %408 = vmatpush1.msra.mxu0 0.0
  %409 = vmatprep.mubr.f32.mxu0 0.0
  %410 = vmatmul.mubr.f32.gmra.mrb[0].mxu0 %v113
  %v411 = vpop.f32.mrb[0].mxu0
  %v412 = vadd.f32 %v343, %v411
  %v413 = vpop.f32.mrb[0].mxu0
  %414 = vmatprep.mubr.f32.mxu0 0.0
  %415 = vmatmul.mubr.f32.gmra.mrb[0].mxu0 %v114
  %v416 = vpop.f32.mrb[0].mxu0
  %v417 = vadd.f32 %v343, %v416
  %v418 = vpop.f32.mrb[0].mxu0
  %419 = vmatprep.mubr.f32.mxu0 0.0
  %420 = vmatmul.mubr.f32.gmra.mrb[0].mxu0 %v115
  %v421 = vpop.f32.mrb[0].mxu0
  %v422 = vadd.f32 %v343, %v421
  %v423 = vpop.f32.mrb[0].mxu0
  %424 = vdwg.mxu0
  %vm425 = vcmask 261120
  %v427 = vsel %vm425, %v206, 0
  %v430 = vsel %vm425, %v211, 0
  %v433 = vsel %vm425, %v216, 0
  %v436 = vsel %vm425, %v309, 0
  %v439 = vsel %vm425, %v314, 0
  %v442 = vsel %vm425, %v319, 0
  %444 = vmatprep.subr.mxu0 0.0
  %445 = vmatpush1.xpose.msra.mxu0 %v436
  %446 = vmatprep.subr.mxu0 0.0
  %447 = vmatpush1.xpose.msra.mxu0 %v439
  %448 = vmatprep.subr.mxu0 0.0
  %449 = vmatpush1.xpose.msra.mxu0 %v442
  %450 = vmatprep.subr.mxu0 0.0
  %451 = vmatpush1.xpose.msra.mxu0 0.0
  %452 = vmatprep.subr.mxu0 0.0
  %453 = vmatpush1.xpose.msra.mxu0 0.0
  %454 = vmatprep.subr.mxu0 0.0
  %455 = vmatpush1.xpose.msra.mxu0 0.0
  %456 = vmatprep.subr.mxu0 0.0
  %457 = vmatpush1.xpose.msra.mxu0 0.0
  %458 = vmatprep.subr.mxu0 0.0
  %459 = vmatpush1.xpose.msra.mxu0 0.0
  %460 = vmatprep.subr.mxu0 0.0
  %461 = vmatpush1.xpose.msra.mxu0 0.0
  %462 = vmatprep.subr.mxu0 0.0
  %463 = vmatpush1.xpose.msra.mxu0 0.0
  %464 = vmatprep.subr.mxu0 0.0
  %465 = vmatpush1.xpose.msra.mxu0 0.0
  %466 = vmatprep.subr.mxu0 0.0
  %467 = vmatpush1.xpose.msra.mxu0 0.0
  %468 = vmatprep.subr.mxu0 0.0
  %469 = vmatpush1.xpose.msra.mxu0 0.0
  %470 = vmatprep.subr.mxu0 0.0
  %471 = vmatpush1.xpose.msra.mxu0 0.0
  %472 = vmatprep.subr.mxu0 0.0
  %473 = vmatpush1.xpose.msra.mxu0 0.0
  %474 = vmatprep.subr.mxu0 0.0
  %475 = vmatpush1.xpose.msra.mxu0 0.0
  %476 = vmatprep.subr.mxu0 0.0
  %477 = vmatpush1.xpose.msra.mxu0 0.0
  %478 = vmatprep.subr.mxu0 0.0
  %479 = vmatpush1.xpose.msra.mxu0 0.0
  %480 = vmatprep.subr.mxu0 0.0
  %481 = vmatpush1.xpose.msra.mxu0 0.0
  %482 = vmatprep.subr.mxu0 0.0
  %483 = vmatpush1.xpose.msra.mxu0 0.0
  %484 = vmatprep.subr.mxu0 0.0
  %485 = vmatpush1.xpose.msra.mxu0 0.0
  %486 = vmatprep.subr.mxu0 0.0
  %487 = vmatpush1.xpose.msra.mxu0 0.0
  %488 = vmatprep.subr.mxu0 0.0
  %489 = vmatpush1.xpose.msra.mxu0 0.0
  %490 = vmatprep.subr.mxu0 0.0
  %491 = vmatpush1.xpose.msra.mxu0 0.0
  %492 = vmatprep.subr.mxu0 0.0
  %493 = vmatpush1.xpose.msra.mxu0 0.0
  %494 = vmatprep.subr.mxu0 0.0
  %495 = vmatpush1.xpose.msra.mxu0 0.0
  %496 = vmatprep.subr.mxu0 0.0
  %497 = vmatpush1.xpose.msra.mxu0 0.0
  %498 = vmatprep.subr.mxu0 0.0
  %499 = vmatpush1.xpose.msra.mxu0 0.0
  %500 = vmatprep.subr.mxu0 0.0
  %501 = vmatpush1.xpose.msra.mxu0 0.0
  %502 = vmatprep.subr.mxu0 0.0
  %503 = vmatpush1.xpose.msra.mxu0 0.0
  %504 = vmatprep.subr.mxu0 0.0
  %505 = vmatpush1.xpose.msra.mxu0 0.0
  %506 = vmatprep.subr.mxu0 0.0
  %507 = vmatpush1.xpose.msra.mxu0 0.0
  %508 = vmatprep.mubr.f32.mxu0 0.0
  %509 = vmatmul.mubr.f32.gmra.mrb[0].mxu0 %v427
  %v510 = vpop.f32.mrb[0].mxu0
  %v511 = vadd.f32 0.0, %v510
  %v512 = vpop.f32.mrb[0].mxu0
  %513 = vmatprep.mubr.f32.mxu0 0.0
  %514 = vmatmul.mubr.f32.gmra.mrb[0].mxu0 %v430
  %v515 = vpop.f32.mrb[0].mxu0
  %v516 = vadd.f32 0.0, %v515
  %v517 = vpop.f32.mrb[0].mxu0
  %518 = vmatprep.mubr.f32.mxu0 0.0
  %519 = vmatmul.mubr.f32.gmra.mrb[0].mxu0 %v433
  %v520 = vpop.f32.mrb[0].mxu0
  %v521 = vadd.f32 0.0, %v520
  %v522 = vpop.f32.mrb[0].mxu0
  %523 = vdwg.mxu0
  %v524 = vmul.f32 %v511, 0.17677669
  %v525 = vmul.f32 %v516, 0.17677669
  %v526 = vmul.f32 %v521, 0.17677669
  %vm527 = vcmask 138240
  %v528 = vsel %vm527, %v524, -inf
  %529 = vmax.xlane.f32.xlu0 %v528
  %v530 = vpop.xlane.xlu0 %529
  %v531 = vsel %vm527, %v525, -inf
  %532 = vmax.xlane.f32.xlu0 %v531
  %v533 = vpop.xlane.xlu0 %532
  %vm534 = vcmask 131072
  %v535 = vsel %vm534, %v526, -inf
  %536 = vmax.xlane.f32.xlu0 %v535
  %v537 = vpop.xlane.xlu0 %536
  %v538 = vsub.f32 %v524, %v530
  %v539 = vsub.f32 %v525, %v533
  %v540 = vsub.f32 %v526, %v537
  %v541 = vmul.f32 %v538, 1.442695
  %v542 = vpow.pop %v541
  %v543 = vmul.f32 %v539, 1.442695
  %v544 = vpow.pop %v543
  %v545 = vmul.f32 %v540, 1.442695
  %v546 = vpow.pop %v545
  %v547 = vsel %vm527, %v542, 0.0
  %548 = vadd.xlane.f32.xlu0 %v547
  %v549 = vpop.xlane.xlu0 %548
  %v550 = vsel %vm527, %v544, 0.0
  %551 = vadd.xlane.f32.xlu0 %v550
  %v552 = vpop.xlane.xlu0 %551
  %v553 = vsel %vm534, %v546, 0.0
  %554 = vadd.xlane.f32.xlu0 %v553
  %v555 = vpop.xlane.xlu0 %554
  %v556 = vrcp.pop %v549
  %v557 = vmul.f32 %v542, %v556
  %v558 = vrcp.pop %v552
  %v559 = vmul.f32 %v544, %v558
  %v560 = vrcp.pop %v555
  %v561 = vmul.f32 %v546, %v560
  %v563 = vsel %vm527, %v557, 0
  %v566 = vsel %vm527, %v559, 0
  %v569 = vsel %vm527, %v561, 0
  %v572 = vsel %vm65, %v422, 0
  %574 = vmatprep.subr.mxu0 0.0
  %575 = vmatpush1.msra.mxu0 %v412
  %576 = vmatprep.subr.mxu0 0.0
  %577 = vmatpush1.msra.mxu0 %v417
  %578 = vmatprep.subr.mxu0 0.0
  %579 = vmatpush1.msra.mxu0 %v572
  %580 = vmatprep.subr.mxu0 0.0
  %581 = vmatpush1.msra.mxu0 0.0
  %582 = vmatprep.subr.mxu0 0.0
  %583 = vmatpush1.msra.mxu0 0.0
  %584 = vmatprep.subr.mxu0 0.0
  %585 = vmatpush1.msra.mxu0 0.0
  %586 = vmatprep.subr.mxu0 0.0
  %587 = vmatpush1.msra.mxu0 0.0
  %588 = vmatprep.subr.mxu0 0.0
  %589 = vmatpush1.msra.mxu0 0.0
  %590 = vmatprep.subr.mxu0 0.0
  %591 = vmatpush1.msra.mxu0 0.0
  %592 = vmatprep.subr.mxu0 0.0
  %593 = vmatpush1.msra.mxu0 0.0
  %594 = vmatprep.subr.mxu0 0.0
  %595 = vmatpush1.msra.mxu0 0.0
  %596 = vmatprep.subr.mxu0 0.0
  %597 = vmatpush1.msra.mxu0 0.0
  %598 = vmatprep.subr.mxu0 0.0
  %599 = vmatpush1.msra.mxu0 0.0
  %600 = vmatprep.subr.mxu0 0.0
  %601 = vmatpush1.msra.mxu0 0.0
  %602 = vmatprep.subr.mxu0 0.0
  %603 = vmatpush1.msra.mxu0 0.0
  %604 = vmatprep.subr.mxu0 0.0
  %605 = vmatpush1.msra.mxu0 0.0
  %606 = vmatprep.subr.mxu0 0.0
  %607 = vmatpush1.msra.mxu0 0.0
  %608 = vmatprep.subr.mxu0 0.0
  %609 = vmatpush1.msra.mxu0 0.0
  %610 = vmatprep.subr.mxu0 0.0
  %611 = vmatpush1.msra.mxu0 0.0
  %612 = vmatprep.subr.mxu0 0.0
  %613 = vmatpush1.msra.mxu0 0.0
  %614 = vmatprep.subr.mxu0 0.0
  %615 = vmatpush1.msra.mxu0 0.0
  %616 = vmatprep.subr.mxu0 0.0
  %617 = vmatpush1.msra.mxu0 0.0
  %618 = vmatprep.subr.mxu0 0.0
  %619 = vmatpush1.msra.mxu0 0.0
  %620 = vmatprep.subr.mxu0 0.0
  %621 = vmatpush1.msra.mxu0 0.0
  %622 = vmatprep.subr.mxu0 0.0
  %623 = vmatpush1.msra.mxu0 0.0
  %624 = vmatprep.subr.mxu0 0.0
  %625 = vmatpush1.msra.mxu0 0.0
  %626 = vmatprep.subr.mxu0 0.0
  %627 = vmatpush1.msra.mxu0 0.0
  %628 = vmatprep.subr.mxu0 0.0
  %629 = vmatpush1.msra.mxu0 0.0
  %630 = vmatprep.subr.mxu0 0.0
  %631 = vmatpush1.msra.mxu0 0.0
  %632 = vmatprep.subr.mxu0 0.0
  %633 = vmatpush1.msra.mxu0 0.0
  %634 = vmatprep.subr.mxu0 0.0
  %635 = vmatpush1.msra.mxu0 0.0
  %636 = vmatprep.subr.mxu0 0.0
  %637 = vmatpush1.msra.mxu0 0.0
  %638 = vmatprep.mubr.f32.mxu0 0.0
  %639 = vmatmul.mubr.f32.gmra.mrb[0].mxu0 %v563
  %v640 = vpop.f32.mrb[0].mxu0
  %v641 = vadd.f32 0.0, %v640
  %v642 = vpop.f32.mrb[0].mxu0
  %643 = vmatprep.mubr.f32.mxu0 0.0
  %644 = vmatmul.mubr.f32.gmra.mrb[0].mxu0 %v566
  %v645 = vpop.f32.mrb[0].mxu0
  %v646 = vadd.f32 0.0, %v645
  %v647 = vpop.f32.mrb[0].mxu0
  %648 = vmatprep.mubr.f32.mxu0 0.0
  %649 = vmatmul.mubr.f32.gmra.mrb[0].mxu0 %v569
  %v650 = vpop.f32.mrb[0].mxu0
  %v651 = vadd.f32 0.0, %v650
  %v652 = vpop.f32.mrb[0].mxu0
  %653 = vdwg.mxu0
  %v654 = vld [vmem:[%s7] sm:$0xff]
  %v655 = vld [vmem:[%s7 + $0x8] sm:$0xff]
  %v656 = vld [vmem:[%s7 + $0x10] sm:$0xff]
  %v657 = vld [vmem:[%s7 + $0x18] sm:$0xff]
  %s658 = scalar_lea.vmem %s1, 128
  %v659 = vld [vmem:[%s658] sm:$0xff]
  %v660 = vld [vmem:[%s658 + $0x8] sm:$0xff]
  %v661 = vld [vmem:[%s658 + $0x10] sm:$0xff]
  %v662 = vld [vmem:[%s658 + $0x18] sm:$0xff]
  %v663 = vld [vmem:[%s658 + $0x20] sm:$0xff]
  %v664 = vld [vmem:[%s658 + $0x28] sm:$0xff]
  %v665 = vld [vmem:[%s658 + $0x30] sm:$0xff]
  %v666 = vld [vmem:[%s658 + $0x38] sm:$0xff]
  %v667 = vld [vmem:[%s658 + $0x40] sm:$0xff]
  %v668 = vld [vmem:[%s658 + $0x48] sm:$0xff]
  %v669 = vld [vmem:[%s658 + $0x50] sm:$0xff]
  %v670 = vld [vmem:[%s658 + $0x58] sm:$0xff]
  %v671 = vld [vmem:[%s658 + $0x60] sm:$0xff]
  %v672 = vld [vmem:[%s658 + $0x68] sm:$0xff]
  %v673 = vld [vmem:[%s658 + $0x70] sm:$0xff]
  %v674 = vld [vmem:[%s658 + $0x78] sm:$0xff]
  %s675 = scalar_lea.vmem %s4, 1
  %v676 = vld [vmem:[%s675] sm:$0x1]
  %v678 = vlaneseq
  %v679 = vshrl.u32 %v678, 7
  %v680 = vsub.s32 0, %v679
  %v681 = vrot.slane %v676, %v680
  %683 = vmatprep.subr.mxu0 0.0
  %684 = vmatpush1.msra.mxu0 %v659
  %685 = vmatprep.subr.mxu0 0.0
  %686 = vmatpush1.msra.mxu0 %v660
  %687 = vmatprep.subr.mxu0 0.0
  %688 = vmatpush1.msra.mxu0 %v661
  %689 = vmatprep.subr.mxu0 0.0
  %690 = vmatpush1.msra.mxu0 %v662
  %691 = vmatprep.subr.mxu0 0.0
  %692 = vmatpush1.msra.mxu0 %v663
  %693 = vmatprep.subr.mxu0 0.0
  %694 = vmatpush1.msra.mxu0 %v664
  %695 = vmatprep.subr.mxu0 0.0
  %696 = vmatpush1.msra.mxu0 %v665
  %697 = vmatprep.subr.mxu0 0.0
  %698 = vmatpush1.msra.mxu0 %v666
  %699 = vmatprep.subr.mxu0 0.0
  %700 = vmatpush1.msra.mxu0 %v667
  %701 = vmatprep.subr.mxu0 0.0
  %702 = vmatpush1.msra.mxu0 %v668
  %703 = vmatprep.subr.mxu0 0.0
  %704 = vmatpush1.msra.mxu0 %v669
  %705 = vmatprep.subr.mxu0 0.0
  %706 = vmatpush1.msra.mxu0 %v670
  %707 = vmatprep.subr.mxu0 0.0
  %708 = vmatpush1.msra.mxu0 %v671
  %709 = vmatprep.subr.mxu0 0.0
  %710 = vmatpush1.msra.mxu0 %v672
  %711 = vmatprep.subr.mxu0 0.0
  %712 = vmatpush1.msra.mxu0 %v673
  %713 = vmatprep.subr.mxu0 0.0
  %714 = vmatpush1.msra.mxu0 %v674
  %715 = vmatprep.subr.mxu0 0.0
  %716 = vmatpush1.msra.mxu0 0.0
  %717 = vmatprep.subr.mxu0 0.0
  %718 = vmatpush1.msra.mxu0 0.0
  %719 = vmatprep.subr.mxu0 0.0
  %720 = vmatpush1.msra.mxu0 0.0
  %721 = vmatprep.subr.mxu0 0.0
  %722 = vmatpush1.msra.mxu0 0.0
  %723 = vmatprep.subr.mxu0 0.0
  %724 = vmatpush1.msra.mxu0 0.0
  %725 = vmatprep.subr.mxu0 0.0
  %726 = vmatpush1.msra.mxu0 0.0
  %727 = vmatprep.subr.mxu0 0.0
  %728 = vmatpush1.msra.mxu0 0.0
  %729 = vmatprep.subr.mxu0 0.0
  %730 = vmatpush1.msra.mxu0 0.0
  %731 = vmatprep.subr.mxu0 0.0
  %732 = vmatpush1.msra.mxu0 0.0
  %733 = vmatprep.subr.mxu0 0.0
  %734 = vmatpush1.msra.mxu0 0.0
  %735 = vmatprep.subr.mxu0 0.0
  %736 = vmatpush1.msra.mxu0 0.0
  %737 = vmatprep.subr.mxu0 0.0
  %738 = vmatpush1.msra.mxu0 0.0
  %739 = vmatprep.subr.mxu0 0.0
  %740 = vmatpush1.msra.mxu0 0.0
  %741 = vmatprep.subr.mxu0 0.0
  %742 = vmatpush1.msra.mxu0 0.0
  %743 = vmatprep.subr.mxu0 0.0
  %744 = vmatpush1.msra.mxu0 0.0
  %745 = vmatprep.subr.mxu0 0.0
  %746 = vmatpush1.msra.mxu0 0.0
  %747 = vmatprep.mubr.f32.mxu0 0.0
  %748 = vmatmul.mubr.f32.gmra.mrb[0].mxu0 %v113
  %v749 = vpop.f32.mrb[0].mxu0
  %v750 = vadd.f32 %v681, %v749
  %v751 = vpop.f32.mrb[0].mxu0
  %752 = vmatprep.mubr.f32.mxu0 0.0
  %753 = vmatmul.mubr.f32.gmra.mrb[0].mxu0 %v114
  %v754 = vpop.f32.mrb[0].mxu0
  %v755 = vadd.f32 %v681, %v754
  %v756 = vpop.f32.mrb[0].mxu0
  %757 = vmatprep.mubr.f32.mxu0 0.0
  %758 = vmatmul.mubr.f32.gmra.mrb[0].mxu0 %v115
  %v759 = vpop.f32.mrb[0].mxu0
  %v760 = vadd.f32 %v681, %v759
  %v761 = vpop.f32.mrb[0].mxu0
  %762 = vdwg.mxu0
  %s763 = scalar_lea.vmem %s2, 128
  %v764 = vld [vmem:[%s763] sm:$0xff]
  %v765 = vld [vmem:[%s763 + $0x8] sm:$0xff]
  %v766 = vld [vmem:[%s763 + $0x10] sm:$0xff]
  %v767 = vld [vmem:[%s763 + $0x18] sm:$0xff]
  %v768 = vld [vmem:[%s763 + $0x20] sm:$0xff]
  %v769 = vld [vmem:[%s763 + $0x28] sm:$0xff]
  %v770 = vld [vmem:[%s763 + $0x30] sm:$0xff]
  %v771 = vld [vmem:[%s763 + $0x38] sm:$0xff]
  %v772 = vld [vmem:[%s763 + $0x40] sm:$0xff]
  %v773 = vld [vmem:[%s763 + $0x48] sm:$0xff]
  %v774 = vld [vmem:[%s763 + $0x50] sm:$0xff]
  %v775 = vld [vmem:[%s763 + $0x58] sm:$0xff]
  %v776 = vld [vmem:[%s763 + $0x60] sm:$0xff]
  %v777 = vld [vmem:[%s763 + $0x68] sm:$0xff]
  %v778 = vld [vmem:[%s763 + $0x70] sm:$0xff]
  %v779 = vld [vmem:[%s763 + $0x78] sm:$0xff]
  %s780 = scalar_lea.vmem %s5, 1
  %v781 = vld [vmem:[%s780] sm:$0x1]
  %v783 = vlaneseq
  %v784 = vshrl.u32 %v783, 7
  %v785 = vsub.s32 0, %v784
  %v786 = vrot.slane %v781, %v785
  %788 = vmatprep.subr.mxu0 0.0
  %789 = vmatpush1.msra.mxu0 %v764
  %790 = vmatprep.subr.mxu0 0.0
  %791 = vmatpush1.msra.mxu0 %v765
  %792 = vmatprep.subr.mxu0 0.0
  %793 = vmatpush1.msra.mxu0 %v766
  %794 = vmatprep.subr.mxu0 0.0
  %795 = vmatpush1.msra.mxu0 %v767
  %796 = vmatprep.subr.mxu0 0.0
  %797 = vmatpush1.msra.mxu0 %v768
  %798 = vmatprep.subr.mxu0 0.0
  %799 = vmatpush1.msra.mxu0 %v769
  %800 = vmatprep.subr.mxu0 0.0
  %801 = vmatpush1.msra.mxu0 %v770
  %802 = vmatprep.subr.mxu0 0.0
  %803 = vmatpush1.msra.mxu0 %v771
  %804 = vmatprep.subr.mxu0 0.0
  %805 = vmatpush1.msra.mxu0 %v772
  %806 = vmatprep.subr.mxu0 0.0
  %807 = vmatpush1.msra.mxu0 %v773
  %808 = vmatprep.subr.mxu0 0.0
  %809 = vmatpush1.msra.mxu0 %v774
  %810 = vmatprep.subr.mxu0 0.0
  %811 = vmatpush1.msra.mxu0 %v775
  %812 = vmatprep.subr.mxu0 0.0
  %813 = vmatpush1.msra.mxu0 %v776
  %814 = vmatprep.subr.mxu0 0.0
  %815 = vmatpush1.msra.mxu0 %v777
  %816 = vmatprep.subr.mxu0 0.0
  %817 = vmatpush1.msra.mxu0 %v778
  %818 = vmatprep.subr.mxu0 0.0
  %819 = vmatpush1.msra.mxu0 %v779
  %820 = vmatprep.subr.mxu0 0.0
  %821 = vmatpush1.msra.mxu0 0.0
  %822 = vmatprep.subr.mxu0 0.0
  %823 = vmatpush1.msra.mxu0 0.0
  %824 = vmatprep.subr.mxu0 0.0
  %825 = vmatpush1.msra.mxu0 0.0
  %826 = vmatprep.subr.mxu0 0.0
  %827 = vmatpush1.msra.mxu0 0.0
  %828 = vmatprep.subr.mxu0 0.0
  %829 = vmatpush1.msra.mxu0 0.0
  %830 = vmatprep.subr.mxu0 0.0
  %831 = vmatpush1.msra.mxu0 0.0
  %832 = vmatprep.subr.mxu0 0.0
  %833 = vmatpush1.msra.mxu0 0.0
  %834 = vmatprep.subr.mxu0 0.0
  %835 = vmatpush1.msra.mxu0 0.0
  %836 = vmatprep.subr.mxu0 0.0
  %837 = vmatpush1.msra.mxu0 0.0
  %838 = vmatprep.subr.mxu0 0.0
  %839 = vmatpush1.msra.mxu0 0.0
  %840 = vmatprep.subr.mxu0 0.0
  %841 = vmatpush1.msra.mxu0 0.0
  %842 = vmatprep.subr.mxu0 0.0
  %843 = vmatpush1.msra.mxu0 0.0
  %844 = vmatprep.subr.mxu0 0.0
  %845 = vmatpush1.msra.mxu0 0.0
  %846 = vmatprep.subr.mxu0 0.0
  %847 = vmatpush1.msra.mxu0 0.0
  %848 = vmatprep.subr.mxu0 0.0
  %849 = vmatpush1.msra.mxu0 0.0
  %850 = vmatprep.subr.mxu0 0.0
  %851 = vmatpush1.msra.mxu0 0.0
  %852 = vmatprep.mubr.f32.mxu0 0.0
  %853 = vmatmul.mubr.f32.gmra.mrb[0].mxu0 %v113
  %v854 = vpop.f32.mrb[0].mxu0
  %v855 = vadd.f32 %v786, %v854
  %v856 = vpop.f32.mrb[0].mxu0
  %857 = vmatprep.mubr.f32.mxu0 0.0
  %858 = vmatmul.mubr.f32.gmra.mrb[0].mxu0 %v114
  %v859 = vpop.f32.mrb[0].mxu0
  %v860 = vadd.f32 %v786, %v859
  %v861 = vpop.f32.mrb[0].mxu0
  %862 = vmatprep.mubr.f32.mxu0 0.0
  %863 = vmatmul.mubr.f32.gmra.mrb[0].mxu0 %v115
  %v864 = vpop.f32.mrb[0].mxu0
  %v865 = vadd.f32 %v786, %v864
  %v866 = vpop.f32.mrb[0].mxu0
  %867 = vdwg.mxu0
  %s868 = scalar_lea.vmem %s3, 128
  %v869 = vld [vmem:[%s868] sm:$0xff]
  %v870 = vld [vmem:[%s868 + $0x8] sm:$0xff]
  %v871 = vld [vmem:[%s868 + $0x10] sm:$0xff]
  %v872 = vld [vmem:[%s868 + $0x18] sm:$0xff]
  %v873 = vld [vmem:[%s868 + $0x20] sm:$0xff]
  %v874 = vld [vmem:[%s868 + $0x28] sm:$0xff]
  %v875 = vld [vmem:[%s868 + $0x30] sm:$0xff]
  %v876 = vld [vmem:[%s868 + $0x38] sm:$0xff]
  %v877 = vld [vmem:[%s868 + $0x40] sm:$0xff]
  %v878 = vld [vmem:[%s868 + $0x48] sm:$0xff]
  %v879 = vld [vmem:[%s868 + $0x50] sm:$0xff]
  %v880 = vld [vmem:[%s868 + $0x58] sm:$0xff]
  %v881 = vld [vmem:[%s868 + $0x60] sm:$0xff]
  %v882 = vld [vmem:[%s868 + $0x68] sm:$0xff]
  %v883 = vld [vmem:[%s868 + $0x70] sm:$0xff]
  %v884 = vld [vmem:[%s868 + $0x78] sm:$0xff]
  %s885 = scalar_lea.vmem %s6, 1
  %v886 = vld [vmem:[%s885] sm:$0x1]
  %v888 = vlaneseq
  %v889 = vshrl.u32 %v888, 7
  %v890 = vsub.s32 0, %v889
  %v891 = vrot.slane %v886, %v890
  %893 = vmatprep.subr.mxu0 0.0
  %894 = vmatpush1.msra.mxu0 %v869
  %895 = vmatprep.subr.mxu0 0.0
  %896 = vmatpush1.msra.mxu0 %v870
  %897 = vmatprep.subr.mxu0 0.0
  %898 = vmatpush1.msra.mxu0 %v871
  %899 = vmatprep.subr.mxu0 0.0
  %900 = vmatpush1.msra.mxu0 %v872
  %901 = vmatprep.subr.mxu0 0.0
  %902 = vmatpush1.msra.mxu0 %v873
  %903 = vmatprep.subr.mxu0 0.0
  %904 = vmatpush1.msra.mxu0 %v874
  %905 = vmatprep.subr.mxu0 0.0
  %906 = vmatpush1.msra.mxu0 %v875
  %907 = vmatprep.subr.mxu0 0.0
  %908 = vmatpush1.msra.mxu0 %v876
  %909 = vmatprep.subr.mxu0 0.0
  %910 = vmatpush1.msra.mxu0 %v877
  %911 = vmatprep.subr.mxu0 0.0
  %912 = vmatpush1.msra.mxu0 %v878
  %913 = vmatprep.subr.mxu0 0.0
  %914 = vmatpush1.msra.mxu0 %v879
  %915 = vmatprep.subr.mxu0 0.0
  %916 = vmatpush1.msra.mxu0 %v880
  %917 = vmatprep.subr.mxu0 0.0
  %918 = vmatpush1.msra.mxu0 %v881
  %919 = vmatprep.subr.mxu0 0.0
  %920 = vmatpush1.msra.mxu0 %v882
  %921 = vmatprep.subr.mxu0 0.0
  %922 = vmatpush1.msra.mxu0 %v883
  %923 = vmatprep.subr.mxu0 0.0
  %924 = vmatpush1.msra.mxu0 %v884
  %925 = vmatprep.subr.mxu0 0.0
  %926 = vmatpush1.msra.mxu0 0.0
  %927 = vmatprep.subr.mxu0 0.0
  %928 = vmatpush1.msra.mxu0 0.0
  %929 = vmatprep.subr.mxu0 0.0
  %930 = vmatpush1.msra.mxu0 0.0
  %931 = vmatprep.subr.mxu0 0.0
  %932 = vmatpush1.msra.mxu0 0.0
  %933 = vmatprep.subr.mxu0 0.0
  %934 = vmatpush1.msra.mxu0 0.0
  %935 = vmatprep.subr.mxu0 0.0
  %936 = vmatpush1.msra.mxu0 0.0
  %937 = vmatprep.subr.mxu0 0.0
  %938 = vmatpush1.msra.mxu0 0.0
  %939 = vmatprep.subr.mxu0 0.0
  %940 = vmatpush1.msra.mxu0 0.0
  %941 = vmatprep.subr.mxu0 0.0
  %942 = vmatpush1.msra.mxu0 0.0
  %943 = vmatprep.subr.mxu0 0.0
  %944 = vmatpush1.msra.mxu0 0.0
  %945 = vmatprep.subr.mxu0 0.0
  %946 = vmatpush1.msra.mxu0 0.0
  %947 = vmatprep.subr.mxu0 0.0
  %948 = vmatpush1.msra.mxu0 0.0
  %949 = vmatprep.subr.mxu0 0.0
  %950 = vmatpush1.msra.mxu0 0.0
  %951 = vmatprep.subr.mxu0 0.0
  %952 = vmatpush1.msra.mxu0 0.0
  %953 = vmatprep.subr.mxu0 0.0
  %954 = vmatpush1.msra.mxu0 0.0
  %955 = vmatprep.subr.mxu0 0.0
  %956 = vmatpush1.msra.mxu0 0.0
  %957 = vmatprep.mubr.f32.mxu0 0.0
  %958 = vmatmul.mubr.f32.gmra.mrb[0].mxu0 %v113
  %v959 = vpop.f32.mrb[0].mxu0
  %v960 = vadd.f32 %v891, %v959
  %v961 = vpop.f32.mrb[0].mxu0
  %962 = vmatprep.mubr.f32.mxu0 0.0
  %963 = vmatmul.mubr.f32.gmra.mrb[0].mxu0 %v114
  %v964 = vpop.f32.mrb[0].mxu0
  %v965 = vadd.f32 %v891, %v964
  %v966 = vpop.f32.mrb[0].mxu0
  %967 = vmatprep.mubr.f32.mxu0 0.0
  %968 = vmatmul.mubr.f32.gmra.mrb[0].mxu0 %v115
  %v969 = vpop.f32.mrb[0].mxu0
  %v970 = vadd.f32 %v891, %v969
  %v971 = vpop.f32.mrb[0].mxu0
  %972 = vdwg.mxu0
  %v974 = vsel %vm425, %v750, 0
  %v977 = vsel %vm425, %v755, 0
  %v980 = vsel %vm425, %v760, 0
  %v983 = vsel %vm425, %v855, 0
  %v986 = vsel %vm425, %v860, 0
  %v989 = vsel %vm425, %v865, 0
  %991 = vmatprep.subr.mxu0 0.0
  %992 = vmatpush1.xpose.msra.mxu0 %v983
  %993 = vmatprep.subr.mxu0 0.0
  %994 = vmatpush1.xpose.msra.mxu0 %v986
  %995 = vmatprep.subr.mxu0 0.0
  %996 = vmatpush1.xpose.msra.mxu0 %v989
  %997 = vmatprep.subr.mxu0 0.0
  %998 = vmatpush1.xpose.msra.mxu0 0.0
  %999 = vmatprep.subr.mxu0 0.0
  %1000 = vmatpush1.xpose.msra.mxu0 0.0
  %1001 = vmatprep.subr.mxu0 0.0
  %1002 = vmatpush1.xpose.msra.mxu0 0.0
  %1003 = vmatprep.subr.mxu0 0.0
  %1004 = vmatpush1.xpose.msra.mxu0 0.0
  %1005 = vmatprep.subr.mxu0 0.0
  %1006 = vmatpush1.xpose.msra.mxu0 0.0
  %1007 = vmatprep.subr.mxu0 0.0
  %1008 = vmatpush1.xpose.msra.mxu0 0.0
  %1009 = vmatprep.subr.mxu0 0.0
  %1010 = vmatpush1.xpose.msra.mxu0 0.0
  %1011 = vmatprep.subr.mxu0 0.0
  %1012 = vmatpush1.xpose.msra.mxu0 0.0
  %1013 = vmatprep.subr.mxu0 0.0
  %1014 = vmatpush1.xpose.msra.mxu0 0.0
  %1015 = vmatprep.subr.mxu0 0.0
  %1016 = vmatpush1.xpose.msra.mxu0 0.0
  %1017 = vmatprep.subr.mxu0 0.0
  %1018 = vmatpush1.xpose.msra.mxu0 0.0
  %1019 = vmatprep.subr.mxu0 0.0
  %1020 = vmatpush1.xpose.msra.mxu0 0.0
  %1021 = vmatprep.subr.mxu0 0.0
  %1022 = vmatpush1.xpose.msra.mxu0 0.0
  %1023 = vmatprep.subr.mxu0 0.0
  %1024 = vmatpush1.xpose.msra.mxu0 0.0
  %1025 = vmatprep.subr.mxu0 0.0
  %1026 = vmatpush1.xpose.msra.mxu0 0.0
  %1027 = vmatprep.subr.mxu0 0.0
  %1028 = vmatpush1.xpose.msra.mxu0 0.0
  %1029 = vmatprep.subr.mxu0 0.0
  %1030 = vmatpush1.xpose.msra.mxu0 0.0
  %1031 = vmatprep.subr.mxu0 0.0
  %1032 = vmatpush1.xpose.msra.mxu0 0.0
  %1033 = vmatprep.subr.mxu0 0.0
  %1034 = vmatpush1.xpose.msra.mxu0 0.0
  %1035 = vmatprep.subr.mxu0 0.0
  %1036 = vmatpush1.xpose.msra.mxu0 0.0
  %1037 = vmatprep.subr.mxu0 0.0
  %1038 = vmatpush1.xpose.msra.mxu0 0.0
  %1039 = vmatprep.subr.mxu0 0.0
  %1040 = vmatpush1.xpose.msra.mxu0 0.0
  %1041 = vmatprep.subr.mxu0 0.0
  %1042 = vmatpush1.xpose.msra.mxu0 0.0
  %1043 = vmatprep.subr.mxu0 0.0
  %1044 = vmatpush1.xpose.msra.mxu0 0.0
  %1045 = vmatprep.subr.mxu0 0.0
  %1046 = vmatpush1.xpose.msra.mxu0 0.0
  %1047 = vmatprep.subr.mxu0 0.0
  %1048 = vmatpush1.xpose.msra.mxu0 0.0
  %1049 = vmatprep.subr.mxu0 0.0
  %1050 = vmatpush1.xpose.msra.mxu0 0.0
  %1051 = vmatprep.subr.mxu0 0.0
  %1052 = vmatpush1.xpose.msra.mxu0 0.0
  %1053 = vmatprep.subr.mxu0 0.0
  %1054 = vmatpush1.xpose.msra.mxu0 0.0
  %1055 = vmatprep.mubr.f32.mxu0 0.0
  %1056 = vmatmul.mubr.f32.gmra.mrb[0].mxu0 %v974
  %v1057 = vpop.f32.mrb[0].mxu0
  %v1058 = vadd.f32 0.0, %v1057
  %v1059 = vpop.f32.mrb[0].mxu0
  %1060 = vmatprep.mubr.f32.mxu0 0.0
  %1061 = vmatmul.mubr.f32.gmra.mrb[0].mxu0 %v977
  %v1062 = vpop.f32.mrb[0].mxu0
  %v1063 = vadd.f32 0.0, %v1062
  %v1064 = vpop.f32.mrb[0].mxu0
  %1065 = vmatprep.mubr.f32.mxu0 0.0
  %1066 = vmatmul.mubr.f32.gmra.mrb[0].mxu0 %v980
  %v1067 = vpop.f32.mrb[0].mxu0
  %v1068 = vadd.f32 0.0, %v1067
  %v1069 = vpop.f32.mrb[0].mxu0
  %1070 = vdwg.mxu0
  %v1071 = vmul.f32 %v1058, 0.17677669
  %v1072 = vmul.f32 %v1063, 0.17677669
  %v1073 = vmul.f32 %v1068, 0.17677669
  %v1074 = vsel %vm527, %v1071, -inf
  %1075 = vmax.xlane.f32.xlu0 %v1074
  %v1076 = vpop.xlane.xlu0 %1075
  %v1077 = vsel %vm527, %v1072, -inf
  %1078 = vmax.xlane.f32.xlu0 %v1077
  %v1079 = vpop.xlane.xlu0 %1078
  %v1080 = vsel %vm534, %v1073, -inf
  %1081 = vmax.xlane.f32.xlu0 %v1080
  %v1082 = vpop.xlane.xlu0 %1081
  %v1083 = vsub.f32 %v1071, %v1076
  %v1084 = vsub.f32 %v1072, %v1079
  %v1085 = vsub.f32 %v1073, %v1082
  %v1086 = vmul.f32 %v1083, 1.442695
  %v1087 = vpow.pop %v1086
  %v1088 = vmul.f32 %v1084, 1.442695
  %v1089 = vpow.pop %v1088
  %v1090 = vmul.f32 %v1085, 1.442695
  %v1091 = vpow.pop %v1090
  %v1092 = vsel %vm527, %v1087, 0.0
  %1093 = vadd.xlane.f32.xlu0 %v1092
  %v1094 = vpop.xlane.xlu0 %1093
  %v1095 = vsel %vm527, %v1089, 0.0
  %1096 = vadd.xlane.f32.xlu0 %v1095
  %v1097 = vpop.xlane.xlu0 %1096
  %v1098 = vsel %vm534, %v1091, 0.0
  %1099 = vadd.xlane.f32.xlu0 %v1098
  %v1100 = vpop.xlane.xlu0 %1099
  %v1101 = vrcp.pop %v1094
  %v1102 = vmul.f32 %v1087, %v1101
  %v1103 = vrcp.pop %v1097
  %v1104 = vmul.f32 %v1089, %v1103
  %v1105 = vrcp.pop %v1100
  %v1106 = vmul.f32 %v1091, %v1105
  %v1108 = vsel %vm527, %v1102, 0
  %v1111 = vsel %vm527, %v1104, 0
  %v1114 = vsel %vm527, %v1106, 0
  %v1117 = vsel %vm65, %v970, 0
  %1119 = vmatprep.subr.mxu0 0.0
  %1120 = vmatpush1.msra.mxu0 %v960
  %1121 = vmatprep.subr.mxu0 0.0
  %1122 = vmatpush1.msra.mxu0 %v965
  %1123 = vmatprep.subr.mxu0 0.0
  %1124 = vmatpush1.msra.mxu0 %v1117
  %1125 = vmatprep.subr.mxu0 0.0
  %1126 = vmatpush1.msra.mxu0 0.0
  %1127 = vmatprep.subr.mxu0 0.0
  %1128 = vmatpush1.msra.mxu0 0.0
  %1129 = vmatprep.subr.mxu0 0.0
  %1130 = vmatpush1.msra.mxu0 0.0
  %1131 = vmatprep.subr.mxu0 0.0
  %1132 = vmatpush1.msra.mxu0 0.0
  %1133 = vmatprep.subr.mxu0 0.0
  %1134 = vmatpush1.msra.mxu0 0.0
  %1135 = vmatprep.subr.mxu0 0.0
  %1136 = vmatpush1.msra.mxu0 0.0
  %1137 = vmatprep.subr.mxu0 0.0
  %1138 = vmatpush1.msra.mxu0 0.0
  %1139 = vmatprep.subr.mxu0 0.0
  %1140 = vmatpush1.msra.mxu0 0.0
  %1141 = vmatprep.subr.mxu0 0.0
  %1142 = vmatpush1.msra.mxu0 0.0
  %1143 = vmatprep.subr.mxu0 0.0
  %1144 = vmatpush1.msra.mxu0 0.0
  %1145 = vmatprep.subr.mxu0 0.0
  %1146 = vmatpush1.msra.mxu0 0.0
  %1147 = vmatprep.subr.mxu0 0.0
  %1148 = vmatpush1.msra.mxu0 0.0
  %1149 = vmatprep.subr.mxu0 0.0
  %1150 = vmatpush1.msra.mxu0 0.0
  %1151 = vmatprep.subr.mxu0 0.0
  %1152 = vmatpush1.msra.mxu0 0.0
  %1153 = vmatprep.subr.mxu0 0.0
  %1154 = vmatpush1.msra.mxu0 0.0
  %1155 = vmatprep.subr.mxu0 0.0
  %1156 = vmatpush1.msra.mxu0 0.0
  %1157 = vmatprep.subr.mxu0 0.0
  %1158 = vmatpush1.msra.mxu0 0.0
  %1159 = vmatprep.subr.mxu0 0.0
  %1160 = vmatpush1.msra.mxu0 0.0
  %1161 = vmatprep.subr.mxu0 0.0
  %1162 = vmatpush1.msra.mxu0 0.0
  %1163 = vmatprep.subr.mxu0 0.0
  %1164 = vmatpush1.msra.mxu0 0.0
  %1165 = vmatprep.subr.mxu0 0.0
  %1166 = vmatpush1.msra.mxu0 0.0
  %1167 = vmatprep.subr.mxu0 0.0
  %1168 = vmatpush1.msra.mxu0 0.0
  %1169 = vmatprep.subr.mxu0 0.0
  %1170 = vmatpush1.msra.mxu0 0.0
  %1171 = vmatprep.subr.mxu0 0.0
  %1172 = vmatpush1.msra.mxu0 0.0
  %1173 = vmatprep.subr.mxu0 0.0
  %1174 = vmatpush1.msra.mxu0 0.0
  %1175 = vmatprep.subr.mxu0 0.0
  %1176 = vmatpush1.msra.mxu0 0.0
  %1177 = vmatprep.subr.mxu0 0.0
  %1178 = vmatpush1.msra.mxu0 0.0
  %1179 = vmatprep.subr.mxu0 0.0
  %1180 = vmatpush1.msra.mxu0 0.0
  %1181 = vmatprep.subr.mxu0 0.0
  %1182 = vmatpush1.msra.mxu0 0.0
  %1183 = vmatprep.mubr.f32.mxu0 0.0
  %1184 = vmatmul.mubr.f32.gmra.mrb[0].mxu0 %v1108
  %v1185 = vpop.f32.mrb[0].mxu0
  %v1186 = vadd.f32 0.0, %v1185
  %v1187 = vpop.f32.mrb[0].mxu0
  %1188 = vmatprep.mubr.f32.mxu0 0.0
  %1189 = vmatmul.mubr.f32.gmra.mrb[0].mxu0 %v1111
  %v1190 = vpop.f32.mrb[0].mxu0
  %v1191 = vadd.f32 0.0, %v1190
  %v1192 = vpop.f32.mrb[0].mxu0
  %1193 = vmatprep.mubr.f32.mxu0 0.0
  %1194 = vmatmul.mubr.f32.gmra.mrb[0].mxu0 %v1114
  %v1195 = vpop.f32.mrb[0].mxu0
  %v1196 = vadd.f32 0.0, %v1195
  %v1197 = vpop.f32.mrb[0].mxu0
  %1198 = vdwg.mxu0
  %s1199 = scalar_lea.vmem %s7, 32
  %v1200 = vld [vmem:[%s1199] sm:$0xff]
  %v1201 = vld [vmem:[%s1199 + $0x8] sm:$0xff]
  %v1202 = vld [vmem:[%s1199 + $0x10] sm:$0xff]
  %v1203 = vld [vmem:[%s1199 + $0x18] sm:$0xff]
  %v1205 = vsel %vm425, %v1186, 0
  %v1208 = vsel %vm425, %v1191, 0
  %v1211 = vsel %vm425, %v1196, 0
  %1213 = vmatprep.subr.mxu0 0.0
  %1214 = vmatpush1.msra.mxu0 %v1200
  %1215 = vmatprep.subr.mxu0 0.0
  %1216 = vmatpush1.msra.mxu0 %v1201
  %1217 = vmatprep.subr.mxu0 0.0
  %1218 = vmatpush1.msra.mxu0 %v1202
  %1219 = vmatprep.subr.mxu0 0.0
  %1220 = vmatpush1.msra.mxu0 %v1203
  %1221 = vmatprep.subr.mxu0 0.0
  %1222 = vmatpush1.msra.mxu0 0.0
  %1223 = vmatprep.subr.mxu0 0.0
  %1224 = vmatpush1.msra.mxu0 0.0
  %1225 = vmatprep.subr.mxu0 0.0
  %1226 = vmatpush1.msra.mxu0 0.0
  %1227 = vmatprep.subr.mxu0 0.0
  %1228 = vmatpush1.msra.mxu0 0.0
  %1229 = vmatprep.subr.mxu0 0.0
  %1230 = vmatpush1.msra.mxu0 0.0
  %1231 = vmatprep.subr.mxu0 0.0
  %1232 = vmatpush1.msra.mxu0 0.0
  %1233 = vmatprep.subr.mxu0 0.0
  %1234 = vmatpush1.msra.mxu0 0.0
  %1235 = vmatprep.subr.mxu0 0.0
  %1236 = vmatpush1.msra.mxu0 0.0
  %1237 = vmatprep.subr.mxu0 0.0
  %1238 = vmatpush1.msra.mxu0 0.0
  %1239 = vmatprep.subr.mxu0 0.0
  %1240 = vmatpush1.msra.mxu0 0.0
  %1241 = vmatprep.subr.mxu0 0.0
  %1242 = vmatpush1.msra.mxu0 0.0
  %1243 = vmatprep.subr.mxu0 0.0
  %1244 = vmatpush1.msra.mxu0 0.0
  %1245 = vmatprep.subr.mxu0 0.0
  %1246 = vmatpush1.msra.mxu0 0.0
  %1247 = vmatprep.subr.mxu0 0.0
  %1248 = vmatpush1.msra.mxu0 0.0
  %1249 = vmatprep.subr.mxu0 0.0
  %1250 = vmatpush1.msra.mxu0 0.0
  %1251 = vmatprep.subr.mxu0 0.0
  %1252 = vmatpush1.msra.mxu0 0.0
  %1253 = vmatprep.subr.mxu0 0.0
  %1254 = vmatpush1.msra.mxu0 0.0
  %1255 = vmatprep.subr.mxu0 0.0
  %1256 = vmatpush1.msra.mxu0 0.0
  %1257 = vmatprep.subr.mxu0 0.0
  %1258 = vmatpush1.msra.mxu0 0.0
  %1259 = vmatprep.subr.mxu0 0.0
  %1260 = vmatpush1.msra.mxu0 0.0
  %1261 = vmatprep.subr.mxu0 0.0
  %1262 = vmatpush1.msra.mxu0 0.0
  %1263 = vmatprep.subr.mxu0 0.0
  %1264 = vmatpush1.msra.mxu0 0.0
  %1265 = vmatprep.subr.mxu0 0.0
  %1266 = vmatpush1.msra.mxu0 0.0
  %1267 = vmatprep.subr.mxu0 0.0
  %1268 = vmatpush1.msra.mxu0 0.0
  %1269 = vmatprep.subr.mxu0 0.0
  %1270 = vmatpush1.msra.mxu0 0.0
  %1271 = vmatprep.subr.mxu0 0.0
  %1272 = vmatpush1.msra.mxu0 0.0
  %1273 = vmatprep.subr.mxu0 0.0
  %1274 = vmatpush1.msra.mxu0 0.0
  %1275 = vmatprep.subr.mxu0 0.0
  %1276 = vmatpush1.msra.mxu0 0.0
  %1277 = vmatprep.mubr.f32.mxu0 0.0
  %1278 = vmatmul.mubr.f32.gmra.mrb[0].mxu0 %v1205
  %v1279 = vpop.f32.mrb[0].mxu0
  %v1280 = vadd.f32 0.0, %v1279
  %v1281 = vpop.f32.mrb[0].mxu0
  %1282 = vmatprep.mubr.f32.mxu0 0.0
  %1283 = vmatmul.mubr.f32.gmra.mrb[0].mxu0 %v1208
  %v1284 = vpop.f32.mrb[0].mxu0
  %v1285 = vadd.f32 0.0, %v1284
  %v1286 = vpop.f32.mrb[0].mxu0
  %1287 = vmatprep.mubr.f32.mxu0 0.0
  %1288 = vmatmul.mubr.f32.gmra.mrb[0].mxu0 %v1211
  %v1289 = vpop.f32.mrb[0].mxu0
  %v1290 = vadd.f32 0.0, %v1289
  %v1291 = vpop.f32.mrb[0].mxu0
  %1292 = vdwg.mxu0
  %v1294 = vsel %vm425, %v641, 0
  %v1297 = vsel %vm425, %v646, 0
  %v1300 = vsel %vm425, %v651, 0
  %1302 = vmatprep.subr.mxu0 0.0
  %1303 = vmatpush1.msra.mxu0 %v654
  %1304 = vmatprep.subr.mxu0 0.0
  %1305 = vmatpush1.msra.mxu0 %v655
  %1306 = vmatprep.subr.mxu0 0.0
  %1307 = vmatpush1.msra.mxu0 %v656
  %1308 = vmatprep.subr.mxu0 0.0
  %1309 = vmatpush1.msra.mxu0 %v657
  %1310 = vmatprep.subr.mxu0 0.0
  %1311 = vmatpush1.msra.mxu0 0.0
  %1312 = vmatprep.subr.mxu0 0.0
  %1313 = vmatpush1.msra.mxu0 0.0
  %1314 = vmatprep.subr.mxu0 0.0
  %1315 = vmatpush1.msra.mxu0 0.0
  %1316 = vmatprep.subr.mxu0 0.0
  %1317 = vmatpush1.msra.mxu0 0.0
  %1318 = vmatprep.subr.mxu0 0.0
  %1319 = vmatpush1.msra.mxu0 0.0
  %1320 = vmatprep.subr.mxu0 0.0
  %1321 = vmatpush1.msra.mxu0 0.0
  %1322 = vmatprep.subr.mxu0 0.0
  %1323 = vmatpush1.msra.mxu0 0.0
  %1324 = vmatprep.subr.mxu0 0.0
  %1325 = vmatpush1.msra.mxu0 0.0
  %1326 = vmatprep.subr.mxu0 0.0
  %1327 = vmatpush1.msra.mxu0 0.0
  %1328 = vmatprep.subr.mxu0 0.0
  %1329 = vmatpush1.msra.mxu0 0.0
  %1330 = vmatprep.subr.mxu0 0.0
  %1331 = vmatpush1.msra.mxu0 0.0
  %1332 = vmatprep.subr.mxu0 0.0
  %1333 = vmatpush1.msra.mxu0 0.0
  %1334 = vmatprep.subr.mxu0 0.0
  %1335 = vmatpush1.msra.mxu0 0.0
  %1336 = vmatprep.subr.mxu0 0.0
  %1337 = vmatpush1.msra.mxu0 0.0
  %1338 = vmatprep.subr.mxu0 0.0
  %1339 = vmatpush1.msra.mxu0 0.0
  %1340 = vmatprep.subr.mxu0 0.0
  %1341 = vmatpush1.msra.mxu0 0.0
  %1342 = vmatprep.subr.mxu0 0.0
  %1343 = vmatpush1.msra.mxu0 0.0
  %1344 = vmatprep.subr.mxu0 0.0
  %1345 = vmatpush1.msra.mxu0 0.0
  %1346 = vmatprep.subr.mxu0 0.0
  %1347 = vmatpush1.msra.mxu0 0.0
  %1348 = vmatprep.subr.mxu0 0.0
  %1349 = vmatpush1.msra.mxu0 0.0
  %1350 = vmatprep.subr.mxu0 0.0
  %1351 = vmatpush1.msra.mxu0 0.0
  %1352 = vmatprep.subr.mxu0 0.0
  %1353 = vmatpush1.msra.mxu0 0.0
  %1354 = vmatprep.subr.mxu0 0.0
  %1355 = vmatpush1.msra.mxu0 0.0
  %1356 = vmatprep.subr.mxu0 0.0
  %1357 = vmatpush1.msra.mxu0 0.0
  %1358 = vmatprep.subr.mxu0 0.0
  %1359 = vmatpush1.msra.mxu0 0.0
  %1360 = vmatprep.subr.mxu0 0.0
  %1361 = vmatpush1.msra.mxu0 0.0
  %1362 = vmatprep.subr.mxu0 0.0
  %1363 = vmatpush1.msra.mxu0 0.0
  %1364 = vmatprep.subr.mxu0 0.0
  %1365 = vmatpush1.msra.mxu0 0.0
  %1366 = vmatprep.mubr.f32.mxu0 0.0
  %1367 = vmatmul.mubr.f32.gmra.mrb[0].mxu0 %v1294
  %v1368 = vpop.f32.mrb[0].mxu0
  %v1369 = vadd.f32 %v1280, %v1368
  %v1370 = vpop.f32.mrb[0].mxu0
  %1371 = vmatprep.mubr.f32.mxu0 0.0
  %1372 = vmatmul.mubr.f32.gmra.mrb[0].mxu0 %v1297
  %v1373 = vpop.f32.mrb[0].mxu0
  %v1374 = vadd.f32 %v1285, %v1373
  %v1375 = vpop.f32.mrb[0].mxu0
  %1376 = vmatprep.mubr.f32.mxu0 0.0
  %1377 = vmatmul.mubr.f32.gmra.mrb[0].mxu0 %v1300
  %v1378 = vpop.f32.mrb[0].mxu0
  %v1379 = vadd.f32 %v1290, %v1378
  %v1380 = vpop.f32.mrb[0].mxu0
  %1381 = vdwg.mxu0
  %s1382 = scalar_lea.vmem %s1, 256
  %v1383 = vld [vmem:[%s1382] sm:$0xff]
  %v1384 = vld [vmem:[%s1382 + $0x8] sm:$0xff]
  %v1385 = vld [vmem:[%s1382 + $0x10] sm:$0xff]
  %v1386 = vld [vmem:[%s1382 + $0x18] sm:$0xff]
  %v1387 = vld [vmem:[%s1382 + $0x20] sm:$0xff]
  %v1388 = vld [vmem:[%s1382 + $0x28] sm:$0xff]
  %v1389 = vld [vmem:[%s1382 + $0x30] sm:$0xff]
  %v1390 = vld [vmem:[%s1382 + $0x38] sm:$0xff]
  %v1391 = vld [vmem:[%s1382 + $0x40] sm:$0xff]
  %v1392 = vld [vmem:[%s1382 + $0x48] sm:$0xff]
  %v1393 = vld [vmem:[%s1382 + $0x50] sm:$0xff]
  %v1394 = vld [vmem:[%s1382 + $0x58] sm:$0xff]
  %v1395 = vld [vmem:[%s1382 + $0x60] sm:$0xff]
  %v1396 = vld [vmem:[%s1382 + $0x68] sm:$0xff]
  %v1397 = vld [vmem:[%s1382 + $0x70] sm:$0xff]
  %v1398 = vld [vmem:[%s1382 + $0x78] sm:$0xff]
  %s1399 = scalar_lea.vmem %s4, 2
  %v1400 = vld [vmem:[%s1399] sm:$0x1]
  %v1402 = vlaneseq
  %v1403 = vshrl.u32 %v1402, 7
  %v1404 = vsub.s32 0, %v1403
  %v1405 = vrot.slane %v1400, %v1404
  %1407 = vmatprep.subr.mxu0 0.0
  %1408 = vmatpush1.msra.mxu0 %v1383
  %1409 = vmatprep.subr.mxu0 0.0
  %1410 = vmatpush1.msra.mxu0 %v1384
  %1411 = vmatprep.subr.mxu0 0.0
  %1412 = vmatpush1.msra.mxu0 %v1385
  %1413 = vmatprep.subr.mxu0 0.0
  %1414 = vmatpush1.msra.mxu0 %v1386
  %1415 = vmatprep.subr.mxu0 0.0
  %1416 = vmatpush1.msra.mxu0 %v1387
  %1417 = vmatprep.subr.mxu0 0.0
  %1418 = vmatpush1.msra.mxu0 %v1388
  %1419 = vmatprep.subr.mxu0 0.0
  %1420 = vmatpush1.msra.mxu0 %v1389
  %1421 = vmatprep.subr.mxu0 0.0
  %1422 = vmatpush1.msra.mxu0 %v1390
  %1423 = vmatprep.subr.mxu0 0.0
  %1424 = vmatpush1.msra.mxu0 %v1391
  %1425 = vmatprep.subr.mxu0 0.0
  %1426 = vmatpush1.msra.mxu0 %v1392
  %1427 = vmatprep.subr.mxu0 0.0
  %1428 = vmatpush1.msra.mxu0 %v1393
  %1429 = vmatprep.subr.mxu0 0.0
  %1430 = vmatpush1.msra.mxu0 %v1394
  %1431 = vmatprep.subr.mxu0 0.0
  %1432 = vmatpush1.msra.mxu0 %v1395
  %1433 = vmatprep.subr.mxu0 0.0
  %1434 = vmatpush1.msra.mxu0 %v1396
  %1435 = vmatprep.subr.mxu0 0.0
  %1436 = vmatpush1.msra.mxu0 %v1397
  %1437 = vmatprep.subr.mxu0 0.0
  %1438 = vmatpush1.msra.mxu0 %v1398
  %1439 = vmatprep.subr.mxu0 0.0
  %1440 = vmatpush1.msra.mxu0 0.0
  %1441 = vmatprep.subr.mxu0 0.0
  %1442 = vmatpush1.msra.mxu0 0.0
  %1443 = vmatprep.subr.mxu0 0.0
  %1444 = vmatpush1.msra.mxu0 0.0
  %1445 = vmatprep.subr.mxu0 0.0
  %1446 = vmatpush1.msra.mxu0 0.0
  %1447 = vmatprep.subr.mxu0 0.0
  %1448 = vmatpush1.msra.mxu0 0.0
  %1449 = vmatprep.subr.mxu0 0.0
  %1450 = vmatpush1.msra.mxu0 0.0
  %1451 = vmatprep.subr.mxu0 0.0
  %1452 = vmatpush1.msra.mxu0 0.0
  %1453 = vmatprep.subr.mxu0 0.0
  %1454 = vmatpush1.msra.mxu0 0.0
  %1455 = vmatprep.subr.mxu0 0.0
  %1456 = vmatpush1.msra.mxu0 0.0
  %1457 = vmatprep.subr.mxu0 0.0
  %1458 = vmatpush1.msra.mxu0 0.0
  %1459 = vmatprep.subr.mxu0 0.0
  %1460 = vmatpush1.msra.mxu0 0.0
  %1461 = vmatprep.subr.mxu0 0.0
  %1462 = vmatpush1.msra.mxu0 0.0
  %1463 = vmatprep.subr.mxu0 0.0
  %1464 = vmatpush1.msra.mxu0 0.0
  %1465 = vmatprep.subr.mxu0 0.0
  %1466 = vmatpush1.msra.mxu0 0.0
  %1467 = vmatprep.subr.mxu0 0.0
  %1468 = vmatpush1.msra.mxu0 0.0
  %1469 = vmatprep.subr.mxu0 0.0
  %1470 = vmatpush1.msra.mxu0 0.0
  %1471 = vmatprep.mubr.f32.mxu0 0.0
  %1472 = vmatmul.mubr.f32.gmra.mrb[0].mxu0 %v113
  %v1473 = vpop.f32.mrb[0].mxu0
  %v1474 = vadd.f32 %v1405, %v1473
  %v1475 = vpop.f32.mrb[0].mxu0
  %1476 = vmatprep.mubr.f32.mxu0 0.0
  %1477 = vmatmul.mubr.f32.gmra.mrb[0].mxu0 %v114
  %v1478 = vpop.f32.mrb[0].mxu0
  %v1479 = vadd.f32 %v1405, %v1478
  %v1480 = vpop.f32.mrb[0].mxu0
  %1481 = vmatprep.mubr.f32.mxu0 0.0
  %1482 = vmatmul.mubr.f32.gmra.mrb[0].mxu0 %v115
  %v1483 = vpop.f32.mrb[0].mxu0
  %v1484 = vadd.f32 %v1405, %v1483
  %v1485 = vpop.f32.mrb[0].mxu0
  %1486 = vdwg.mxu0
  %s1487 = scalar_lea.vmem %s2, 256
  %v1488 = vld [vmem:[%s1487] sm:$0xff]
  %v1489 = vld [vmem:[%s1487 + $0x8] sm:$0xff]
  %v1490 = vld [vmem:[%s1487 + $0x10] sm:$0xff]
  %v1491 = vld [vmem:[%s1487 + $0x18] sm:$0xff]
  %v1492 = vld [vmem:[%s1487 + $0x20] sm:$0xff]
  %v1493 = vld [vmem:[%s1487 + $0x28] sm:$0xff]
  %v1494 = vld [vmem:[%s1487 + $0x30] sm:$0xff]
  %v1495 = vld [vmem:[%s1487 + $0x38] sm:$0xff]
  %v1496 = vld [vmem:[%s1487 + $0x40] sm:$0xff]
  %v1497 = vld [vmem:[%s1487 + $0x48] sm:$0xff]
  %v1498 = vld [vmem:[%s1487 + $0x50] sm:$0xff]
  %v1499 = vld [vmem:[%s1487 + $0x58] sm:$0xff]
  %v1500 = vld [vmem:[%s1487 + $0x60] sm:$0xff]
  %v1501 = vld [vmem:[%s1487 + $0x68] sm:$0xff]
  %v1502 = vld [vmem:[%s1487 + $0x70] sm:$0xff]
  %v1503 = vld [vmem:[%s1487 + $0x78] sm:$0xff]
  %s1504 = scalar_lea.vmem %s5, 2
  %v1505 = vld [vmem:[%s1504] sm:$0x1]
  %v1507 = vlaneseq
  %v1508 = vshrl.u32 %v1507, 7
  %v1509 = vsub.s32 0, %v1508
  %v1510 = vrot.slane %v1505, %v1509
  %1512 = vmatprep.subr.mxu0 0.0
  %1513 = vmatpush1.msra.mxu0 %v1488
  %1514 = vmatprep.subr.mxu0 0.0
  %1515 = vmatpush1.msra.mxu0 %v1489
  %1516 = vmatprep.subr.mxu0 0.0
  %1517 = vmatpush1.msra.mxu0 %v1490
  %1518 = vmatprep.subr.mxu0 0.0
  %1519 = vmatpush1.msra.mxu0 %v1491
  %1520 = vmatprep.subr.mxu0 0.0
  %1521 = vmatpush1.msra.mxu0 %v1492
  %1522 = vmatprep.subr.mxu0 0.0
  %1523 = vmatpush1.msra.mxu0 %v1493
  %1524 = vmatprep.subr.mxu0 0.0
  %1525 = vmatpush1.msra.mxu0 %v1494
  %1526 = vmatprep.subr.mxu0 0.0
  %1527 = vmatpush1.msra.mxu0 %v1495
  %1528 = vmatprep.subr.mxu0 0.0
  %1529 = vmatpush1.msra.mxu0 %v1496
  %1530 = vmatprep.subr.mxu0 0.0
  %1531 = vmatpush1.msra.mxu0 %v1497
  %1532 = vmatprep.subr.mxu0 0.0
  %1533 = vmatpush1.msra.mxu0 %v1498
  %1534 = vmatprep.subr.mxu0 0.0
  %1535 = vmatpush1.msra.mxu0 %v1499
  %1536 = vmatprep.subr.mxu0 0.0
  %1537 = vmatpush1.msra.mxu0 %v1500
  %1538 = vmatprep.subr.mxu0 0.0
  %1539 = vmatpush1.msra.mxu0 %v1501
  %1540 = vmatprep.subr.mxu0 0.0
  %1541 = vmatpush1.msra.mxu0 %v1502
  %1542 = vmatprep.subr.mxu0 0.0
  %1543 = vmatpush1.msra.mxu0 %v1503
  %1544 = vmatprep.subr.mxu0 0.0
  %1545 = vmatpush1.msra.mxu0 0.0
  %1546 = vmatprep.subr.mxu0 0.0
  %1547 = vmatpush1.msra.mxu0 0.0
  %1548 = vmatprep.subr.mxu0 0.0
  %1549 = vmatpush1.msra.mxu0 0.0
  %1550 = vmatprep.subr.mxu0 0.0
  %1551 = vmatpush1.msra.mxu0 0.0
  %1552 = vmatprep.subr.mxu0 0.0
  %1553 = vmatpush1.msra.mxu0 0.0
  %1554 = vmatprep.subr.mxu0 0.0
  %1555 = vmatpush1.msra.mxu0 0.0
  %1556 = vmatprep.subr.mxu0 0.0
  %1557 = vmatpush1.msra.mxu0 0.0
  %1558 = vmatprep.subr.mxu0 0.0
  %1559 = vmatpush1.msra.mxu0 0.0
  %1560 = vmatprep.subr.mxu0 0.0
  %1561 = vmatpush1.msra.mxu0 0.0
  %1562 = vmatprep.subr.mxu0 0.0
  %1563 = vmatpush1.msra.mxu0 0.0
  %1564 = vmatprep.subr.mxu0 0.0
  %1565 = vmatpush1.msra.mxu0 0.0
  %1566 = vmatprep.subr.mxu0 0.0
  %1567 = vmatpush1.msra.mxu0 0.0
  %1568 = vmatprep.subr.mxu0 0.0
  %1569 = vmatpush1.msra.mxu0 0.0
  %1570 = vmatprep.subr.mxu0 0.0
  %1571 = vmatpush1.msra.mxu0 0.0
  %1572 = vmatprep.subr.mxu0 0.0
  %1573 = vmatpush1.msra.mxu0 0.0
  %1574 = vmatprep.subr.mxu0 0.0
  %1575 = vmatpush1.msra.mxu0 0.0
  %1576 = vmatprep.mubr.f32.mxu0 0.0
  %1577 = vmatmul.mubr.f32.gmra.mrb[0].mxu0 %v113
  %v1578 = vpop.f32.mrb[0].mxu0
  %v1579 = vadd.f32 %v1510, %v1578
  %v1580 = vpop.f32.mrb[0].mxu0
  %1581 = vmatprep.mubr.f32.mxu0 0.0
  %1582 = vmatmul.mubr.f32.gmra.mrb[0].mxu0 %v114
  %v1583 = vpop.f32.mrb[0].mxu0
  %v1584 = vadd.f32 %v1510, %v1583
  %v1585 = vpop.f32.mrb[0].mxu0
  %1586 = vmatprep.mubr.f32.mxu0 0.0
  %1587 = vmatmul.mubr.f32.gmra.mrb[0].mxu0 %v115
  %v1588 = vpop.f32.mrb[0].mxu0
  %v1589 = vadd.f32 %v1510, %v1588
  %v1590 = vpop.f32.mrb[0].mxu0
  %1591 = vdwg.mxu0
  %s1592 = scalar_lea.vmem %s3, 256
  %v1593 = vld [vmem:[%s1592] sm:$0xff]
  %v1594 = vld [vmem:[%s1592 + $0x8] sm:$0xff]
  %v1595 = vld [vmem:[%s1592 + $0x10] sm:$0xff]
  %v1596 = vld [vmem:[%s1592 + $0x18] sm:$0xff]
  %v1597 = vld [vmem:[%s1592 + $0x20] sm:$0xff]
  %v1598 = vld [vmem:[%s1592 + $0x28] sm:$0xff]
  %v1599 = vld [vmem:[%s1592 + $0x30] sm:$0xff]
  %v1600 = vld [vmem:[%s1592 + $0x38] sm:$0xff]
  %v1601 = vld [vmem:[%s1592 + $0x40] sm:$0xff]
  %v1602 = vld [vmem:[%s1592 + $0x48] sm:$0xff]
  %v1603 = vld [vmem:[%s1592 + $0x50] sm:$0xff]
  %v1604 = vld [vmem:[%s1592 + $0x58] sm:$0xff]
  %v1605 = vld [vmem:[%s1592 + $0x60] sm:$0xff]
  %v1606 = vld [vmem:[%s1592 + $0x68] sm:$0xff]
  %v1607 = vld [vmem:[%s1592 + $0x70] sm:$0xff]
  %v1608 = vld [vmem:[%s1592 + $0x78] sm:$0xff]
  %s1609 = scalar_lea.vmem %s6, 2
  %v1610 = vld [vmem:[%s1609] sm:$0x1]
  %v1612 = vlaneseq
  %v1613 = vshrl.u32 %v1612, 7
  %v1614 = vsub.s32 0, %v1613
  %v1615 = vrot.slane %v1610, %v1614
  %1617 = vmatprep.subr.mxu0 0.0
  %1618 = vmatpush1.msra.mxu0 %v1593
  %1619 = vmatprep.subr.mxu0 0.0
  %1620 = vmatpush1.msra.mxu0 %v1594
  %1621 = vmatprep.subr.mxu0 0.0
  %1622 = vmatpush1.msra.mxu0 %v1595
  %1623 = vmatprep.subr.mxu0 0.0
  %1624 = vmatpush1.msra.mxu0 %v1596
  %1625 = vmatprep.subr.mxu0 0.0
  %1626 = vmatpush1.msra.mxu0 %v1597
  %1627 = vmatprep.subr.mxu0 0.0
  %1628 = vmatpush1.msra.mxu0 %v1598
  %1629 = vmatprep.subr.mxu0 0.0
  %1630 = vmatpush1.msra.mxu0 %v1599
  %1631 = vmatprep.subr.mxu0 0.0
  %1632 = vmatpush1.msra.mxu0 %v1600
  %1633 = vmatprep.subr.mxu0 0.0
  %1634 = vmatpush1.msra.mxu0 %v1601
  %1635 = vmatprep.subr.mxu0 0.0
  %1636 = vmatpush1.msra.mxu0 %v1602
  %1637 = vmatprep.subr.mxu0 0.0
  %1638 = vmatpush1.msra.mxu0 %v1603
  %1639 = vmatprep.subr.mxu0 0.0
  %1640 = vmatpush1.msra.mxu0 %v1604
  %1641 = vmatprep.subr.mxu0 0.0
  %1642 = vmatpush1.msra.mxu0 %v1605
  %1643 = vmatprep.subr.mxu0 0.0
  %1644 = vmatpush1.msra.mxu0 %v1606
  %1645 = vmatprep.subr.mxu0 0.0
  %1646 = vmatpush1.msra.mxu0 %v1607
  %1647 = vmatprep.subr.mxu0 0.0
  %1648 = vmatpush1.msra.mxu0 %v1608
  %1649 = vmatprep.subr.mxu0 0.0
  %1650 = vmatpush1.msra.mxu0 0.0
  %1651 = vmatprep.subr.mxu0 0.0
  %1652 = vmatpush1.msra.mxu0 0.0
  %1653 = vmatprep.subr.mxu0 0.0
  %1654 = vmatpush1.msra.mxu0 0.0
  %1655 = vmatprep.subr.mxu0 0.0
  %1656 = vmatpush1.msra.mxu0 0.0
  %1657 = vmatprep.subr.mxu0 0.0
  %1658 = vmatpush1.msra.mxu0 0.0
  %1659 = vmatprep.subr.mxu0 0.0
  %1660 = vmatpush1.msra.mxu0 0.0
  %1661 = vmatprep.subr.mxu0 0.0
  %1662 = vmatpush1.msra.mxu0 0.0
  %1663 = vmatprep.subr.mxu0 0.0
  %1664 = vmatpush1.msra.mxu0 0.0
  %1665 = vmatprep.subr.mxu0 0.0
  %1666 = vmatpush1.msra.mxu0 0.0
  %1667 = vmatprep.subr.mxu0 0.0
  %1668 = vmatpush1.msra.mxu0 0.0
  %1669 = vmatprep.subr.mxu0 0.0
  %1670 = vmatpush1.msra.mxu0 0.0
  %1671 = vmatprep.subr.mxu0 0.0
  %1672 = vmatpush1.msra.mxu0 0.0
  %1673 = vmatprep.subr.mxu0 0.0
  %1674 = vmatpush1.msra.mxu0 0.0
  %1675 = vmatprep.subr.mxu0 0.0
  %1676 = vmatpush1.msra.mxu0 0.0
  %1677 = vmatprep.subr.mxu0 0.0
  %1678 = vmatpush1.msra.mxu0 0.0
  %1679 = vmatprep.subr.mxu0 0.0
  %1680 = vmatpush1.msra.mxu0 0.0
  %1681 = vmatprep.mubr.f32.mxu0 0.0
  %1682 = vmatmul.mubr.f32.gmra.mrb[0].mxu0 %v113
  %v1683 = vpop.f32.mrb[0].mxu0
  %v1684 = vadd.f32 %v1615, %v1683
  %v1685 = vpop.f32.mrb[0].mxu0
  %1686 = vmatprep.mubr.f32.mxu0 0.0
  %1687 = vmatmul.mubr.f32.gmra.mrb[0].mxu0 %v114
  %v1688 = vpop.f32.mrb[0].mxu0
  %v1689 = vadd.f32 %v1615, %v1688
  %v1690 = vpop.f32.mrb[0].mxu0
  %1691 = vmatprep.mubr.f32.mxu0 0.0
  %1692 = vmatmul.mubr.f32.gmra.mrb[0].mxu0 %v115
  %v1693 = vpop.f32.mrb[0].mxu0
  %v1694 = vadd.f32 %v1615, %v1693
  %v1695 = vpop.f32.mrb[0].mxu0
  %1696 = vdwg.mxu0
  %v1698 = vsel %vm425, %v1474, 0
  %v1701 = vsel %vm425, %v1479, 0
  %v1704 = vsel %vm425, %v1484, 0
  %v1707 = vsel %vm425, %v1579, 0
  %v1710 = vsel %vm425, %v1584, 0
  %v1713 = vsel %vm425, %v1589, 0
  %1715 = vmatprep.subr.mxu0 0.0
  %1716 = vmatpush1.xpose.msra.mxu0 %v1707
  %1717 = vmatprep.subr.mxu0 0.0
  %1718 = vmatpush1.xpose.msra.mxu0 %v1710
  %1719 = vmatprep.subr.mxu0 0.0
  %1720 = vmatpush1.xpose.msra.mxu0 %v1713
  %1721 = vmatprep.subr.mxu0 0.0
  %1722 = vmatpush1.xpose.msra.mxu0 0.0
  %1723 = vmatprep.subr.mxu0 0.0
  %1724 = vmatpush1.xpose.msra.mxu0 0.0
  %1725 = vmatprep.subr.mxu0 0.0
  %1726 = vmatpush1.xpose.msra.mxu0 0.0
  %1727 = vmatprep.subr.mxu0 0.0
  %1728 = vmatpush1.xpose.msra.mxu0 0.0
  %1729 = vmatprep.subr.mxu0 0.0
  %1730 = vmatpush1.xpose.msra.mxu0 0.0
  %1731 = vmatprep.subr.mxu0 0.0
  %1732 = vmatpush1.xpose.msra.mxu0 0.0
  %1733 = vmatprep.subr.mxu0 0.0
  %1734 = vmatpush1.xpose.msra.mxu0 0.0
  %1735 = vmatprep.subr.mxu0 0.0
  %1736 = vmatpush1.xpose.msra.mxu0 0.0
  %1737 = vmatprep.subr.mxu0 0.0
  %1738 = vmatpush1.xpose.msra.mxu0 0.0
  %1739 = vmatprep.subr.mxu0 0.0
  %1740 = vmatpush1.xpose.msra.mxu0 0.0
  %1741 = vmatprep.subr.mxu0 0.0
  %1742 = vmatpush1.xpose.msra.mxu0 0.0
  %1743 = vmatprep.subr.mxu0 0.0
  %1744 = vmatpush1.xpose.msra.mxu0 0.0
  %1745 = vmatprep.subr.mxu0 0.0
  %1746 = vmatpush1.xpose.msra.mxu0 0.0
  %1747 = vmatprep.subr.mxu0 0.0
  %1748 = vmatpush1.xpose.msra.mxu0 0.0
  %1749 = vmatprep.subr.mxu0 0.0
  %1750 = vmatpush1.xpose.msra.mxu0 0.0
  %1751 = vmatprep.subr.mxu0 0.0
  %1752 = vmatpush1.xpose.msra.mxu0 0.0
  %1753 = vmatprep.subr.mxu0 0.0
  %1754 = vmatpush1.xpose.msra.mxu0 0.0
  %1755 = vmatprep.subr.mxu0 0.0
  %1756 = vmatpush1.xpose.msra.mxu0 0.0
  %1757 = vmatprep.subr.mxu0 0.0
  %1758 = vmatpush1.xpose.msra.mxu0 0.0
  %1759 = vmatprep.subr.mxu0 0.0
  %1760 = vmatpush1.xpose.msra.mxu0 0.0
  %1761 = vmatprep.subr.mxu0 0.0
  %1762 = vmatpush1.xpose.msra.mxu0 0.0
  %1763 = vmatprep.subr.mxu0 0.0
  %1764 = vmatpush1.xpose.msra.mxu0 0.0
  %1765 = vmatprep.subr.mxu0 0.0
  %1766 = vmatpush1.xpose.msra.mxu0 0.0
  %1767 = vmatprep.subr.mxu0 0.0
  %1768 = vmatpush1.xpose.msra.mxu0 0.0
  %1769 = vmatprep.subr.mxu0 0.0
  %1770 = vmatpush1.xpose.msra.mxu0 0.0
  %1771 = vmatprep.subr.mxu0 0.0
  %1772 = vmatpush1.xpose.msra.mxu0 0.0
  %1773 = vmatprep.subr.mxu0 0.0
  %1774 = vmatpush1.xpose.msra.mxu0 0.0
  %1775 = vmatprep.subr.mxu0 0.0
  %1776 = vmatpush1.xpose.msra.mxu0 0.0
  %1777 = vmatprep.subr.mxu0 0.0
  %1778 = vmatpush1.xpose.msra.mxu0 0.0
  %1779 = vmatprep.mubr.f32.mxu0 0.0
  %1780 = vmatmul.mubr.f32.gmra.mrb[0].mxu0 %v1698
  %v1781 = vpop.f32.mrb[0].mxu0
  %v1782 = vadd.f32 0.0, %v1781
  %v1783 = vpop.f32.mrb[0].mxu0
  %1784 = vmatprep.mubr.f32.mxu0 0.0
  %1785 = vmatmul.mubr.f32.gmra.mrb[0].mxu0 %v1701
  %v1786 = vpop.f32.mrb[0].mxu0
  %v1787 = vadd.f32 0.0, %v1786
  %v1788 = vpop.f32.mrb[0].mxu0
  %1789 = vmatprep.mubr.f32.mxu0 0.0
  %1790 = vmatmul.mubr.f32.gmra.mrb[0].mxu0 %v1704
  %v1791 = vpop.f32.mrb[0].mxu0
  %v1792 = vadd.f32 0.0, %v1791
  %v1793 = vpop.f32.mrb[0].mxu0
  %1794 = vdwg.mxu0
  %v1795 = vmul.f32 %v1782, 0.17677669
  %v1796 = vmul.f32 %v1787, 0.17677669
  %v1797 = vmul.f32 %v1792, 0.17677669
  %v1798 = vsel %vm527, %v1795, -inf
  %1799 = vmax.xlane.f32.xlu0 %v1798
  %v1800 = vpop.xlane.xlu0 %1799
  %v1801 = vsel %vm527, %v1796, -inf
  %1802 = vmax.xlane.f32.xlu0 %v1801
  %v1803 = vpop.xlane.xlu0 %1802
  %v1804 = vsel %vm534, %v1797, -inf
  %1805 = vmax.xlane.f32.xlu0 %v1804
  %v1806 = vpop.xlane.xlu0 %1805
  %v1807 = vsub.f32 %v1795, %v1800
  %v1808 = vsub.f32 %v1796, %v1803
  %v1809 = vsub.f32 %v1797, %v1806
  %v1810 = vmul.f32 %v1807, 1.442695
  %v1811 = vpow.pop %v1810
  %v1812 = vmul.f32 %v1808, 1.442695
  %v1813 = vpow.pop %v1812
  %v1814 = vmul.f32 %v1809, 1.442695
  %v1815 = vpow.pop %v1814
  %v1816 = vsel %vm527, %v1811, 0.0
  %1817 = vadd.xlane.f32.xlu0 %v1816
  %v1818 = vpop.xlane.xlu0 %1817
  %v1819 = vsel %vm527, %v1813, 0.0
  %1820 = vadd.xlane.f32.xlu0 %v1819
  %v1821 = vpop.xlane.xlu0 %1820
  %v1822 = vsel %vm534, %v1815, 0.0
  %1823 = vadd.xlane.f32.xlu0 %v1822
  %v1824 = vpop.xlane.xlu0 %1823
  %v1825 = vrcp.pop %v1818
  %v1826 = vmul.f32 %v1811, %v1825
  %v1827 = vrcp.pop %v1821
  %v1828 = vmul.f32 %v1813, %v1827
  %v1829 = vrcp.pop %v1824
  %v1830 = vmul.f32 %v1815, %v1829
  %v1832 = vsel %vm527, %v1826, 0
  %v1835 = vsel %vm527, %v1828, 0
  %v1838 = vsel %vm527, %v1830, 0
  %v1841 = vsel %vm65, %v1694, 0
  %1843 = vmatprep.subr.mxu0 0.0
  %1844 = vmatpush1.msra.mxu0 %v1684
  %1845 = vmatprep.subr.mxu0 0.0
  %1846 = vmatpush1.msra.mxu0 %v1689
  %1847 = vmatprep.subr.mxu0 0.0
  %1848 = vmatpush1.msra.mxu0 %v1841
  %1849 = vmatprep.subr.mxu0 0.0
  %1850 = vmatpush1.msra.mxu0 0.0
  %1851 = vmatprep.subr.mxu0 0.0
  %1852 = vmatpush1.msra.mxu0 0.0
  %1853 = vmatprep.subr.mxu0 0.0
  %1854 = vmatpush1.msra.mxu0 0.0
  %1855 = vmatprep.subr.mxu0 0.0
  %1856 = vmatpush1.msra.mxu0 0.0
  %1857 = vmatprep.subr.mxu0 0.0
  %1858 = vmatpush1.msra.mxu0 0.0
  %1859 = vmatprep.subr.mxu0 0.0
  %1860 = vmatpush1.msra.mxu0 0.0
  %1861 = vmatprep.subr.mxu0 0.0
  %1862 = vmatpush1.msra.mxu0 0.0
  %1863 = vmatprep.subr.mxu0 0.0
  %1864 = vmatpush1.msra.mxu0 0.0
  %1865 = vmatprep.subr.mxu0 0.0
  %1866 = vmatpush1.msra.mxu0 0.0
  %1867 = vmatprep.subr.mxu0 0.0
  %1868 = vmatpush1.msra.mxu0 0.0
  %1869 = vmatprep.subr.mxu0 0.0
  %1870 = vmatpush1.msra.mxu0 0.0
  %1871 = vmatprep.subr.mxu0 0.0
  %1872 = vmatpush1.msra.mxu0 0.0
  %1873 = vmatprep.subr.mxu0 0.0
  %1874 = vmatpush1.msra.mxu0 0.0
  %1875 = vmatprep.subr.mxu0 0.0
  %1876 = vmatpush1.msra.mxu0 0.0
  %1877 = vmatprep.subr.mxu0 0.0
  %1878 = vmatpush1.msra.mxu0 0.0
  %1879 = vmatprep.subr.mxu0 0.0
  %1880 = vmatpush1.msra.mxu0 0.0
  %1881 = vmatprep.subr.mxu0 0.0
  %1882 = vmatpush1.msra.mxu0 0.0
  %1883 = vmatprep.subr.mxu0 0.0
  %1884 = vmatpush1.msra.mxu0 0.0
  %1885 = vmatprep.subr.mxu0 0.0
  %1886 = vmatpush1.msra.mxu0 0.0
  %1887 = vmatprep.subr.mxu0 0.0
  %1888 = vmatpush1.msra.mxu0 0.0
  %1889 = vmatprep.subr.mxu0 0.0
  %1890 = vmatpush1.msra.mxu0 0.0
  %1891 = vmatprep.subr.mxu0 0.0
  %1892 = vmatpush1.msra.mxu0 0.0
  %1893 = vmatprep.subr.mxu0 0.0
  %1894 = vmatpush1.msra.mxu0 0.0
  %1895 = vmatprep.subr.mxu0 0.0
  %1896 = vmatpush1.msra.mxu0 0.0
  %1897 = vmatprep.subr.mxu0 0.0
  %1898 = vmatpush1.msra.mxu0 0.0
  %1899 = vmatprep.subr.mxu0 0.0
  %1900 = vmatpush1.msra.mxu0 0.0
  %1901 = vmatprep.subr.mxu0 0.0
  %1902 = vmatpush1.msra.mxu0 0.0
  %1903 = vmatprep.subr.mxu0 0.0
  %1904 = vmatpush1.msra.mxu0 0.0
  %1905 = vmatprep.subr.mxu0 0.0
  %1906 = vmatpush1.msra.mxu0 0.0
  %1907 = vmatprep.mubr.f32.mxu0 0.0
  %1908 = vmatmul.mubr.f32.gmra.mrb[0].mxu0 %v1832
  %v1909 = vpop.f32.mrb[0].mxu0
  %v1910 = vadd.f32 0.0, %v1909
  %v1911 = vpop.f32.mrb[0].mxu0
  %1912 = vmatprep.mubr.f32.mxu0 0.0
  %1913 = vmatmul.mubr.f32.gmra.mrb[0].mxu0 %v1835
  %v1914 = vpop.f32.mrb[0].mxu0
  %v1915 = vadd.f32 0.0, %v1914
  %v1916 = vpop.f32.mrb[0].mxu0
  %1917 = vmatprep.mubr.f32.mxu0 0.0
  %1918 = vmatmul.mubr.f32.gmra.mrb[0].mxu0 %v1838
  %v1919 = vpop.f32.mrb[0].mxu0
  %v1920 = vadd.f32 0.0, %v1919
  %v1921 = vpop.f32.mrb[0].mxu0
  %1922 = vdwg.mxu0
  %s1923 = scalar_lea.vmem %s7, 64
  %v1924 = vld [vmem:[%s1923] sm:$0xff]
  %v1925 = vld [vmem:[%s1923 + $0x8] sm:$0xff]
  %v1926 = vld [vmem:[%s1923 + $0x10] sm:$0xff]
  %v1927 = vld [vmem:[%s1923 + $0x18] sm:$0xff]
  %v1929 = vsel %vm425, %v1910, 0
  %v1932 = vsel %vm425, %v1915, 0
  %v1935 = vsel %vm425, %v1920, 0
  %1937 = vmatprep.subr.mxu0 0.0
  %1938 = vmatpush1.msra.mxu0 %v1924
  %1939 = vmatprep.subr.mxu0 0.0
  %1940 = vmatpush1.msra.mxu0 %v1925
  %1941 = vmatprep.subr.mxu0 0.0
  %1942 = vmatpush1.msra.mxu0 %v1926
  %1943 = vmatprep.subr.mxu0 0.0
  %1944 = vmatpush1.msra.mxu0 %v1927
  %1945 = vmatprep.subr.mxu0 0.0
  %1946 = vmatpush1.msra.mxu0 0.0
  %1947 = vmatprep.subr.mxu0 0.0
  %1948 = vmatpush1.msra.mxu0 0.0
  %1949 = vmatprep.subr.mxu0 0.0
  %1950 = vmatpush1.msra.mxu0 0.0
  %1951 = vmatprep.subr.mxu0 0.0
  %1952 = vmatpush1.msra.mxu0 0.0
  %1953 = vmatprep.subr.mxu0 0.0
  %1954 = vmatpush1.msra.mxu0 0.0
  %1955 = vmatprep.subr.mxu0 0.0
  %1956 = vmatpush1.msra.mxu0 0.0
  %1957 = vmatprep.subr.mxu0 0.0
  %1958 = vmatpush1.msra.mxu0 0.0
  %1959 = vmatprep.subr.mxu0 0.0
  %1960 = vmatpush1.msra.mxu0 0.0
  %1961 = vmatprep.subr.mxu0 0.0
  %1962 = vmatpush1.msra.mxu0 0.0
  %1963 = vmatprep.subr.mxu0 0.0
  %1964 = vmatpush1.msra.mxu0 0.0
  %1965 = vmatprep.subr.mxu0 0.0
  %1966 = vmatpush1.msra.mxu0 0.0
  %1967 = vmatprep.subr.mxu0 0.0
  %1968 = vmatpush1.msra.mxu0 0.0
  %1969 = vmatprep.subr.mxu0 0.0
  %1970 = vmatpush1.msra.mxu0 0.0
  %1971 = vmatprep.subr.mxu0 0.0
  %1972 = vmatpush1.msra.mxu0 0.0
  %1973 = vmatprep.subr.mxu0 0.0
  %1974 = vmatpush1.msra.mxu0 0.0
  %1975 = vmatprep.subr.mxu0 0.0
  %1976 = vmatpush1.msra.mxu0 0.0
  %1977 = vmatprep.subr.mxu0 0.0
  %1978 = vmatpush1.msra.mxu0 0.0
  %1979 = vmatprep.subr.mxu0 0.0
  %1980 = vmatpush1.msra.mxu0 0.0
  %1981 = vmatprep.subr.mxu0 0.0
  %1982 = vmatpush1.msra.mxu0 0.0
  %1983 = vmatprep.subr.mxu0 0.0
  %1984 = vmatpush1.msra.mxu0 0.0
  %1985 = vmatprep.subr.mxu0 0.0
  %1986 = vmatpush1.msra.mxu0 0.0
  %1987 = vmatprep.subr.mxu0 0.0
  %1988 = vmatpush1.msra.mxu0 0.0
  %1989 = vmatprep.subr.mxu0 0.0
  %1990 = vmatpush1.msra.mxu0 0.0
  %1991 = vmatprep.subr.mxu0 0.0
  %1992 = vmatpush1.msra.mxu0 0.0
  %1993 = vmatprep.subr.mxu0 0.0
  %1994 = vmatpush1.msra.mxu0 0.0
  %1995 = vmatprep.subr.mxu0 0.0
  %1996 = vmatpush1.msra.mxu0 0.0
  %1997 = vmatprep.subr.mxu0 0.0
  %1998 = vmatpush1.msra.mxu0 0.0
  %1999 = vmatprep.subr.mxu0 0.0
  %2000 = vmatpush1.msra.mxu0 0.0
  %2001 = vmatprep.mubr.f32.mxu0 0.0
  %2002 = vmatmul.mubr.f32.gmra.mrb[0].mxu0 %v1929
  %v2003 = vpop.f32.mrb[0].mxu0
  %v2004 = vadd.f32 0.0, %v2003
  %v2005 = vpop.f32.mrb[0].mxu0
  %2006 = vmatprep.mubr.f32.mxu0 0.0
  %2007 = vmatmul.mubr.f32.gmra.mrb[0].mxu0 %v1932
  %v2008 = vpop.f32.mrb[0].mxu0
  %v2009 = vadd.f32 0.0, %v2008
  %v2010 = vpop.f32.mrb[0].mxu0
  %2011 = vmatprep.mubr.f32.mxu0 0.0
  %2012 = vmatmul.mubr.f32.gmra.mrb[0].mxu0 %v1935
  %v2013 = vpop.f32.mrb[0].mxu0
  %v2014 = vadd.f32 0.0, %v2013
  %v2015 = vpop.f32.mrb[0].mxu0
  %2016 = vdwg.mxu0
  %v2017 = vadd.f32 %v1369, %v2004
  %v2018 = vadd.f32 %v1374, %v2009
  %v2019 = vadd.f32 %v1379, %v2014
  %s2020 = scalar_lea.vmem %s1, 384
  %v2021 = vld [vmem:[%s2020] sm:$0xff]
  %v2022 = vld [vmem:[%s2020 + $0x8] sm:$0xff]
  %v2023 = vld [vmem:[%s2020 + $0x10] sm:$0xff]
  %v2024 = vld [vmem:[%s2020 + $0x18] sm:$0xff]
  %v2025 = vld [vmem:[%s2020 + $0x20] sm:$0xff]
  %v2026 = vld [vmem:[%s2020 + $0x28] sm:$0xff]
  %v2027 = vld [vmem:[%s2020 + $0x30] sm:$0xff]
  %v2028 = vld [vmem:[%s2020 + $0x38] sm:$0xff]
  %v2029 = vld [vmem:[%s2020 + $0x40] sm:$0xff]
  %v2030 = vld [vmem:[%s2020 + $0x48] sm:$0xff]
  %v2031 = vld [vmem:[%s2020 + $0x50] sm:$0xff]
  %v2032 = vld [vmem:[%s2020 + $0x58] sm:$0xff]
  %v2033 = vld [vmem:[%s2020 + $0x60] sm:$0xff]
  %v2034 = vld [vmem:[%s2020 + $0x68] sm:$0xff]
  %v2035 = vld [vmem:[%s2020 + $0x70] sm:$0xff]
  %v2036 = vld [vmem:[%s2020 + $0x78] sm:$0xff]
  %s2037 = scalar_lea.vmem %s4, 3
  %v2038 = vld [vmem:[%s2037] sm:$0x1]
  %v2040 = vlaneseq
  %v2041 = vshrl.u32 %v2040, 7
  %v2042 = vsub.s32 0, %v2041
  %v2043 = vrot.slane %v2038, %v2042
  %2045 = vmatprep.subr.mxu0 0.0
  %2046 = vmatpush1.msra.mxu0 %v2021
  %2047 = vmatprep.subr.mxu0 0.0
  %2048 = vmatpush1.msra.mxu0 %v2022
  %2049 = vmatprep.subr.mxu0 0.0
  %2050 = vmatpush1.msra.mxu0 %v2023
  %2051 = vmatprep.subr.mxu0 0.0
  %2052 = vmatpush1.msra.mxu0 %v2024
  %2053 = vmatprep.subr.mxu0 0.0
  %2054 = vmatpush1.msra.mxu0 %v2025
  %2055 = vmatprep.subr.mxu0 0.0
  %2056 = vmatpush1.msra.mxu0 %v2026
  %2057 = vmatprep.subr.mxu0 0.0
  %2058 = vmatpush1.msra.mxu0 %v2027
  %2059 = vmatprep.subr.mxu0 0.0
  %2060 = vmatpush1.msra.mxu0 %v2028
  %2061 = vmatprep.subr.mxu0 0.0
  %2062 = vmatpush1.msra.mxu0 %v2029
  %2063 = vmatprep.subr.mxu0 0.0
  %2064 = vmatpush1.msra.mxu0 %v2030
  %2065 = vmatprep.subr.mxu0 0.0
  %2066 = vmatpush1.msra.mxu0 %v2031
  %2067 = vmatprep.subr.mxu0 0.0
  %2068 = vmatpush1.msra.mxu0 %v2032
  %2069 = vmatprep.subr.mxu0 0.0
  %2070 = vmatpush1.msra.mxu0 %v2033
  %2071 = vmatprep.subr.mxu0 0.0
  %2072 = vmatpush1.msra.mxu0 %v2034
  %2073 = vmatprep.subr.mxu0 0.0
  %2074 = vmatpush1.msra.mxu0 %v2035
  %2075 = vmatprep.subr.mxu0 0.0
  %2076 = vmatpush1.msra.mxu0 %v2036
  %2077 = vmatprep.subr.mxu0 0.0
  %2078 = vmatpush1.msra.mxu0 0.0
  %2079 = vmatprep.subr.mxu0 0.0
  %2080 = vmatpush1.msra.mxu0 0.0
  %2081 = vmatprep.subr.mxu0 0.0
  %2082 = vmatpush1.msra.mxu0 0.0
  %2083 = vmatprep.subr.mxu0 0.0
  %2084 = vmatpush1.msra.mxu0 0.0
  %2085 = vmatprep.subr.mxu0 0.0
  %2086 = vmatpush1.msra.mxu0 0.0
  %2087 = vmatprep.subr.mxu0 0.0
  %2088 = vmatpush1.msra.mxu0 0.0
  %2089 = vmatprep.subr.mxu0 0.0
  %2090 = vmatpush1.msra.mxu0 0.0
  %2091 = vmatprep.subr.mxu0 0.0
  %2092 = vmatpush1.msra.mxu0 0.0
  %2093 = vmatprep.subr.mxu0 0.0
  %2094 = vmatpush1.msra.mxu0 0.0
  %2095 = vmatprep.subr.mxu0 0.0
  %2096 = vmatpush1.msra.mxu0 0.0
  %2097 = vmatprep.subr.mxu0 0.0
  %2098 = vmatpush1.msra.mxu0 0.0
  %2099 = vmatprep.subr.mxu0 0.0
  %2100 = vmatpush1.msra.mxu0 0.0
  %2101 = vmatprep.subr.mxu0 0.0
  %2102 = vmatpush1.msra.mxu0 0.0
  %2103 = vmatprep.subr.mxu0 0.0
  %2104 = vmatpush1.msra.mxu0 0.0
  %2105 = vmatprep.subr.mxu0 0.0
  %2106 = vmatpush1.msra.mxu0 0.0
  %2107 = vmatprep.subr.mxu0 0.0
  %2108 = vmatpush1.msra.mxu0 0.0
  %2109 = vmatprep.mubr.f32.mxu0 0.0
  %2110 = vmatmul.mubr.f32.gmra.mrb[0].mxu0 %v113
  %v2111 = vpop.f32.mrb[0].mxu0
  %v2112 = vadd.f32 %v2043, %v2111
  %v2113 = vpop.f32.mrb[0].mxu0
  %2114 = vmatprep.mubr.f32.mxu0 0.0
  %2115 = vmatmul.mubr.f32.gmra.mrb[0].mxu0 %v114
  %v2116 = vpop.f32.mrb[0].mxu0
  %v2117 = vadd.f32 %v2043, %v2116
  %v2118 = vpop.f32.mrb[0].mxu0
  %2119 = vmatprep.mubr.f32.mxu0 0.0
  %2120 = vmatmul.mubr.f32.gmra.mrb[0].mxu0 %v115
  %v2121 = vpop.f32.mrb[0].mxu0
  %v2122 = vadd.f32 %v2043, %v2121
  %v2123 = vpop.f32.mrb[0].mxu0
  %2124 = vdwg.mxu0
  %s2125 = scalar_lea.vmem %s2, 384
  %v2126 = vld [vmem:[%s2125] sm:$0xff]
  %v2127 = vld [vmem:[%s2125 + $0x8] sm:$0xff]
  %v2128 = vld [vmem:[%s2125 + $0x10] sm:$0xff]
  %v2129 = vld [vmem:[%s2125 + $0x18] sm:$0xff]
  %v2130 = vld [vmem:[%s2125 + $0x20] sm:$0xff]
  %v2131 = vld [vmem:[%s2125 + $0x28] sm:$0xff]
  %v2132 = vld [vmem:[%s2125 + $0x30] sm:$0xff]
  %v2133 = vld [vmem:[%s2125 + $0x38] sm:$0xff]
  %v2134 = vld [vmem:[%s2125 + $0x40] sm:$0xff]
  %v2135 = vld [vmem:[%s2125 + $0x48] sm:$0xff]
  %v2136 = vld [vmem:[%s2125 + $0x50] sm:$0xff]
  %v2137 = vld [vmem:[%s2125 + $0x58] sm:$0xff]
  %v2138 = vld [vmem:[%s2125 + $0x60] sm:$0xff]
  %v2139 = vld [vmem:[%s2125 + $0x68] sm:$0xff]
  %v2140 = vld [vmem:[%s2125 + $0x70] sm:$0xff]
  %v2141 = vld [vmem:[%s2125 + $0x78] sm:$0xff]
  %s2142 = scalar_lea.vmem %s5, 3
  %v2143 = vld [vmem:[%s2142] sm:$0x1]
  %v2145 = vlaneseq
  %v2146 = vshrl.u32 %v2145, 7
  %v2147 = vsub.s32 0, %v2146
  %v2148 = vrot.slane %v2143, %v2147
  %2150 = vmatprep.subr.mxu0 0.0
  %2151 = vmatpush1.msra.mxu0 %v2126
  %2152 = vmatprep.subr.mxu0 0.0
  %2153 = vmatpush1.msra.mxu0 %v2127
  %2154 = vmatprep.subr.mxu0 0.0
  %2155 = vmatpush1.msra.mxu0 %v2128
  %2156 = vmatprep.subr.mxu0 0.0
  %2157 = vmatpush1.msra.mxu0 %v2129
  %2158 = vmatprep.subr.mxu0 0.0
  %2159 = vmatpush1.msra.mxu0 %v2130
  %2160 = vmatprep.subr.mxu0 0.0
  %2161 = vmatpush1.msra.mxu0 %v2131
  %2162 = vmatprep.subr.mxu0 0.0
  %2163 = vmatpush1.msra.mxu0 %v2132
  %2164 = vmatprep.subr.mxu0 0.0
  %2165 = vmatpush1.msra.mxu0 %v2133
  %2166 = vmatprep.subr.mxu0 0.0
  %2167 = vmatpush1.msra.mxu0 %v2134
  %2168 = vmatprep.subr.mxu0 0.0
  %2169 = vmatpush1.msra.mxu0 %v2135
  %2170 = vmatprep.subr.mxu0 0.0
  %2171 = vmatpush1.msra.mxu0 %v2136
  %2172 = vmatprep.subr.mxu0 0.0
  %2173 = vmatpush1.msra.mxu0 %v2137
  %2174 = vmatprep.subr.mxu0 0.0
  %2175 = vmatpush1.msra.mxu0 %v2138
  %2176 = vmatprep.subr.mxu0 0.0
  %2177 = vmatpush1.msra.mxu0 %v2139
  %2178 = vmatprep.subr.mxu0 0.0
  %2179 = vmatpush1.msra.mxu0 %v2140
  %2180 = vmatprep.subr.mxu0 0.0
  %2181 = vmatpush1.msra.mxu0 %v2141
  %2182 = vmatprep.subr.mxu0 0.0
  %2183 = vmatpush1.msra.mxu0 0.0
  %2184 = vmatprep.subr.mxu0 0.0
  %2185 = vmatpush1.msra.mxu0 0.0
  %2186 = vmatprep.subr.mxu0 0.0
  %2187 = vmatpush1.msra.mxu0 0.0
  %2188 = vmatprep.subr.mxu0 0.0
  %2189 = vmatpush1.msra.mxu0 0.0
  %2190 = vmatprep.subr.mxu0 0.0
  %2191 = vmatpush1.msra.mxu0 0.0
  %2192 = vmatprep.subr.mxu0 0.0
  %2193 = vmatpush1.msra.mxu0 0.0
  %2194 = vmatprep.subr.mxu0 0.0
  %2195 = vmatpush1.msra.mxu0 0.0
  %2196 = vmatprep.subr.mxu0 0.0
  %2197 = vmatpush1.msra.mxu0 0.0
  %2198 = vmatprep.subr.mxu0 0.0
  %2199 = vmatpush1.msra.mxu0 0.0
  %2200 = vmatprep.subr.mxu0 0.0
  %2201 = vmatpush1.msra.mxu0 0.0
  %2202 = vmatprep.subr.mxu0 0.0
  %2203 = vmatpush1.msra.mxu0 0.0
  %2204 = vmatprep.subr.mxu0 0.0
  %2205 = vmatpush1.msra.mxu0 0.0
  %2206 = vmatprep.subr.mxu0 0.0
  %2207 = vmatpush1.msra.mxu0 0.0
  %2208 = vmatprep.subr.mxu0 0.0
  %2209 = vmatpush1.msra.mxu0 0.0
  %2210 = vmatprep.subr.mxu0 0.0
  %2211 = vmatpush1.msra.mxu0 0.0
  %2212 = vmatprep.subr.mxu0 0.0
  %2213 = vmatpush1.msra.mxu0 0.0
  %2214 = vmatprep.mubr.f32.mxu0 0.0
  %2215 = vmatmul.mubr.f32.gmra.mrb[0].mxu0 %v113
  %v2216 = vpop.f32.mrb[0].mxu0
  %v2217 = vadd.f32 %v2148, %v2216
  %v2218 = vpop.f32.mrb[0].mxu0
  %2219 = vmatprep.mubr.f32.mxu0 0.0
  %2220 = vmatmul.mubr.f32.gmra.mrb[0].mxu0 %v114
  %v2221 = vpop.f32.mrb[0].mxu0
  %v2222 = vadd.f32 %v2148, %v2221
  %v2223 = vpop.f32.mrb[0].mxu0
  %2224 = vmatprep.mubr.f32.mxu0 0.0
  %2225 = vmatmul.mubr.f32.gmra.mrb[0].mxu0 %v115
  %v2226 = vpop.f32.mrb[0].mxu0
  %v2227 = vadd.f32 %v2148, %v2226
  %v2228 = vpop.f32.mrb[0].mxu0
  %2229 = vdwg.mxu0
  %s2230 = scalar_lea.vmem %s3, 384
  %v2231 = vld [vmem:[%s2230] sm:$0xff]
  %v2232 = vld [vmem:[%s2230 + $0x8] sm:$0xff]
  %v2233 = vld [vmem:[%s2230 + $0x10] sm:$0xff]
  %v2234 = vld [vmem:[%s2230 + $0x18] sm:$0xff]
  %v2235 = vld [vmem:[%s2230 + $0x20] sm:$0xff]
  %v2236 = vld [vmem:[%s2230 + $0x28] sm:$0xff]
  %v2237 = vld [vmem:[%s2230 + $0x30] sm:$0xff]
  %v2238 = vld [vmem:[%s2230 + $0x38] sm:$0xff]
  %v2239 = vld [vmem:[%s2230 + $0x40] sm:$0xff]
  %v2240 = vld [vmem:[%s2230 + $0x48] sm:$0xff]
  %v2241 = vld [vmem:[%s2230 + $0x50] sm:$0xff]
  %v2242 = vld [vmem:[%s2230 + $0x58] sm:$0xff]
  %v2243 = vld [vmem:[%s2230 + $0x60] sm:$0xff]
  %v2244 = vld [vmem:[%s2230 + $0x68] sm:$0xff]
  %v2245 = vld [vmem:[%s2230 + $0x70] sm:$0xff]
  %v2246 = vld [vmem:[%s2230 + $0x78] sm:$0xff]
  %s2247 = scalar_lea.vmem %s6, 3
  %v2248 = vld [vmem:[%s2247] sm:$0x1]
  %v2250 = vlaneseq
  %v2251 = vshrl.u32 %v2250, 7
  %v2252 = vsub.s32 0, %v2251
  %v2253 = vrot.slane %v2248, %v2252
  %2255 = vmatprep.subr.mxu0 0.0
  %2256 = vmatpush1.msra.mxu0 %v2231
  %2257 = vmatprep.subr.mxu0 0.0
  %2258 = vmatpush1.msra.mxu0 %v2232
  %2259 = vmatprep.subr.mxu0 0.0
  %2260 = vmatpush1.msra.mxu0 %v2233
  %2261 = vmatprep.subr.mxu0 0.0
  %2262 = vmatpush1.msra.mxu0 %v2234
  %2263 = vmatprep.subr.mxu0 0.0
  %2264 = vmatpush1.msra.mxu0 %v2235
  %2265 = vmatprep.subr.mxu0 0.0
  %2266 = vmatpush1.msra.mxu0 %v2236
  %2267 = vmatprep.subr.mxu0 0.0
  %2268 = vmatpush1.msra.mxu0 %v2237
  %2269 = vmatprep.subr.mxu0 0.0
  %2270 = vmatpush1.msra.mxu0 %v2238
  %2271 = vmatprep.subr.mxu0 0.0
  %2272 = vmatpush1.msra.mxu0 %v2239
  %2273 = vmatprep.subr.mxu0 0.0
  %2274 = vmatpush1.msra.mxu0 %v2240
  %2275 = vmatprep.subr.mxu0 0.0
  %2276 = vmatpush1.msra.mxu0 %v2241
  %2277 = vmatprep.subr.mxu0 0.0
  %2278 = vmatpush1.msra.mxu0 %v2242
  %2279 = vmatprep.subr.mxu0 0.0
  %2280 = vmatpush1.msra.mxu0 %v2243
  %2281 = vmatprep.subr.mxu0 0.0
  %2282 = vmatpush1.msra.mxu0 %v2244
  %2283 = vmatprep.subr.mxu0 0.0
  %2284 = vmatpush1.msra.mxu0 %v2245
  %2285 = vmatprep.subr.mxu0 0.0
  %2286 = vmatpush1.msra.mxu0 %v2246
  %2287 = vmatprep.subr.mxu0 0.0
  %2288 = vmatpush1.msra.mxu0 0.0
  %2289 = vmatprep.subr.mxu0 0.0
  %2290 = vmatpush1.msra.mxu0 0.0
  %2291 = vmatprep.subr.mxu0 0.0
  %2292 = vmatpush1.msra.mxu0 0.0
  %2293 = vmatprep.subr.mxu0 0.0
  %2294 = vmatpush1.msra.mxu0 0.0
  %2295 = vmatprep.subr.mxu0 0.0
  %2296 = vmatpush1.msra.mxu0 0.0
  %2297 = vmatprep.subr.mxu0 0.0
  %2298 = vmatpush1.msra.mxu0 0.0
  %2299 = vmatprep.subr.mxu0 0.0
  %2300 = vmatpush1.msra.mxu0 0.0
  %2301 = vmatprep.subr.mxu0 0.0
  %2302 = vmatpush1.msra.mxu0 0.0
  %2303 = vmatprep.subr.mxu0 0.0
  %2304 = vmatpush1.msra.mxu0 0.0
  %2305 = vmatprep.subr.mxu0 0.0
  %2306 = vmatpush1.msra.mxu0 0.0
  %2307 = vmatprep.subr.mxu0 0.0
  %2308 = vmatpush1.msra.mxu0 0.0
  %2309 = vmatprep.subr.mxu0 0.0
  %2310 = vmatpush1.msra.mxu0 0.0
  %2311 = vmatprep.subr.mxu0 0.0
  %2312 = vmatpush1.msra.mxu0 0.0
  %2313 = vmatprep.subr.mxu0 0.0
  %2314 = vmatpush1.msra.mxu0 0.0
  %2315 = vmatprep.subr.mxu0 0.0
  %2316 = vmatpush1.msra.mxu0 0.0
  %2317 = vmatprep.subr.mxu0 0.0
  %2318 = vmatpush1.msra.mxu0 0.0
  %2319 = vmatprep.mubr.f32.mxu0 0.0
  %2320 = vmatmul.mubr.f32.gmra.mrb[0].mxu0 %v113
  %v2321 = vpop.f32.mrb[0].mxu0
  %v2322 = vadd.f32 %v2253, %v2321
  %v2323 = vpop.f32.mrb[0].mxu0
  %2324 = vmatprep.mubr.f32.mxu0 0.0
  %2325 = vmatmul.mubr.f32.gmra.mrb[0].mxu0 %v114
  %v2326 = vpop.f32.mrb[0].mxu0
  %v2327 = vadd.f32 %v2253, %v2326
  %v2328 = vpop.f32.mrb[0].mxu0
  %2329 = vmatprep.mubr.f32.mxu0 0.0
  %2330 = vmatmul.mubr.f32.gmra.mrb[0].mxu0 %v115
  %v2331 = vpop.f32.mrb[0].mxu0
  %v2332 = vadd.f32 %v2253, %v2331
  %v2333 = vpop.f32.mrb[0].mxu0
  %2334 = vdwg.mxu0
  %v2336 = vsel %vm425, %v2112, 0
  %v2339 = vsel %vm425, %v2117, 0
  %v2342 = vsel %vm425, %v2122, 0
  %v2345 = vsel %vm425, %v2217, 0
  %v2348 = vsel %vm425, %v2222, 0
  %v2351 = vsel %vm425, %v2227, 0
  %2353 = vmatprep.subr.mxu0 0.0
  %2354 = vmatpush1.xpose.msra.mxu0 %v2345
  %2355 = vmatprep.subr.mxu0 0.0
  %2356 = vmatpush1.xpose.msra.mxu0 %v2348
  %2357 = vmatprep.subr.mxu0 0.0
  %2358 = vmatpush1.xpose.msra.mxu0 %v2351
  %2359 = vmatprep.subr.mxu0 0.0
  %2360 = vmatpush1.xpose.msra.mxu0 0.0
  %2361 = vmatprep.subr.mxu0 0.0
  %2362 = vmatpush1.xpose.msra.mxu0 0.0
  %2363 = vmatprep.subr.mxu0 0.0
  %2364 = vmatpush1.xpose.msra.mxu0 0.0
  %2365 = vmatprep.subr.mxu0 0.0
  %2366 = vmatpush1.xpose.msra.mxu0 0.0
  %2367 = vmatprep.subr.mxu0 0.0
  %2368 = vmatpush1.xpose.msra.mxu0 0.0
  %2369 = vmatprep.subr.mxu0 0.0
  %2370 = vmatpush1.xpose.msra.mxu0 0.0
  %2371 = vmatprep.subr.mxu0 0.0
  %2372 = vmatpush1.xpose.msra.mxu0 0.0
  %2373 = vmatprep.subr.mxu0 0.0
  %2374 = vmatpush1.xpose.msra.mxu0 0.0
  %2375 = vmatprep.subr.mxu0 0.0
  %2376 = vmatpush1.xpose.msra.mxu0 0.0
  %2377 = vmatprep.subr.mxu0 0.0
  %2378 = vmatpush1.xpose.msra.mxu0 0.0
  %2379 = vmatprep.subr.mxu0 0.0
  %2380 = vmatpush1.xpose.msra.mxu0 0.0
  %2381 = vmatprep.subr.mxu0 0.0
  %2382 = vmatpush1.xpose.msra.mxu0 0.0
  %2383 = vmatprep.subr.mxu0 0.0
  %2384 = vmatpush1.xpose.msra.mxu0 0.0
  %2385 = vmatprep.subr.mxu0 0.0
  %2386 = vmatpush1.xpose.msra.mxu0 0.0
  %2387 = vmatprep.subr.mxu0 0.0
  %2388 = vmatpush1.xpose.msra.mxu0 0.0
  %2389 = vmatprep.subr.mxu0 0.0
  %2390 = vmatpush1.xpose.msra.mxu0 0.0
  %2391 = vmatprep.subr.mxu0 0.0
  %2392 = vmatpush1.xpose.msra.mxu0 0.0
  %2393 = vmatprep.subr.mxu0 0.0
  %2394 = vmatpush1.xpose.msra.mxu0 0.0
  %2395 = vmatprep.subr.mxu0 0.0
  %2396 = vmatpush1.xpose.msra.mxu0 0.0
  %2397 = vmatprep.subr.mxu0 0.0
  %2398 = vmatpush1.xpose.msra.mxu0 0.0
  %2399 = vmatprep.subr.mxu0 0.0
  %2400 = vmatpush1.xpose.msra.mxu0 0.0
  %2401 = vmatprep.subr.mxu0 0.0
  %2402 = vmatpush1.xpose.msra.mxu0 0.0
  %2403 = vmatprep.subr.mxu0 0.0
  %2404 = vmatpush1.xpose.msra.mxu0 0.0
  %2405 = vmatprep.subr.mxu0 0.0
  %2406 = vmatpush1.xpose.msra.mxu0 0.0
  %2407 = vmatprep.subr.mxu0 0.0
  %2408 = vmatpush1.xpose.msra.mxu0 0.0
  %2409 = vmatprep.subr.mxu0 0.0
  %2410 = vmatpush1.xpose.msra.mxu0 0.0
  %2411 = vmatprep.subr.mxu0 0.0
  %2412 = vmatpush1.xpose.msra.mxu0 0.0
  %2413 = vmatprep.subr.mxu0 0.0
  %2414 = vmatpush1.xpose.msra.mxu0 0.0
  %2415 = vmatprep.subr.mxu0 0.0
  %2416 = vmatpush1.xpose.msra.mxu0 0.0
  %2417 = vmatprep.mubr.f32.mxu0 0.0
  %2418 = vmatmul.mubr.f32.gmra.mrb[0].mxu0 %v2336
  %v2419 = vpop.f32.mrb[0].mxu0
  %v2420 = vadd.f32 0.0, %v2419
  %v2421 = vpop.f32.mrb[0].mxu0
  %2422 = vmatprep.mubr.f32.mxu0 0.0
  %2423 = vmatmul.mubr.f32.gmra.mrb[0].mxu0 %v2339
  %v2424 = vpop.f32.mrb[0].mxu0
  %v2425 = vadd.f32 0.0, %v2424
  %v2426 = vpop.f32.mrb[0].mxu0
  %2427 = vmatprep.mubr.f32.mxu0 0.0
  %2428 = vmatmul.mubr.f32.gmra.mrb[0].mxu0 %v2342
  %v2429 = vpop.f32.mrb[0].mxu0
  %v2430 = vadd.f32 0.0, %v2429
  %v2431 = vpop.f32.mrb[0].mxu0
  %2432 = vdwg.mxu0
  %v2433 = vmul.f32 %v2420, 0.17677669
  %v2434 = vmul.f32 %v2425, 0.17677669
  %v2435 = vmul.f32 %v2430, 0.17677669
  %v2436 = vsel %vm527, %v2433, -inf
  %2437 = vmax.xlane.f32.xlu0 %v2436
  %v2438 = vpop.xlane.xlu0 %2437
  %v2439 = vsel %vm527, %v2434, -inf
  %2440 = vmax.xlane.f32.xlu0 %v2439
  %v2441 = vpop.xlane.xlu0 %2440
  %v2442 = vsel %vm534, %v2435, -inf
  %2443 = vmax.xlane.f32.xlu0 %v2442
  %v2444 = vpop.xlane.xlu0 %2443
  %v2445 = vsub.f32 %v2433, %v2438
  %v2446 = vsub.f32 %v2434, %v2441
  %v2447 = vsub.f32 %v2435, %v2444
  %v2448 = vmul.f32 %v2445, 1.442695
  %v2449 = vpow.pop %v2448
  %v2450 = vmul.f32 %v2446, 1.442695
  %v2451 = vpow.pop %v2450
  %v2452 = vmul.f32 %v2447, 1.442695
  %v2453 = vpow.pop %v2452
  %v2454 = vsel %vm527, %v2449, 0.0
  %2455 = vadd.xlane.f32.xlu0 %v2454
  %v2456 = vpop.xlane.xlu0 %2455
  %v2457 = vsel %vm527, %v2451, 0.0
  %2458 = vadd.xlane.f32.xlu0 %v2457
  %v2459 = vpop.xlane.xlu0 %2458
  %v2460 = vsel %vm534, %v2453, 0.0
  %2461 = vadd.xlane.f32.xlu0 %v2460
  %v2462 = vpop.xlane.xlu0 %2461
  %v2463 = vrcp.pop %v2456
  %v2464 = vmul.f32 %v2449, %v2463
  %v2465 = vrcp.pop %v2459
  %v2466 = vmul.f32 %v2451, %v2465
  %v2467 = vrcp.pop %v2462
  %v2468 = vmul.f32 %v2453, %v2467
  %v2470 = vsel %vm527, %v2464, 0
  %v2473 = vsel %vm527, %v2466, 0
  %v2476 = vsel %vm527, %v2468, 0
  %v2479 = vsel %vm65, %v2332, 0
  %2481 = vmatprep.subr.mxu0 0.0
  %2482 = vmatpush1.msra.mxu0 %v2322
  %2483 = vmatprep.subr.mxu0 0.0
  %2484 = vmatpush1.msra.mxu0 %v2327
  %2485 = vmatprep.subr.mxu0 0.0
  %2486 = vmatpush1.msra.mxu0 %v2479
  %2487 = vmatprep.subr.mxu0 0.0
  %2488 = vmatpush1.msra.mxu0 0.0
  %2489 = vmatprep.subr.mxu0 0.0
  %2490 = vmatpush1.msra.mxu0 0.0
  %2491 = vmatprep.subr.mxu0 0.0
  %2492 = vmatpush1.msra.mxu0 0.0
  %2493 = vmatprep.subr.mxu0 0.0
  %2494 = vmatpush1.msra.mxu0 0.0
  %2495 = vmatprep.subr.mxu0 0.0
  %2496 = vmatpush1.msra.mxu0 0.0
  %2497 = vmatprep.subr.mxu0 0.0
  %2498 = vmatpush1.msra.mxu0 0.0
  %2499 = vmatprep.subr.mxu0 0.0
  %2500 = vmatpush1.msra.mxu0 0.0
  %2501 = vmatprep.subr.mxu0 0.0
  %2502 = vmatpush1.msra.mxu0 0.0
  %2503 = vmatprep.subr.mxu0 0.0
  %2504 = vmatpush1.msra.mxu0 0.0
  %2505 = vmatprep.subr.mxu0 0.0
  %2506 = vmatpush1.msra.mxu0 0.0
  %2507 = vmatprep.subr.mxu0 0.0
  %2508 = vmatpush1.msra.mxu0 0.0
  %2509 = vmatprep.subr.mxu0 0.0
  %2510 = vmatpush1.msra.mxu0 0.0
  %2511 = vmatprep.subr.mxu0 0.0
  %2512 = vmatpush1.msra.mxu0 0.0
  %2513 = vmatprep.subr.mxu0 0.0
  %2514 = vmatpush1.msra.mxu0 0.0
  %2515 = vmatprep.subr.mxu0 0.0
  %2516 = vmatpush1.msra.mxu0 0.0
  %2517 = vmatprep.subr.mxu0 0.0
  %2518 = vmatpush1.msra.mxu0 0.0
  %2519 = vmatprep.subr.mxu0 0.0
  %2520 = vmatpush1.msra.mxu0 0.0
  %2521 = vmatprep.subr.mxu0 0.0
  %2522 = vmatpush1.msra.mxu0 0.0
  %2523 = vmatprep.subr.mxu0 0.0
  %2524 = vmatpush1.msra.mxu0 0.0
  %2525 = vmatprep.subr.mxu0 0.0
  %2526 = vmatpush1.msra.mxu0 0.0
  %2527 = vmatprep.subr.mxu0 0.0
  %2528 = vmatpush1.msra.mxu0 0.0
  %2529 = vmatprep.subr.mxu0 0.0
  %2530 = vmatpush1.msra.mxu0 0.0
  %2531 = vmatprep.subr.mxu0 0.0
  %2532 = vmatpush1.msra.mxu0 0.0
  %2533 = vmatprep.subr.mxu0 0.0
  %2534 = vmatpush1.msra.mxu0 0.0
  %2535 = vmatprep.subr.mxu0 0.0
  %2536 = vmatpush1.msra.mxu0 0.0
  %2537 = vmatprep.subr.mxu0 0.0
  %2538 = vmatpush1.msra.mxu0 0.0
  %2539 = vmatprep.subr.mxu0 0.0
  %2540 = vmatpush1.msra.mxu0 0.0
  %2541 = vmatprep.subr.mxu0 0.0
  %2542 = vmatpush1.msra.mxu0 0.0
  %2543 = vmatprep.subr.mxu0 0.0
  %2544 = vmatpush1.msra.mxu0 0.0
  %2545 = vmatprep.mubr.f32.mxu0 0.0
  %2546 = vmatmul.mubr.f32.gmra.mrb[0].mxu0 %v2470
  %v2547 = vpop.f32.mrb[0].mxu0
  %v2548 = vadd.f32 0.0, %v2547
  %v2549 = vpop.f32.mrb[0].mxu0
  %2550 = vmatprep.mubr.f32.mxu0 0.0
  %2551 = vmatmul.mubr.f32.gmra.mrb[0].mxu0 %v2473
  %v2552 = vpop.f32.mrb[0].mxu0
  %v2553 = vadd.f32 0.0, %v2552
  %v2554 = vpop.f32.mrb[0].mxu0
  %2555 = vmatprep.mubr.f32.mxu0 0.0
  %2556 = vmatmul.mubr.f32.gmra.mrb[0].mxu0 %v2476
  %v2557 = vpop.f32.mrb[0].mxu0
  %v2558 = vadd.f32 0.0, %v2557
  %v2559 = vpop.f32.mrb[0].mxu0
  %2560 = vdwg.mxu0
  %s2561 = scalar_lea.vmem %s7, 96
  %v2562 = vld [vmem:[%s2561] sm:$0xff]
  %v2563 = vld [vmem:[%s2561 + $0x8] sm:$0xff]
  %v2564 = vld [vmem:[%s2561 + $0x10] sm:$0xff]
  %v2565 = vld [vmem:[%s2561 + $0x18] sm:$0xff]
  %v2567 = vsel %vm425, %v2548, 0
  %v2570 = vsel %vm425, %v2553, 0
  %v2573 = vsel %vm425, %v2558, 0
  %2575 = vmatprep.subr.mxu0 0.0
  %2576 = vmatpush1.msra.mxu0 %v2562
  %2577 = vmatprep.subr.mxu0 0.0
  %2578 = vmatpush1.msra.mxu0 %v2563
  %2579 = vmatprep.subr.mxu0 0.0
  %2580 = vmatpush1.msra.mxu0 %v2564
  %2581 = vmatprep.subr.mxu0 0.0
  %2582 = vmatpush1.msra.mxu0 %v2565
  %2583 = vmatprep.subr.mxu0 0.0
  %2584 = vmatpush1.msra.mxu0 0.0
  %2585 = vmatprep.subr.mxu0 0.0
  %2586 = vmatpush1.msra.mxu0 0.0
  %2587 = vmatprep.subr.mxu0 0.0
  %2588 = vmatpush1.msra.mxu0 0.0
  %2589 = vmatprep.subr.mxu0 0.0
  %2590 = vmatpush1.msra.mxu0 0.0
  %2591 = vmatprep.subr.mxu0 0.0
  %2592 = vmatpush1.msra.mxu0 0.0
  %2593 = vmatprep.subr.mxu0 0.0
  %2594 = vmatpush1.msra.mxu0 0.0
  %2595 = vmatprep.subr.mxu0 0.0
  %2596 = vmatpush1.msra.mxu0 0.0
  %2597 = vmatprep.subr.mxu0 0.0
  %2598 = vmatpush1.msra.mxu0 0.0
  %2599 = vmatprep.subr.mxu0 0.0
  %2600 = vmatpush1.msra.mxu0 0.0
  %2601 = vmatprep.subr.mxu0 0.0
  %2602 = vmatpush1.msra.mxu0 0.0
  %2603 = vmatprep.subr.mxu0 0.0
  %2604 = vmatpush1.msra.mxu0 0.0
  %2605 = vmatprep.subr.mxu0 0.0
  %2606 = vmatpush1.msra.mxu0 0.0
  %2607 = vmatprep.subr.mxu0 0.0
  %2608 = vmatpush1.msra.mxu0 0.0
  %2609 = vmatprep.subr.mxu0 0.0
  %2610 = vmatpush1.msra.mxu0 0.0
  %2611 = vmatprep.subr.mxu0 0.0
  %2612 = vmatpush1.msra.mxu0 0.0
  %2613 = vmatprep.subr.mxu0 0.0
  %2614 = vmatpush1.msra.mxu0 0.0
  %2615 = vmatprep.subr.mxu0 0.0
  %2616 = vmatpush1.msra.mxu0 0.0
  %2617 = vmatprep.subr.mxu0 0.0
  %2618 = vmatpush1.msra.mxu0 0.0
  %2619 = vmatprep.subr.mxu0 0.0
  %2620 = vmatpush1.msra.mxu0 0.0
  %2621 = vmatprep.subr.mxu0 0.0
  %2622 = vmatpush1.msra.mxu0 0.0
  %2623 = vmatprep.subr.mxu0 0.0
  %2624 = vmatpush1.msra.mxu0 0.0
  %2625 = vmatprep.subr.mxu0 0.0
  %2626 = vmatpush1.msra.mxu0 0.0
  %2627 = vmatprep.subr.mxu0 0.0
  %2628 = vmatpush1.msra.mxu0 0.0
  %2629 = vmatprep.subr.mxu0 0.0
  %2630 = vmatpush1.msra.mxu0 0.0
  %2631 = vmatprep.subr.mxu0 0.0
  %2632 = vmatpush1.msra.mxu0 0.0
  %2633 = vmatprep.subr.mxu0 0.0
  %2634 = vmatpush1.msra.mxu0 0.0
  %2635 = vmatprep.subr.mxu0 0.0
  %2636 = vmatpush1.msra.mxu0 0.0
  %2637 = vmatprep.subr.mxu0 0.0
  %2638 = vmatpush1.msra.mxu0 0.0
  %2639 = vmatprep.mubr.f32.mxu0 0.0
  %2640 = vmatmul.mubr.f32.gmra.mrb[0].mxu0 %v2567
  %v2641 = vpop.f32.mrb[0].mxu0
  %v2642 = vadd.f32 0.0, %v2641
  %v2643 = vpop.f32.mrb[0].mxu0
  %2644 = vmatprep.mubr.f32.mxu0 0.0
  %2645 = vmatmul.mubr.f32.gmra.mrb[0].mxu0 %v2570
  %v2646 = vpop.f32.mrb[0].mxu0
  %v2647 = vadd.f32 0.0, %v2646
  %v2648 = vpop.f32.mrb[0].mxu0
  %2649 = vmatprep.mubr.f32.mxu0 0.0
  %2650 = vmatmul.mubr.f32.gmra.mrb[0].mxu0 %v2573
  %v2651 = vpop.f32.mrb[0].mxu0
  %v2652 = vadd.f32 0.0, %v2651
  %v2653 = vpop.f32.mrb[0].mxu0
  %2654 = vdwg.mxu0
  %v2655 = vadd.f32 %v2017, %v2642
  %v2656 = vadd.f32 %v2018, %v2647
  %v2657 = vadd.f32 %v2019, %v2652
  %v2658 = vadd.f32 %v56, %v2655
  %v2659 = vadd.f32 %v57, %v2656
  %v2660 = vadd.f32 %v58, %v2657
  %v2661 = vld [vmem:[%s8] sm:$0x1]
  %v2663 = vlaneseq
  %v2664 = vshrl.u32 %v2663, 7
  %v2665 = vsub.s32 0, %v2664
  %v2666 = vrot.slane %v2661, %v2665
  %v2668 = vadd.f32 %v2658, %v2666
  %v2669 = vadd.f32 %v2659, %v2666
  %v2670 = vadd.f32 %v2660, %v2666
  %v2671 = vld [vmem:[%s11] sm:$0x1]
  %v2672 = vld [vmem:[%s12] sm:$0x1]
  %2673 = vadd.xlane.f32.xlu0 %v2668
  %v2674 = vpop.xlane.xlu0 %2673
  %2675 = vadd.xlane.f32.xlu0 %v2669
  %v2676 = vpop.xlane.xlu0 %2675
  %v2677 = vsel %vm65, %v2670, 0.0
  %2678 = vadd.xlane.f32.xlu0 %v2677
  %v2679 = vpop.xlane.xlu0 %2678
  %v2680 = vmul.f32 %v2674, %v69
  %v2681 = vmul.f32 %v2676, %v69
  %v2682 = vmul.f32 %v2679, %v69
  %v2683 = vsub.f32 %v2668, %v2680
  %v2684 = vsub.f32 %v2669, %v2681
  %v2685 = vsub.f32 %v2670, %v2682
  %v2686 = vmul.f32 %v2683, %v2683
  %v2687 = vmul.f32 %v2684, %v2684
  %v2688 = vmul.f32 %v2685, %v2685
  %2689 = vadd.xlane.f32.xlu0 %v2686
  %v2690 = vpop.xlane.xlu0 %2689
  %2691 = vadd.xlane.f32.xlu0 %v2687
  %v2692 = vpop.xlane.xlu0 %2691
  %v2693 = vsel %vm65, %v2688, 0.0
  %2694 = vadd.xlane.f32.xlu0 %v2693
  %v2695 = vpop.xlane.xlu0 %2694
  %v2696 = vmul.f32 %v2690, %v69
  %v2697 = vmul.f32 %v2692, %v69
  %v2698 = vmul.f32 %v2695, %v69
  %v2699 = vadd.f32 %v2696, 1e-05
  %v2700 = vadd.f32 %v2697, 1e-05
  %v2701 = vadd.f32 %v2698, 1e-05
  %v2702 = vrsqrt.pop %v2699
  %v2703 = vrsqrt.pop %v2700
  %v2704 = vrsqrt.pop %v2701
  %v2705 = vmul.f32 %v2683, %v2702
  %v2706 = vmul.f32 %v2684, %v2703
  %v2707 = vmul.f32 %v2685, %v2704
  %v2709 = vlaneseq
  %v2710 = vshrl.u32 %v2709, 7
  %v2711 = vsub.s32 0, %v2710
  %v2712 = vrot.slane %v2671, %v2711
  %v2714 = vmul.f32 %v2705, %v2712
  %v2715 = vmul.f32 %v2706, %v2712
  %v2716 = vmul.f32 %v2707, %v2712
  %v2718 = vlaneseq
  %v2719 = vshrl.u32 %v2718, 7
  %v2720 = vsub.s32 0, %v2719
  %v2721 = vrot.slane %v2672, %v2720
  %v2723 = vadd.f32 %v2714, %v2721
  %v2724 = vadd.f32 %v2715, %v2721
  %v2725 = vadd.f32 %v2716, %v2721
  %v2726 = vld [vmem:[%s13] sm:$0xff]
  %v2727 = vld [vmem:[%s13 + $0x8] sm:$0xff]
  %v2728 = vld [vmem:[%s13 + $0x10] sm:$0xff]
  %v2729 = vld [vmem:[%s13 + $0x18] sm:$0xff]
  %v2730 = vld [vmem:[%s13 + $0x20] sm:$0xff]
  %v2731 = vld [vmem:[%s13 + $0x28] sm:$0xff]
  %v2732 = vld [vmem:[%s13 + $0x30] sm:$0xff]
  %v2733 = vld [vmem:[%s13 + $0x38] sm:$0xff]
  %v2734 = vld [vmem:[%s13 + $0x40] sm:$0xff]
  %v2735 = vld [vmem:[%s13 + $0x48] sm:$0xff]
  %v2736 = vld [vmem:[%s13 + $0x50] sm:$0xff]
  %v2737 = vld [vmem:[%s13 + $0x58] sm:$0xff]
  %v2738 = vld [vmem:[%s13 + $0x60] sm:$0xff]
  %v2739 = vld [vmem:[%s13 + $0x68] sm:$0xff]
  %v2740 = vld [vmem:[%s13 + $0x70] sm:$0xff]
  %v2741 = vld [vmem:[%s13 + $0x78] sm:$0xff]
  %v2742 = vld [vmem:[%s13 + $0x80] sm:$0xff]
  %v2743 = vld [vmem:[%s13 + $0x88] sm:$0xff]
  %v2744 = vld [vmem:[%s13 + $0x90] sm:$0xff]
  %v2745 = vld [vmem:[%s13 + $0x98] sm:$0xff]
  %v2746 = vld [vmem:[%s13 + $0xa0] sm:$0xff]
  %v2747 = vld [vmem:[%s13 + $0xa8] sm:$0xff]
  %v2748 = vld [vmem:[%s13 + $0xb0] sm:$0xff]
  %v2749 = vld [vmem:[%s13 + $0xb8] sm:$0xff]
  %v2750 = vld [vmem:[%s13 + $0xc0] sm:$0xff]
  %v2751 = vld [vmem:[%s13 + $0xc8] sm:$0xff]
  %v2752 = vld [vmem:[%s13 + $0xd0] sm:$0xff]
  %v2753 = vld [vmem:[%s13 + $0xd8] sm:$0xff]
  %v2754 = vld [vmem:[%s13 + $0xe0] sm:$0xff]
  %v2755 = vld [vmem:[%s13 + $0xe8] sm:$0xff]
  %v2756 = vld [vmem:[%s13 + $0xf0] sm:$0xff]
  %v2757 = vld [vmem:[%s13 + $0xf8] sm:$0xff]
  %v2758 = vld [vmem:[%s14] sm:$0x3]
  %v2760 = vlaneseq
  %v2761 = vshrl.u32 %v2760, 7
  %v2762 = vsub.s32 0, %v2761
  %v2763 = vrot.slane %v2758, %v2762
  %v2764 = vlaneseq
  %v2765 = vshrl.u32 %v2764, 7
  %v2766 = vsub.s32 1, %v2765
  %v2767 = vrot.slane %v2758, %v2766
  %2770 = vmatprep.subr.mxu0 %v2727
  %2771 = vmatpush1.msra.mxu0 %v2726
  %2772 = vmatprep.subr.mxu0 %v2729
  %2773 = vmatpush1.msra.mxu0 %v2728
  %2774 = vmatprep.subr.mxu0 %v2731
  %2775 = vmatpush1.msra.mxu0 %v2730
  %2776 = vmatprep.subr.mxu0 %v2733
  %2777 = vmatpush1.msra.mxu0 %v2732
  %2778 = vmatprep.subr.mxu0 %v2735
  %2779 = vmatpush1.msra.mxu0 %v2734
  %2780 = vmatprep.subr.mxu0 %v2737
  %2781 = vmatpush1.msra.mxu0 %v2736
  %2782 = vmatprep.subr.mxu0 %v2739
  %2783 = vmatpush1.msra.mxu0 %v2738
  %2784 = vmatprep.subr.mxu0 %v2741
  %2785 = vmatpush1.msra.mxu0 %v2740
  %2786 = vmatprep.subr.mxu0 %v2743
  %2787 = vmatpush1.msra.mxu0 %v2742
  %2788 = vmatprep.subr.mxu0 %v2745
  %2789 = vmatpush1.msra.mxu0 %v2744
  %2790 = vmatprep.subr.mxu0 %v2747
  %2791 = vmatpush1.msra.mxu0 %v2746
  %2792 = vmatprep.subr.mxu0 %v2749
  %2793 = vmatpush1.msra.mxu0 %v2748
  %2794 = vmatprep.subr.mxu0 %v2751
  %2795 = vmatpush1.msra.mxu0 %v2750
  %2796 = vmatprep.subr.mxu0 %v2753
  %2797 = vmatpush1.msra.mxu0 %v2752
  %2798 = vmatprep.subr.mxu0 %v2755
  %2799 = vmatpush1.msra.mxu0 %v2754
  %2800 = vmatprep.subr.mxu0 %v2757
  %2801 = vmatpush1.msra.mxu0 %v2756
  %2802 = vmatprep.subr.mxu0 0.0
  %2803 = vmatpush1.msra.mxu0 0.0
  %2804 = vmatprep.subr.mxu0 0.0
  %2805 = vmatpush1.msra.mxu0 0.0
  %2806 = vmatprep.subr.mxu0 0.0
  %2807 = vmatpush1.msra.mxu0 0.0
  %2808 = vmatprep.subr.mxu0 0.0
  %2809 = vmatpush1.msra.mxu0 0.0
  %2810 = vmatprep.subr.mxu0 0.0
  %2811 = vmatpush1.msra.mxu0 0.0
  %2812 = vmatprep.subr.mxu0 0.0
  %2813 = vmatpush1.msra.mxu0 0.0
  %2814 = vmatprep.subr.mxu0 0.0
  %2815 = vmatpush1.msra.mxu0 0.0
  %2816 = vmatprep.subr.mxu0 0.0
  %2817 = vmatpush1.msra.mxu0 0.0
  %2818 = vmatprep.subr.mxu0 0.0
  %2819 = vmatpush1.msra.mxu0 0.0
  %2820 = vmatprep.subr.mxu0 0.0
  %2821 = vmatpush1.msra.mxu0 0.0
  %2822 = vmatprep.subr.mxu0 0.0
  %2823 = vmatpush1.msra.mxu0 0.0
  %2824 = vmatprep.subr.mxu0 0.0
  %2825 = vmatpush1.msra.mxu0 0.0
  %2826 = vmatprep.subr.mxu0 0.0
  %2827 = vmatpush1.msra.mxu0 0.0
  %2828 = vmatprep.subr.mxu0 0.0
  %2829 = vmatpush1.msra.mxu0 0.0
  %2830 = vmatprep.subr.mxu0 0.0
  %2831 = vmatpush1.msra.mxu0 0.0
  %2832 = vmatprep.subr.mxu0 0.0
  %2833 = vmatpush1.msra.mxu0 0.0
  %2834 = vmatprep.mubr.f32.mxu0 0.0
  %2835 = vmatmul.mubr.f32.gmra.mrb[0].mxu0 %v2723
  %v2836 = vpop.f32.mrb[0].mxu0
  %v2837 = vadd.f32 %v2763, %v2836
  %v2838 = vpop.f32.mrb[0].mxu0
  %v2839 = vadd.f32 %v2767, %v2838
  %2840 = vmatprep.mubr.f32.mxu0 0.0
  %2841 = vmatmul.mubr.f32.gmra.mrb[0].mxu0 %v2724
  %v2842 = vpop.f32.mrb[0].mxu0
  %v2843 = vadd.f32 %v2763, %v2842
  %v2844 = vpop.f32.mrb[0].mxu0
  %v2845 = vadd.f32 %v2767, %v2844
  %2846 = vmatprep.mubr.f32.mxu0 0.0
  %2847 = vmatmul.mubr.f32.gmra.mrb[0].mxu0 %v2725
  %v2848 = vpop.f32.mrb[0].mxu0
  %v2849 = vadd.f32 %v2763, %v2848
  %v2850 = vpop.f32.mrb[0].mxu0
  %v2851 = vadd.f32 %v2767, %v2850
  %2852 = vdwg.mxu0
  %v2853 = vmul.f32 %v2837, 0.5
  %v2854 = vmul.f32 %v2839, 0.5
  %v2855 = vmul.f32 %v2843, 0.5
  %v2856 = vmul.f32 %v2845, 0.5
  %v2857 = vmul.f32 %v2849, 0.5
  %v2858 = vmul.f32 %v2851, 0.5
  %v2859 = vmul.f32 %v2837, %v2837
  %v2860 = vmul.f32 %v2839, %v2839
  %v2861 = vmul.f32 %v2843, %v2843
  %v2862 = vmul.f32 %v2845, %v2845
  %v2863 = vmul.f32 %v2849, %v2849
  %v2864 = vmul.f32 %v2851, %v2851
  %v2865 = vmul.f32 %v2859, %v2837
  %v2866 = vmul.f32 %v2860, %v2839
  %v2867 = vmul.f32 %v2861, %v2843
  %v2868 = vmul.f32 %v2862, %v2845
  %v2869 = vmul.f32 %v2863, %v2849
  %v2870 = vmul.f32 %v2864, %v2851
  %v2871 = vmul.f32 %v2865, 0.044715
  %v2872 = vmul.f32 %v2866, 0.044715
  %v2873 = vmul.f32 %v2867, 0.044715
  %v2874 = vmul.f32 %v2868, 0.044715
  %v2875 = vmul.f32 %v2869, 0.044715
  %v2876 = vmul.f32 %v2870, 0.044715
  %v2877 = vadd.f32 %v2837, %v2871
  %v2878 = vadd.f32 %v2839, %v2872
  %v2879 = vadd.f32 %v2843, %v2873
  %v2880 = vadd.f32 %v2845, %v2874
  %v2881 = vadd.f32 %v2849, %v2875
  %v2882 = vadd.f32 %v2851, %v2876
  %v2883 = vmul.f32 %v2877, 0.7978846
  %v2884 = vmul.f32 %v2878, 0.7978846
  %v2885 = vmul.f32 %v2879, 0.7978846
  %v2886 = vmul.f32 %v2880, 0.7978846
  %v2887 = vmul.f32 %v2881, 0.7978846
  %v2888 = vmul.f32 %v2882, 0.7978846
  %v2889 = vtanh.pop %v2883
  %v2890 = vtanh.pop %v2884
  %v2891 = vtanh.pop %v2885
  %v2892 = vtanh.pop %v2886
  %v2893 = vtanh.pop %v2887
  %v2894 = vtanh.pop %v2888
  %v2895 = vadd.f32 %v2889, 1.0
  %v2896 = vadd.f32 %v2890, 1.0
  %v2897 = vadd.f32 %v2891, 1.0
  %v2898 = vadd.f32 %v2892, 1.0
  %v2899 = vadd.f32 %v2893, 1.0
  %v2900 = vadd.f32 %v2894, 1.0
  %v2901 = vmul.f32 %v2853, %v2895
  %v2902 = vmul.f32 %v2854, %v2896
  %v2903 = vmul.f32 %v2855, %v2897
  %v2904 = vmul.f32 %v2856, %v2898
  %v2905 = vmul.f32 %v2857, %v2899
  %v2906 = vmul.f32 %v2858, %v2900
  %v2907 = vld [vmem:[%s15] sm:$0xff]
  %v2908 = vld [vmem:[%s15 + $0x8] sm:$0xff]
  %v2909 = vld [vmem:[%s15 + $0x10] sm:$0xff]
  %v2910 = vld [vmem:[%s15 + $0x18] sm:$0xff]
  %v2911 = vld [vmem:[%s15 + $0x20] sm:$0xff]
  %v2912 = vld [vmem:[%s15 + $0x28] sm:$0xff]
  %v2913 = vld [vmem:[%s15 + $0x30] sm:$0xff]
  %v2914 = vld [vmem:[%s15 + $0x38] sm:$0xff]
  %v2915 = vld [vmem:[%s15 + $0x40] sm:$0xff]
  %v2916 = vld [vmem:[%s15 + $0x48] sm:$0xff]
  %v2917 = vld [vmem:[%s15 + $0x50] sm:$0xff]
  %v2918 = vld [vmem:[%s15 + $0x58] sm:$0xff]
  %v2919 = vld [vmem:[%s15 + $0x60] sm:$0xff]
  %v2920 = vld [vmem:[%s15 + $0x68] sm:$0xff]
  %v2921 = vld [vmem:[%s15 + $0x70] sm:$0xff]
  %v2922 = vld [vmem:[%s15 + $0x78] sm:$0xff]
  %v2923 = vld [vmem:[%s15 + $0x80] sm:$0xff]
  %v2924 = vld [vmem:[%s15 + $0x88] sm:$0xff]
  %v2925 = vld [vmem:[%s15 + $0x90] sm:$0xff]
  %v2926 = vld [vmem:[%s15 + $0x98] sm:$0xff]
  %v2927 = vld [vmem:[%s15 + $0xa0] sm:$0xff]
  %v2928 = vld [vmem:[%s15 + $0xa8] sm:$0xff]
  %v2929 = vld [vmem:[%s15 + $0xb0] sm:$0xff]
  %v2930 = vld [vmem:[%s15 + $0xb8] sm:$0xff]
  %v2931 = vld [vmem:[%s15 + $0xc0] sm:$0xff]
  %v2932 = vld [vmem:[%s15 + $0xc8] sm:$0xff]
  %v2933 = vld [vmem:[%s15 + $0xd0] sm:$0xff]
  %v2934 = vld [vmem:[%s15 + $0xd8] sm:$0xff]
  %v2935 = vld [vmem:[%s15 + $0xe0] sm:$0xff]
  %v2936 = vld [vmem:[%s15 + $0xe8] sm:$0xff]
  %v2937 = vld [vmem:[%s15 + $0xf0] sm:$0xff]
  %v2938 = vld [vmem:[%s15 + $0xf8] sm:$0xff]
  %2939 = vmatprep.subr.mxu0 0.0
  %2940 = vmatpush1.msra.mxu0 %v2907
  %2941 = vmatprep.subr.mxu0 0.0
  %2942 = vmatpush1.msra.mxu0 %v2908
  %2943 = vmatprep.subr.mxu0 0.0
  %2944 = vmatpush1.msra.mxu0 %v2909
  %2945 = vmatprep.subr.mxu0 0.0
  %2946 = vmatpush1.msra.mxu0 %v2910
  %2947 = vmatprep.subr.mxu0 0.0
  %2948 = vmatpush1.msra.mxu0 %v2911
  %2949 = vmatprep.subr.mxu0 0.0
  %2950 = vmatpush1.msra.mxu0 %v2912
  %2951 = vmatprep.subr.mxu0 0.0
  %2952 = vmatpush1.msra.mxu0 %v2913
  %2953 = vmatprep.subr.mxu0 0.0
  %2954 = vmatpush1.msra.mxu0 %v2914
  %2955 = vmatprep.subr.mxu0 0.0
  %2956 = vmatpush1.msra.mxu0 %v2915
  %2957 = vmatprep.subr.mxu0 0.0
  %2958 = vmatpush1.msra.mxu0 %v2916
  %2959 = vmatprep.subr.mxu0 0.0
  %2960 = vmatpush1.msra.mxu0 %v2917
  %2961 = vmatprep.subr.mxu0 0.0
  %2962 = vmatpush1.msra.mxu0 %v2918
  %2963 = vmatprep.subr.mxu0 0.0
  %2964 = vmatpush1.msra.mxu0 %v2919
  %2965 = vmatprep.subr.mxu0 0.0
  %2966 = vmatpush1.msra.mxu0 %v2920
  %2967 = vmatprep.subr.mxu0 0.0
  %2968 = vmatpush1.msra.mxu0 %v2921
  %2969 = vmatprep.subr.mxu0 0.0
  %2970 = vmatpush1.msra.mxu0 %v2922
  %2971 = vmatprep.subr.mxu0 0.0
  %2972 = vmatpush1.msra.mxu0 %v2923
  %2973 = vmatprep.subr.mxu0 0.0
  %2974 = vmatpush1.msra.mxu0 %v2924
  %2975 = vmatprep.subr.mxu0 0.0
  %2976 = vmatpush1.msra.mxu0 %v2925
  %2977 = vmatprep.subr.mxu0 0.0
  %2978 = vmatpush1.msra.mxu0 %v2926
  %2979 = vmatprep.subr.mxu0 0.0
  %2980 = vmatpush1.msra.mxu0 %v2927
  %2981 = vmatprep.subr.mxu0 0.0
  %2982 = vmatpush1.msra.mxu0 %v2928
  %2983 = vmatprep.subr.mxu0 0.0
  %2984 = vmatpush1.msra.mxu0 %v2929
  %2985 = vmatprep.subr.mxu0 0.0
  %2986 = vmatpush1.msra.mxu0 %v2930
  %2987 = vmatprep.subr.mxu0 0.0
  %2988 = vmatpush1.msra.mxu0 %v2931
  %2989 = vmatprep.subr.mxu0 0.0
  %2990 = vmatpush1.msra.mxu0 %v2932
  %2991 = vmatprep.subr.mxu0 0.0
  %2992 = vmatpush1.msra.mxu0 %v2933
  %2993 = vmatprep.subr.mxu0 0.0
  %2994 = vmatpush1.msra.mxu0 %v2934
  %2995 = vmatprep.subr.mxu0 0.0
  %2996 = vmatpush1.msra.mxu0 %v2935
  %2997 = vmatprep.subr.mxu0 0.0
  %2998 = vmatpush1.msra.mxu0 %v2936
  %2999 = vmatprep.subr.mxu0 0.0
  %3000 = vmatpush1.msra.mxu0 %v2937
  %3001 = vmatprep.subr.mxu0 0.0
  %3002 = vmatpush1.msra.mxu0 %v2938
  %3003 = vmatprep.mubr.f32.mxu0 %v2902
  %3004 = vmatmul.mubr.f32.gmra.mrb[0].mxu0 %v2901
  %v3005 = vpop.f32.mrb[0].mxu0
  %v3006 = vadd.f32 0.0, %v3005
  %v3007 = vpop.f32.mrb[0].mxu0
  %3008 = vmatprep.mubr.f32.mxu0 %v2904
  %3009 = vmatmul.mubr.f32.gmra.mrb[0].mxu0 %v2903
  %v3010 = vpop.f32.mrb[0].mxu0
  %v3011 = vadd.f32 0.0, %v3010
  %v3012 = vpop.f32.mrb[0].mxu0
  %3013 = vmatprep.mubr.f32.mxu0 %v2906
  %3014 = vmatmul.mubr.f32.gmra.mrb[0].mxu0 %v2905
  %v3015 = vpop.f32.mrb[0].mxu0
  %v3016 = vadd.f32 0.0, %v3015
  %v3017 = vpop.f32.mrb[0].mxu0
  %3018 = vdwg.mxu0
  %v3019 = vadd.f32 %v2668, %v3006
  %v3020 = vadd.f32 %v2669, %v3011
  %v3021 = vadd.f32 %v2670, %v3016
  %v3022 = vld [vmem:[%s16] sm:$0x1]
  %v3024 = vlaneseq
  %v3025 = vshrl.u32 %v3024, 7
  %v3026 = vsub.s32 0, %v3025
  %v3027 = vrot.slane %v3022, %v3026
  %v3029 = vadd.f32 %v3019, %v3027
  %v3030 = vadd.f32 %v3020, %v3027
  %v3031 = vadd.f32 %v3021, %v3027
  %3032 = vst [vmem:[%s17] sm:$0xff] %v3029
  %3033 = vst [vmem:[%s17 + $0x8] sm:$0xff] %v3030
  %3034 = vst [vmem:[%s17 + $0x10] sm:$0x1] %v3031
  %s3035 = scalar_lea.vmem %s0, 24
  %v3036 = vld [vmem:[%s3035] sm:$0xff]
  %v3037 = vld [vmem:[%s3035 + $0x8] sm:$0xff]
  %v3038 = vld [vmem:[%s3035 + $0x10] sm:$0x1]
  %v3039 = vld [vmem:[%s9] sm:$0x1]
  %v3040 = vld [vmem:[%s10] sm:$0x1]
  %3041 = vadd.xlane.f32.xlu0 %v3036
  %v3042 = vpop.xlane.xlu0 %3041
  %3043 = vadd.xlane.f32.xlu0 %v3037
  %v3044 = vpop.xlane.xlu0 %3043
  %v3045 = vsel %vm65, %v3038, 0.0
  %3046 = vadd.xlane.f32.xlu0 %v3045
  %v3047 = vpop.xlane.xlu0 %3046
  %v3048 = vmul.f32 %v3042, %v69
  %v3049 = vmul.f32 %v3044, %v69
  %v3050 = vmul.f32 %v3047, %v69
  %v3051 = vsub.f32 %v3036, %v3048
  %v3052 = vsub.f32 %v3037, %v3049
  %v3053 = vsub.f32 %v3038, %v3050
  %v3054 = vmul.f32 %v3051, %v3051
  %v3055 = vmul.f32 %v3052, %v3052
  %v3056 = vmul.f32 %v3053, %v3053
  %3057 = vadd.xlane.f32.xlu0 %v3054
  %v3058 = vpop.xlane.xlu0 %3057
  %3059 = vadd.xlane.f32.xlu0 %v3055
  %v3060 = vpop.xlane.xlu0 %3059
  %v3061 = vsel %vm65, %v3056, 0.0
  %3062 = vadd.xlane.f32.xlu0 %v3061
  %v3063 = vpop.xlane.xlu0 %3062
  %v3064 = vmul.f32 %v3058, %v69
  %v3065 = vmul.f32 %v3060, %v69
  %v3066 = vmul.f32 %v3063, %v69
  %v3067 = vadd.f32 %v3064, 1e-05
  %v3068 = vadd.f32 %v3065, 1e-05
  %v3069 = vadd.f32 %v3066, 1e-05
  %v3070 = vrsqrt.pop %v3067
  %v3071 = vrsqrt.pop %v3068
  %v3072 = vrsqrt.pop %v3069
  %v3073 = vmul.f32 %v3051, %v3070
  %v3074 = vmul.f32 %v3052, %v3071
  %v3075 = vmul.f32 %v3053, %v3072
  %v3077 = vlaneseq
  %v3078 = vshrl.u32 %v3077, 7
  %v3079 = vsub.s32 0, %v3078
  %v3080 = vrot.slane %v3039, %v3079
  %v3082 = vmul.f32 %v3073, %v3080
  %v3083 = vmul.f32 %v3074, %v3080
  %v3084 = vmul.f32 %v3075, %v3080
  %v3086 = vlaneseq
  %v3087 = vshrl.u32 %v3086, 7
  %v3088 = vsub.s32 0, %v3087
  %v3089 = vrot.slane %v3040, %v3088
  %v3091 = vadd.f32 %v3082, %v3089
  %v3092 = vadd.f32 %v3083, %v3089
  %v3093 = vadd.f32 %v3084, %v3089
  %v3094 = vld [vmem:[%s1] sm:$0xff]
  %v3095 = vld [vmem:[%s1 + $0x8] sm:$0xff]
  %v3096 = vld [vmem:[%s1 + $0x10] sm:$0xff]
  %v3097 = vld [vmem:[%s1 + $0x18] sm:$0xff]
  %v3098 = vld [vmem:[%s1 + $0x20] sm:$0xff]
  %v3099 = vld [vmem:[%s1 + $0x28] sm:$0xff]
  %v3100 = vld [vmem:[%s1 + $0x30] sm:$0xff]
  %v3101 = vld [vmem:[%s1 + $0x38] sm:$0xff]
  %v3102 = vld [vmem:[%s1 + $0x40] sm:$0xff]
  %v3103 = vld [vmem:[%s1 + $0x48] sm:$0xff]
  %v3104 = vld [vmem:[%s1 + $0x50] sm:$0xff]
  %v3105 = vld [vmem:[%s1 + $0x58] sm:$0xff]
  %v3106 = vld [vmem:[%s1 + $0x60] sm:$0xff]
  %v3107 = vld [vmem:[%s1 + $0x68] sm:$0xff]
  %v3108 = vld [vmem:[%s1 + $0x70] sm:$0xff]
  %v3109 = vld [vmem:[%s1 + $0x78] sm:$0xff]
  %v3110 = vld [vmem:[%s4] sm:$0x1]
  %v3112 = vlaneseq
  %v3113 = vshrl.u32 %v3112, 7
  %v3114 = vsub.s32 0, %v3113
  %v3115 = vrot.slane %v3110, %v3114
  %3117 = vmatprep.subr.mxu0 0.0
  %3118 = vmatpush1.msra.mxu0 %v3094
  %3119 = vmatprep.subr.mxu0 0.0
  %3120 = vmatpush1.msra.mxu0 %v3095
  %3121 = vmatprep.subr.mxu0 0.0
  %3122 = vmatpush1.msra.mxu0 %v3096
  %3123 = vmatprep.subr.mxu0 0.0
  %3124 = vmatpush1.msra.mxu0 %v3097
  %3125 = vmatprep.subr.mxu0 0.0
  %3126 = vmatpush1.msra.mxu0 %v3098
  %3127 = vmatprep.subr.mxu0 0.0
  %3128 = vmatpush1.msra.mxu0 %v3099
  %3129 = vmatprep.subr.mxu0 0.0
  %3130 = vmatpush1.msra.mxu0 %v3100
  %3131 = vmatprep.subr.mxu0 0.0
  %3132 = vmatpush1.msra.mxu0 %v3101
  %3133 = vmatprep.subr.mxu0 0.0
  %3134 = vmatpush1.msra.mxu0 %v3102
  %3135 = vmatprep.subr.mxu0 0.0
  %3136 = vmatpush1.msra.mxu0 %v3103
  %3137 = vmatprep.subr.mxu0 0.0
  %3138 = vmatpush1.msra.mxu0 %v3104
  %3139 = vmatprep.subr.mxu0 0.0
  %3140 = vmatpush1.msra.mxu0 %v3105
  %3141 = vmatprep.subr.mxu0 0.0
  %3142 = vmatpush1.msra.mxu0 %v3106
  %3143 = vmatprep.subr.mxu0 0.0
  %3144 = vmatpush1.msra.mxu0 %v3107
  %3145 = vmatprep.subr.mxu0 0.0
  %3146 = vmatpush1.msra.mxu0 %v3108
  %3147 = vmatprep.subr.mxu0 0.0
  %3148 = vmatpush1.msra.mxu0 %v3109
  %3149 = vmatprep.subr.mxu0 0.0
  %3150 = vmatpush1.msra.mxu0 0.0
  %3151 = vmatprep.subr.mxu0 0.0
  %3152 = vmatpush1.msra.mxu0 0.0
  %3153 = vmatprep.subr.mxu0 0.0
  %3154 = vmatpush1.msra.mxu0 0.0
  %3155 = vmatprep.subr.mxu0 0.0
  %3156 = vmatpush1.msra.mxu0 0.0
  %3157 = vmatprep.subr.mxu0 0.0
  %3158 = vmatpush1.msra.mxu0 0.0
  %3159 = vmatprep.subr.mxu0 0.0
  %3160 = vmatpush1.msra.mxu0 0.0
  %3161 = vmatprep.subr.mxu0 0.0
  %3162 = vmatpush1.msra.mxu0 0.0
  %3163 = vmatprep.subr.mxu0 0.0
  %3164 = vmatpush1.msra.mxu0 0.0
  %3165 = vmatprep.subr.mxu0 0.0
  %3166 = vmatpush1.msra.mxu0 0.0
  %3167 = vmatprep.subr.mxu0 0.0
  %3168 = vmatpush1.msra.mxu0 0.0
  %3169 = vmatprep.subr.mxu0 0.0
  %3170 = vmatpush1.msra.mxu0 0.0
  %3171 = vmatprep.subr.mxu0 0.0
  %3172 = vmatpush1.msra.mxu0 0.0
  %3173 = vmatprep.subr.mxu0 0.0
  %3174 = vmatpush1.msra.mxu0 0.0
  %3175 = vmatprep.subr.mxu0 0.0
  %3176 = vmatpush1.msra.mxu0 0.0
  %3177 = vmatprep.subr.mxu0 0.0
  %3178 = vmatpush1.msra.mxu0 0.0
  %3179 = vmatprep.subr.mxu0 0.0
  %3180 = vmatpush1.msra.mxu0 0.0
  %3181 = vmatprep.mubr.f32.mxu0 0.0
  %3182 = vmatmul.mubr.f32.gmra.mrb[0].mxu0 %v3091
  %v3183 = vpop.f32.mrb[0].mxu0
  %v3184 = vadd.f32 %v3115, %v3183
  %v3185 = vpop.f32.mrb[0].mxu0
  %3186 = vmatprep.mubr.f32.mxu0 0.0
  %3187 = vmatmul.mubr.f32.gmra.mrb[0].mxu0 %v3092
  %v3188 = vpop.f32.mrb[0].mxu0
  %v3189 = vadd.f32 %v3115, %v3188
  %v3190 = vpop.f32.mrb[0].mxu0
  %3191 = vmatprep.mubr.f32.mxu0 0.0
  %3192 = vmatmul.mubr.f32.gmra.mrb[0].mxu0 %v3093
  %v3193 = vpop.f32.mrb[0].mxu0
  %v3194 = vadd.f32 %v3115, %v3193
  %v3195 = vpop.f32.mrb[0].mxu0
  %3196 = vdwg.mxu0
  %v3197 = vld [vmem:[%s2] sm:$0xff]
  %v3198 = vld [vmem:[%s2 + $0x8] sm:$0xff]
  %v3199 = vld [vmem:[%s2 + $0x10] sm:$0xff]
  %v3200 = vld [vmem:[%s2 + $0x18] sm:$0xff]
  %v3201 = vld [vmem:[%s2 + $0x20] sm:$0xff]
  %v3202 = vld [vmem:[%s2 + $0x28] sm:$0xff]
  %v3203 = vld [vmem:[%s2 + $0x30] sm:$0xff]
  %v3204 = vld [vmem:[%s2 + $0x38] sm:$0xff]
  %v3205 = vld [vmem:[%s2 + $0x40] sm:$0xff]
  %v3206 = vld [vmem:[%s2 + $0x48] sm:$0xff]
  %v3207 = vld [vmem:[%s2 + $0x50] sm:$0xff]
  %v3208 = vld [vmem:[%s2 + $0x58] sm:$0xff]
  %v3209 = vld [vmem:[%s2 + $0x60] sm:$0xff]
  %v3210 = vld [vmem:[%s2 + $0x68] sm:$0xff]
  %v3211 = vld [vmem:[%s2 + $0x70] sm:$0xff]
  %v3212 = vld [vmem:[%s2 + $0x78] sm:$0xff]
  %v3213 = vld [vmem:[%s5] sm:$0x1]
  %v3215 = vlaneseq
  %v3216 = vshrl.u32 %v3215, 7
  %v3217 = vsub.s32 0, %v3216
  %v3218 = vrot.slane %v3213, %v3217
  %3220 = vmatprep.subr.mxu0 0.0
  %3221 = vmatpush1.msra.mxu0 %v3197
  %3222 = vmatprep.subr.mxu0 0.0
  %3223 = vmatpush1.msra.mxu0 %v3198
  %3224 = vmatprep.subr.mxu0 0.0
  %3225 = vmatpush1.msra.mxu0 %v3199
  %3226 = vmatprep.subr.mxu0 0.0
  %3227 = vmatpush1.msra.mxu0 %v3200
  %3228 = vmatprep.subr.mxu0 0.0
  %3229 = vmatpush1.msra.mxu0 %v3201
  %3230 = vmatprep.subr.mxu0 0.0
  %3231 = vmatpush1.msra.mxu0 %v3202
  %3232 = vmatprep.subr.mxu0 0.0
  %3233 = vmatpush1.msra.mxu0 %v3203
  %3234 = vmatprep.subr.mxu0 0.0
  %3235 = vmatpush1.msra.mxu0 %v3204
  %3236 = vmatprep.subr.mxu0 0.0
  %3237 = vmatpush1.msra.mxu0 %v3205
  %3238 = vmatprep.subr.mxu0 0.0
  %3239 = vmatpush1.msra.mxu0 %v3206
  %3240 = vmatprep.subr.mxu0 0.0
  %3241 = vmatpush1.msra.mxu0 %v3207
  %3242 = vmatprep.subr.mxu0 0.0
  %3243 = vmatpush1.msra.mxu0 %v3208
  %3244 = vmatprep.subr.mxu0 0.0
  %3245 = vmatpush1.msra.mxu0 %v3209
  %3246 = vmatprep.subr.mxu0 0.0
  %3247 = vmatpush1.msra.mxu0 %v3210
  %3248 = vmatprep.subr.mxu0 0.0
  %3249 = vmatpush1.msra.mxu0 %v3211
  %3250 = vmatprep.subr.mxu0 0.0
  %3251 = vmatpush1.msra.mxu0 %v3212
  %3252 = vmatprep.subr.mxu0 0.0
  %3253 = vmatpush1.msra.mxu0 0.0
  %3254 = vmatprep.subr.mxu0 0.0
  %3255 = vmatpush1.msra.mxu0 0.0
  %3256 = vmatprep.subr.mxu0 0.0
  %3257 = vmatpush1.msra.mxu0 0.0
  %3258 = vmatprep.subr.mxu0 0.0
  %3259 = vmatpush1.msra.mxu0 0.0
  %3260 = vmatprep.subr.mxu0 0.0
  %3261 = vmatpush1.msra.mxu0 0.0
  %3262 = vmatprep.subr.mxu0 0.0
  %3263 = vmatpush1.msra.mxu0 0.0
  %3264 = vmatprep.subr.mxu0 0.0
  %3265 = vmatpush1.msra.mxu0 0.0
  %3266 = vmatprep.subr.mxu0 0.0
  %3267 = vmatpush1.msra.mxu0 0.0
  %3268 = vmatprep.subr.mxu0 0.0
  %3269 = vmatpush1.msra.mxu0 0.0
  %3270 = vmatprep.subr.mxu0 0.0
  %3271 = vmatpush1.msra.mxu0 0.0
  %3272 = vmatprep.subr.mxu0 0.0
  %3273 = vmatpush1.msra.mxu0 0.0
  %3274 = vmatprep.subr.mxu0 0.0
  %3275 = vmatpush1.msra.mxu0 0.0
  %3276 = vmatprep.subr.mxu0 0.0
  %3277 = vmatpush1.msra.mxu0 0.0
  %3278 = vmatprep.subr.mxu0 0.0
  %3279 = vmatpush1.msra.mxu0 0.0
  %3280 = vmatprep.subr.mxu0 0.0
  %3281 = vmatpush1.msra.mxu0 0.0
  %3282 = vmatprep.subr.mxu0 0.0
  %3283 = vmatpush1.msra.mxu0 0.0
  %3284 = vmatprep.mubr.f32.mxu0 0.0
  %3285 = vmatmul.mubr.f32.gmra.mrb[0].mxu0 %v3091
  %v3286 = vpop.f32.mrb[0].mxu0
  %v3287 = vadd.f32 %v3218, %v3286
  %v3288 = vpop.f32.mrb[0].mxu0
  %3289 = vmatprep.mubr.f32.mxu0 0.0
  %3290 = vmatmul.mubr.f32.gmra.mrb[0].mxu0 %v3092
  %v3291 = vpop.f32.mrb[0].mxu0
  %v3292 = vadd.f32 %v3218, %v3291
  %v3293 = vpop.f32.mrb[0].mxu0
  %3294 = vmatprep.mubr.f32.mxu0 0.0
  %3295 = vmatmul.mubr.f32.gmra.mrb[0].mxu0 %v3093
  %v3296 = vpop.f32.mrb[0].mxu0
  %v3297 = vadd.f32 %v3218, %v3296
  %v3298 = vpop.f32.mrb[0].mxu0
  %3299 = vdwg.mxu0
  %v3300 = vld [vmem:[%s3] sm:$0xff]
  %v3301 = vld [vmem:[%s3 + $0x8] sm:$0xff]
  %v3302 = vld [vmem:[%s3 + $0x10] sm:$0xff]
  %v3303 = vld [vmem:[%s3 + $0x18] sm:$0xff]
  %v3304 = vld [vmem:[%s3 + $0x20] sm:$0xff]
  %v3305 = vld [vmem:[%s3 + $0x28] sm:$0xff]
  %v3306 = vld [vmem:[%s3 + $0x30] sm:$0xff]
  %v3307 = vld [vmem:[%s3 + $0x38] sm:$0xff]
  %v3308 = vld [vmem:[%s3 + $0x40] sm:$0xff]
  %v3309 = vld [vmem:[%s3 + $0x48] sm:$0xff]
  %v3310 = vld [vmem:[%s3 + $0x50] sm:$0xff]
  %v3311 = vld [vmem:[%s3 + $0x58] sm:$0xff]
  %v3312 = vld [vmem:[%s3 + $0x60] sm:$0xff]
  %v3313 = vld [vmem:[%s3 + $0x68] sm:$0xff]
  %v3314 = vld [vmem:[%s3 + $0x70] sm:$0xff]
  %v3315 = vld [vmem:[%s3 + $0x78] sm:$0xff]
  %v3316 = vld [vmem:[%s6] sm:$0x1]
  %v3318 = vlaneseq
  %v3319 = vshrl.u32 %v3318, 7
  %v3320 = vsub.s32 0, %v3319
  %v3321 = vrot.slane %v3316, %v3320
  %3323 = vmatprep.subr.mxu0 0.0
  %3324 = vmatpush1.msra.mxu0 %v3300
  %3325 = vmatprep.subr.mxu0 0.0
  %3326 = vmatpush1.msra.mxu0 %v3301
  %3327 = vmatprep.subr.mxu0 0.0
  %3328 = vmatpush1.msra.mxu0 %v3302
  %3329 = vmatprep.subr.mxu0 0.0
  %3330 = vmatpush1.msra.mxu0 %v3303
  %3331 = vmatprep.subr.mxu0 0.0
  %3332 = vmatpush1.msra.mxu0 %v3304
  %3333 = vmatprep.subr.mxu0 0.0
  %3334 = vmatpush1.msra.mxu0 %v3305
  %3335 = vmatprep.subr.mxu0 0.0
  %3336 = vmatpush1.msra.mxu0 %v3306
  %3337 = vmatprep.subr.mxu0 0.0
  %3338 = vmatpush1.msra.mxu0 %v3307
  %3339 = vmatprep.subr.mxu0 0.0
  %3340 = vmatpush1.msra.mxu0 %v3308
  %3341 = vmatprep.subr.mxu0 0.0
  %3342 = vmatpush1.msra.mxu0 %v3309
  %3343 = vmatprep.subr.mxu0 0.0
  %3344 = vmatpush1.msra.mxu0 %v3310
  %3345 = vmatprep.subr.mxu0 0.0
  %3346 = vmatpush1.msra.mxu0 %v3311
  %3347 = vmatprep.subr.mxu0 0.0
  %3348 = vmatpush1.msra.mxu0 %v3312
  %3349 = vmatprep.subr.mxu0 0.0
  %3350 = vmatpush1.msra.mxu0 %v3313
  %3351 = vmatprep.subr.mxu0 0.0
  %3352 = vmatpush1.msra.mxu0 %v3314
  %3353 = vmatprep.subr.mxu0 0.0
  %3354 = vmatpush1.msra.mxu0 %v3315
  %3355 = vmatprep.subr.mxu0 0.0
  %3356 = vmatpush1.msra.mxu0 0.0
  %3357 = vmatprep.subr.mxu0 0.0
  %3358 = vmatpush1.msra.mxu0 0.0
  %3359 = vmatprep.subr.mxu0 0.0
  %3360 = vmatpush1.msra.mxu0 0.0
  %3361 = vmatprep.subr.mxu0 0.0
  %3362 = vmatpush1.msra.mxu0 0.0
  %3363 = vmatprep.subr.mxu0 0.0
  %3364 = vmatpush1.msra.mxu0 0.0
  %3365 = vmatprep.subr.mxu0 0.0
  %3366 = vmatpush1.msra.mxu0 0.0
  %3367 = vmatprep.subr.mxu0 0.0
  %3368 = vmatpush1.msra.mxu0 0.0
  %3369 = vmatprep.subr.mxu0 0.0
  %3370 = vmatpush1.msra.mxu0 0.0
  %3371 = vmatprep.subr.mxu0 0.0
  %3372 = vmatpush1.msra.mxu0 0.0
  %3373 = vmatprep.subr.mxu0 0.0
  %3374 = vmatpush1.msra.mxu0 0.0
  %3375 = vmatprep.subr.mxu0 0.0
  %3376 = vmatpush1.msra.mxu0 0.0
  %3377 = vmatprep.subr.mxu0 0.0
  %3378 = vmatpush1.msra.mxu0 0.0
  %3379 = vmatprep.subr.mxu0 0.0
  %3380 = vmatpush1.msra.mxu0 0.0
  %3381 = vmatprep.subr.mxu0 0.0
  %3382 = vmatpush1.msra.mxu0 0.0
  %3383 = vmatprep.subr.mxu0 0.0
  %3384 = vmatpush1.msra.mxu0 0.0
  %3385 = vmatprep.subr.mxu0 0.0
  %3386 = vmatpush1.msra.mxu0 0.0
  %3387 = vmatprep.mubr.f32.mxu0 0.0
  %3388 = vmatmul.mubr.f32.gmra.mrb[0].mxu0 %v3091
  %v3389 = vpop.f32.mrb[0].mxu0
  %v3390 = vadd.f32 %v3321, %v3389
  %v3391 = vpop.f32.mrb[0].mxu0
  %3392 = vmatprep.mubr.f32.mxu0 0.0
  %3393 = vmatmul.mubr.f32.gmra.mrb[0].mxu0 %v3092
  %v3394 = vpop.f32.mrb[0].mxu0
  %v3395 = vadd.f32 %v3321, %v3394
  %v3396 = vpop.f32.mrb[0].mxu0
  %3397 = vmatprep.mubr.f32.mxu0 0.0
  %3398 = vmatmul.mubr.f32.gmra.mrb[0].mxu0 %v3093
  %v3399 = vpop.f32.mrb[0].mxu0
  %v3400 = vadd.f32 %v3321, %v3399
  %v3401 = vpop.f32.mrb[0].mxu0
  %3402 = vdwg.mxu0
  %v3404 = vsel %vm425, %v3184, 0
  %v3407 = vsel %vm425, %v3189, 0
  %v3410 = vsel %vm425, %v3194, 0
  %v3413 = vsel %vm425, %v3287, 0
  %v3416 = vsel %vm425, %v3292, 0
  %v3419 = vsel %vm425, %v3297, 0
  %3421 = vmatprep.subr.mxu0 0.0
  %3422 = vmatpush1.xpose.msra.mxu0 %v3413
  %3423 = vmatprep.subr.mxu0 0.0
  %3424 = vmatpush1.xpose.msra.mxu0 %v3416
  %3425 = vmatprep.subr.mxu0 0.0
  %3426 = vmatpush1.xpose.msra.mxu0 %v3419
  %3427 = vmatprep.subr.mxu0 0.0
  %3428 = vmatpush1.xpose.msra.mxu0 0.0
  %3429 = vmatprep.subr.mxu0 0.0
  %3430 = vmatpush1.xpose.msra.mxu0 0.0
  %3431 = vmatprep.subr.mxu0 0.0
  %3432 = vmatpush1.xpose.msra.mxu0 0.0
  %3433 = vmatprep.subr.mxu0 0.0
  %3434 = vmatpush1.xpose.msra.mxu0 0.0
  %3435 = vmatprep.subr.mxu0 0.0
  %3436 = vmatpush1.xpose.msra.mxu0 0.0
  %3437 = vmatprep.subr.mxu0 0.0
  %3438 = vmatpush1.xpose.msra.mxu0 0.0
  %3439 = vmatprep.subr.mxu0 0.0
  %3440 = vmatpush1.xpose.msra.mxu0 0.0
  %3441 = vmatprep.subr.mxu0 0.0
  %3442 = vmatpush1.xpose.msra.mxu0 0.0
  %3443 = vmatprep.subr.mxu0 0.0
  %3444 = vmatpush1.xpose.msra.mxu0 0.0
  %3445 = vmatprep.subr.mxu0 0.0
  %3446 = vmatpush1.xpose.msra.mxu0 0.0
  %3447 = vmatprep.subr.mxu0 0.0
  %3448 = vmatpush1.xpose.msra.mxu0 0.0
  %3449 = vmatprep.subr.mxu0 0.0
  %3450 = vmatpush1.xpose.msra.mxu0 0.0
  %3451 = vmatprep.subr.mxu0 0.0
  %3452 = vmatpush1.xpose.msra.mxu0 0.0
  %3453 = vmatprep.subr.mxu0 0.0
  %3454 = vmatpush1.xpose.msra.mxu0 0.0
  %3455 = vmatprep.subr.mxu0 0.0
  %3456 = vmatpush1.xpose.msra.mxu0 0.0
  %3457 = vmatprep.subr.mxu0 0.0
  %3458 = vmatpush1.xpose.msra.mxu0 0.0
  %3459 = vmatprep.subr.mxu0 0.0
  %3460 = vmatpush1.xpose.msra.mxu0 0.0
  %3461 = vmatprep.subr.mxu0 0.0
  %3462 = vmatpush1.xpose.msra.mxu0 0.0
  %3463 = vmatprep.subr.mxu0 0.0
  %3464 = vmatpush1.xpose.msra.mxu0 0.0
  %3465 = vmatprep.subr.mxu0 0.0
  %3466 = vmatpush1.xpose.msra.mxu0 0.0
  %3467 = vmatprep.subr.mxu0 0.0
  %3468 = vmatpush1.xpose.msra.mxu0 0.0
  %3469 = vmatprep.subr.mxu0 0.0
  %3470 = vmatpush1.xpose.msra.mxu0 0.0
  %3471 = vmatprep.subr.mxu0 0.0
  %3472 = vmatpush1.xpose.msra.mxu0 0.0
  %3473 = vmatprep.subr.mxu0 0.0
  %3474 = vmatpush1.xpose.msra.mxu0 0.0
  %3475 = vmatprep.subr.mxu0 0.0
  %3476 = vmatpush1.xpose.msra.mxu0 0.0
  %3477 = vmatprep.subr.mxu0 0.0
  %3478 = vmatpush1.xpose.msra.mxu0 0.0
  %3479 = vmatprep.subr.mxu0 0.0
  %3480 = vmatpush1.xpose.msra.mxu0 0.0
  %3481 = vmatprep.subr.mxu0 0.0
  %3482 = vmatpush1.xpose.msra.mxu0 0.0
  %3483 = vmatprep.subr.mxu0 0.0
  %3484 = vmatpush1.xpose.msra.mxu0 0.0
  %3485 = vmatprep.mubr.f32.mxu0 0.0
  %3486 = vmatmul.mubr.f32.gmra.mrb[0].mxu0 %v3404
  %v3487 = vpop.f32.mrb[0].mxu0
  %v3488 = vadd.f32 0.0, %v3487
  %v3489 = vpop.f32.mrb[0].mxu0
  %3490 = vmatprep.mubr.f32.mxu0 0.0
  %3491 = vmatmul.mubr.f32.gmra.mrb[0].mxu0 %v3407
  %v3492 = vpop.f32.mrb[0].mxu0
  %v3493 = vadd.f32 0.0, %v3492
  %v3494 = vpop.f32.mrb[0].mxu0
  %3495 = vmatprep.mubr.f32.mxu0 0.0
  %3496 = vmatmul.mubr.f32.gmra.mrb[0].mxu0 %v3410
  %v3497 = vpop.f32.mrb[0].mxu0
  %v3498 = vadd.f32 0.0, %v3497
  %v3499 = vpop.f32.mrb[0].mxu0
  %3500 = vdwg.mxu0
  %v3501 = vmul.f32 %v3488, 0.17677669
  %v3502 = vmul.f32 %v3493, 0.17677669
  %v3503 = vmul.f32 %v3498, 0.17677669
  %v3504 = vsel %vm527, %v3501, -inf
  %3505 = vmax.xlane.f32.xlu0 %v3504
  %v3506 = vpop.xlane.xlu0 %3505
  %v3507 = vsel %vm527, %v3502, -inf
  %3508 = vmax.xlane.f32.xlu0 %v3507
  %v3509 = vpop.xlane.xlu0 %3508
  %v3510 = vsel %vm534, %v3503, -inf
  %3511 = vmax.xlane.f32.xlu0 %v3510
  %v3512 = vpop.xlane.xlu0 %3511
  %v3513 = vsub.f32 %v3501, %v3506
  %v3514 = vsub.f32 %v3502, %v3509
  %v3515 = vsub.f32 %v3503, %v3512
  %v3516 = vmul.f32 %v3513, 1.442695
  %v3517 = vpow.pop %v3516
  %v3518 = vmul.f32 %v3514, 1.442695
  %v3519 = vpow.pop %v3518
  %v3520 = vmul.f32 %v3515, 1.442695
  %v3521 = vpow.pop %v3520
  %v3522 = vsel %vm527, %v3517, 0.0
  %3523 = vadd.xlane.f32.xlu0 %v3522
  %v3524 = vpop.xlane.xlu0 %3523
  %v3525 = vsel %vm527, %v3519, 0.0
  %3526 = vadd.xlane.f32.xlu0 %v3525
  %v3527 = vpop.xlane.xlu0 %3526
  %v3528 = vsel %vm534, %v3521, 0.0
  %3529 = vadd.xlane.f32.xlu0 %v3528
  %v3530 = vpop.xlane.xlu0 %3529
  %v3531 = vrcp.pop %v3524
  %v3532 = vmul.f32 %v3517, %v3531
  %v3533 = vrcp.pop %v3527
  %v3534 = vmul.f32 %v3519, %v3533
  %v3535 = vrcp.pop %v3530
  %v3536 = vmul.f32 %v3521, %v3535
  %v3538 = vsel %vm527, %v3532, 0
  %v3541 = vsel %vm527, %v3534, 0
  %v3544 = vsel %vm527, %v3536, 0
  %v3547 = vsel %vm65, %v3400, 0
  %3549 = vmatprep.subr.mxu0 0.0
  %3550 = vmatpush1.msra.mxu0 %v3390
  %3551 = vmatprep.subr.mxu0 0.0
  %3552 = vmatpush1.msra.mxu0 %v3395
  %3553 = vmatprep.subr.mxu0 0.0
  %3554 = vmatpush1.msra.mxu0 %v3547
  %3555 = vmatprep.subr.mxu0 0.0
  %3556 = vmatpush1.msra.mxu0 0.0
  %3557 = vmatprep.subr.mxu0 0.0
  %3558 = vmatpush1.msra.mxu0 0.0
  %3559 = vmatprep.subr.mxu0 0.0
  %3560 = vmatpush1.msra.mxu0 0.0
  %3561 = vmatprep.subr.mxu0 0.0
  %3562 = vmatpush1.msra.mxu0 0.0
  %3563 = vmatprep.subr.mxu0 0.0
  %3564 = vmatpush1.msra.mxu0 0.0
  %3565 = vmatprep.subr.mxu0 0.0
  %3566 = vmatpush1.msra.mxu0 0.0
  %3567 = vmatprep.subr.mxu0 0.0
  %3568 = vmatpush1.msra.mxu0 0.0
  %3569 = vmatprep.subr.mxu0 0.0
  %3570 = vmatpush1.msra.mxu0 0.0
  %3571 = vmatprep.subr.mxu0 0.0
  %3572 = vmatpush1.msra.mxu0 0.0
  %3573 = vmatprep.subr.mxu0 0.0
  %3574 = vmatpush1.msra.mxu0 0.0
  %3575 = vmatprep.subr.mxu0 0.0
  %3576 = vmatpush1.msra.mxu0 0.0
  %3577 = vmatprep.subr.mxu0 0.0
  %3578 = vmatpush1.msra.mxu0 0.0
  %3579 = vmatprep.subr.mxu0 0.0
  %3580 = vmatpush1.msra.mxu0 0.0
  %3581 = vmatprep.subr.mxu0 0.0
  %3582 = vmatpush1.msra.mxu0 0.0
  %3583 = vmatprep.subr.mxu0 0.0
  %3584 = vmatpush1.msra.mxu0 0.0
  %3585 = vmatprep.subr.mxu0 0.0
  %3586 = vmatpush1.msra.mxu0 0.0
  %3587 = vmatprep.subr.mxu0 0.0
  %3588 = vmatpush1.msra.mxu0 0.0
  %3589 = vmatprep.subr.mxu0 0.0
  %3590 = vmatpush1.msra.mxu0 0.0
  %3591 = vmatprep.subr.mxu0 0.0
  %3592 = vmatpush1.msra.mxu0 0.0
  %3593 = vmatprep.subr.mxu0 0.0
  %3594 = vmatpush1.msra.mxu0 0.0
  %3595 = vmatprep.subr.mxu0 0.0
  %3596 = vmatpush1.msra.mxu0 0.0
  %3597 = vmatprep.subr.mxu0 0.0
  %3598 = vmatpush1.msra.mxu0 0.0
  %3599 = vmatprep.subr.mxu0 0.0
  %3600 = vmatpush1.msra.mxu0 0.0
  %3601 = vmatprep.subr.mxu0 0.0
  %3602 = vmatpush1.msra.mxu0 0.0
  %3603 = vmatprep.subr.mxu0 0.0
  %3604 = vmatpush1.msra.mxu0 0.0
  %3605 = vmatprep.subr.mxu0 0.0
  %3606 = vmatpush1.msra.mxu0 0.0
  %3607 = vmatprep.subr.mxu0 0.0
  %3608 = vmatpush1.msra.mxu0 0.0
  %3609 = vmatprep.subr.mxu0 0.0
  %3610 = vmatpush1.msra.mxu0 0.0
  %3611 = vmatprep.subr.mxu0 0.0
  %3612 = vmatpush1.msra.mxu0 0.0
  %3613 = vmatprep.mubr.f32.mxu0 0.0
  %3614 = vmatmul.mubr.f32.gmra.mrb[0].mxu0 %v3538
  %v3615 = vpop.f32.mrb[0].mxu0
  %v3616 = vadd.f32 0.0, %v3615
  %v3617 = vpop.f32.mrb[0].mxu0
  %3618 = vmatprep.mubr.f32.mxu0 0.0
  %3619 = vmatmul.mubr.f32.gmra.mrb[0].mxu0 %v3541
  %v3620 = vpop.f32.mrb[0].mxu0
  %v3621 = vadd.f32 0.0, %v3620
  %v3622 = vpop.f32.mrb[0].mxu0
  %3623 = vmatprep.mubr.f32.mxu0 0.0
  %3624 = vmatmul.mubr.f32.gmra.mrb[0].mxu0 %v3544
  %v3625 = vpop.f32.mrb[0].mxu0
  %v3626 = vadd.f32 0.0, %v3625
  %v3627 = vpop.f32.mrb[0].mxu0
  %3628 = vdwg.mxu0
  %v3629 = vld [vmem:[%s7] sm:$0xff]
  %v3630 = vld [vmem:[%s7 + $0x8] sm:$0xff]
  %v3631 = vld [vmem:[%s7 + $0x10] sm:$0xff]
  %v3632 = vld [vmem:[%s7 + $0x18] sm:$0xff]
  %v3633 = vld [vmem:[%s658] sm:$0xff]
  %v3634 = vld [vmem:[%s658 + $0x8] sm:$0xff]
  %v3635 = vld [vmem:[%s658 + $0x10] sm:$0xff]
  %v3636 = vld [vmem:[%s658 + $0x18] sm:$0xff]
  %v3637 = vld [vmem:[%s658 + $0x20] sm:$0xff]
  %v3638 = vld [vmem:[%s658 + $0x28] sm:$0xff]
  %v3639 = vld [vmem:[%s658 + $0x30] sm:$0xff]
  %v3640 = vld [vmem:[%s658 + $0x38] sm:$0xff]
  %v3641 = vld [vmem:[%s658 + $0x40] sm:$0xff]
  %v3642 = vld [vmem:[%s658 + $0x48] sm:$0xff]
  %v3643 = vld [vmem:[%s658 + $0x50] sm:$0xff]
  %v3644 = vld [vmem:[%s658 + $0x58] sm:$0xff]
  %v3645 = vld [vmem:[%s658 + $0x60] sm:$0xff]
  %v3646 = vld [vmem:[%s658 + $0x68] sm:$0xff]
  %v3647 = vld [vmem:[%s658 + $0x70] sm:$0xff]
  %v3648 = vld [vmem:[%s658 + $0x78] sm:$0xff]
  %v3649 = vld [vmem:[%s675] sm:$0x1]
  %v3651 = vlaneseq
  %v3652 = vshrl.u32 %v3651, 7
  %v3653 = vsub.s32 0, %v3652
  %v3654 = vrot.slane %v3649, %v3653
  %3656 = vmatprep.subr.mxu0 0.0
  %3657 = vmatpush1.msra.mxu0 %v3633
  %3658 = vmatprep.subr.mxu0 0.0
  %3659 = vmatpush1.msra.mxu0 %v3634
  %3660 = vmatprep.subr.mxu0 0.0
  %3661 = vmatpush1.msra.mxu0 %v3635
  %3662 = vmatprep.subr.mxu0 0.0
  %3663 = vmatpush1.msra.mxu0 %v3636
  %3664 = vmatprep.subr.mxu0 0.0
  %3665 = vmatpush1.msra.mxu0 %v3637
  %3666 = vmatprep.subr.mxu0 0.0
  %3667 = vmatpush1.msra.mxu0 %v3638
  %3668 = vmatprep.subr.mxu0 0.0
  %3669 = vmatpush1.msra.mxu0 %v3639
  %3670 = vmatprep.subr.mxu0 0.0
  %3671 = vmatpush1.msra.mxu0 %v3640
  %3672 = vmatprep.subr.mxu0 0.0
  %3673 = vmatpush1.msra.mxu0 %v3641
  %3674 = vmatprep.subr.mxu0 0.0
  %3675 = vmatpush1.msra.mxu0 %v3642
  %3676 = vmatprep.subr.mxu0 0.0
  %3677 = vmatpush1.msra.mxu0 %v3643
  %3678 = vmatprep.subr.mxu0 0.0
  %3679 = vmatpush1.msra.mxu0 %v3644
  %3680 = vmatprep.subr.mxu0 0.0
  %3681 = vmatpush1.msra.mxu0 %v3645
  %3682 = vmatprep.subr.mxu0 0.0
  %3683 = vmatpush1.msra.mxu0 %v3646
  %3684 = vmatprep.subr.mxu0 0.0
  %3685 = vmatpush1.msra.mxu0 %v3647
  %3686 = vmatprep.subr.mxu0 0.0
  %3687 = vmatpush1.msra.mxu0 %v3648
  %3688 = vmatprep.subr.mxu0 0.0
  %3689 = vmatpush1.msra.mxu0 0.0
  %3690 = vmatprep.subr.mxu0 0.0
  %3691 = vmatpush1.msra.mxu0 0.0
  %3692 = vmatprep.subr.mxu0 0.0
  %3693 = vmatpush1.msra.mxu0 0.0
  %3694 = vmatprep.subr.mxu0 0.0
  %3695 = vmatpush1.msra.mxu0 0.0
  %3696 = vmatprep.subr.mxu0 0.0
  %3697 = vmatpush1.msra.mxu0 0.0
  %3698 = vmatprep.subr.mxu0 0.0
  %3699 = vmatpush1.msra.mxu0 0.0
  %3700 = vmatprep.subr.mxu0 0.0
  %3701 = vmatpush1.msra.mxu0 0.0
  %3702 = vmatprep.subr.mxu0 0.0
  %3703 = vmatpush1.msra.mxu0 0.0
  %3704 = vmatprep.subr.mxu0 0.0
  %3705 = vmatpush1.msra.mxu0 0.0
  %3706 = vmatprep.subr.mxu0 0.0
  %3707 = vmatpush1.msra.mxu0 0.0
  %3708 = vmatprep.subr.mxu0 0.0
  %3709 = vmatpush1.msra.mxu0 0.0
  %3710 = vmatprep.subr.mxu0 0.0
  %3711 = vmatpush1.msra.mxu0 0.0
  %3712 = vmatprep.subr.mxu0 0.0
  %3713 = vmatpush1.msra.mxu0 0.0
  %3714 = vmatprep.subr.mxu0 0.0
  %3715 = vmatpush1.msra.mxu0 0.0
  %3716 = vmatprep.subr.mxu0 0.0
  %3717 = vmatpush1.msra.mxu0 0.0
  %3718 = vmatprep.subr.mxu0 0.0
  %3719 = vmatpush1.msra.mxu0 0.0
  %3720 = vmatprep.mubr.f32.mxu0 0.0
  %3721 = vmatmul.mubr.f32.gmra.mrb[0].mxu0 %v3091
  %v3722 = vpop.f32.mrb[0].mxu0
  %v3723 = vadd.f32 %v3654, %v3722
  %v3724 = vpop.f32.mrb[0].mxu0
  %3725 = vmatprep.mubr.f32.mxu0 0.0
  %3726 = vmatmul.mubr.f32.gmra.mrb[0].mxu0 %v3092
  %v3727 = vpop.f32.mrb[0].mxu0
  %v3728 = vadd.f32 %v3654, %v3727
  %v3729 = vpop.f32.mrb[0].mxu0
  %3730 = vmatprep.mubr.f32.mxu0 0.0
  %3731 = vmatmul.mubr.f32.gmra.mrb[0].mxu0 %v3093
  %v3732 = vpop.f32.mrb[0].mxu0
  %v3733 = vadd.f32 %v3654, %v3732
  %v3734 = vpop.f32.mrb[0].mxu0
  %3735 = vdwg.mxu0
  %v3736 = vld [vmem:[%s763] sm:$0xff]
  %v3737 = vld [vmem:[%s763 + $0x8] sm:$0xff]
  %v3738 = vld [vmem:[%s763 + $0x10] sm:$0xff]
  %v3739 = vld [vmem:[%s763 + $0x18] sm:$0xff]
  %v3740 = vld [vmem:[%s763 + $0x20] sm:$0xff]
  %v3741 = vld [vmem:[%s763 + $0x28] sm:$0xff]
  %v3742 = vld [vmem:[%s763 + $0x30] sm:$0xff]
  %v3743 = vld [vmem:[%s763 + $0x38] sm:$0xff]
  %v3744 = vld [vmem:[%s763 + $0x40] sm:$0xff]
  %v3745 = vld [vmem:[%s763 + $0x48] sm:$0xff]
  %v3746 = vld [vmem:[%s763 + $0x50] sm:$0xff]
  %v3747 = vld [vmem:[%s763 + $0x58] sm:$0xff]
  %v3748 = vld [vmem:[%s763 + $0x60] sm:$0xff]
  %v3749 = vld [vmem:[%s763 + $0x68] sm:$0xff]
  %v3750 = vld [vmem:[%s763 + $0x70] sm:$0xff]
  %v3751 = vld [vmem:[%s763 + $0x78] sm:$0xff]
  %v3752 = vld [vmem:[%s780] sm:$0x1]
  %v3754 = vlaneseq
  %v3755 = vshrl.u32 %v3754, 7
  %v3756 = vsub.s32 0, %v3755
  %v3757 = vrot.slane %v3752, %v3756
  %3759 = vmatprep.subr.mxu0 0.0
  %3760 = vmatpush1.msra.mxu0 %v3736
  %3761 = vmatprep.subr.mxu0 0.0
  %3762 = vmatpush1.msra.mxu0 %v3737
  %3763 = vmatprep.subr.mxu0 0.0
  %3764 = vmatpush1.msra.mxu0 %v3738
  %3765 = vmatprep.subr.mxu0 0.0
  %3766 = vmatpush1.msra.mxu0 %v3739
  %3767 = vmatprep.subr.mxu0 0.0
  %3768 = vmatpush1.msra.mxu0 %v3740
  %3769 = vmatprep.subr.mxu0 0.0
  %3770 = vmatpush1.msra.mxu0 %v3741
  %3771 = vmatprep.subr.mxu0 0.0
  %3772 = vmatpush1.msra.mxu0 %v3742
  %3773 = vmatprep.subr.mxu0 0.0
  %3774 = vmatpush1.msra.mxu0 %v3743
  %3775 = vmatprep.subr.mxu0 0.0
  %3776 = vmatpush1.msra.mxu0 %v3744
  %3777 = vmatprep.subr.mxu0 0.0
  %3778 = vmatpush1.msra.mxu0 %v3745
  %3779 = vmatprep.subr.mxu0 0.0
  %3780 = vmatpush1.msra.mxu0 %v3746
  %3781 = vmatprep.subr.mxu0 0.0
  %3782 = vmatpush1.msra.mxu0 %v3747
  %3783 = vmatprep.subr.mxu0 0.0
  %3784 = vmatpush1.msra.mxu0 %v3748
  %3785 = vmatprep.subr.mxu0 0.0
  %3786 = vmatpush1.msra.mxu0 %v3749
  %3787 = vmatprep.subr.mxu0 0.0
  %3788 = vmatpush1.msra.mxu0 %v3750
  %3789 = vmatprep.subr.mxu0 0.0
  %3790 = vmatpush1.msra.mxu0 %v3751
  %3791 = vmatprep.subr.mxu0 0.0
  %3792 = vmatpush1.msra.mxu0 0.0
  %3793 = vmatprep.subr.mxu0 0.0
  %3794 = vmatpush1.msra.mxu0 0.0
  %3795 = vmatprep.subr.mxu0 0.0
  %3796 = vmatpush1.msra.mxu0 0.0
  %3797 = vmatprep.subr.mxu0 0.0
  %3798 = vmatpush1.msra.mxu0 0.0
  %3799 = vmatprep.subr.mxu0 0.0
  %3800 = vmatpush1.msra.mxu0 0.0
  %3801 = vmatprep.subr.mxu0 0.0
  %3802 = vmatpush1.msra.mxu0 0.0
  %3803 = vmatprep.subr.mxu0 0.0
  %3804 = vmatpush1.msra.mxu0 0.0
  %3805 = vmatprep.subr.mxu0 0.0
  %3806 = vmatpush1.msra.mxu0 0.0
  %3807 = vmatprep.subr.mxu0 0.0
  %3808 = vmatpush1.msra.mxu0 0.0
  %3809 = vmatprep.subr.mxu0 0.0
  %3810 = vmatpush1.msra.mxu0 0.0
  %3811 = vmatprep.subr.mxu0 0.0
  %3812 = vmatpush1.msra.mxu0 0.0
  %3813 = vmatprep.subr.mxu0 0.0
  %3814 = vmatpush1.msra.mxu0 0.0
  %3815 = vmatprep.subr.mxu0 0.0
  %3816 = vmatpush1.msra.mxu0 0.0
  %3817 = vmatprep.subr.mxu0 0.0
  %3818 = vmatpush1.msra.mxu0 0.0
  %3819 = vmatprep.subr.mxu0 0.0
  %3820 = vmatpush1.msra.mxu0 0.0
  %3821 = vmatprep.subr.mxu0 0.0
  %3822 = vmatpush1.msra.mxu0 0.0
  %3823 = vmatprep.mubr.f32.mxu0 0.0
  %3824 = vmatmul.mubr.f32.gmra.mrb[0].mxu0 %v3091
  %v3825 = vpop.f32.mrb[0].mxu0
  %v3826 = vadd.f32 %v3757, %v3825
  %v3827 = vpop.f32.mrb[0].mxu0
  %3828 = vmatprep.mubr.f32.mxu0 0.0
  %3829 = vmatmul.mubr.f32.gmra.mrb[0].mxu0 %v3092
  %v3830 = vpop.f32.mrb[0].mxu0
  %v3831 = vadd.f32 %v3757, %v3830
  %v3832 = vpop.f32.mrb[0].mxu0
  %3833 = vmatprep.mubr.f32.mxu0 0.0
  %3834 = vmatmul.mubr.f32.gmra.mrb[0].mxu0 %v3093
  %v3835 = vpop.f32.mrb[0].mxu0
  %v3836 = vadd.f32 %v3757, %v3835
  %v3837 = vpop.f32.mrb[0].mxu0
  %3838 = vdwg.mxu0
  %v3839 = vld [vmem:[%s868] sm:$0xff]
  %v3840 = vld [vmem:[%s868 + $0x8] sm:$0xff]
  %v3841 = vld [vmem:[%s868 + $0x10] sm:$0xff]
  %v3842 = vld [vmem:[%s868 + $0x18] sm:$0xff]
  %v3843 = vld [vmem:[%s868 + $0x20] sm:$0xff]
  %v3844 = vld [vmem:[%s868 + $0x28] sm:$0xff]
  %v3845 = vld [vmem:[%s868 + $0x30] sm:$0xff]
  %v3846 = vld [vmem:[%s868 + $0x38] sm:$0xff]
  %v3847 = vld [vmem:[%s868 + $0x40] sm:$0xff]
  %v3848 = vld [vmem:[%s868 + $0x48] sm:$0xff]
  %v3849 = vld [vmem:[%s868 + $0x50] sm:$0xff]
  %v3850 = vld [vmem:[%s868 + $0x58] sm:$0xff]
  %v3851 = vld [vmem:[%s868 + $0x60] sm:$0xff]
  %v3852 = vld [vmem:[%s868 + $0x68] sm:$0xff]
  %v3853 = vld [vmem:[%s868 + $0x70] sm:$0xff]
  %v3854 = vld [vmem:[%s868 + $0x78] sm:$0xff]
  %v3855 = vld [vmem:[%s885] sm:$0x1]
  %v3857 = vlaneseq
  %v3858 = vshrl.u32 %v3857, 7
  %v3859 = vsub.s32 0, %v3858
  %v3860 = vrot.slane %v3855, %v3859
  %3862 = vmatprep.subr.mxu0 0.0
  %3863 = vmatpush1.msra.mxu0 %v3839
  %3864 = vmatprep.subr.mxu0 0.0
  %3865 = vmatpush1.msra.mxu0 %v3840
  %3866 = vmatprep.subr.mxu0 0.0
  %3867 = vmatpush1.msra.mxu0 %v3841
  %3868 = vmatprep.subr.mxu0 0.0
  %3869 = vmatpush1.msra.mxu0 %v3842
  %3870 = vmatprep.subr.mxu0 0.0
  %3871 = vmatpush1.msra.mxu0 %v3843
  %3872 = vmatprep.subr.mxu0 0.0
  %3873 = vmatpush1.msra.mxu0 %v3844
  %3874 = vmatprep.subr.mxu0 0.0
  %3875 = vmatpush1.msra.mxu0 %v3845
  %3876 = vmatprep.subr.mxu0 0.0
  %3877 = vmatpush1.msra.mxu0 %v3846
  %3878 = vmatprep.subr.mxu0 0.0
  %3879 = vmatpush1.msra.mxu0 %v3847
  %3880 = vmatprep.subr.mxu0 0.0
  %3881 = vmatpush1.msra.mxu0 %v3848
  %3882 = vmatprep.subr.mxu0 0.0
  %3883 = vmatpush1.msra.mxu0 %v3849
  %3884 = vmatprep.subr.mxu0 0.0
  %3885 = vmatpush1.msra.mxu0 %v3850
  %3886 = vmatprep.subr.mxu0 0.0
  %3887 = vmatpush1.msra.mxu0 %v3851
  %3888 = vmatprep.subr.mxu0 0.0
  %3889 = vmatpush1.msra.mxu0 %v3852
  %3890 = vmatprep.subr.mxu0 0.0
  %3891 = vmatpush1.msra.mxu0 %v3853
  %3892 = vmatprep.subr.mxu0 0.0
  %3893 = vmatpush1.msra.mxu0 %v3854
  %3894 = vmatprep.subr.mxu0 0.0
  %3895 = vmatpush1.msra.mxu0 0.0
  %3896 = vmatprep.subr.mxu0 0.0
  %3897 = vmatpush1.msra.mxu0 0.0
  %3898 = vmatprep.subr.mxu0 0.0
  %3899 = vmatpush1.msra.mxu0 0.0
  %3900 = vmatprep.subr.mxu0 0.0
  %3901 = vmatpush1.msra.mxu0 0.0
  %3902 = vmatprep.subr.mxu0 0.0
  %3903 = vmatpush1.msra.mxu0 0.0
  %3904 = vmatprep.subr.mxu0 0.0
  %3905 = vmatpush1.msra.mxu0 0.0
  %3906 = vmatprep.subr.mxu0 0.0
  %3907 = vmatpush1.msra.mxu0 0.0
  %3908 = vmatprep.subr.mxu0 0.0
  %3909 = vmatpush1.msra.mxu0 0.0
  %3910 = vmatprep.subr.mxu0 0.0
  %3911 = vmatpush1.msra.mxu0 0.0
  %3912 = vmatprep.subr.mxu0 0.0
  %3913 = vmatpush1.msra.mxu0 0.0
  %3914 = vmatprep.subr.mxu0 0.0
  %3915 = vmatpush1.msra.mxu0 0.0
  %3916 = vmatprep.subr.mxu0 0.0
  %3917 = vmatpush1.msra.mxu0 0.0
  %3918 = vmatprep.subr.mxu0 0.0
  %3919 = vmatpush1.msra.mxu0 0.0
  %3920 = vmatprep.subr.mxu0 0.0
  %3921 = vmatpush1.msra.mxu0 0.0
  %3922 = vmatprep.subr.mxu0 0.0
  %3923 = vmatpush1.msra.mxu0 0.0
  %3924 = vmatprep.subr.mxu0 0.0
  %3925 = vmatpush1.msra.mxu0 0.0
  %3926 = vmatprep.mubr.f32.mxu0 0.0
  %3927 = vmatmul.mubr.f32.gmra.mrb[0].mxu0 %v3091
  %v3928 = vpop.f32.mrb[0].mxu0
  %v3929 = vadd.f32 %v3860, %v3928
  %v3930 = vpop.f32.mrb[0].mxu0
  %3931 = vmatprep.mubr.f32.mxu0 0.0
  %3932 = vmatmul.mubr.f32.gmra.mrb[0].mxu0 %v3092
  %v3933 = vpop.f32.mrb[0].mxu0
  %v3934 = vadd.f32 %v3860, %v3933
  %v3935 = vpop.f32.mrb[0].mxu0
  %3936 = vmatprep.mubr.f32.mxu0 0.0
  %3937 = vmatmul.mubr.f32.gmra.mrb[0].mxu0 %v3093
  %v3938 = vpop.f32.mrb[0].mxu0
  %v3939 = vadd.f32 %v3860, %v3938
  %v3940 = vpop.f32.mrb[0].mxu0
  %3941 = vdwg.mxu0
  %v3943 = vsel %vm425, %v3723, 0
  %v3946 = vsel %vm425, %v3728, 0
  %v3949 = vsel %vm425, %v3733, 0
  %v3952 = vsel %vm425, %v3826, 0
  %v3955 = vsel %vm425, %v3831, 0
  %v3958 = vsel %vm425, %v3836, 0
  %3960 = vmatprep.subr.mxu0 0.0
  %3961 = vmatpush1.xpose.msra.mxu0 %v3952
  %3962 = vmatprep.subr.mxu0 0.0
  %3963 = vmatpush1.xpose.msra.mxu0 %v3955
  %3964 = vmatprep.subr.mxu0 0.0
  %3965 = vmatpush1.xpose.msra.mxu0 %v3958
  %3966 = vmatprep.subr.mxu0 0.0
  %3967 = vmatpush1.xpose.msra.mxu0 0.0
  %3968 = vmatprep.subr.mxu0 0.0
  %3969 = vmatpush1.xpose.msra.mxu0 0.0
  %3970 = vmatprep.subr.mxu0 0.0
  %3971 = vmatpush1.xpose.msra.mxu0 0.0
  %3972 = vmatprep.subr.mxu0 0.0
  %3973 = vmatpush1.xpose.msra.mxu0 0.0
  %3974 = vmatprep.subr.mxu0 0.0
  %3975 = vmatpush1.xpose.msra.mxu0 0.0
  %3976 = vmatprep.subr.mxu0 0.0
  %3977 = vmatpush1.xpose.msra.mxu0 0.0
  %3978 = vmatprep.subr.mxu0 0.0
  %3979 = vmatpush1.xpose.msra.mxu0 0.0
  %3980 = vmatprep.subr.mxu0 0.0
  %3981 = vmatpush1.xpose.msra.mxu0 0.0
  %3982 = vmatprep.subr.mxu0 0.0
  %3983 = vmatpush1.xpose.msra.mxu0 0.0
  %3984 = vmatprep.subr.mxu0 0.0
  %3985 = vmatpush1.xpose.msra.mxu0 0.0
  %3986 = vmatprep.subr.mxu0 0.0
  %3987 = vmatpush1.xpose.msra.mxu0 0.0
  %3988 = vmatprep.subr.mxu0 0.0
  %3989 = vmatpush1.xpose.msra.mxu0 0.0
  %3990 = vmatprep.subr.mxu0 0.0
  %3991 = vmatpush1.xpose.msra.mxu0 0.0
  %3992 = vmatprep.subr.mxu0 0.0
  %3993 = vmatpush1.xpose.msra.mxu0 0.0
  %3994 = vmatprep.subr.mxu0 0.0
  %3995 = vmatpush1.xpose.msra.mxu0 0.0
  %3996 = vmatprep.subr.mxu0 0.0
  %3997 = vmatpush1.xpose.msra.mxu0 0.0
  %3998 = vmatprep.subr.mxu0 0.0
  %3999 = vmatpush1.xpose.msra.mxu0 0.0
  %4000 = vmatprep.subr.mxu0 0.0
  %4001 = vmatpush1.xpose.msra.mxu0 0.0
  %4002 = vmatprep.subr.mxu0 0.0
  %4003 = vmatpush1.xpose.msra.mxu0 0.0
  %4004 = vmatprep.subr.mxu0 0.0
  %4005 = vmatpush1.xpose.msra.mxu0 0.0
  %4006 = vmatprep.subr.mxu0 0.0
  %4007 = vmatpush1.xpose.msra.mxu0 0.0
  %4008 = vmatprep.subr.mxu0 0.0
  %4009 = vmatpush1.xpose.msra.mxu0 0.0
  %4010 = vmatprep.subr.mxu0 0.0
  %4011 = vmatpush1.xpose.msra.mxu0 0.0
  %4012 = vmatprep.subr.mxu0 0.0
  %4013 = vmatpush1.xpose.msra.mxu0 0.0
  %4014 = vmatprep.subr.mxu0 0.0
  %4015 = vmatpush1.xpose.msra.mxu0 0.0
  %4016 = vmatprep.subr.mxu0 0.0
  %4017 = vmatpush1.xpose.msra.mxu0 0.0
  %4018 = vmatprep.subr.mxu0 0.0
  %4019 = vmatpush1.xpose.msra.mxu0 0.0
  %4020 = vmatprep.subr.mxu0 0.0
  %4021 = vmatpush1.xpose.msra.mxu0 0.0
  %4022 = vmatprep.subr.mxu0 0.0
  %4023 = vmatpush1.xpose.msra.mxu0 0.0
  %4024 = vmatprep.mubr.f32.mxu0 0.0
  %4025 = vmatmul.mubr.f32.gmra.mrb[0].mxu0 %v3943
  %v4026 = vpop.f32.mrb[0].mxu0
  %v4027 = vadd.f32 0.0, %v4026
  %v4028 = vpop.f32.mrb[0].mxu0
  %4029 = vmatprep.mubr.f32.mxu0 0.0
  %4030 = vmatmul.mubr.f32.gmra.mrb[0].mxu0 %v3946
  %v4031 = vpop.f32.mrb[0].mxu0
  %v4032 = vadd.f32 0.0, %v4031
  %v4033 = vpop.f32.mrb[0].mxu0
  %4034 = vmatprep.mubr.f32.mxu0 0.0
  %4035 = vmatmul.mubr.f32.gmra.mrb[0].mxu0 %v3949
  %v4036 = vpop.f32.mrb[0].mxu0
  %v4037 = vadd.f32 0.0, %v4036
  %v4038 = vpop.f32.mrb[0].mxu0
  %4039 = vdwg.mxu0
  %v4040 = vmul.f32 %v4027, 0.17677669
  %v4041 = vmul.f32 %v4032, 0.17677669
  %v4042 = vmul.f32 %v4037, 0.17677669
  %v4043 = vsel %vm527, %v4040, -inf
  %4044 = vmax.xlane.f32.xlu0 %v4043
  %v4045 = vpop.xlane.xlu0 %4044
  %v4046 = vsel %vm527, %v4041, -inf
  %4047 = vmax.xlane.f32.xlu0 %v4046
  %v4048 = vpop.xlane.xlu0 %4047
  %v4049 = vsel %vm534, %v4042, -inf
  %4050 = vmax.xlane.f32.xlu0 %v4049
  %v4051 = vpop.xlane.xlu0 %4050
  %v4052 = vsub.f32 %v4040, %v4045
  %v4053 = vsub.f32 %v4041, %v4048
  %v4054 = vsub.f32 %v4042, %v4051
  %v4055 = vmul.f32 %v4052, 1.442695
  %v4056 = vpow.pop %v4055
  %v4057 = vmul.f32 %v4053, 1.442695
  %v4058 = vpow.pop %v4057
  %v4059 = vmul.f32 %v4054, 1.442695
  %v4060 = vpow.pop %v4059
  %v4061 = vsel %vm527, %v4056, 0.0
  %4062 = vadd.xlane.f32.xlu0 %v4061
  %v4063 = vpop.xlane.xlu0 %4062
  %v4064 = vsel %vm527, %v4058, 0.0
  %4065 = vadd.xlane.f32.xlu0 %v4064
  %v4066 = vpop.xlane.xlu0 %4065
  %v4067 = vsel %vm534, %v4060, 0.0
  %4068 = vadd.xlane.f32.xlu0 %v4067
  %v4069 = vpop.xlane.xlu0 %4068
  %v4070 = vrcp.pop %v4063
  %v4071 = vmul.f32 %v4056, %v4070
  %v4072 = vrcp.pop %v4066
  %v4073 = vmul.f32 %v4058, %v4072
  %v4074 = vrcp.pop %v4069
  %v4075 = vmul.f32 %v4060, %v4074
  %v4077 = vsel %vm527, %v4071, 0
  %v4080 = vsel %vm527, %v4073, 0
  %v4083 = vsel %vm527, %v4075, 0
  %v4086 = vsel %vm65, %v3939, 0
  %4088 = vmatprep.subr.mxu0 0.0
  %4089 = vmatpush1.msra.mxu0 %v3929
  %4090 = vmatprep.subr.mxu0 0.0
  %4091 = vmatpush1.msra.mxu0 %v3934
  %4092 = vmatprep.subr.mxu0 0.0
  %4093 = vmatpush1.msra.mxu0 %v4086
  %4094 = vmatprep.subr.mxu0 0.0
  %4095 = vmatpush1.msra.mxu0 0.0
  %4096 = vmatprep.subr.mxu0 0.0
  %4097 = vmatpush1.msra.mxu0 0.0
  %4098 = vmatprep.subr.mxu0 0.0
  %4099 = vmatpush1.msra.mxu0 0.0
  %4100 = vmatprep.subr.mxu0 0.0
  %4101 = vmatpush1.msra.mxu0 0.0
  %4102 = vmatprep.subr.mxu0 0.0
  %4103 = vmatpush1.msra.mxu0 0.0
  %4104 = vmatprep.subr.mxu0 0.0
  %4105 = vmatpush1.msra.mxu0 0.0
  %4106 = vmatprep.subr.mxu0 0.0
  %4107 = vmatpush1.msra.mxu0 0.0
  %4108 = vmatprep.subr.mxu0 0.0
  %4109 = vmatpush1.msra.mxu0 0.0
  %4110 = vmatprep.subr.mxu0 0.0
  %4111 = vmatpush1.msra.mxu0 0.0
  %4112 = vmatprep.subr.mxu0 0.0
  %4113 = vmatpush1.msra.mxu0 0.0
  %4114 = vmatprep.subr.mxu0 0.0
  %4115 = vmatpush1.msra.mxu0 0.0
  %4116 = vmatprep.subr.mxu0 0.0
  %4117 = vmatpush1.msra.mxu0 0.0
  %4118 = vmatprep.subr.mxu0 0.0
  %4119 = vmatpush1.msra.mxu0 0.0
  %4120 = vmatprep.subr.mxu0 0.0
  %4121 = vmatpush1.msra.mxu0 0.0
  %4122 = vmatprep.subr.mxu0 0.0
  %4123 = vmatpush1.msra.mxu0 0.0
  %4124 = vmatprep.subr.mxu0 0.0
  %4125 = vmatpush1.msra.mxu0 0.0
  %4126 = vmatprep.subr.mxu0 0.0
  %4127 = vmatpush1.msra.mxu0 0.0
  %4128 = vmatprep.subr.mxu0 0.0
  %4129 = vmatpush1.msra.mxu0 0.0
  %4130 = vmatprep.subr.mxu0 0.0
  %4131 = vmatpush1.msra.mxu0 0.0
  %4132 = vmatprep.subr.mxu0 0.0
  %4133 = vmatpush1.msra.mxu0 0.0
  %4134 = vmatprep.subr.mxu0 0.0
  %4135 = vmatpush1.msra.mxu0 0.0
  %4136 = vmatprep.subr.mxu0 0.0
  %4137 = vmatpush1.msra.mxu0 0.0
  %4138 = vmatprep.subr.mxu0 0.0
  %4139 = vmatpush1.msra.mxu0 0.0
  %4140 = vmatprep.subr.mxu0 0.0
  %4141 = vmatpush1.msra.mxu0 0.0
  %4142 = vmatprep.subr.mxu0 0.0
  %4143 = vmatpush1.msra.mxu0 0.0
  %4144 = vmatprep.subr.mxu0 0.0
  %4145 = vmatpush1.msra.mxu0 0.0
  %4146 = vmatprep.subr.mxu0 0.0
  %4147 = vmatpush1.msra.mxu0 0.0
  %4148 = vmatprep.subr.mxu0 0.0
  %4149 = vmatpush1.msra.mxu0 0.0
  %4150 = vmatprep.subr.mxu0 0.0
  %4151 = vmatpush1.msra.mxu0 0.0
  %4152 = vmatprep.mubr.f32.mxu0 0.0
  %4153 = vmatmul.mubr.f32.gmra.mrb[0].mxu0 %v4077
  %v4154 = vpop.f32.mrb[0].mxu0
  %v4155 = vadd.f32 0.0, %v4154
  %v4156 = vpop.f32.mrb[0].mxu0
  %4157 = vmatprep.mubr.f32.mxu0 0.0
  %4158 = vmatmul.mubr.f32.gmra.mrb[0].mxu0 %v4080
  %v4159 = vpop.f32.mrb[0].mxu0
  %v4160 = vadd.f32 0.0, %v4159
  %v4161 = vpop.f32.mrb[0].mxu0
  %4162 = vmatprep.mubr.f32.mxu0 0.0
  %4163 = vmatmul.mubr.f32.gmra.mrb[0].mxu0 %v4083
  %v4164 = vpop.f32.mrb[0].mxu0
  %v4165 = vadd.f32 0.0, %v4164
  %v4166 = vpop.f32.mrb[0].mxu0
  %4167 = vdwg.mxu0
  %v4168 = vld [vmem:[%s1199] sm:$0xff]
  %v4169 = vld [vmem:[%s1199 + $0x8] sm:$0xff]
  %v4170 = vld [vmem:[%s1199 + $0x10] sm:$0xff]
  %v4171 = vld [vmem:[%s1199 + $0x18] sm:$0xff]
  %v4173 = vsel %vm425, %v4155, 0
  %v4176 = vsel %vm425, %v4160, 0
  %v4179 = vsel %vm425, %v4165, 0
  %4181 = vmatprep.subr.mxu0 0.0
  %4182 = vmatpush1.msra.mxu0 %v4168
  %4183 = vmatprep.subr.mxu0 0.0
  %4184 = vmatpush1.msra.mxu0 %v4169
  %4185 = vmatprep.subr.mxu0 0.0
  %4186 = vmatpush1.msra.mxu0 %v4170
  %4187 = vmatprep.subr.mxu0 0.0
  %4188 = vmatpush1.msra.mxu0 %v4171
  %4189 = vmatprep.subr.mxu0 0.0
  %4190 = vmatpush1.msra.mxu0 0.0
  %4191 = vmatprep.subr.mxu0 0.0
  %4192 = vmatpush1.msra.mxu0 0.0
  %4193 = vmatprep.subr.mxu0 0.0
  %4194 = vmatpush1.msra.mxu0 0.0
  %4195 = vmatprep.subr.mxu0 0.0
  %4196 = vmatpush1.msra.mxu0 0.0
  %4197 = vmatprep.subr.mxu0 0.0
  %4198 = vmatpush1.msra.mxu0 0.0
  %4199 = vmatprep.subr.mxu0 0.0
  %4200 = vmatpush1.msra.mxu0 0.0
  %4201 = vmatprep.subr.mxu0 0.0
  %4202 = vmatpush1.msra.mxu0 0.0
  %4203 = vmatprep.subr.mxu0 0.0
  %4204 = vmatpush1.msra.mxu0 0.0
  %4205 = vmatprep.subr.mxu0 0.0
  %4206 = vmatpush1.msra.mxu0 0.0
  %4207 = vmatprep.subr.mxu0 0.0
  %4208 = vmatpush1.msra.mxu0 0.0
  %4209 = vmatprep.subr.mxu0 0.0
  %4210 = vmatpush1.msra.mxu0 0.0
  %4211 = vmatprep.subr.mxu0 0.0
  %4212 = vmatpush1.msra.mxu0 0.0
  %4213 = vmatprep.subr.mxu0 0.0
  %4214 = vmatpush1.msra.mxu0 0.0
  %4215 = vmatprep.subr.mxu0 0.0
  %4216 = vmatpush1.msra.mxu0 0.0
  %4217 = vmatprep.subr.mxu0 0.0
  %4218 = vmatpush1.msra.mxu0 0.0
  %4219 = vmatprep.subr.mxu0 0.0
  %4220 = vmatpush1.msra.mxu0 0.0
  %4221 = vmatprep.subr.mxu0 0.0
  %4222 = vmatpush1.msra.mxu0 0.0
  %4223 = vmatprep.subr.mxu0 0.0
  %4224 = vmatpush1.msra.mxu0 0.0
  %4225 = vmatprep.subr.mxu0 0.0
  %4226 = vmatpush1.msra.mxu0 0.0
  %4227 = vmatprep.subr.mxu0 0.0
  %4228 = vmatpush1.msra.mxu0 0.0
  %4229 = vmatprep.subr.mxu0 0.0
  %4230 = vmatpush1.msra.mxu0 0.0
  %4231 = vmatprep.subr.mxu0 0.0
  %4232 = vmatpush1.msra.mxu0 0.0
  %4233 = vmatprep.subr.mxu0 0.0
  %4234 = vmatpush1.msra.mxu0 0.0
  %4235 = vmatprep.subr.mxu0 0.0
  %4236 = vmatpush1.msra.mxu0 0.0
  %4237 = vmatprep.subr.mxu0 0.0
  %4238 = vmatpush1.msra.mxu0 0.0
  %4239 = vmatprep.subr.mxu0 0.0
  %4240 = vmatpush1.msra.mxu0 0.0
  %4241 = vmatprep.subr.mxu0 0.0
  %4242 = vmatpush1.msra.mxu0 0.0
  %4243 = vmatprep.subr.mxu0 0.0
  %4244 = vmatpush1.msra.mxu0 0.0
  %4245 = vmatprep.mubr.f32.mxu0 0.0
  %4246 = vmatmul.mubr.f32.gmra.mrb[0].mxu0 %v4173
  %v4247 = vpop.f32.mrb[0].mxu0
  %v4248 = vadd.f32 0.0, %v4247
  %v4249 = vpop.f32.mrb[0].mxu0
  %4250 = vmatprep.mubr.f32.mxu0 0.0
  %4251 = vmatmul.mubr.f32.gmra.mrb[0].mxu0 %v4176
  %v4252 = vpop.f32.mrb[0].mxu0
  %v4253 = vadd.f32 0.0, %v4252
  %v4254 = vpop.f32.mrb[0].mxu0
  %4255 = vmatprep.mubr.f32.mxu0 0.0
  %4256 = vmatmul.mubr.f32.gmra.mrb[0].mxu0 %v4179
  %v4257 = vpop.f32.mrb[0].mxu0
  %v4258 = vadd.f32 0.0, %v4257
  %v4259 = vpop.f32.mrb[0].mxu0
  %4260 = vdwg.mxu0
  %v4262 = vsel %vm425, %v3616, 0
  %v4265 = vsel %vm425, %v3621, 0
  %v4268 = vsel %vm425, %v3626, 0
  %4270 = vmatprep.subr.mxu0 0.0
  %4271 = vmatpush1.msra.mxu0 %v3629
  %4272 = vmatprep.subr.mxu0 0.0
  %4273 = vmatpush1.msra.mxu0 %v3630
  %4274 = vmatprep.subr.mxu0 0.0
  %4275 = vmatpush1.msra.mxu0 %v3631
  %4276 = vmatprep.subr.mxu0 0.0
  %4277 = vmatpush1.msra.mxu0 %v3632
  %4278 = vmatprep.subr.mxu0 0.0
  %4279 = vmatpush1.msra.mxu0 0.0
  %4280 = vmatprep.subr.mxu0 0.0
  %4281 = vmatpush1.msra.mxu0 0.0
  %4282 = vmatprep.subr.mxu0 0.0
  %4283 = vmatpush1.msra.mxu0 0.0
  %4284 = vmatprep.subr.mxu0 0.0
  %4285 = vmatpush1.msra.mxu0 0.0
  %4286 = vmatprep.subr.mxu0 0.0
  %4287 = vmatpush1.msra.mxu0 0.0
  %4288 = vmatprep.subr.mxu0 0.0
  %4289 = vmatpush1.msra.mxu0 0.0
  %4290 = vmatprep.subr.mxu0 0.0
  %4291 = vmatpush1.msra.mxu0 0.0
  %4292 = vmatprep.subr.mxu0 0.0
  %4293 = vmatpush1.msra.mxu0 0.0
  %4294 = vmatprep.subr.mxu0 0.0
  %4295 = vmatpush1.msra.mxu0 0.0
  %4296 = vmatprep.subr.mxu0 0.0
  %4297 = vmatpush1.msra.mxu0 0.0
  %4298 = vmatprep.subr.mxu0 0.0
  %4299 = vmatpush1.msra.mxu0 0.0
  %4300 = vmatprep.subr.mxu0 0.0
  %4301 = vmatpush1.msra.mxu0 0.0
  %4302 = vmatprep.subr.mxu0 0.0
  %4303 = vmatpush1.msra.mxu0 0.0
  %4304 = vmatprep.subr.mxu0 0.0
  %4305 = vmatpush1.msra.mxu0 0.0
  %4306 = vmatprep.subr.mxu0 0.0
  %4307 = vmatpush1.msra.mxu0 0.0
  %4308 = vmatprep.subr.mxu0 0.0
  %4309 = vmatpush1.msra.mxu0 0.0
  %4310 = vmatprep.subr.mxu0 0.0
  %4311 = vmatpush1.msra.mxu0 0.0
  %4312 = vmatprep.subr.mxu0 0.0
  %4313 = vmatpush1.msra.mxu0 0.0
  %4314 = vmatprep.subr.mxu0 0.0
  %4315 = vmatpush1.msra.mxu0 0.0
  %4316 = vmatprep.subr.mxu0 0.0
  %4317 = vmatpush1.msra.mxu0 0.0
  %4318 = vmatprep.subr.mxu0 0.0
  %4319 = vmatpush1.msra.mxu0 0.0
  %4320 = vmatprep.subr.mxu0 0.0
  %4321 = vmatpush1.msra.mxu0 0.0
  %4322 = vmatprep.subr.mxu0 0.0
  %4323 = vmatpush1.msra.mxu0 0.0
  %4324 = vmatprep.subr.mxu0 0.0
  %4325 = vmatpush1.msra.mxu0 0.0
  %4326 = vmatprep.subr.mxu0 0.0
  %4327 = vmatpush1.msra.mxu0 0.0
  %4328 = vmatprep.subr.mxu0 0.0
  %4329 = vmatpush1.msra.mxu0 0.0
  %4330 = vmatprep.subr.mxu0 0.0
  %4331 = vmatpush1.msra.mxu0 0.0
  %4332 = vmatprep.subr.mxu0 0.0
  %4333 = vmatpush1.msra.mxu0 0.0
  %4334 = vmatprep.mubr.f32.mxu0 0.0
  %4335 = vmatmul.mubr.f32.gmra.mrb[0].mxu0 %v4262
  %v4336 = vpop.f32.mrb[0].mxu0
  %v4337 = vadd.f32 %v4248, %v4336
  %v4338 = vpop.f32.mrb[0].mxu0
  %4339 = vmatprep.mubr.f32.mxu0 0.0
  %4340 = vmatmul.mubr.f32.gmra.mrb[0].mxu0 %v4265
  %v4341 = vpop.f32.mrb[0].mxu0
  %v4342 = vadd.f32 %v4253, %v4341
  %v4343 = vpop.f32.mrb[0].mxu0
  %4344 = vmatprep.mubr.f32.mxu0 0.0
  %4345 = vmatmul.mubr.f32.gmra.mrb[0].mxu0 %v4268
  %v4346 = vpop.f32.mrb[0].mxu0
  %v4347 = vadd.f32 %v4258, %v4346
  %v4348 = vpop.f32.mrb[0].mxu0
  %4349 = vdwg.mxu0
  %v4350 = vld [vmem:[%s1382] sm:$0xff]
  %v4351 = vld [vmem:[%s1382 + $0x8] sm:$0xff]
  %v4352 = vld [vmem:[%s1382 + $0x10] sm:$0xff]
  %v4353 = vld [vmem:[%s1382 + $0x18] sm:$0xff]
  %v4354 = vld [vmem:[%s1382 + $0x20] sm:$0xff]
  %v4355 = vld [vmem:[%s1382 + $0x28] sm:$0xff]
  %v4356 = vld [vmem:[%s1382 + $0x30] sm:$0xff]
  %v4357 = vld [vmem:[%s1382 + $0x38] sm:$0xff]
  %v4358 = vld [vmem:[%s1382 + $0x40] sm:$0xff]
  %v4359 = vld [vmem:[%s1382 + $0x48] sm:$0xff]
  %v4360 = vld [vmem:[%s1382 + $0x50] sm:$0xff]
  %v4361 = vld [vmem:[%s1382 + $0x58] sm:$0xff]
  %v4362 = vld [vmem:[%s1382 + $0x60] sm:$0xff]
  %v4363 = vld [vmem:[%s1382 + $0x68] sm:$0xff]
  %v4364 = vld [vmem:[%s1382 + $0x70] sm:$0xff]
  %v4365 = vld [vmem:[%s1382 + $0x78] sm:$0xff]
  %v4366 = vld [vmem:[%s1399] sm:$0x1]
  %v4368 = vlaneseq
  %v4369 = vshrl.u32 %v4368, 7
  %v4370 = vsub.s32 0, %v4369
  %v4371 = vrot.slane %v4366, %v4370
  %4373 = vmatprep.subr.mxu0 0.0
  %4374 = vmatpush1.msra.mxu0 %v4350
  %4375 = vmatprep.subr.mxu0 0.0
  %4376 = vmatpush1.msra.mxu0 %v4351
  %4377 = vmatprep.subr.mxu0 0.0
  %4378 = vmatpush1.msra.mxu0 %v4352
  %4379 = vmatprep.subr.mxu0 0.0
  %4380 = vmatpush1.msra.mxu0 %v4353
  %4381 = vmatprep.subr.mxu0 0.0
  %4382 = vmatpush1.msra.mxu0 %v4354
  %4383 = vmatprep.subr.mxu0 0.0
  %4384 = vmatpush1.msra.mxu0 %v4355
  %4385 = vmatprep.subr.mxu0 0.0
  %4386 = vmatpush1.msra.mxu0 %v4356
  %4387 = vmatprep.subr.mxu0 0.0
  %4388 = vmatpush1.msra.mxu0 %v4357
  %4389 = vmatprep.subr.mxu0 0.0
  %4390 = vmatpush1.msra.mxu0 %v4358
  %4391 = vmatprep.subr.mxu0 0.0
  %4392 = vmatpush1.msra.mxu0 %v4359
  %4393 = vmatprep.subr.mxu0 0.0
  %4394 = vmatpush1.msra.mxu0 %v4360
  %4395 = vmatprep.subr.mxu0 0.0
  %4396 = vmatpush1.msra.mxu0 %v4361
  %4397 = vmatprep.subr.mxu0 0.0
  %4398 = vmatpush1.msra.mxu0 %v4362
  %4399 = vmatprep.subr.mxu0 0.0
  %4400 = vmatpush1.msra.mxu0 %v4363
  %4401 = vmatprep.subr.mxu0 0.0
  %4402 = vmatpush1.msra.mxu0 %v4364
  %4403 = vmatprep.subr.mxu0 0.0
  %4404 = vmatpush1.msra.mxu0 %v4365
  %4405 = vmatprep.subr.mxu0 0.0
  %4406 = vmatpush1.msra.mxu0 0.0
  %4407 = vmatprep.subr.mxu0 0.0
  %4408 = vmatpush1.msra.mxu0 0.0
  %4409 = vmatprep.subr.mxu0 0.0
  %4410 = vmatpush1.msra.mxu0 0.0
  %4411 = vmatprep.subr.mxu0 0.0
  %4412 = vmatpush1.msra.mxu0 0.0
  %4413 = vmatprep.subr.mxu0 0.0
  %4414 = vmatpush1.msra.mxu0 0.0
  %4415 = vmatprep.subr.mxu0 0.0
  %4416 = vmatpush1.msra.mxu0 0.0
  %4417 = vmatprep.subr.mxu0 0.0
  %4418 = vmatpush1.msra.mxu0 0.0
  %4419 = vmatprep.subr.mxu0 0.0
  %4420 = vmatpush1.msra.mxu0 0.0
  %4421 = vmatprep.subr.mxu0 0.0
  %4422 = vmatpush1.msra.mxu0 0.0
  %4423 = vmatprep.subr.mxu0 0.0
  %4424 = vmatpush1.msra.mxu0 0.0
  %4425 = vmatprep.subr.mxu0 0.0
  %4426 = vmatpush1.msra.mxu0 0.0
  %4427 = vmatprep.subr.mxu0 0.0
  %4428 = vmatpush1.msra.mxu0 0.0
  %4429 = vmatprep.subr.mxu0 0.0
  %4430 = vmatpush1.msra.mxu0 0.0
  %4431 = vmatprep.subr.mxu0 0.0
  %4432 = vmatpush1.msra.mxu0 0.0
  %4433 = vmatprep.subr.mxu0 0.0
  %4434 = vmatpush1.msra.mxu0 0.0
  %4435 = vmatprep.subr.mxu0 0.0
  %4436 = vmatpush1.msra.mxu0 0.0
  %4437 = vmatprep.mubr.f32.mxu0 0.0
  %4438 = vmatmul.mubr.f32.gmra.mrb[0].mxu0 %v3091
  %v4439 = vpop.f32.mrb[0].mxu0
  %v4440 = vadd.f32 %v4371, %v4439
  %v4441 = vpop.f32.mrb[0].mxu0
  %4442 = vmatprep.mubr.f32.mxu0 0.0
  %4443 = vmatmul.mubr.f32.gmra.mrb[0].mxu0 %v3092
  %v4444 = vpop.f32.mrb[0].mxu0
  %v4445 = vadd.f32 %v4371, %v4444
  %v4446 = vpop.f32.mrb[0].mxu0
  %4447 = vmatprep.mubr.f32.mxu0 0.0
  %4448 = vmatmul.mubr.f32.gmra.mrb[0].mxu0 %v3093
  %v4449 = vpop.f32.mrb[0].mxu0
  %v4450 = vadd.f32 %v4371, %v4449
  %v4451 = vpop.f32.mrb[0].mxu0
  %4452 = vdwg.mxu0
  %v4453 = vld [vmem:[%s1487] sm:$0xff]
  %v4454 = vld [vmem:[%s1487 + $0x8] sm:$0xff]
  %v4455 = vld [vmem:[%s1487 + $0x10] sm:$0xff]
  %v4456 = vld [vmem:[%s1487 + $0x18] sm:$0xff]
  %v4457 = vld [vmem:[%s1487 + $0x20] sm:$0xff]
  %v4458 = vld [vmem:[%s1487 + $0x28] sm:$0xff]
  %v4459 = vld [vmem:[%s1487 + $0x30] sm:$0xff]
  %v4460 = vld [vmem:[%s1487 + $0x38] sm:$0xff]
  %v4461 = vld [vmem:[%s1487 + $0x40] sm:$0xff]
  %v4462 = vld [vmem:[%s1487 + $0x48] sm:$0xff]
  %v4463 = vld [vmem:[%s1487 + $0x50] sm:$0xff]
  %v4464 = vld [vmem:[%s1487 + $0x58] sm:$0xff]
  %v4465 = vld [vmem:[%s1487 + $0x60] sm:$0xff]
  %v4466 = vld [vmem:[%s1487 + $0x68] sm:$0xff]
  %v4467 = vld [vmem:[%s1487 + $0x70] sm:$0xff]
  %v4468 = vld [vmem:[%s1487 + $0x78] sm:$0xff]
  %v4469 = vld [vmem:[%s1504] sm:$0x1]
  %v4471 = vlaneseq
  %v4472 = vshrl.u32 %v4471, 7
  %v4473 = vsub.s32 0, %v4472
  %v4474 = vrot.slane %v4469, %v4473
  %4476 = vmatprep.subr.mxu0 0.0
  %4477 = vmatpush1.msra.mxu0 %v4453
  %4478 = vmatprep.subr.mxu0 0.0
  %4479 = vmatpush1.msra.mxu0 %v4454
  %4480 = vmatprep.subr.mxu0 0.0
  %4481 = vmatpush1.msra.mxu0 %v4455
  %4482 = vmatprep.subr.mxu0 0.0
  %4483 = vmatpush1.msra.mxu0 %v4456
  %4484 = vmatprep.subr.mxu0 0.0
  %4485 = vmatpush1.msra.mxu0 %v4457
  %4486 = vmatprep.subr.mxu0 0.0
  %4487 = vmatpush1.msra.mxu0 %v4458
  %4488 = vmatprep.subr.mxu0 0.0
  %4489 = vmatpush1.msra.mxu0 %v4459
  %4490 = vmatprep.subr.mxu0 0.0
  %4491 = vmatpush1.msra.mxu0 %v4460
  %4492 = vmatprep.subr.mxu0 0.0
  %4493 = vmatpush1.msra.mxu0 %v4461
  %4494 = vmatprep.subr.mxu0 0.0
  %4495 = vmatpush1.msra.mxu0 %v4462
  %4496 = vmatprep.subr.mxu0 0.0
  %4497 = vmatpush1.msra.mxu0 %v4463
  %4498 = vmatprep.subr.mxu0 0.0
  %4499 = vmatpush1.msra.mxu0 %v4464
  %4500 = vmatprep.subr.mxu0 0.0
  %4501 = vmatpush1.msra.mxu0 %v4465
  %4502 = vmatprep.subr.mxu0 0.0
  %4503 = vmatpush1.msra.mxu0 %v4466
  %4504 = vmatprep.subr.mxu0 0.0
  %4505 = vmatpush1.msra.mxu0 %v4467
  %4506 = vmatprep.subr.mxu0 0.0
  %4507 = vmatpush1.msra.mxu0 %v4468
  %4508 = vmatprep.subr.mxu0 0.0
  %4509 = vmatpush1.msra.mxu0 0.0
  %4510 = vmatprep.subr.mxu0 0.0
  %4511 = vmatpush1.msra.mxu0 0.0
  %4512 = vmatprep.subr.mxu0 0.0
  %4513 = vmatpush1.msra.mxu0 0.0
  %4514 = vmatprep.subr.mxu0 0.0
  %4515 = vmatpush1.msra.mxu0 0.0
  %4516 = vmatprep.subr.mxu0 0.0
  %4517 = vmatpush1.msra.mxu0 0.0
  %4518 = vmatprep.subr.mxu0 0.0
  %4519 = vmatpush1.msra.mxu0 0.0
  %4520 = vmatprep.subr.mxu0 0.0
  %4521 = vmatpush1.msra.mxu0 0.0
  %4522 = vmatprep.subr.mxu0 0.0
  %4523 = vmatpush1.msra.mxu0 0.0
  %4524 = vmatprep.subr.mxu0 0.0
  %4525 = vmatpush1.msra.mxu0 0.0
  %4526 = vmatprep.subr.mxu0 0.0
  %4527 = vmatpush1.msra.mxu0 0.0
  %4528 = vmatprep.subr.mxu0 0.0
  %4529 = vmatpush1.msra.mxu0 0.0
  %4530 = vmatprep.subr.mxu0 0.0
  %4531 = vmatpush1.msra.mxu0 0.0
  %4532 = vmatprep.subr.mxu0 0.0
  %4533 = vmatpush1.msra.mxu0 0.0
  %4534 = vmatprep.subr.mxu0 0.0
  %4535 = vmatpush1.msra.mxu0 0.0
  %4536 = vmatprep.subr.mxu0 0.0
  %4537 = vmatpush1.msra.mxu0 0.0
  %4538 = vmatprep.subr.mxu0 0.0
  %4539 = vmatpush1.msra.mxu0 0.0
  %4540 = vmatprep.mubr.f32.mxu0 0.0
  %4541 = vmatmul.mubr.f32.gmra.mrb[0].mxu0 %v3091
  %v4542 = vpop.f32.mrb[0].mxu0
  %v4543 = vadd.f32 %v4474, %v4542
  %v4544 = vpop.f32.mrb[0].mxu0
  %4545 = vmatprep.mubr.f32.mxu0 0.0
  %4546 = vmatmul.mubr.f32.gmra.mrb[0].mxu0 %v3092
  %v4547 = vpop.f32.mrb[0].mxu0
  %v4548 = vadd.f32 %v4474, %v4547
  %v4549 = vpop.f32.mrb[0].mxu0
  %4550 = vmatprep.mubr.f32.mxu0 0.0
  %4551 = vmatmul.mubr.f32.gmra.mrb[0].mxu0 %v3093
  %v4552 = vpop.f32.mrb[0].mxu0
  %v4553 = vadd.f32 %v4474, %v4552
  %v4554 = vpop.f32.mrb[0].mxu0
  %4555 = vdwg.mxu0
  %v4556 = vld [vmem:[%s1592] sm:$0xff]
  %v4557 = vld [vmem:[%s1592 + $0x8] sm:$0xff]
  %v4558 = vld [vmem:[%s1592 + $0x10] sm:$0xff]
  %v4559 = vld [vmem:[%s1592 + $0x18] sm:$0xff]
  %v4560 = vld [vmem:[%s1592 + $0x20] sm:$0xff]
  %v4561 = vld [vmem:[%s1592 + $0x28] sm:$0xff]
  %v4562 = vld [vmem:[%s1592 + $0x30] sm:$0xff]
  %v4563 = vld [vmem:[%s1592 + $0x38] sm:$0xff]
  %v4564 = vld [vmem:[%s1592 + $0x40] sm:$0xff]
  %v4565 = vld [vmem:[%s1592 + $0x48] sm:$0xff]
  %v4566 = vld [vmem:[%s1592 + $0x50] sm:$0xff]
  %v4567 = vld [vmem:[%s1592 + $0x58] sm:$0xff]
  %v4568 = vld [vmem:[%s1592 + $0x60] sm:$0xff]
  %v4569 = vld [vmem:[%s1592 + $0x68] sm:$0xff]
  %v4570 = vld [vmem:[%s1592 + $0x70] sm:$0xff]
  %v4571 = vld [vmem:[%s1592 + $0x78] sm:$0xff]
  %v4572 = vld [vmem:[%s1609] sm:$0x1]
  %v4574 = vlaneseq
  %v4575 = vshrl.u32 %v4574, 7
  %v4576 = vsub.s32 0, %v4575
  %v4577 = vrot.slane %v4572, %v4576
  %4579 = vmatprep.subr.mxu0 0.0
  %4580 = vmatpush1.msra.mxu0 %v4556
  %4581 = vmatprep.subr.mxu0 0.0
  %4582 = vmatpush1.msra.mxu0 %v4557
  %4583 = vmatprep.subr.mxu0 0.0
  %4584 = vmatpush1.msra.mxu0 %v4558
  %4585 = vmatprep.subr.mxu0 0.0
  %4586 = vmatpush1.msra.mxu0 %v4559
  %4587 = vmatprep.subr.mxu0 0.0
  %4588 = vmatpush1.msra.mxu0 %v4560
  %4589 = vmatprep.subr.mxu0 0.0
  %4590 = vmatpush1.msra.mxu0 %v4561
  %4591 = vmatprep.subr.mxu0 0.0
  %4592 = vmatpush1.msra.mxu0 %v4562
  %4593 = vmatprep.subr.mxu0 0.0
  %4594 = vmatpush1.msra.mxu0 %v4563
  %4595 = vmatprep.subr.mxu0 0.0
  %4596 = vmatpush1.msra.mxu0 %v4564
  %4597 = vmatprep.subr.mxu0 0.0
  %4598 = vmatpush1.msra.mxu0 %v4565
  %4599 = vmatprep.subr.mxu0 0.0
  %4600 = vmatpush1.msra.mxu0 %v4566
  %4601 = vmatprep.subr.mxu0 0.0
  %4602 = vmatpush1.msra.mxu0 %v4567
  %4603 = vmatprep.subr.mxu0 0.0
  %4604 = vmatpush1.msra.mxu0 %v4568
  %4605 = vmatprep.subr.mxu0 0.0
  %4606 = vmatpush1.msra.mxu0 %v4569
  %4607 = vmatprep.subr.mxu0 0.0
  %4608 = vmatpush1.msra.mxu0 %v4570
  %4609 = vmatprep.subr.mxu0 0.0
  %4610 = vmatpush1.msra.mxu0 %v4571
  %4611 = vmatprep.subr.mxu0 0.0
  %4612 = vmatpush1.msra.mxu0 0.0
  %4613 = vmatprep.subr.mxu0 0.0
  %4614 = vmatpush1.msra.mxu0 0.0
  %4615 = vmatprep.subr.mxu0 0.0
  %4616 = vmatpush1.msra.mxu0 0.0
  %4617 = vmatprep.subr.mxu0 0.0
  %4618 = vmatpush1.msra.mxu0 0.0
  %4619 = vmatprep.subr.mxu0 0.0
  %4620 = vmatpush1.msra.mxu0 0.0
  %4621 = vmatprep.subr.mxu0 0.0
  %4622 = vmatpush1.msra.mxu0 0.0
  %4623 = vmatprep.subr.mxu0 0.0
  %4624 = vmatpush1.msra.mxu0 0.0
  %4625 = vmatprep.subr.mxu0 0.0
  %4626 = vmatpush1.msra.mxu0 0.0
  %4627 = vmatprep.subr.mxu0 0.0
  %4628 = vmatpush1.msra.mxu0 0.0
  %4629 = vmatprep.subr.mxu0 0.0
  %4630 = vmatpush1.msra.mxu0 0.0
  %4631 = vmatprep.subr.mxu0 0.0
  %4632 = vmatpush1.msra.mxu0 0.0
  %4633 = vmatprep.subr.mxu0 0.0
  %4634 = vmatpush1.msra.mxu0 0.0
  %4635 = vmatprep.subr.mxu0 0.0
  %4636 = vmatpush1.msra.mxu0 0.0
  %4637 = vmatprep.subr.mxu0 0.0
  %4638 = vmatpush1.msra.mxu0 0.0
  %4639 = vmatprep.subr.mxu0 0.0
  %4640 = vmatpush1.msra.mxu0 0.0
  %4641 = vmatprep.subr.mxu0 0.0
  %4642 = vmatpush1.msra.mxu0 0.0
  %4643 = vmatprep.mubr.f32.mxu0 0.0
  %4644 = vmatmul.mubr.f32.gmra.mrb[0].mxu0 %v3091
  %v4645 = vpop.f32.mrb[0].mxu0
  %v4646 = vadd.f32 %v4577, %v4645
  %v4647 = vpop.f32.mrb[0].mxu0
  %4648 = vmatprep.mubr.f32.mxu0 0.0
  %4649 = vmatmul.mubr.f32.gmra.mrb[0].mxu0 %v3092
  %v4650 = vpop.f32.mrb[0].mxu0
  %v4651 = vadd.f32 %v4577, %v4650
  %v4652 = vpop.f32.mrb[0].mxu0
  %4653 = vmatprep.mubr.f32.mxu0 0.0
  %4654 = vmatmul.mubr.f32.gmra.mrb[0].mxu0 %v3093
  %v4655 = vpop.f32.mrb[0].mxu0
  %v4656 = vadd.f32 %v4577, %v4655
  %v4657 = vpop.f32.mrb[0].mxu0
  %4658 = vdwg.mxu0
  %v4660 = vsel %vm425, %v4440, 0
  %v4663 = vsel %vm425, %v4445, 0
  %v4666 = vsel %vm425, %v4450, 0
  %v4669 = vsel %vm425, %v4543, 0
  %v4672 = vsel %vm425, %v4548, 0
  %v4675 = vsel %vm425, %v4553, 0
  %4677 = vmatprep.subr.mxu0 0.0
  %4678 = vmatpush1.xpose.msra.mxu0 %v4669
  %4679 = vmatprep.subr.mxu0 0.0
  %4680 = vmatpush1.xpose.msra.mxu0 %v4672
  %4681 = vmatprep.subr.mxu0 0.0
  %4682 = vmatpush1.xpose.msra.mxu0 %v4675
  %4683 = vmatprep.subr.mxu0 0.0
  %4684 = vmatpush1.xpose.msra.mxu0 0.0
  %4685 = vmatprep.subr.mxu0 0.0
  %4686 = vmatpush1.xpose.msra.mxu0 0.0
  %4687 = vmatprep.subr.mxu0 0.0
  %4688 = vmatpush1.xpose.msra.mxu0 0.0
  %4689 = vmatprep.subr.mxu0 0.0
  %4690 = vmatpush1.xpose.msra.mxu0 0.0
  %4691 = vmatprep.subr.mxu0 0.0
  %4692 = vmatpush1.xpose.msra.mxu0 0.0
  %4693 = vmatprep.subr.mxu0 0.0
  %4694 = vmatpush1.xpose.msra.mxu0 0.0
  %4695 = vmatprep.subr.mxu0 0.0
  %4696 = vmatpush1.xpose.msra.mxu0 0.0
  %4697 = vmatprep.subr.mxu0 0.0
  %4698 = vmatpush1.xpose.msra.mxu0 0.0
  %4699 = vmatprep.subr.mxu0 0.0
  %4700 = vmatpush1.xpose.msra.mxu0 0.0
  %4701 = vmatprep.subr.mxu0 0.0
  %4702 = vmatpush1.xpose.msra.mxu0 0.0
  %4703 = vmatprep.subr.mxu0 0.0
  %4704 = vmatpush1.xpose.msra.mxu0 0.0
  %4705 = vmatprep.subr.mxu0 0.0
  %4706 = vmatpush1.xpose.msra.mxu0 0.0
  %4707 = vmatprep.subr.mxu0 0.0
  %4708 = vmatpush1.xpose.msra.mxu0 0.0
  %4709 = vmatprep.subr.mxu0 0.0
  %4710 = vmatpush1.xpose.msra.mxu0 0.0
  %4711 = vmatprep.subr.mxu0 0.0
  %4712 = vmatpush1.xpose.msra.mxu0 0.0
  %4713 = vmatprep.subr.mxu0 0.0
  %4714 = vmatpush1.xpose.msra.mxu0 0.0
  %4715 = vmatprep.subr.mxu0 0.0
  %4716 = vmatpush1.xpose.msra.mxu0 0.0
  %4717 = vmatprep.subr.mxu0 0.0
  %4718 = vmatpush1.xpose.msra.mxu0 0.0
  %4719 = vmatprep.subr.mxu0 0.0
  %4720 = vmatpush1.xpose.msra.mxu0 0.0
  %4721 = vmatprep.subr.mxu0 0.0
  %4722 = vmatpush1.xpose.msra.mxu0 0.0
  %4723 = vmatprep.subr.mxu0 0.0
  %4724 = vmatpush1.xpose.msra.mxu0 0.0
  %4725 = vmatprep.subr.mxu0 0.0
  %4726 = vmatpush1.xpose.msra.mxu0 0.0
  %4727 = vmatprep.subr.mxu0 0.0
  %4728 = vmatpush1.xpose.msra.mxu0 0.0
  %4729 = vmatprep.subr.mxu0 0.0
  %4730 = vmatpush1.xpose.msra.mxu0 0.0
  %4731 = vmatprep.subr.mxu0 0.0
  %4732 = vmatpush1.xpose.msra.mxu0 0.0
  %4733 = vmatprep.subr.mxu0 0.0
  %4734 = vmatpush1.xpose.msra.mxu0 0.0
  %4735 = vmatprep.subr.mxu0 0.0
  %4736 = vmatpush1.xpose.msra.mxu0 0.0
  %4737 = vmatprep.subr.mxu0 0.0
  %4738 = vmatpush1.xpose.msra.mxu0 0.0
  %4739 = vmatprep.subr.mxu0 0.0
  %4740 = vmatpush1.xpose.msra.mxu0 0.0
  %4741 = vmatprep.mubr.f32.mxu0 0.0
  %4742 = vmatmul.mubr.f32.gmra.mrb[0].mxu0 %v4660
  %v4743 = vpop.f32.mrb[0].mxu0
  %v4744 = vadd.f32 0.0, %v4743
  %v4745 = vpop.f32.mrb[0].mxu0
  %4746 = vmatprep.mubr.f32.mxu0 0.0
  %4747 = vmatmul.mubr.f32.gmra.mrb[0].mxu0 %v4663
  %v4748 = vpop.f32.mrb[0].mxu0
  %v4749 = vadd.f32 0.0, %v4748
  %v4750 = vpop.f32.mrb[0].mxu0
  %4751 = vmatprep.mubr.f32.mxu0 0.0
  %4752 = vmatmul.mubr.f32.gmra.mrb[0].mxu0 %v4666
  %v4753 = vpop.f32.mrb[0].mxu0
  %v4754 = vadd.f32 0.0, %v4753
  %v4755 = vpop.f32.mrb[0].mxu0
  %4756 = vdwg.mxu0
  %v4757 = vmul.f32 %v4744, 0.17677669
  %v4758 = vmul.f32 %v4749, 0.17677669
  %v4759 = vmul.f32 %v4754, 0.17677669
  %v4760 = vsel %vm527, %v4757, -inf
  %4761 = vmax.xlane.f32.xlu0 %v4760
  %v4762 = vpop.xlane.xlu0 %4761
  %v4763 = vsel %vm527, %v4758, -inf
  %4764 = vmax.xlane.f32.xlu0 %v4763
  %v4765 = vpop.xlane.xlu0 %4764
  %v4766 = vsel %vm534, %v4759, -inf
  %4767 = vmax.xlane.f32.xlu0 %v4766
  %v4768 = vpop.xlane.xlu0 %4767
  %v4769 = vsub.f32 %v4757, %v4762
  %v4770 = vsub.f32 %v4758, %v4765
  %v4771 = vsub.f32 %v4759, %v4768
  %v4772 = vmul.f32 %v4769, 1.442695
  %v4773 = vpow.pop %v4772
  %v4774 = vmul.f32 %v4770, 1.442695
  %v4775 = vpow.pop %v4774
  %v4776 = vmul.f32 %v4771, 1.442695
  %v4777 = vpow.pop %v4776
  %v4778 = vsel %vm527, %v4773, 0.0
  %4779 = vadd.xlane.f32.xlu0 %v4778
  %v4780 = vpop.xlane.xlu0 %4779
  %v4781 = vsel %vm527, %v4775, 0.0
  %4782 = vadd.xlane.f32.xlu0 %v4781
  %v4783 = vpop.xlane.xlu0 %4782
  %v4784 = vsel %vm534, %v4777, 0.0
  %4785 = vadd.xlane.f32.xlu0 %v4784
  %v4786 = vpop.xlane.xlu0 %4785
  %v4787 = vrcp.pop %v4780
  %v4788 = vmul.f32 %v4773, %v4787
  %v4789 = vrcp.pop %v4783
  %v4790 = vmul.f32 %v4775, %v4789
  %v4791 = vrcp.pop %v4786
  %v4792 = vmul.f32 %v4777, %v4791
  %v4794 = vsel %vm527, %v4788, 0
  %v4797 = vsel %vm527, %v4790, 0
  %v4800 = vsel %vm527, %v4792, 0
  %v4803 = vsel %vm65, %v4656, 0
  %4805 = vmatprep.subr.mxu0 0.0
  %4806 = vmatpush1.msra.mxu0 %v4646
  %4807 = vmatprep.subr.mxu0 0.0
  %4808 = vmatpush1.msra.mxu0 %v4651
  %4809 = vmatprep.subr.mxu0 0.0
  %4810 = vmatpush1.msra.mxu0 %v4803
  %4811 = vmatprep.subr.mxu0 0.0
  %4812 = vmatpush1.msra.mxu0 0.0
  %4813 = vmatprep.subr.mxu0 0.0
  %4814 = vmatpush1.msra.mxu0 0.0
  %4815 = vmatprep.subr.mxu0 0.0
  %4816 = vmatpush1.msra.mxu0 0.0
  %4817 = vmatprep.subr.mxu0 0.0
  %4818 = vmatpush1.msra.mxu0 0.0
  %4819 = vmatprep.subr.mxu0 0.0
  %4820 = vmatpush1.msra.mxu0 0.0
  %4821 = vmatprep.subr.mxu0 0.0
  %4822 = vmatpush1.msra.mxu0 0.0
  %4823 = vmatprep.subr.mxu0 0.0
  %4824 = vmatpush1.msra.mxu0 0.0
  %4825 = vmatprep.subr.mxu0 0.0
  %4826 = vmatpush1.msra.mxu0 0.0
  %4827 = vmatprep.subr.mxu0 0.0
  %4828 = vmatpush1.msra.mxu0 0.0
  %4829 = vmatprep.subr.mxu0 0.0
  %4830 = vmatpush1.msra.mxu0 0.0
  %4831 = vmatprep.subr.mxu0 0.0
  %4832 = vmatpush1.msra.mxu0 0.0
  %4833 = vmatprep.subr.mxu0 0.0
  %4834 = vmatpush1.msra.mxu0 0.0
  %4835 = vmatprep.subr.mxu0 0.0
  %4836 = vmatpush1.msra.mxu0 0.0
  %4837 = vmatprep.subr.mxu0 0.0
  %4838 = vmatpush1.msra.mxu0 0.0
  %4839 = vmatprep.subr.mxu0 0.0
  %4840 = vmatpush1.msra.mxu0 0.0
  %4841 = vmatprep.subr.mxu0 0.0
  %4842 = vmatpush1.msra.mxu0 0.0
  %4843 = vmatprep.subr.mxu0 0.0
  %4844 = vmatpush1.msra.mxu0 0.0
  %4845 = vmatprep.subr.mxu0 0.0
  %4846 = vmatpush1.msra.mxu0 0.0
  %4847 = vmatprep.subr.mxu0 0.0
  %4848 = vmatpush1.msra.mxu0 0.0
  %4849 = vmatprep.subr.mxu0 0.0
  %4850 = vmatpush1.msra.mxu0 0.0
  %4851 = vmatprep.subr.mxu0 0.0
  %4852 = vmatpush1.msra.mxu0 0.0
  %4853 = vmatprep.subr.mxu0 0.0
  %4854 = vmatpush1.msra.mxu0 0.0
  %4855 = vmatprep.subr.mxu0 0.0
  %4856 = vmatpush1.msra.mxu0 0.0
  %4857 = vmatprep.subr.mxu0 0.0
  %4858 = vmatpush1.msra.mxu0 0.0
  %4859 = vmatprep.subr.mxu0 0.0
  %4860 = vmatpush1.msra.mxu0 0.0
  %4861 = vmatprep.subr.mxu0 0.0
  %4862 = vmatpush1.msra.mxu0 0.0
  %4863 = vmatprep.subr.mxu0 0.0
  %4864 = vmatpush1.msra.mxu0 0.0
  %4865 = vmatprep.subr.mxu0 0.0
  %4866 = vmatpush1.msra.mxu0 0.0
  %4867 = vmatprep.subr.mxu0 0.0
  %4868 = vmatpush1.msra.mxu0 0.0
  %4869 = vmatprep.mubr.f32.mxu0 0.0
  %4870 = vmatmul.mubr.f32.gmra.mrb[0].mxu0 %v4794
  %v4871 = vpop.f32.mrb[0].mxu0
  %v4872 = vadd.f32 0.0, %v4871
  %v4873 = vpop.f32.mrb[0].mxu0
  %4874 = vmatprep.mubr.f32.mxu0 0.0
  %4875 = vmatmul.mubr.f32.gmra.mrb[0].mxu0 %v4797
  %v4876 = vpop.f32.mrb[0].mxu0
  %v4877 = vadd.f32 0.0, %v4876
  %v4878 = vpop.f32.mrb[0].mxu0
  %4879 = vmatprep.mubr.f32.mxu0 0.0
  %4880 = vmatmul.mubr.f32.gmra.mrb[0].mxu0 %v4800
  %v4881 = vpop.f32.mrb[0].mxu0
  %v4882 = vadd.f32 0.0, %v4881
  %v4883 = vpop.f32.mrb[0].mxu0
  %4884 = vdwg.mxu0
  %v4885 = vld [vmem:[%s1923] sm:$0xff]
  %v4886 = vld [vmem:[%s1923 + $0x8] sm:$0xff]
  %v4887 = vld [vmem:[%s1923 + $0x10] sm:$0xff]
  %v4888 = vld [vmem:[%s1923 + $0x18] sm:$0xff]
  %v4890 = vsel %vm425, %v4872, 0
  %v4893 = vsel %vm425, %v4877, 0
  %v4896 = vsel %vm425, %v4882, 0
  %4898 = vmatprep.subr.mxu0 0.0
  %4899 = vmatpush1.msra.mxu0 %v4885
  %4900 = vmatprep.subr.mxu0 0.0
  %4901 = vmatpush1.msra.mxu0 %v4886
  %4902 = vmatprep.subr.mxu0 0.0
  %4903 = vmatpush1.msra.mxu0 %v4887
  %4904 = vmatprep.subr.mxu0 0.0
  %4905 = vmatpush1.msra.mxu0 %v4888
  %4906 = vmatprep.subr.mxu0 0.0
  %4907 = vmatpush1.msra.mxu0 0.0
  %4908 = vmatprep.subr.mxu0 0.0
  %4909 = vmatpush1.msra.mxu0 0.0
  %4910 = vmatprep.subr.mxu0 0.0
  %4911 = vmatpush1.msra.mxu0 0.0
  %4912 = vmatprep.subr.mxu0 0.0
  %4913 = vmatpush1.msra.mxu0 0.0
  %4914 = vmatprep.subr.mxu0 0.0
  %4915 = vmatpush1.msra.mxu0 0.0
  %4916 = vmatprep.subr.mxu0 0.0
  %4917 = vmatpush1.msra.mxu0 0.0
  %4918 = vmatprep.subr.mxu0 0.0
  %4919 = vmatpush1.msra.mxu0 0.0
  %4920 = vmatprep.subr.mxu0 0.0
  %4921 = vmatpush1.msra.mxu0 0.0
  %4922 = vmatprep.subr.mxu0 0.0
  %4923 = vmatpush1.msra.mxu0 0.0
  %4924 = vmatprep.subr.mxu0 0.0
  %4925 = vmatpush1.msra.mxu0 0.0
  %4926 = vmatprep.subr.mxu0 0.0
  %4927 = vmatpush1.msra.mxu0 0.0
  %4928 = vmatprep.subr.mxu0 0.0
  %4929 = vmatpush1.msra.mxu0 0.0
  %4930 = vmatprep.subr.mxu0 0.0
  %4931 = vmatpush1.msra.mxu0 0.0
  %4932 = vmatprep.subr.mxu0 0.0
  %4933 = vmatpush1.msra.mxu0 0.0
  %4934 = vmatprep.subr.mxu0 0.0
  %4935 = vmatpush1.msra.mxu0 0.0
  %4936 = vmatprep.subr.mxu0 0.0
  %4937 = vmatpush1.msra.mxu0 0.0
  %4938 = vmatprep.subr.mxu0 0.0
  %4939 = vmatpush1.msra.mxu0 0.0
  %4940 = vmatprep.subr.mxu0 0.0
  %4941 = vmatpush1.msra.mxu0 0.0
  %4942 = vmatprep.subr.mxu0 0.0
  %4943 = vmatpush1.msra.mxu0 0.0
  %4944 = vmatprep.subr.mxu0 0.0
  %4945 = vmatpush1.msra.mxu0 0.0
  %4946 = vmatprep.subr.mxu0 0.0
  %4947 = vmatpush1.msra.mxu0 0.0
  %4948 = vmatprep.subr.mxu0 0.0
  %4949 = vmatpush1.msra.mxu0 0.0
  %4950 = vmatprep.subr.mxu0 0.0
  %4951 = vmatpush1.msra.mxu0 0.0
  %4952 = vmatprep.subr.mxu0 0.0
  %4953 = vmatpush1.msra.mxu0 0.0
  %4954 = vmatprep.subr.mxu0 0.0
  %4955 = vmatpush1.msra.mxu0 0.0
  %4956 = vmatprep.subr.mxu0 0.0
  %4957 = vmatpush1.msra.mxu0 0.0
  %4958 = vmatprep.subr.mxu0 0.0
  %4959 = vmatpush1.msra.mxu0 0.0
  %4960 = vmatprep.subr.mxu0 0.0
  %4961 = vmatpush1.msra.mxu0 0.0
  %4962 = vmatprep.mubr.f32.mxu0 0.0
  %4963 = vmatmul.mubr.f32.gmra.mrb[0].mxu0 %v4890
  %v4964 = vpop.f32.mrb[0].mxu0
  %v4965 = vadd.f32 0.0, %v4964
  %v4966 = vpop.f32.mrb[0].mxu0
  %4967 = vmatprep.mubr.f32.mxu0 0.0
  %4968 = vmatmul.mubr.f32.gmra.mrb[0].mxu0 %v4893
  %v4969 = vpop.f32.mrb[0].mxu0
  %v4970 = vadd.f32 0.0, %v4969
  %v4971 = vpop.f32.mrb[0].mxu0
  %4972 = vmatprep.mubr.f32.mxu0 0.0
  %4973 = vmatmul.mubr.f32.gmra.mrb[0].mxu0 %v4896
  %v4974 = vpop.f32.mrb[0].mxu0
  %v4975 = vadd.f32 0.0, %v4974
  %v4976 = vpop.f32.mrb[0].mxu0
  %4977 = vdwg.mxu0
  %v4978 = vadd.f32 %v4337, %v4965
  %v4979 = vadd.f32 %v4342, %v4970
  %v4980 = vadd.f32 %v4347, %v4975
  %v4981 = vld [vmem:[%s2020] sm:$0xff]
  %v4982 = vld [vmem:[%s2020 + $0x8] sm:$0xff]
  %v4983 = vld [vmem:[%s2020 + $0x10] sm:$0xff]
  %v4984 = vld [vmem:[%s2020 + $0x18] sm:$0xff]
  %v4985 = vld [vmem:[%s2020 + $0x20] sm:$0xff]
  %v4986 = vld [vmem:[%s2020 + $0x28] sm:$0xff]
  %v4987 = vld [vmem:[%s2020 + $0x30] sm:$0xff]
  %v4988 = vld [vmem:[%s2020 + $0x38] sm:$0xff]
  %v4989 = vld [vmem:[%s2020 + $0x40] sm:$0xff]
  %v4990 = vld [vmem:[%s2020 + $0x48] sm:$0xff]
  %v4991 = vld [vmem:[%s2020 + $0x50] sm:$0xff]
  %v4992 = vld [vmem:[%s2020 + $0x58] sm:$0xff]
  %v4993 = vld [vmem:[%s2020 + $0x60] sm:$0xff]
  %v4994 = vld [vmem:[%s2020 + $0x68] sm:$0xff]
  %v4995 = vld [vmem:[%s2020 + $0x70] sm:$0xff]
  %v4996 = vld [vmem:[%s2020 + $0x78] sm:$0xff]
  %v4997 = vld [vmem:[%s2037] sm:$0x1]
  %v4999 = vlaneseq
  %v5000 = vshrl.u32 %v4999, 7
  %v5001 = vsub.s32 0, %v5000
  %v5002 = vrot.slane %v4997, %v5001
  %5004 = vmatprep.subr.mxu0 0.0
  %5005 = vmatpush1.msra.mxu0 %v4981
  %5006 = vmatprep.subr.mxu0 0.0
  %5007 = vmatpush1.msra.mxu0 %v4982
  %5008 = vmatprep.subr.mxu0 0.0
  %5009 = vmatpush1.msra.mxu0 %v4983
  %5010 = vmatprep.subr.mxu0 0.0
  %5011 = vmatpush1.msra.mxu0 %v4984
  %5012 = vmatprep.subr.mxu0 0.0
  %5013 = vmatpush1.msra.mxu0 %v4985
  %5014 = vmatprep.subr.mxu0 0.0
  %5015 = vmatpush1.msra.mxu0 %v4986
  %5016 = vmatprep.subr.mxu0 0.0
  %5017 = vmatpush1.msra.mxu0 %v4987
  %5018 = vmatprep.subr.mxu0 0.0
  %5019 = vmatpush1.msra.mxu0 %v4988
  %5020 = vmatprep.subr.mxu0 0.0
  %5021 = vmatpush1.msra.mxu0 %v4989
  %5022 = vmatprep.subr.mxu0 0.0
  %5023 = vmatpush1.msra.mxu0 %v4990
  %5024 = vmatprep.subr.mxu0 0.0
  %5025 = vmatpush1.msra.mxu0 %v4991
  %5026 = vmatprep.subr.mxu0 0.0
  %5027 = vmatpush1.msra.mxu0 %v4992
  %5028 = vmatprep.subr.mxu0 0.0
  %5029 = vmatpush1.msra.mxu0 %v4993
  %5030 = vmatprep.subr.mxu0 0.0
  %5031 = vmatpush1.msra.mxu0 %v4994
  %5032 = vmatprep.subr.mxu0 0.0
  %5033 = vmatpush1.msra.mxu0 %v4995
  %5034 = vmatprep.subr.mxu0 0.0
  %5035 = vmatpush1.msra.mxu0 %v4996
  %5036 = vmatprep.subr.mxu0 0.0
  %5037 = vmatpush1.msra.mxu0 0.0
  %5038 = vmatprep.subr.mxu0 0.0
  %5039 = vmatpush1.msra.mxu0 0.0
  %5040 = vmatprep.subr.mxu0 0.0
  %5041 = vmatpush1.msra.mxu0 0.0
  %5042 = vmatprep.subr.mxu0 0.0
  %5043 = vmatpush1.msra.mxu0 0.0
  %5044 = vmatprep.subr.mxu0 0.0
  %5045 = vmatpush1.msra.mxu0 0.0
  %5046 = vmatprep.subr.mxu0 0.0
  %5047 = vmatpush1.msra.mxu0 0.0
  %5048 = vmatprep.subr.mxu0 0.0
  %5049 = vmatpush1.msra.mxu0 0.0
  %5050 = vmatprep.subr.mxu0 0.0
  %5051 = vmatpush1.msra.mxu0 0.0
  %5052 = vmatprep.subr.mxu0 0.0
  %5053 = vmatpush1.msra.mxu0 0.0
  %5054 = vmatprep.subr.mxu0 0.0
  %5055 = vmatpush1.msra.mxu0 0.0
  %5056 = vmatprep.subr.mxu0 0.0
  %5057 = vmatpush1.msra.mxu0 0.0
  %5058 = vmatprep.subr.mxu0 0.0
  %5059 = vmatpush1.msra.mxu0 0.0
  %5060 = vmatprep.subr.mxu0 0.0
  %5061 = vmatpush1.msra.mxu0 0.0
  %5062 = vmatprep.subr.mxu0 0.0
  %5063 = vmatpush1.msra.mxu0 0.0
  %5064 = vmatprep.subr.mxu0 0.0
  %5065 = vmatpush1.msra.mxu0 0.0
  %5066 = vmatprep.subr.mxu0 0.0
  %5067 = vmatpush1.msra.mxu0 0.0
  %5068 = vmatprep.mubr.f32.mxu0 0.0
  %5069 = vmatmul.mubr.f32.gmra.mrb[0].mxu0 %v3091
  %v5070 = vpop.f32.mrb[0].mxu0
  %v5071 = vadd.f32 %v5002, %v5070
  %v5072 = vpop.f32.mrb[0].mxu0
  %5073 = vmatprep.mubr.f32.mxu0 0.0
  %5074 = vmatmul.mubr.f32.gmra.mrb[0].mxu0 %v3092
  %v5075 = vpop.f32.mrb[0].mxu0
  %v5076 = vadd.f32 %v5002, %v5075
  %v5077 = vpop.f32.mrb[0].mxu0
  %5078 = vmatprep.mubr.f32.mxu0 0.0
  %5079 = vmatmul.mubr.f32.gmra.mrb[0].mxu0 %v3093
  %v5080 = vpop.f32.mrb[0].mxu0
  %v5081 = vadd.f32 %v5002, %v5080
  %v5082 = vpop.f32.mrb[0].mxu0
  %5083 = vdwg.mxu0
  %v5084 = vld [vmem:[%s2125] sm:$0xff]
  %v5085 = vld [vmem:[%s2125 + $0x8] sm:$0xff]
  %v5086 = vld [vmem:[%s2125 + $0x10] sm:$0xff]
  %v5087 = vld [vmem:[%s2125 + $0x18] sm:$0xff]
  %v5088 = vld [vmem:[%s2125 + $0x20] sm:$0xff]
  %v5089 = vld [vmem:[%s2125 + $0x28] sm:$0xff]
  %v5090 = vld [vmem:[%s2125 + $0x30] sm:$0xff]
  %v5091 = vld [vmem:[%s2125 + $0x38] sm:$0xff]
  %v5092 = vld [vmem:[%s2125 + $0x40] sm:$0xff]
  %v5093 = vld [vmem:[%s2125 + $0x48] sm:$0xff]
  %v5094 = vld [vmem:[%s2125 + $0x50] sm:$0xff]
  %v5095 = vld [vmem:[%s2125 + $0x58] sm:$0xff]
  %v5096 = vld [vmem:[%s2125 + $0x60] sm:$0xff]
  %v5097 = vld [vmem:[%s2125 + $0x68] sm:$0xff]
  %v5098 = vld [vmem:[%s2125 + $0x70] sm:$0xff]
  %v5099 = vld [vmem:[%s2125 + $0x78] sm:$0xff]
  %v5100 = vld [vmem:[%s2142] sm:$0x1]
  %v5102 = vlaneseq
  %v5103 = vshrl.u32 %v5102, 7
  %v5104 = vsub.s32 0, %v5103
  %v5105 = vrot.slane %v5100, %v5104
  %5107 = vmatprep.subr.mxu0 0.0
  %5108 = vmatpush1.msra.mxu0 %v5084
  %5109 = vmatprep.subr.mxu0 0.0
  %5110 = vmatpush1.msra.mxu0 %v5085
  %5111 = vmatprep.subr.mxu0 0.0
  %5112 = vmatpush1.msra.mxu0 %v5086
  %5113 = vmatprep.subr.mxu0 0.0
  %5114 = vmatpush1.msra.mxu0 %v5087
  %5115 = vmatprep.subr.mxu0 0.0
  %5116 = vmatpush1.msra.mxu0 %v5088
  %5117 = vmatprep.subr.mxu0 0.0
  %5118 = vmatpush1.msra.mxu0 %v5089
  %5119 = vmatprep.subr.mxu0 0.0
  %5120 = vmatpush1.msra.mxu0 %v5090
  %5121 = vmatprep.subr.mxu0 0.0
  %5122 = vmatpush1.msra.mxu0 %v5091
  %5123 = vmatprep.subr.mxu0 0.0
  %5124 = vmatpush1.msra.mxu0 %v5092
  %5125 = vmatprep.subr.mxu0 0.0
  %5126 = vmatpush1.msra.mxu0 %v5093
  %5127 = vmatprep.subr.mxu0 0.0
  %5128 = vmatpush1.msra.mxu0 %v5094
  %5129 = vmatprep.subr.mxu0 0.0
  %5130 = vmatpush1.msra.mxu0 %v5095
  %5131 = vmatprep.subr.mxu0 0.0
  %5132 = vmatpush1.msra.mxu0 %v5096
  %5133 = vmatprep.subr.mxu0 0.0
  %5134 = vmatpush1.msra.mxu0 %v5097
  %5135 = vmatprep.subr.mxu0 0.0
  %5136 = vmatpush1.msra.mxu0 %v5098
  %5137 = vmatprep.subr.mxu0 0.0
  %5138 = vmatpush1.msra.mxu0 %v5099
  %5139 = vmatprep.subr.mxu0 0.0
  %5140 = vmatpush1.msra.mxu0 0.0
  %5141 = vmatprep.subr.mxu0 0.0
  %5142 = vmatpush1.msra.mxu0 0.0
  %5143 = vmatprep.subr.mxu0 0.0
  %5144 = vmatpush1.msra.mxu0 0.0
  %5145 = vmatprep.subr.mxu0 0.0
  %5146 = vmatpush1.msra.mxu0 0.0
  %5147 = vmatprep.subr.mxu0 0.0
  %5148 = vmatpush1.msra.mxu0 0.0
  %5149 = vmatprep.subr.mxu0 0.0
  %5150 = vmatpush1.msra.mxu0 0.0
  %5151 = vmatprep.subr.mxu0 0.0
  %5152 = vmatpush1.msra.mxu0 0.0
  %5153 = vmatprep.subr.mxu0 0.0
  %5154 = vmatpush1.msra.mxu0 0.0
  %5155 = vmatprep.subr.mxu0 0.0
  %5156 = vmatpush1.msra.mxu0 0.0
  %5157 = vmatprep.subr.mxu0 0.0
  %5158 = vmatpush1.msra.mxu0 0.0
  %5159 = vmatprep.subr.mxu0 0.0
  %5160 = vmatpush1.msra.mxu0 0.0
  %5161 = vmatprep.subr.mxu0 0.0
  %5162 = vmatpush1.msra.mxu0 0.0
  %5163 = vmatprep.subr.mxu0 0.0
  %5164 = vmatpush1.msra.mxu0 0.0
  %5165 = vmatprep.subr.mxu0 0.0
  %5166 = vmatpush1.msra.mxu0 0.0
  %5167 = vmatprep.subr.mxu0 0.0
  %5168 = vmatpush1.msra.mxu0 0.0
  %5169 = vmatprep.subr.mxu0 0.0
  %5170 = vmatpush1.msra.mxu0 0.0
  %5171 = vmatprep.mubr.f32.mxu0 0.0
  %5172 = vmatmul.mubr.f32.gmra.mrb[0].mxu0 %v3091
  %v5173 = vpop.f32.mrb[0].mxu0
  %v5174 = vadd.f32 %v5105, %v5173
  %v5175 = vpop.f32.mrb[0].mxu0
  %5176 = vmatprep.mubr.f32.mxu0 0.0
  %5177 = vmatmul.mubr.f32.gmra.mrb[0].mxu0 %v3092
  %v5178 = vpop.f32.mrb[0].mxu0
  %v5179 = vadd.f32 %v5105, %v5178
  %v5180 = vpop.f32.mrb[0].mxu0
  %5181 = vmatprep.mubr.f32.mxu0 0.0
  %5182 = vmatmul.mubr.f32.gmra.mrb[0].mxu0 %v3093
  %v5183 = vpop.f32.mrb[0].mxu0
  %v5184 = vadd.f32 %v5105, %v5183
  %v5185 = vpop.f32.mrb[0].mxu0
  %5186 = vdwg.mxu0
  %v5187 = vld [vmem:[%s2230] sm:$0xff]
  %v5188 = vld [vmem:[%s2230 + $0x8] sm:$0xff]
  %v5189 = vld [vmem:[%s2230 + $0x10] sm:$0xff]
  %v5190 = vld [vmem:[%s2230 + $0x18] sm:$0xff]
  %v5191 = vld [vmem:[%s2230 + $0x20] sm:$0xff]
  %v5192 = vld [vmem:[%s2230 + $0x28] sm:$0xff]
  %v5193 = vld [vmem:[%s2230 + $0x30] sm:$0xff]
  %v5194 = vld [vmem:[%s2230 + $0x38] sm:$0xff]
  %v5195 = vld [vmem:[%s2230 + $0x40] sm:$0xff]
  %v5196 = vld [vmem:[%s2230 + $0x48] sm:$0xff]
  %v5197 = vld [vmem:[%s2230 + $0x50] sm:$0xff]
  %v5198 = vld [vmem:[%s2230 + $0x58] sm:$0xff]
  %v5199 = vld [vmem:[%s2230 + $0x60] sm:$0xff]
  %v5200 = vld [vmem:[%s2230 + $0x68] sm:$0xff]
  %v5201 = vld [vmem:[%s2230 + $0x70] sm:$0xff]
  %v5202 = vld [vmem:[%s2230 + $0x78] sm:$0xff]
  %v5203 = vld [vmem:[%s2247] sm:$0x1]
  %v5205 = vlaneseq
  %v5206 = vshrl.u32 %v5205, 7
  %v5207 = vsub.s32 0, %v5206
  %v5208 = vrot.slane %v5203, %v5207
  %5210 = vmatprep.subr.mxu0 0.0
  %5211 = vmatpush1.msra.mxu0 %v5187
  %5212 = vmatprep.subr.mxu0 0.0
  %5213 = vmatpush1.msra.mxu0 %v5188
  %5214 = vmatprep.subr.mxu0 0.0
  %5215 = vmatpush1.msra.mxu0 %v5189
  %5216 = vmatprep.subr.mxu0 0.0
  %5217 = vmatpush1.msra.mxu0 %v5190
  %5218 = vmatprep.subr.mxu0 0.0
  %5219 = vmatpush1.msra.mxu0 %v5191
  %5220 = vmatprep.subr.mxu0 0.0
  %5221 = vmatpush1.msra.mxu0 %v5192
  %5222 = vmatprep.subr.mxu0 0.0
  %5223 = vmatpush1.msra.mxu0 %v5193
  %5224 = vmatprep.subr.mxu0 0.0
  %5225 = vmatpush1.msra.mxu0 %v5194
  %5226 = vmatprep.subr.mxu0 0.0
  %5227 = vmatpush1.msra.mxu0 %v5195
  %5228 = vmatprep.subr.mxu0 0.0
  %5229 = vmatpush1.msra.mxu0 %v5196
  %5230 = vmatprep.subr.mxu0 0.0
  %5231 = vmatpush1.msra.mxu0 %v5197
  %5232 = vmatprep.subr.mxu0 0.0
  %5233 = vmatpush1.msra.mxu0 %v5198
  %5234 = vmatprep.subr.mxu0 0.0
  %5235 = vmatpush1.msra.mxu0 %v5199
  %5236 = vmatprep.subr.mxu0 0.0
  %5237 = vmatpush1.msra.mxu0 %v5200
  %5238 = vmatprep.subr.mxu0 0.0
  %5239 = vmatpush1.msra.mxu0 %v5201
  %5240 = vmatprep.subr.mxu0 0.0
  %5241 = vmatpush1.msra.mxu0 %v5202
  %5242 = vmatprep.subr.mxu0 0.0
  %5243 = vmatpush1.msra.mxu0 0.0
  %5244 = vmatprep.subr.mxu0 0.0
  %5245 = vmatpush1.msra.mxu0 0.0
  %5246 = vmatprep.subr.mxu0 0.0
  %5247 = vmatpush1.msra.mxu0 0.0
  %5248 = vmatprep.subr.mxu0 0.0
  %5249 = vmatpush1.msra.mxu0 0.0
  %5250 = vmatprep.subr.mxu0 0.0
  %5251 = vmatpush1.msra.mxu0 0.0
  %5252 = vmatprep.subr.mxu0 0.0
  %5253 = vmatpush1.msra.mxu0 0.0
  %5254 = vmatprep.subr.mxu0 0.0
  %5255 = vmatpush1.msra.mxu0 0.0
  %5256 = vmatprep.subr.mxu0 0.0
  %5257 = vmatpush1.msra.mxu0 0.0
  %5258 = vmatprep.subr.mxu0 0.0
  %5259 = vmatpush1.msra.mxu0 0.0
  %5260 = vmatprep.subr.mxu0 0.0
  %5261 = vmatpush1.msra.mxu0 0.0
  %5262 = vmatprep.subr.mxu0 0.0
  %5263 = vmatpush1.msra.mxu0 0.0
  %5264 = vmatprep.subr.mxu0 0.0
  %5265 = vmatpush1.msra.mxu0 0.0
  %5266 = vmatprep.subr.mxu0 0.0
  %5267 = vmatpush1.msra.mxu0 0.0
  %5268 = vmatprep.subr.mxu0 0.0
  %5269 = vmatpush1.msra.mxu0 0.0
  %5270 = vmatprep.subr.mxu0 0.0
  %5271 = vmatpush1.msra.mxu0 0.0
  %5272 = vmatprep.subr.mxu0 0.0
  %5273 = vmatpush1.msra.mxu0 0.0
  %5274 = vmatprep.mubr.f32.mxu0 0.0
  %5275 = vmatmul.mubr.f32.gmra.mrb[0].mxu0 %v3091
  %v5276 = vpop.f32.mrb[0].mxu0
  %v5277 = vadd.f32 %v5208, %v5276
  %v5278 = vpop.f32.mrb[0].mxu0
  %5279 = vmatprep.mubr.f32.mxu0 0.0
  %5280 = vmatmul.mubr.f32.gmra.mrb[0].mxu0 %v3092
  %v5281 = vpop.f32.mrb[0].mxu0
  %v5282 = vadd.f32 %v5208, %v5281
  %v5283 = vpop.f32.mrb[0].mxu0
  %5284 = vmatprep.mubr.f32.mxu0 0.0
  %5285 = vmatmul.mubr.f32.gmra.mrb[0].mxu0 %v3093
  %v5286 = vpop.f32.mrb[0].mxu0
  %v5287 = vadd.f32 %v5208, %v5286
  %v5288 = vpop.f32.mrb[0].mxu0
  %5289 = vdwg.mxu0
  %v5291 = vsel %vm425, %v5071, 0
  %v5294 = vsel %vm425, %v5076, 0
  %v5297 = vsel %vm425, %v5081, 0
  %v5300 = vsel %vm425, %v5174, 0
  %v5303 = vsel %vm425, %v5179, 0
  %v5306 = vsel %vm425, %v5184, 0
  %5308 = vmatprep.subr.mxu0 0.0
  %5309 = vmatpush1.xpose.msra.mxu0 %v5300
  %5310 = vmatprep.subr.mxu0 0.0
  %5311 = vmatpush1.xpose.msra.mxu0 %v5303
  %5312 = vmatprep.subr.mxu0 0.0
  %5313 = vmatpush1.xpose.msra.mxu0 %v5306
  %5314 = vmatprep.subr.mxu0 0.0
  %5315 = vmatpush1.xpose.msra.mxu0 0.0
  %5316 = vmatprep.subr.mxu0 0.0
  %5317 = vmatpush1.xpose.msra.mxu0 0.0
  %5318 = vmatprep.subr.mxu0 0.0
  %5319 = vmatpush1.xpose.msra.mxu0 0.0
  %5320 = vmatprep.subr.mxu0 0.0
  %5321 = vmatpush1.xpose.msra.mxu0 0.0
  %5322 = vmatprep.subr.mxu0 0.0
  %5323 = vmatpush1.xpose.msra.mxu0 0.0
  %5324 = vmatprep.subr.mxu0 0.0
  %5325 = vmatpush1.xpose.msra.mxu0 0.0
  %5326 = vmatprep.subr.mxu0 0.0
  %5327 = vmatpush1.xpose.msra.mxu0 0.0
  %5328 = vmatprep.subr.mxu0 0.0
  %5329 = vmatpush1.xpose.msra.mxu0 0.0
  %5330 = vmatprep.subr.mxu0 0.0
  %5331 = vmatpush1.xpose.msra.mxu0 0.0
  %5332 = vmatprep.subr.mxu0 0.0
  %5333 = vmatpush1.xpose.msra.mxu0 0.0
  %5334 = vmatprep.subr.mxu0 0.0
  %5335 = vmatpush1.xpose.msra.mxu0 0.0
  %5336 = vmatprep.subr.mxu0 0.0
  %5337 = vmatpush1.xpose.msra.mxu0 0.0
  %5338 = vmatprep.subr.mxu0 0.0
  %5339 = vmatpush1.xpose.msra.mxu0 0.0
  %5340 = vmatprep.subr.mxu0 0.0
  %5341 = vmatpush1.xpose.msra.mxu0 0.0
  %5342 = vmatprep.subr.mxu0 0.0
  %5343 = vmatpush1.xpose.msra.mxu0 0.0
  %5344 = vmatprep.subr.mxu0 0.0
  %5345 = vmatpush1.xpose.msra.mxu0 0.0
  %5346 = vmatprep.subr.mxu0 0.0
  %5347 = vmatpush1.xpose.msra.mxu0 0.0
  %5348 = vmatprep.subr.mxu0 0.0
  %5349 = vmatpush1.xpose.msra.mxu0 0.0
  %5350 = vmatprep.subr.mxu0 0.0
  %5351 = vmatpush1.xpose.msra.mxu0 0.0
  %5352 = vmatprep.subr.mxu0 0.0
  %5353 = vmatpush1.xpose.msra.mxu0 0.0
  %5354 = vmatprep.subr.mxu0 0.0
  %5355 = vmatpush1.xpose.msra.mxu0 0.0
  %5356 = vmatprep.subr.mxu0 0.0
  %5357 = vmatpush1.xpose.msra.mxu0 0.0
  %5358 = vmatprep.subr.mxu0 0.0
  %5359 = vmatpush1.xpose.msra.mxu0 0.0
  %5360 = vmatprep.subr.mxu0 0.0
  %5361 = vmatpush1.xpose.msra.mxu0 0.0
  %5362 = vmatprep.subr.mxu0 0.0
  %5363 = vmatpush1.xpose.msra.mxu0 0.0
  %5364 = vmatprep.subr.mxu0 0.0
  %5365 = vmatpush1.xpose.msra.mxu0 0.0
  %5366 = vmatprep.subr.mxu0 0.0
  %5367 = vmatpush1.xpose.msra.mxu0 0.0
  %5368 = vmatprep.subr.mxu0 0.0
  %5369 = vmatpush1.xpose.msra.mxu0 0.0
  %5370 = vmatprep.subr.mxu0 0.0
  %5371 = vmatpush1.xpose.msra.mxu0 0.0
  %5372 = vmatprep.mubr.f32.mxu0 0.0
  %5373 = vmatmul.mubr.f32.gmra.mrb[0].mxu0 %v5291
  %v5374 = vpop.f32.mrb[0].mxu0
  %v5375 = vadd.f32 0.0, %v5374
  %v5376 = vpop.f32.mrb[0].mxu0
  %5377 = vmatprep.mubr.f32.mxu0 0.0
  %5378 = vmatmul.mubr.f32.gmra.mrb[0].mxu0 %v5294
  %v5379 = vpop.f32.mrb[0].mxu0
  %v5380 = vadd.f32 0.0, %v5379
  %v5381 = vpop.f32.mrb[0].mxu0
  %5382 = vmatprep.mubr.f32.mxu0 0.0
  %5383 = vmatmul.mubr.f32.gmra.mrb[0].mxu0 %v5297
  %v5384 = vpop.f32.mrb[0].mxu0
  %v5385 = vadd.f32 0.0, %v5384
  %v5386 = vpop.f32.mrb[0].mxu0
  %5387 = vdwg.mxu0
  %v5388 = vmul.f32 %v5375, 0.17677669
  %v5389 = vmul.f32 %v5380, 0.17677669
  %v5390 = vmul.f32 %v5385, 0.17677669
  %v5391 = vsel %vm527, %v5388, -inf
  %5392 = vmax.xlane.f32.xlu0 %v5391
  %v5393 = vpop.xlane.xlu0 %5392
  %v5394 = vsel %vm527, %v5389, -inf
  %5395 = vmax.xlane.f32.xlu0 %v5394
  %v5396 = vpop.xlane.xlu0 %5395
  %v5397 = vsel %vm534, %v5390, -inf
  %5398 = vmax.xlane.f32.xlu0 %v5397
  %v5399 = vpop.xlane.xlu0 %5398
  %v5400 = vsub.f32 %v5388, %v5393
  %v5401 = vsub.f32 %v5389, %v5396
  %v5402 = vsub.f32 %v5390, %v5399
  %v5403 = vmul.f32 %v5400, 1.442695
  %v5404 = vpow.pop %v5403
  %v5405 = vmul.f32 %v5401, 1.442695
  %v5406 = vpow.pop %v5405
  %v5407 = vmul.f32 %v5402, 1.442695
  %v5408 = vpow.pop %v5407
  %v5409 = vsel %vm527, %v5404, 0.0
  %5410 = vadd.xlane.f32.xlu0 %v5409
  %v5411 = vpop.xlane.xlu0 %5410
  %v5412 = vsel %vm527, %v5406, 0.0
  %5413 = vadd.xlane.f32.xlu0 %v5412
  %v5414 = vpop.xlane.xlu0 %5413
  %v5415 = vsel %vm534, %v5408, 0.0
  %5416 = vadd.xlane.f32.xlu0 %v5415
  %v5417 = vpop.xlane.xlu0 %5416
  %v5418 = vrcp.pop %v5411
  %v5419 = vmul.f32 %v5404, %v5418
  %v5420 = vrcp.pop %v5414
  %v5421 = vmul.f32 %v5406, %v5420
  %v5422 = vrcp.pop %v5417
  %v5423 = vmul.f32 %v5408, %v5422
  %v5425 = vsel %vm527, %v5419, 0
  %v5428 = vsel %vm527, %v5421, 0
  %v5431 = vsel %vm527, %v5423, 0
  %v5434 = vsel %vm65, %v5287, 0
  %5436 = vmatprep.subr.mxu0 0.0
  %5437 = vmatpush1.msra.mxu0 %v5277
  %5438 = vmatprep.subr.mxu0 0.0
  %5439 = vmatpush1.msra.mxu0 %v5282
  %5440 = vmatprep.subr.mxu0 0.0
  %5441 = vmatpush1.msra.mxu0 %v5434
  %5442 = vmatprep.subr.mxu0 0.0
  %5443 = vmatpush1.msra.mxu0 0.0
  %5444 = vmatprep.subr.mxu0 0.0
  %5445 = vmatpush1.msra.mxu0 0.0
  %5446 = vmatprep.subr.mxu0 0.0
  %5447 = vmatpush1.msra.mxu0 0.0
  %5448 = vmatprep.subr.mxu0 0.0
  %5449 = vmatpush1.msra.mxu0 0.0
  %5450 = vmatprep.subr.mxu0 0.0
  %5451 = vmatpush1.msra.mxu0 0.0
  %5452 = vmatprep.subr.mxu0 0.0
  %5453 = vmatpush1.msra.mxu0 0.0
  %5454 = vmatprep.subr.mxu0 0.0
  %5455 = vmatpush1.msra.mxu0 0.0
  %5456 = vmatprep.subr.mxu0 0.0
  %5457 = vmatpush1.msra.mxu0 0.0
  %5458 = vmatprep.subr.mxu0 0.0
  %5459 = vmatpush1.msra.mxu0 0.0
  %5460 = vmatprep.subr.mxu0 0.0
  %5461 = vmatpush1.msra.mxu0 0.0
  %5462 = vmatprep.subr.mxu0 0.0
  %5463 = vmatpush1.msra.mxu0 0.0
  %5464 = vmatprep.subr.mxu0 0.0
  %5465 = vmatpush1.msra.mxu0 0.0
  %5466 = vmatprep.subr.mxu0 0.0
  %5467 = vmatpush1.msra.mxu0 0.0
  %5468 = vmatprep.subr.mxu0 0.0
  %5469 = vmatpush1.msra.mxu0 0.0
  %5470 = vmatprep.subr.mxu0 0.0
  %5471 = vmatpush1.msra.mxu0 0.0
  %5472 = vmatprep.subr.mxu0 0.0
  %5473 = vmatpush1.msra.mxu0 0.0
  %5474 = vmatprep.subr.mxu0 0.0
  %5475 = vmatpush1.msra.mxu0 0.0
  %5476 = vmatprep.subr.mxu0 0.0
  %5477 = vmatpush1.msra.mxu0 0.0
  %5478 = vmatprep.subr.mxu0 0.0
  %5479 = vmatpush1.msra.mxu0 0.0
  %5480 = vmatprep.subr.mxu0 0.0
  %5481 = vmatpush1.msra.mxu0 0.0
  %5482 = vmatprep.subr.mxu0 0.0
  %5483 = vmatpush1.msra.mxu0 0.0
  %5484 = vmatprep.subr.mxu0 0.0
  %5485 = vmatpush1.msra.mxu0 0.0
  %5486 = vmatprep.subr.mxu0 0.0
  %5487 = vmatpush1.msra.mxu0 0.0
  %5488 = vmatprep.subr.mxu0 0.0
  %5489 = vmatpush1.msra.mxu0 0.0
  %5490 = vmatprep.subr.mxu0 0.0
  %5491 = vmatpush1.msra.mxu0 0.0
  %5492 = vmatprep.subr.mxu0 0.0
  %5493 = vmatpush1.msra.mxu0 0.0
  %5494 = vmatprep.subr.mxu0 0.0
  %5495 = vmatpush1.msra.mxu0 0.0
  %5496 = vmatprep.subr.mxu0 0.0
  %5497 = vmatpush1.msra.mxu0 0.0
  %5498 = vmatprep.subr.mxu0 0.0
  %5499 = vmatpush1.msra.mxu0 0.0
  %5500 = vmatprep.mubr.f32.mxu0 0.0
  %5501 = vmatmul.mubr.f32.gmra.mrb[0].mxu0 %v5425
  %v5502 = vpop.f32.mrb[0].mxu0
  %v5503 = vadd.f32 0.0, %v5502
  %v5504 = vpop.f32.mrb[0].mxu0
  %5505 = vmatprep.mubr.f32.mxu0 0.0
  %5506 = vmatmul.mubr.f32.gmra.mrb[0].mxu0 %v5428
  %v5507 = vpop.f32.mrb[0].mxu0
  %v5508 = vadd.f32 0.0, %v5507
  %v5509 = vpop.f32.mrb[0].mxu0
  %5510 = vmatprep.mubr.f32.mxu0 0.0
  %5511 = vmatmul.mubr.f32.gmra.mrb[0].mxu0 %v5431
  %v5512 = vpop.f32.mrb[0].mxu0
  %v5513 = vadd.f32 0.0, %v5512
  %v5514 = vpop.f32.mrb[0].mxu0
  %5515 = vdwg.mxu0
  %v5516 = vld [vmem:[%s2561] sm:$0xff]
  %v5517 = vld [vmem:[%s2561 + $0x8] sm:$0xff]
  %v5518 = vld [vmem:[%s2561 + $0x10] sm:$0xff]
  %v5519 = vld [vmem:[%s2561 + $0x18] sm:$0xff]
  %v5521 = vsel %vm425, %v5503, 0
  %v5524 = vsel %vm425, %v5508, 0
  %v5527 = vsel %vm425, %v5513, 0
  %5529 = vmatprep.subr.mxu0 0.0
  %5530 = vmatpush1.msra.mxu0 %v5516
  %5531 = vmatprep.subr.mxu0 0.0
  %5532 = vmatpush1.msra.mxu0 %v5517
  %5533 = vmatprep.subr.mxu0 0.0
  %5534 = vmatpush1.msra.mxu0 %v5518
  %5535 = vmatprep.subr.mxu0 0.0
  %5536 = vmatpush1.msra.mxu0 %v5519
  %5537 = vmatprep.subr.mxu0 0.0
  %5538 = vmatpush1.msra.mxu0 0.0
  %5539 = vmatprep.subr.mxu0 0.0
  %5540 = vmatpush1.msra.mxu0 0.0
  %5541 = vmatprep.subr.mxu0 0.0
  %5542 = vmatpush1.msra.mxu0 0.0
  %5543 = vmatprep.subr.mxu0 0.0
  %5544 = vmatpush1.msra.mxu0 0.0
  %5545 = vmatprep.subr.mxu0 0.0
  %5546 = vmatpush1.msra.mxu0 0.0
  %5547 = vmatprep.subr.mxu0 0.0
  %5548 = vmatpush1.msra.mxu0 0.0
  %5549 = vmatprep.subr.mxu0 0.0
  %5550 = vmatpush1.msra.mxu0 0.0
  %5551 = vmatprep.subr.mxu0 0.0
  %5552 = vmatpush1.msra.mxu0 0.0
  %5553 = vmatprep.subr.mxu0 0.0
  %5554 = vmatpush1.msra.mxu0 0.0
  %5555 = vmatprep.subr.mxu0 0.0
  %5556 = vmatpush1.msra.mxu0 0.0
  %5557 = vmatprep.subr.mxu0 0.0
  %5558 = vmatpush1.msra.mxu0 0.0
  %5559 = vmatprep.subr.mxu0 0.0
  %5560 = vmatpush1.msra.mxu0 0.0
  %5561 = vmatprep.subr.mxu0 0.0
  %5562 = vmatpush1.msra.mxu0 0.0
  %5563 = vmatprep.subr.mxu0 0.0
  %5564 = vmatpush1.msra.mxu0 0.0
  %5565 = vmatprep.subr.mxu0 0.0
  %5566 = vmatpush1.msra.mxu0 0.0
  %5567 = vmatprep.subr.mxu0 0.0
  %5568 = vmatpush1.msra.mxu0 0.0
  %5569 = vmatprep.subr.mxu0 0.0
  %5570 = vmatpush1.msra.mxu0 0.0
  %5571 = vmatprep.subr.mxu0 0.0
  %5572 = vmatpush1.msra.mxu0 0.0
  %5573 = vmatprep.subr.mxu0 0.0
  %5574 = vmatpush1.msra.mxu0 0.0
  %5575 = vmatprep.subr.mxu0 0.0
  %5576 = vmatpush1.msra.mxu0 0.0
  %5577 = vmatprep.subr.mxu0 0.0
  %5578 = vmatpush1.msra.mxu0 0.0
  %5579 = vmatprep.subr.mxu0 0.0
  %5580 = vmatpush1.msra.mxu0 0.0
  %5581 = vmatprep.subr.mxu0 0.0
  %5582 = vmatpush1.msra.mxu0 0.0
  %5583 = vmatprep.subr.mxu0 0.0
  %5584 = vmatpush1.msra.mxu0 0.0
  %5585 = vmatprep.subr.mxu0 0.0
  %5586 = vmatpush1.msra.mxu0 0.0
  %5587 = vmatprep.subr.mxu0 0.0
  %5588 = vmatpush1.msra.mxu0 0.0
  %5589 = vmatprep.subr.mxu0 0.0
  %5590 = vmatpush1.msra.mxu0 0.0
  %5591 = vmatprep.subr.mxu0 0.0
  %5592 = vmatpush1.msra.mxu0 0.0
  %5593 = vmatprep.mubr.f32.mxu0 0.0
  %5594 = vmatmul.mubr.f32.gmra.mrb[0].mxu0 %v5521
  %v5595 = vpop.f32.mrb[0].mxu0
  %v5596 = vadd.f32 0.0, %v5595
  %v5597 = vpop.f32.mrb[0].mxu0
  %5598 = vmatprep.mubr.f32.mxu0 0.0
  %5599 = vmatmul.mubr.f32.gmra.mrb[0].mxu0 %v5524
  %v5600 = vpop.f32.mrb[0].mxu0
  %v5601 = vadd.f32 0.0, %v5600
  %v5602 = vpop.f32.mrb[0].mxu0
  %5603 = vmatprep.mubr.f32.mxu0 0.0
  %5604 = vmatmul.mubr.f32.gmra.mrb[0].mxu0 %v5527
  %v5605 = vpop.f32.mrb[0].mxu0
  %v5606 = vadd.f32 0.0, %v5605
  %v5607 = vpop.f32.mrb[0].mxu0
  %5608 = vdwg.mxu0
  %v5609 = vadd.f32 %v4978, %v5596
  %v5610 = vadd.f32 %v4979, %v5601
  %v5611 = vadd.f32 %v4980, %v5606
  %v5612 = vadd.f32 %v3036, %v5609
  %v5613 = vadd.f32 %v3037, %v5610
  %v5614 = vadd.f32 %v3038, %v5611
  %v5615 = vld [vmem:[%s8] sm:$0x1]
  %v5617 = vlaneseq
  %v5618 = vshrl.u32 %v5617, 7
  %v5619 = vsub.s32 0, %v5618
  %v5620 = vrot.slane %v5615, %v5619
  %v5622 = vadd.f32 %v5612, %v5620
  %v5623 = vadd.f32 %v5613, %v5620
  %v5624 = vadd.f32 %v5614, %v5620
  %v5625 = vld [vmem:[%s11] sm:$0x1]
  %v5626 = vld [vmem:[%s12] sm:$0x1]
  %5627 = vadd.xlane.f32.xlu0 %v5622
  %v5628 = vpop.xlane.xlu0 %5627
  %5629 = vadd.xlane.f32.xlu0 %v5623
  %v5630 = vpop.xlane.xlu0 %5629
  %v5631 = vsel %vm65, %v5624, 0.0
  %5632 = vadd.xlane.f32.xlu0 %v5631
  %v5633 = vpop.xlane.xlu0 %5632
  %v5634 = vmul.f32 %v5628, %v69
  %v5635 = vmul.f32 %v5630, %v69
  %v5636 = vmul.f32 %v5633, %v69
  %v5637 = vsub.f32 %v5622, %v5634
  %v5638 = vsub.f32 %v5623, %v5635
  %v5639 = vsub.f32 %v5624, %v5636
  %v5640 = vmul.f32 %v5637, %v5637
  %v5641 = vmul.f32 %v5638, %v5638
  %v5642 = vmul.f32 %v5639, %v5639
  %5643 = vadd.xlane.f32.xlu0 %v5640
  %v5644 = vpop.xlane.xlu0 %5643
  %5645 = vadd.xlane.f32.xlu0 %v5641
  %v5646 = vpop.xlane.xlu0 %5645
  %v5647 = vsel %vm65, %v5642, 0.0
  %5648 = vadd.xlane.f32.xlu0 %v5647
  %v5649 = vpop.xlane.xlu0 %5648
  %v5650 = vmul.f32 %v5644, %v69
  %v5651 = vmul.f32 %v5646, %v69
  %v5652 = vmul.f32 %v5649, %v69
  %v5653 = vadd.f32 %v5650, 1e-05
  %v5654 = vadd.f32 %v5651, 1e-05
  %v5655 = vadd.f32 %v5652, 1e-05
  %v5656 = vrsqrt.pop %v5653
  %v5657 = vrsqrt.pop %v5654
  %v5658 = vrsqrt.pop %v5655
  %v5659 = vmul.f32 %v5637, %v5656
  %v5660 = vmul.f32 %v5638, %v5657
  %v5661 = vmul.f32 %v5639, %v5658
  %v5663 = vlaneseq
  %v5664 = vshrl.u32 %v5663, 7
  %v5665 = vsub.s32 0, %v5664
  %v5666 = vrot.slane %v5625, %v5665
  %v5668 = vmul.f32 %v5659, %v5666
  %v5669 = vmul.f32 %v5660, %v5666
  %v5670 = vmul.f32 %v5661, %v5666
  %v5672 = vlaneseq
  %v5673 = vshrl.u32 %v5672, 7
  %v5674 = vsub.s32 0, %v5673
  %v5675 = vrot.slane %v5626, %v5674
  %v5677 = vadd.f32 %v5668, %v5675
  %v5678 = vadd.f32 %v5669, %v5675
  %v5679 = vadd.f32 %v5670, %v5675
  %v5680 = vld [vmem:[%s13] sm:$0xff]
  %v5681 = vld [vmem:[%s13 + $0x8] sm:$0xff]
  %v5682 = vld [vmem:[%s13 + $0x10] sm:$0xff]
  %v5683 = vld [vmem:[%s13 + $0x18] sm:$0xff]
  %v5684 = vld [vmem:[%s13 + $0x20] sm:$0xff]
  %v5685 = vld [vmem:[%s13 + $0x28] sm:$0xff]
  %v5686 = vld [vmem:[%s13 + $0x30] sm:$0xff]
  %v5687 = vld [vmem:[%s13 + $0x38] sm:$0xff]
  %v5688 = vld [vmem:[%s13 + $0x40] sm:$0xff]
  %v5689 = vld [vmem:[%s13 + $0x48] sm:$0xff]
  %v5690 = vld [vmem:[%s13 + $0x50] sm:$0xff]
  %v5691 = vld [vmem:[%s13 + $0x58] sm:$0xff]
  %v5692 = vld [vmem:[%s13 + $0x60] sm:$0xff]
  %v5693 = vld [vmem:[%s13 + $0x68] sm:$0xff]
  %v5694 = vld [vmem:[%s13 + $0x70] sm:$0xff]
  %v5695 = vld [vmem:[%s13 + $0x78] sm:$0xff]
  %v5696 = vld [vmem:[%s13 + $0x80] sm:$0xff]
  %v5697 = vld [vmem:[%s13 + $0x88] sm:$0xff]
  %v5698 = vld [vmem:[%s13 + $0x90] sm:$0xff]
  %v5699 = vld [vmem:[%s13 + $0x98] sm:$0xff]
  %v5700 = vld [vmem:[%s13 + $0xa0] sm:$0xff]
  %v5701 = vld [vmem:[%s13 + $0xa8] sm:$0xff]
  %v5702 = vld [vmem:[%s13 + $0xb0] sm:$0xff]
  %v5703 = vld [vmem:[%s13 + $0xb8] sm:$0xff]
  %v5704 = vld [vmem:[%s13 + $0xc0] sm:$0xff]
  %v5705 = vld [vmem:[%s13 + $0xc8] sm:$0xff]
  %v5706 = vld [vmem:[%s13 + $0xd0] sm:$0xff]
  %v5707 = vld [vmem:[%s13 + $0xd8] sm:$0xff]
  %v5708 = vld [vmem:[%s13 + $0xe0] sm:$0xff]
  %v5709 = vld [vmem:[%s13 + $0xe8] sm:$0xff]
  %v5710 = vld [vmem:[%s13 + $0xf0] sm:$0xff]
  %v5711 = vld [vmem:[%s13 + $0xf8] sm:$0xff]
  %v5712 = vld [vmem:[%s14] sm:$0x3]
  %v5714 = vlaneseq
  %v5715 = vshrl.u32 %v5714, 7
  %v5716 = vsub.s32 0, %v5715
  %v5717 = vrot.slane %v5712, %v5716
  %v5718 = vlaneseq
  %v5719 = vshrl.u32 %v5718, 7
  %v5720 = vsub.s32 1, %v5719
  %v5721 = vrot.slane %v5712, %v5720
  %5724 = vmatprep.subr.mxu0 %v5681
  %5725 = vmatpush1.msra.mxu0 %v5680
  %5726 = vmatprep.subr.mxu0 %v5683
  %5727 = vmatpush1.msra.mxu0 %v5682
  %5728 = vmatprep.subr.mxu0 %v5685
  %5729 = vmatpush1.msra.mxu0 %v5684
  %5730 = vmatprep.subr.mxu0 %v5687
  %5731 = vmatpush1.msra.mxu0 %v5686
  %5732 = vmatprep.subr.mxu0 %v5689
  %5733 = vmatpush1.msra.mxu0 %v5688
  %5734 = vmatprep.subr.mxu0 %v5691
  %5735 = vmatpush1.msra.mxu0 %v5690
  %5736 = vmatprep.subr.mxu0 %v5693
  %5737 = vmatpush1.msra.mxu0 %v5692
  %5738 = vmatprep.subr.mxu0 %v5695
  %5739 = vmatpush1.msra.mxu0 %v5694
  %5740 = vmatprep.subr.mxu0 %v5697
  %5741 = vmatpush1.msra.mxu0 %v5696
  %5742 = vmatprep.subr.mxu0 %v5699
  %5743 = vmatpush1.msra.mxu0 %v5698
  %5744 = vmatprep.subr.mxu0 %v5701
  %5745 = vmatpush1.msra.mxu0 %v5700
  %5746 = vmatprep.subr.mxu0 %v5703
  %5747 = vmatpush1.msra.mxu0 %v5702
  %5748 = vmatprep.subr.mxu0 %v5705
  %5749 = vmatpush1.msra.mxu0 %v5704
  %5750 = vmatprep.subr.mxu0 %v5707
  %5751 = vmatpush1.msra.mxu0 %v5706
  %5752 = vmatprep.subr.mxu0 %v5709
  %5753 = vmatpush1.msra.mxu0 %v5708
  %5754 = vmatprep.subr.mxu0 %v5711
  %5755 = vmatpush1.msra.mxu0 %v5710
  %5756 = vmatprep.subr.mxu0 0.0
  %5757 = vmatpush1.msra.mxu0 0.0
  %5758 = vmatprep.subr.mxu0 0.0
  %5759 = vmatpush1.msra.mxu0 0.0
  %5760 = vmatprep.subr.mxu0 0.0
  %5761 = vmatpush1.msra.mxu0 0.0
  %5762 = vmatprep.subr.mxu0 0.0
  %5763 = vmatpush1.msra.mxu0 0.0
  %5764 = vmatprep.subr.mxu0 0.0
  %5765 = vmatpush1.msra.mxu0 0.0
  %5766 = vmatprep.subr.mxu0 0.0
  %5767 = vmatpush1.msra.mxu0 0.0
  %5768 = vmatprep.subr.mxu0 0.0
  %5769 = vmatpush1.msra.mxu0 0.0
  %5770 = vmatprep.subr.mxu0 0.0
  %5771 = vmatpush1.msra.mxu0 0.0
  %5772 = vmatprep.subr.mxu0 0.0
  %5773 = vmatpush1.msra.mxu0 0.0
  %5774 = vmatprep.subr.mxu0 0.0
  %5775 = vmatpush1.msra.mxu0 0.0
  %5776 = vmatprep.subr.mxu0 0.0
  %5777 = vmatpush1.msra.mxu0 0.0
  %5778 = vmatprep.subr.mxu0 0.0
  %5779 = vmatpush1.msra.mxu0 0.0
  %5780 = vmatprep.subr.mxu0 0.0
  %5781 = vmatpush1.msra.mxu0 0.0
  %5782 = vmatprep.subr.mxu0 0.0
  %5783 = vmatpush1.msra.mxu0 0.0
  %5784 = vmatprep.subr.mxu0 0.0
  %5785 = vmatpush1.msra.mxu0 0.0
  %5786 = vmatprep.subr.mxu0 0.0
  %5787 = vmatpush1.msra.mxu0 0.0
  %5788 = vmatprep.mubr.f32.mxu0 0.0
  %5789 = vmatmul.mubr.f32.gmra.mrb[0].mxu0 %v5677
  %v5790 = vpop.f32.mrb[0].mxu0
  %v5791 = vadd.f32 %v5717, %v5790
  %v5792 = vpop.f32.mrb[0].mxu0
  %v5793 = vadd.f32 %v5721, %v5792
  %5794 = vmatprep.mubr.f32.mxu0 0.0
  %5795 = vmatmul.mubr.f32.gmra.mrb[0].mxu0 %v5678
  %v5796 = vpop.f32.mrb[0].mxu0
  %v5797 = vadd.f32 %v5717, %v5796
  %v5798 = vpop.f32.mrb[0].mxu0
  %v5799 = vadd.f32 %v5721, %v5798
  %5800 = vmatprep.mubr.f32.mxu0 0.0
  %5801 = vmatmul.mubr.f32.gmra.mrb[0].mxu0 %v5679
  %v5802 = vpop.f32.mrb[0].mxu0
  %v5803 = vadd.f32 %v5717, %v5802
  %v5804 = vpop.f32.mrb[0].mxu0
  %v5805 = vadd.f32 %v5721, %v5804
  %5806 = vdwg.mxu0
  %v5807 = vmul.f32 %v5791, 0.5
  %v5808 = vmul.f32 %v5793, 0.5
  %v5809 = vmul.f32 %v5797, 0.5
  %v5810 = vmul.f32 %v5799, 0.5
  %v5811 = vmul.f32 %v5803, 0.5
  %v5812 = vmul.f32 %v5805, 0.5
  %v5813 = vmul.f32 %v5791, %v5791
  %v5814 = vmul.f32 %v5793, %v5793
  %v5815 = vmul.f32 %v5797, %v5797
  %v5816 = vmul.f32 %v5799, %v5799
  %v5817 = vmul.f32 %v5803, %v5803
  %v5818 = vmul.f32 %v5805, %v5805
  %v5819 = vmul.f32 %v5813, %v5791
  %v5820 = vmul.f32 %v5814, %v5793
  %v5821 = vmul.f32 %v5815, %v5797
  %v5822 = vmul.f32 %v5816, %v5799
  %v5823 = vmul.f32 %v5817, %v5803
  %v5824 = vmul.f32 %v5818, %v5805
  %v5825 = vmul.f32 %v5819, 0.044715
  %v5826 = vmul.f32 %v5820, 0.044715
  %v5827 = vmul.f32 %v5821, 0.044715
  %v5828 = vmul.f32 %v5822, 0.044715
  %v5829 = vmul.f32 %v5823, 0.044715
  %v5830 = vmul.f32 %v5824, 0.044715
  %v5831 = vadd.f32 %v5791, %v5825
  %v5832 = vadd.f32 %v5793, %v5826
  %v5833 = vadd.f32 %v5797, %v5827
  %v5834 = vadd.f32 %v5799, %v5828
  %v5835 = vadd.f32 %v5803, %v5829
  %v5836 = vadd.f32 %v5805, %v5830
  %v5837 = vmul.f32 %v5831, 0.7978846
  %v5838 = vmul.f32 %v5832, 0.7978846
  %v5839 = vmul.f32 %v5833, 0.7978846
  %v5840 = vmul.f32 %v5834, 0.7978846
  %v5841 = vmul.f32 %v5835, 0.7978846
  %v5842 = vmul.f32 %v5836, 0.7978846
  %v5843 = vtanh.pop %v5837
  %v5844 = vtanh.pop %v5838
  %v5845 = vtanh.pop %v5839
  %v5846 = vtanh.pop %v5840
  %v5847 = vtanh.pop %v5841
  %v5848 = vtanh.pop %v5842
  %v5849 = vadd.f32 %v5843, 1.0
  %v5850 = vadd.f32 %v5844, 1.0
  %v5851 = vadd.f32 %v5845, 1.0
  %v5852 = vadd.f32 %v5846, 1.0
  %v5853 = vadd.f32 %v5847, 1.0
  %v5854 = vadd.f32 %v5848, 1.0
  %v5855 = vmul.f32 %v5807, %v5849
  %v5856 = vmul.f32 %v5808, %v5850
  %v5857 = vmul.f32 %v5809, %v5851
  %v5858 = vmul.f32 %v5810, %v5852
  %v5859 = vmul.f32 %v5811, %v5853
  %v5860 = vmul.f32 %v5812, %v5854
  %v5861 = vld [vmem:[%s15] sm:$0xff]
  %v5862 = vld [vmem:[%s15 + $0x8] sm:$0xff]
  %v5863 = vld [vmem:[%s15 + $0x10] sm:$0xff]
  %v5864 = vld [vmem:[%s15 + $0x18] sm:$0xff]
  %v5865 = vld [vmem:[%s15 + $0x20] sm:$0xff]
  %v5866 = vld [vmem:[%s15 + $0x28] sm:$0xff]
  %v5867 = vld [vmem:[%s15 + $0x30] sm:$0xff]
  %v5868 = vld [vmem:[%s15 + $0x38] sm:$0xff]
  %v5869 = vld [vmem:[%s15 + $0x40] sm:$0xff]
  %v5870 = vld [vmem:[%s15 + $0x48] sm:$0xff]
  %v5871 = vld [vmem:[%s15 + $0x50] sm:$0xff]
  %v5872 = vld [vmem:[%s15 + $0x58] sm:$0xff]
  %v5873 = vld [vmem:[%s15 + $0x60] sm:$0xff]
  %v5874 = vld [vmem:[%s15 + $0x68] sm:$0xff]
  %v5875 = vld [vmem:[%s15 + $0x70] sm:$0xff]
  %v5876 = vld [vmem:[%s15 + $0x78] sm:$0xff]
  %v5877 = vld [vmem:[%s15 + $0x80] sm:$0xff]
  %v5878 = vld [vmem:[%s15 + $0x88] sm:$0xff]
  %v5879 = vld [vmem:[%s15 + $0x90] sm:$0xff]
  %v5880 = vld [vmem:[%s15 + $0x98] sm:$0xff]
  %v5881 = vld [vmem:[%s15 + $0xa0] sm:$0xff]
  %v5882 = vld [vmem:[%s15 + $0xa8] sm:$0xff]
  %v5883 = vld [vmem:[%s15 + $0xb0] sm:$0xff]
  %v5884 = vld [vmem:[%s15 + $0xb8] sm:$0xff]
  %v5885 = vld [vmem:[%s15 + $0xc0] sm:$0xff]
  %v5886 = vld [vmem:[%s15 + $0xc8] sm:$0xff]
  %v5887 = vld [vmem:[%s15 + $0xd0] sm:$0xff]
  %v5888 = vld [vmem:[%s15 + $0xd8] sm:$0xff]
  %v5889 = vld [vmem:[%s15 + $0xe0] sm:$0xff]
  %v5890 = vld [vmem:[%s15 + $0xe8] sm:$0xff]
  %v5891 = vld [vmem:[%s15 + $0xf0] sm:$0xff]
  %v5892 = vld [vmem:[%s15 + $0xf8] sm:$0xff]
  %5893 = vmatprep.subr.mxu0 0.0
  %5894 = vmatpush1.msra.mxu0 %v5861
  %5895 = vmatprep.subr.mxu0 0.0
  %5896 = vmatpush1.msra.mxu0 %v5862
  %5897 = vmatprep.subr.mxu0 0.0
  %5898 = vmatpush1.msra.mxu0 %v5863
  %5899 = vmatprep.subr.mxu0 0.0
  %5900 = vmatpush1.msra.mxu0 %v5864
  %5901 = vmatprep.subr.mxu0 0.0
  %5902 = vmatpush1.msra.mxu0 %v5865
  %5903 = vmatprep.subr.mxu0 0.0
  %5904 = vmatpush1.msra.mxu0 %v5866
  %5905 = vmatprep.subr.mxu0 0.0
  %5906 = vmatpush1.msra.mxu0 %v5867
  %5907 = vmatprep.subr.mxu0 0.0
  %5908 = vmatpush1.msra.mxu0 %v5868
  %5909 = vmatprep.subr.mxu0 0.0
  %5910 = vmatpush1.msra.mxu0 %v5869
  %5911 = vmatprep.subr.mxu0 0.0
  %5912 = vmatpush1.msra.mxu0 %v5870
  %5913 = vmatprep.subr.mxu0 0.0
  %5914 = vmatpush1.msra.mxu0 %v5871
  %5915 = vmatprep.subr.mxu0 0.0
  %5916 = vmatpush1.msra.mxu0 %v5872
  %5917 = vmatprep.subr.mxu0 0.0
  %5918 = vmatpush1.msra.mxu0 %v5873
  %5919 = vmatprep.subr.mxu0 0.0
  %5920 = vmatpush1.msra.mxu0 %v5874
  %5921 = vmatprep.subr.mxu0 0.0
  %5922 = vmatpush1.msra.mxu0 %v5875
  %5923 = vmatprep.subr.mxu0 0.0
  %5924 = vmatpush1.msra.mxu0 %v5876
  %5925 = vmatprep.subr.mxu0 0.0
  %5926 = vmatpush1.msra.mxu0 %v5877
  %5927 = vmatprep.subr.mxu0 0.0
  %5928 = vmatpush1.msra.mxu0 %v5878
  %5929 = vmatprep.subr.mxu0 0.0
  %5930 = vmatpush1.msra.mxu0 %v5879
  %5931 = vmatprep.subr.mxu0 0.0
  %5932 = vmatpush1.msra.mxu0 %v5880
  %5933 = vmatprep.subr.mxu0 0.0
  %5934 = vmatpush1.msra.mxu0 %v5881
  %5935 = vmatprep.subr.mxu0 0.0
  %5936 = vmatpush1.msra.mxu0 %v5882
  %5937 = vmatprep.subr.mxu0 0.0
  %5938 = vmatpush1.msra.mxu0 %v5883
  %5939 = vmatprep.subr.mxu0 0.0
  %5940 = vmatpush1.msra.mxu0 %v5884
  %5941 = vmatprep.subr.mxu0 0.0
  %5942 = vmatpush1.msra.mxu0 %v5885
  %5943 = vmatprep.subr.mxu0 0.0
  %5944 = vmatpush1.msra.mxu0 %v5886
  %5945 = vmatprep.subr.mxu0 0.0
  %5946 = vmatpush1.msra.mxu0 %v5887
  %5947 = vmatprep.subr.mxu0 0.0
  %5948 = vmatpush1.msra.mxu0 %v5888
  %5949 = vmatprep.subr.mxu0 0.0
  %5950 = vmatpush1.msra.mxu0 %v5889
  %5951 = vmatprep.subr.mxu0 0.0
  %5952 = vmatpush1.msra.mxu0 %v5890
  %5953 = vmatprep.subr.mxu0 0.0
  %5954 = vmatpush1.msra.mxu0 %v5891
  %5955 = vmatprep.subr.mxu0 0.0
  %5956 = vmatpush1.msra.mxu0 %v5892
  %5957 = vmatprep.mubr.f32.mxu0 %v5856
  %5958 = vmatmul.mubr.f32.gmra.mrb[0].mxu0 %v5855
  %v5959 = vpop.f32.mrb[0].mxu0
  %v5960 = vadd.f32 0.0, %v5959
  %v5961 = vpop.f32.mrb[0].mxu0
  %5962 = vmatprep.mubr.f32.mxu0 %v5858
  %5963 = vmatmul.mubr.f32.gmra.mrb[0].mxu0 %v5857
  %v5964 = vpop.f32.mrb[0].mxu0
  %v5965 = vadd.f32 0.0, %v5964
  %v5966 = vpop.f32.mrb[0].mxu0
  %5967 = vmatprep.mubr.f32.mxu0 %v5860
  %5968 = vmatmul.mubr.f32.gmra.mrb[0].mxu0 %v5859
  %v5969 = vpop.f32.mrb[0].mxu0
  %v5970 = vadd.f32 0.0, %v5969
  %v5971 = vpop.f32.mrb[0].mxu0
  %5972 = vdwg.mxu0
  %v5973 = vadd.f32 %v5622, %v5960
  %v5974 = vadd.f32 %v5623, %v5965
  %v5975 = vadd.f32 %v5624, %v5970
  %v5976 = vld [vmem:[%s16] sm:$0x1]
  %v5978 = vlaneseq
  %v5979 = vshrl.u32 %v5978, 7
  %v5980 = vsub.s32 0, %v5979
  %v5981 = vrot.slane %v5976, %v5980
  %v5983 = vadd.f32 %v5973, %v5981
  %v5984 = vadd.f32 %v5974, %v5981
  %v5985 = vadd.f32 %v5975, %v5981
  %s5986 = scalar_lea.vmem %s17, 24
  %5987 = vst [vmem:[%s5986] sm:$0xff] %v5983
  %5988 = vst [vmem:[%s5986 + $0x8] sm:$0xff] %v5984
  %5989 = vst [vmem:[%s5986 + $0x10] sm:$0x1] %v5985
  // Predicated region
  $region70: #{vit_forward_pallas.5} parent=0 // pred_check
    _
  $region71: #{vit_forward_pallas.5} parent=0 // pred_check_branch
    %5991 = sbr.rel (0) target = $region73
  $region72: #{vit_forward_pallas.5} parent=0 // pred_region
    _
  $region73: #{vit_forward_pallas.5} parent=0 // pred_fallthru
    _
  // Predicated region
  $region74: #{vit_forward_pallas.5} parent=0 // pred_check
    _
  $region75: #{vit_forward_pallas.5} parent=0 // pred_check_branch
    %5993 = sbr.rel (0) target = $region77
  $region76: #{vit_forward_pallas.5} parent=0 // pred_region
    _
  $region77: #{vit_forward_pallas.5} parent=0 // pred_fallthru
    _

</llo_original>
